<compile_context>
chip_gen: v7x
topology: tpu7x:2x2x1
jax: 0.10.0
libtpu: 0.0.40
codegen_flags: <defaults>
</compile_context>

<pallas_src>
import jax
import jax.numpy as jnp
from jax import lax
from jax.experimental import pallas as pl
from jax.experimental.pallas import tpu as pltpu


# ----------------------------------------------------------------------------
# Pallas kernels
# ----------------------------------------------------------------------------
def _conv_relu_pool_kernel(p_ref, w_ref, b_ref, o_ref):
    """Fused conv (one MXU matmul) + 2x2 max-pool + bias + ReLU, batch tile.

    p_ref: (Bt, K, 4*Lp) bf16  im2col patches; columns ordered
                               [quadrant * Lp + pooled_pixel], Lp % 128 == 0.
    w_ref: (Cout, K)     bf16  conv weight as a matrix (K = Cin*kh*kw, padded).
    b_ref: (Cout, 1)     f32   bias (broadcasts along lanes).
    o_ref: (Bt, Cout, Lp) bf16 pooled NCHW output (lane-dense, padded Lp).
    """
    w = w_ref[...]
    b = b_ref[...]
    lp = o_ref.shape[2]
    for i in range(p_ref.shape[0]):                  # static batch-tile unroll
        # One MXU push covers all 4 pool quadrants; f32 accumulation.
        m = jnp.dot(w, p_ref[i], preferred_element_type=jnp.float32)
        # Quadrant max via lane-aligned slices (Lp is a multiple of 128).
        m = jnp.maximum(
            jnp.maximum(m[:, 0 * lp:1 * lp], m[:, 1 * lp:2 * lp]),
            jnp.maximum(m[:, 2 * lp:3 * lp], m[:, 3 * lp:4 * lp]))
        # maxpool(relu(conv + b)) == relu(max_q(conv_q) + b).
        o_ref[i] = jnp.maximum(m + b, 0.0).astype(o_ref.dtype)


def _fc_head_kernel(x_ref, w1_ref, b1_ref, w2_ref, b2_ref, o_ref):
    """Fused fc1 + ReLU + fc2 for one batch-row tile. bf16 operands, f32 acc."""
    h = jnp.dot(x_ref[...], w1_ref[...], preferred_element_type=jnp.float32)
    h = jnp.maximum(h + b1_ref[...], 0.0)
    o_ref[...] = jnp.dot(h, w2_ref[...],
                         preferred_element_type=jnp.float32) + b2_ref[...]


# ----------------------------------------------------------------------------
# XLA-side patch construction (single pass of strided slices, bf16)
# ----------------------------------------------------------------------------
def _pool_quadrant_patches(x, k, k_pad, l_pad):
    """(N,Cin,H,W) -> (N, k_pad, 4*l_pad) quadrant-grouped im2col patches.

      out[n, ci*k*k + di*k + dj, (2a+b)*l_pad + ph*Wp + pw]
        = x[n, ci, 2ph + a + di, 2pw + b + dj]
    K ordering (ci, di, dj) matches torch's conv weight flattened as
    (Cout, Cin*k*k); K and per-quadrant L are zero-padded.
    """
    n, cin, h, w = x.shape
    ho, wo = h - k + 1, w - k + 1
    assert ho % 2 == 0 and wo % 2 == 0, "floor-mode pool tail not supported"
    hp, wp = ho // 2, wo // 2
    l_pix = hp * wp
    kk = cin * k * k
    quad_blocks = []
    for a in range(2):
        for b in range(2):
            taps = [
                lax.slice(x,
                          (0, 0, a + di, b + dj),
                          (n, cin, a + di + 2 * hp - 1, b + dj + 2 * wp - 1),
                          (1, 1, 2, 2))                    # (N, Cin, Hp, Wp)
                for di in range(k) for dj in range(k)
            ]
            q = jnp.stack(taps, axis=2)                    # (N, Cin, k*k, Hp, Wp)
            q = q.reshape(n, kk, l_pix)                    # K=(ci,di,dj), L=(ph,pw)
            q = jnp.pad(q, ((0, 0), (0, k_pad - kk), (0, l_pad - l_pix)))
            quad_blocks.append(q)
    return jnp.concatenate(quad_blocks, axis=-1)           # (N, k_pad, 4*l_pad)


# ----------------------------------------------------------------------------
# Wrappers
# ----------------------------------------------------------------------------
def conv_relu_pool(x_nchw, w_mat, b_col, *, k=3, batch_tile=8):
    """x: (N, Cin, H, W) -> maxpool2x2(relu(conv(x))) as (N, Cout, Ho/2, Wo/2)."""
    n, _, h, w = x_nchw.shape
    cout, k_pad = w_mat.shape
    ho, wo = h - k + 1, w - k + 1
    hp, wp = ho // 2, wo // 2
    l_pix = hp * wp
    l_pad = ((l_pix + 127) // 128) * 128                   # lane-dense stores
    bt = min(batch_tile, n)                                # v7x-safe block size
    n_pad = ((n + bt - 1) // bt) * bt

    quads = _pool_quadrant_patches(x_nchw.astype(jnp.bfloat16), k, k_pad, l_pad)
    if n_pad > n:
        quads = jnp.pad(quads, ((0, n_pad - n), (0, 0), (0, 0)))

    out = pl.pallas_call(
        _conv_relu_pool_kernel,
        out_shape=jax.ShapeDtypeStruct((n_pad, cout, l_pad), jnp.bfloat16),
        grid=(n_pad // bt,),
        in_specs=[
            pl.BlockSpec((bt, k_pad, 4 * l_pad), lambda i: (i, 0, 0)),
            pl.BlockSpec((cout, k_pad), lambda i: (0, 0)),   # weight resident
            pl.BlockSpec((cout, 1), lambda i: (0, 0)),       # bias resident
        ],
        out_specs=pl.BlockSpec((bt, cout, l_pad), lambda i: (i, 0, 0)),
        compiler_params=pltpu.CompilerParams(
            dimension_semantics=("parallel",),
        ),
    )(quads, w_mat, b_col)
    return out[:n, :, :l_pix].reshape(n, cout, hp, wp)


def fc_head(x_flat, w1, b1, w2, b2, *, row_tile=128):
    """x_flat: (N, 8512) -> fc2(relu(fc1(x))) -> (N, 5) f32, one fused kernel
    gridded over batch-row tiles with the fc weights VMEM-resident."""
    n, d = x_flat.shape
    bt = n if n <= row_tile else row_tile
    n_pad = ((n + bt - 1) // bt) * bt
    xb = x_flat.astype(jnp.bfloat16)
    if n_pad > n:
        xb = jnp.pad(xb, ((0, n_pad - n), (0, 0)))

    out = pl.pallas_call(
        _fc_head_kernel,
        out_shape=jax.ShapeDtypeStruct((n_pad, w2.shape[1]), jnp.float32),
        grid=(n_pad // bt,),
        in_specs=[
            pl.BlockSpec((bt, d), lambda i: (i, 0)),
            pl.BlockSpec(w1.shape, lambda i: (0, 0)),        # fc1 W resident
            pl.BlockSpec(b1.shape, lambda i: (0, 0)),
            pl.BlockSpec(w2.shape, lambda i: (0, 0)),
            pl.BlockSpec(b2.shape, lambda i: (0, 0)),
        ],
        out_specs=pl.BlockSpec((bt, w2.shape[1]), lambda i: (i, 0)),
        compiler_params=pltpu.CompilerParams(
            dimension_semantics=("parallel",),
        ),
    )(xb, w1, b1, w2, b2)
    return out[:n]


def conv_nn_forward(x_nchw, kp):
    """Equivalent of ConvolutionalNN.forward; input is NCHW like PyTorch."""
    a = conv_relu_pool(x_nchw, kp["c1w"], kp["c1b"])   # (N, 16, 30, 40)
    a = conv_relu_pool(a, kp["c2w"], kp["c2b"])        # (N, 32, 14, 19)
    a = a.reshape(a.shape[0], -1)                      # == torch x.view(B, -1)
    return fc_head(a, kp["f1w"], kp["f1b"], kp["f2w"], kp["f2b"])


# ----------------------------------------------------------------------------
# One-time parameter preparation (PyTorch layouts -> kernel layouts)
# ----------------------------------------------------------------------------
def prepare_params(params):
    """Matmul operands bf16, biases/epilogue f32, conv K padded to mult of 8."""
    def conv_w(w):
        cout = w.shape[0]
        kk = w.shape[1] * w.shape[2] * w.shape[3]
        k_pad = ((kk + 7) // 8) * 8
        wm = w.reshape(cout, kk)
        if k_pad > kk:
            wm = jnp.pad(wm, ((0, 0), (0, k_pad - kk)))
        return wm.astype(jnp.bfloat16)

    return {
        "c1w": conv_w(params["conv1_w"]),
        "c1b": params["conv1_b"].reshape(-1, 1).astype(jnp.float32),
        "c2w": conv_w(params["conv2_w"]),
        "c2b": params["conv2_b"].reshape(-1, 1).astype(jnp.float32),
        # Activations flatten in NCHW order (same as torch view(B, -1)), so
        # fc1's weight needs only a transpose, no column permutation.
        "f1w": params["fc1_w"].T.astype(jnp.bfloat16),   # (8512, 200)
        "f1b": params["fc1_b"].reshape(1, -1).astype(jnp.float32),
        "f2w": params["fc2_w"].T.astype(jnp.float32),    # (200, 5): tiny, f32
        "f2b": params["fc2_b"].reshape(1, -1).astype(jnp.float32),
    }


# ----------------------------------------------------------------------------
# Deterministic parameter init (same shapes as the PyTorch module)
# ----------------------------------------------------------------------------
def init_params(key):
    ks = jax.random.split(key, 8)

    def u(k, shape, fan_in):
        bound = 1.0 / jnp.sqrt(jnp.float32(fan_in))
        return jax.random.uniform(k, shape, jnp.float32, -bound, bound)

    flat = 32 * 14 * 19  # 8512
    return {
        "conv1_w": u(ks[0], (16, 3, 3, 3), 3 * 9),
        "conv1_b": u(ks[1], (16,), 3 * 9),
        "conv2_w": u(ks[2], (32, 16, 3, 3), 16 * 9),
        "conv2_b": u(ks[3], (32,), 16 * 9),
        "fc1_w": u(ks[4], (200, flat), flat),   # torch Linear: (out, in)
        "fc1_b": u(ks[5], (200,), flat),
        "fc2_w": u(ks[6], (5, 200), 200),
        "fc2_b": u(ks[7], (5,), 200),
    }


# ----------------------------------------------------------------------------
# Plain-JAX f32 reference of ConvolutionalNN.forward (for validation)
# ----------------------------------------------------------------------------
def reference_forward(x, params):
    hi = lax.Precision.HIGHEST

    def conv(a, w, b):
        out = lax.conv_general_dilated(
            a, w, window_strides=(1, 1), padding="VALID",
            dimension_numbers=("NCHW", "OIHW", "NCHW"), precision=hi)
        return out + b[None, :, None, None]

    def pool(a):
        return lax.reduce_window(a, -jnp.inf, lax.max,
                                 (1, 1, 2, 2), (1, 1, 2, 2), "VALID")

    a = pool(jax.nn.relu(conv(x, params["conv1_w"], params["conv1_b"])))
    a = pool(jax.nn.relu(conv(a, params["conv2_w"], params["conv2_b"])))
    a = a.reshape(a.shape[0], -1)
    a = jax.nn.relu(jnp.dot(a, params["fc1_w"].T, precision=hi)
                    + params["fc1_b"])
    return jnp.dot(a, params["fc2_w"].T, precision=hi) + params["fc2_b"]


if __name__ == "__main__":
    key = jax.random.PRNGKey(0)
    pkey, xkey = jax.random.split(key)
    params = init_params(pkey)
    kparams = prepare_params(params)

    # Input spatial size 62x82 so the flatten is exactly 32*14*19 as in fc1.
    x = jax.random.normal(xkey, (2, 3, 62, 82), jnp.float32)

    fwd = jax.jit(conv_nn_forward)
    out = jax.block_until_ready(fwd(x, kparams))
    assert out.shape == (2, 5) and out.dtype == jnp.float32

    # Validate against the f32 reference (bf16 matmul operands -> loose tol).
    ref = reference_forward(x, params)
    err = float(jnp.max(jnp.abs(out - ref)))
    assert err < 3e-2, f"max abs err {err}"

    print("KERNEL_OK")
</pallas_src>

<mosaic_0001>
module attributes {stable_mosaic.version = 11 : i64} {
  func.func @_conv_relu_pool_kernel(%arg0: i32, %arg1: memref<2x32x5120xbf16, #tpu.memory_space<vmem>>, %arg2: memref<16x32xbf16, #tpu.memory_space<vmem>>, %arg3: memref<16x1xf32, #tpu.memory_space<vmem>>, %arg4: memref<2x16x1280xbf16, #tpu.memory_space<vmem>>) attributes {dimension_semantics = [#tpu.dimension_semantics<parallel>], iteration_bounds = array<i64: 1>, scalar_prefetch = 0 : i64, scratch_operands = 0 : i64, tpu.core_type = #tpu.core_type<tc>, window_params = [{transform_indices = @transform_0, window_bounds = array<i64: 2, 32, 5120>}, {pipeline_mode = #tpu.pipeline_mode<synchronous>, transform_indices = @transform_1, window_bounds = array<i64: 16, 32>}, {pipeline_mode = #tpu.pipeline_mode<synchronous>, transform_indices = @transform_2, window_bounds = array<i64: 16, 1>}, {transform_indices = @transform_3, window_bounds = array<i64: 2, 16, 1280>}]} {
    %c0 = arith.constant 0 : index
    %c0_0 = arith.constant 0 : index
    %0 = vector.load %arg2[%c0, %c0_0] : memref<16x32xbf16, #tpu.memory_space<vmem>>, vector<16x32xbf16>
    %c0_1 = arith.constant 0 : index
    %c0_2 = arith.constant 0 : index
    %1 = vector.load %arg3[%c0_1, %c0_2] : memref<16x1xf32, #tpu.memory_space<vmem>>, vector<16x1xf32>
    %c0_3 = arith.constant 0 : index
    %c0_4 = arith.constant 0 : index
    %c0_5 = arith.constant 0 : index
    %2 = vector.load %arg1[%c0_3, %c0_4, %c0_5] : memref<2x32x5120xbf16, #tpu.memory_space<vmem>>, vector<1x32x5120xbf16>
    %3 = vector.shape_cast %2 : vector<1x32x5120xbf16> to vector<32x5120xbf16>
    %cst = arith.constant dense<0.000000e+00> : vector<16x5120xf32>
    %4 = tpu.matmul %0, %3, %cst {dimension_numbers = #tpu.dot_dimension_numbers<[1], [0], [0], [1], [0, 0, 1, 1], [], []>} : vector<16x32xbf16>, vector<32x5120xbf16>, vector<16x5120xf32> -> vector<16x5120xf32>
    %5 = vector.extract_strided_slice %4 {offsets = [0, 0], sizes = [16, 1280], strides = [1, 1]} : vector<16x5120xf32> to vector<16x1280xf32>
    %6 = vector.extract_strided_slice %4 {offsets = [0, 1280], sizes = [16, 1280], strides = [1, 1]} : vector<16x5120xf32> to vector<16x1280xf32>
    %7 = arith.maximumf %5, %6 : vector<16x1280xf32>
    %8 = vector.extract_strided_slice %4 {offsets = [0, 2560], sizes = [16, 1280], strides = [1, 1]} : vector<16x5120xf32> to vector<16x1280xf32>
    %9 = vector.extract_strided_slice %4 {offsets = [0, 3840], sizes = [16, 1280], strides = [1, 1]} : vector<16x5120xf32> to vector<16x1280xf32>
    %10 = arith.maximumf %8, %9 : vector<16x1280xf32>
    %11 = arith.maximumf %7, %10 : vector<16x1280xf32>
    %12 = vector.broadcast %1 : vector<16x1xf32> to vector<16x1280xf32>
    %13 = arith.addf %11, %12 : vector<16x1280xf32>
    %cst_6 = arith.constant 0.000000e+00 : f32
    %14 = vector.broadcast %cst_6 : f32 to vector<16x1280xf32>
    %15 = arith.maximumf %13, %14 : vector<16x1280xf32>
    %16 = arith.truncf %15 : vector<16x1280xf32> to vector<16x1280xbf16>
    %c0_7 = arith.constant 0 : index
    %c0_8 = arith.constant 0 : index
    %c0_9 = arith.constant 0 : index
    %17 = vector.load %arg4[%c0_7, %c0_8, %c0_9] : memref<2x16x1280xbf16, #tpu.memory_space<vmem>>, vector<1x16x1280xbf16>
    %18 = vector.shape_cast %17 : vector<1x16x1280xbf16> to vector<16x1280xbf16>
    %19 = vector.shape_cast %16 : vector<16x1280xbf16> to vector<1x16x1280xbf16>
    tpu.vector_store %arg4[%c0_7, %c0_8, %c0_9], %19 {strides = array<i32>} : memref<2x16x1280xbf16, #tpu.memory_space<vmem>>, vector<1x16x1280xbf16>,
    %c1 = arith.constant 1 : index
    %c0_10 = arith.constant 0 : index
    %c0_11 = arith.constant 0 : index
    %20 = vector.load %arg1[%c1, %c0_10, %c0_11] : memref<2x32x5120xbf16, #tpu.memory_space<vmem>>, vector<1x32x5120xbf16>
    %21 = vector.shape_cast %20 : vector<1x32x5120xbf16> to vector<32x5120xbf16>
    %cst_12 = arith.constant dense<0.000000e+00> : vector<16x5120xf32>
    %22 = tpu.matmul %0, %21, %cst_12 {dimension_numbers = #tpu.dot_dimension_numbers<[1], [0], [0], [1], [0, 0, 1, 1], [], []>} : vector<16x32xbf16>, vector<32x5120xbf16>, vector<16x5120xf32> -> vector<16x5120xf32>
    %23 = vector.extract_strided_slice %22 {offsets = [0, 0], sizes = [16, 1280], strides = [1, 1]} : vector<16x5120xf32> to vector<16x1280xf32>
    %24 = vector.extract_strided_slice %22 {offsets = [0, 1280], sizes = [16, 1280], strides = [1, 1]} : vector<16x5120xf32> to vector<16x1280xf32>
    %25 = arith.maximumf %23, %24 : vector<16x1280xf32>
    %26 = vector.extract_strided_slice %22 {offsets = [0, 2560], sizes = [16, 1280], strides = [1, 1]} : vector<16x5120xf32> to vector<16x1280xf32>
    %27 = vector.extract_strided_slice %22 {offsets = [0, 3840], sizes = [16, 1280], strides = [1, 1]} : vector<16x5120xf32> to vector<16x1280xf32>
    %28 = arith.maximumf %26, %27 : vector<16x1280xf32>
    %29 = arith.maximumf %25, %28 : vector<16x1280xf32>
    %30 = vector.broadcast %1 : vector<16x1xf32> to vector<16x1280xf32>
    %31 = arith.addf %29, %30 : vector<16x1280xf32>
    %cst_13 = arith.constant 0.000000e+00 : f32
    %32 = vector.broadcast %cst_13 : f32 to vector<16x1280xf32>
    %33 = arith.maximumf %31, %32 : vector<16x1280xf32>
    %34 = arith.truncf %33 : vector<16x1280xf32> to vector<16x1280xbf16>
    %c1_14 = arith.constant 1 : index
    %c0_15 = arith.constant 0 : index
    %c0_16 = arith.constant 0 : index
    %35 = vector.load %arg4[%c1_14, %c0_15, %c0_16] : memref<2x16x1280xbf16, #tpu.memory_space<vmem>>, vector<1x16x1280xbf16>
    %36 = vector.shape_cast %35 : vector<1x16x1280xbf16> to vector<16x1280xbf16>
    %37 = vector.shape_cast %34 : vector<16x1280xbf16> to vector<1x16x1280xbf16>
    tpu.vector_store %arg4[%c1_14, %c0_15, %c0_16], %37 {strides = array<i32>} : memref<2x16x1280xbf16, #tpu.memory_space<vmem>>, vector<1x16x1280xbf16>,
    return
  }
  func.func @transform_0(%arg0: i32) -> (i32, i32, i32) {
    %c0_i32 = arith.constant 0 : i32
    %c0_i32_0 = arith.constant 0 : i32
    %c0_i32_1 = arith.constant 0 : i32
    return %arg0, %c0_i32, %c0_i32_0 : i32, i32, i32
  }
  func.func @transform_1(%arg0: i32) -> (i32, i32) {
    %c0_i32 = arith.constant 0 : i32
    %c0_i32_0 = arith.constant 0 : i32
    %c0_i32_1 = arith.constant 0 : i32
    return %c0_i32, %c0_i32_0 : i32, i32
  }
  func.func @transform_2(%arg0: i32) -> (i32, i32) {
    %c0_i32 = arith.constant 0 : i32
    %c0_i32_0 = arith.constant 0 : i32
    %c0_i32_1 = arith.constant 0 : i32
    return %c0_i32, %c0_i32_0 : i32, i32
  }
  func.func @transform_3(%arg0: i32) -> (i32, i32, i32) {
    %c0_i32 = arith.constant 0 : i32
    %c0_i32_0 = arith.constant 0 : i32
    %c0_i32_1 = arith.constant 0 : i32
    return %arg0, %c0_i32, %c0_i32_0 : i32, i32, i32
  }
}

module attributes {stable_mosaic.version = 11 : i64} {
  func.func @_conv_relu_pool_kernel(%arg0: i32, %arg1: memref<2x144x1536xbf16, #tpu.memory_space<vmem>>, %arg2: memref<32x144xbf16, #tpu.memory_space<vmem>>, %arg3: memref<32x1xf32, #tpu.memory_space<vmem>>, %arg4: memref<2x32x384xbf16, #tpu.memory_space<vmem>>) attributes {dimension_semantics = [#tpu.dimension_semantics<parallel>], iteration_bounds = array<i64: 1>, scalar_prefetch = 0 : i64, scratch_operands = 0 : i64, tpu.core_type = #tpu.core_type<tc>, window_params = [{transform_indices = @transform_0, window_bounds = array<i64: 2, 144, 1536>}, {pipeline_mode = #tpu.pipeline_mode<synchronous>, transform_indices = @transform_1, window_bounds = array<i64: 32, 144>}, {pipeline_mode = #tpu.pipeline_mode<synchronous>, transform_indices = @transform_2, window_bounds = array<i64: 32, 1>}, {transform_indices = @transform_3, window_bounds = array<i64: 2, 32, 384>}]} {
    %c0 = arith.constant 0 : index
    %c0_0 = arith.constant 0 : index
    %0 = vector.load %arg2[%c0, %c0_0] : memref<32x144xbf16, #tpu.memory_space<vmem>>, vector<32x144xbf16>
    %c0_1 = arith.constant 0 : index
    %c0_2 = arith.constant 0 : index
    %1 = vector.load %arg3[%c0_1, %c0_2] : memref<32x1xf32, #tpu.memory_space<vmem>>, vector<32x1xf32>
    %c0_3 = arith.constant 0 : index
    %c0_4 = arith.constant 0 : index
    %c0_5 = arith.constant 0 : index
    %2 = vector.load %arg1[%c0_3, %c0_4, %c0_5] : memref<2x144x1536xbf16, #tpu.memory_space<vmem>>, vector<1x144x1536xbf16>
    %3 = vector.shape_cast %2 : vector<1x144x1536xbf16> to vector<144x1536xbf16>
    %cst = arith.constant dense<0.000000e+00> : vector<32x1536xf32>
    %4 = tpu.matmul %0, %3, %cst {dimension_numbers = #tpu.dot_dimension_numbers<[1], [0], [0], [1], [0, 0, 1, 1], [], []>} : vector<32x144xbf16>, vector<144x1536xbf16>, vector<32x1536xf32> -> vector<32x1536xf32>
    %5 = vector.extract_strided_slice %4 {offsets = [0, 0], sizes = [32, 384], strides = [1, 1]} : vector<32x1536xf32> to vector<32x384xf32>
    %6 = vector.extract_strided_slice %4 {offsets = [0, 384], sizes = [32, 384], strides = [1, 1]} : vector<32x1536xf32> to vector<32x384xf32>
    %7 = arith.maximumf %5, %6 : vector<32x384xf32>
    %8 = vector.extract_strided_slice %4 {offsets = [0, 768], sizes = [32, 384], strides = [1, 1]} : vector<32x1536xf32> to vector<32x384xf32>
    %9 = vector.extract_strided_slice %4 {offsets = [0, 1152], sizes = [32, 384], strides = [1, 1]} : vector<32x1536xf32> to vector<32x384xf32>
    %10 = arith.maximumf %8, %9 : vector<32x384xf32>
    %11 = arith.maximumf %7, %10 : vector<32x384xf32>
    %12 = vector.broadcast %1 : vector<32x1xf32> to vector<32x384xf32>
    %13 = arith.addf %11, %12 : vector<32x384xf32>
    %cst_6 = arith.constant 0.000000e+00 : f32
    %14 = vector.broadcast %cst_6 : f32 to vector<32x384xf32>
    %15 = arith.maximumf %13, %14 : vector<32x384xf32>
    %16 = arith.truncf %15 : vector<32x384xf32> to vector<32x384xbf16>
    %c0_7 = arith.constant 0 : index
    %c0_8 = arith.constant 0 : index
    %c0_9 = arith.constant 0 : index
    %17 = vector.load %arg4[%c0_7, %c0_8, %c0_9] : memref<2x32x384xbf16, #tpu.memory_space<vmem>>, vector<1x32x384xbf16>
    %18 = vector.shape_cast %17 : vector<1x32x384xbf16> to vector<32x384xbf16>
    %19 = vector.shape_cast %16 : vector<32x384xbf16> to vector<1x32x384xbf16>
    tpu.vector_store %arg4[%c0_7, %c0_8, %c0_9], %19 {strides = array<i32>} : memref<2x32x384xbf16, #tpu.memory_space<vmem>>, vector<1x32x384xbf16>,
    %c1 = arith.constant 1 : index
    %c0_10 = arith.constant 0 : index
    %c0_11 = arith.constant 0 : index
    %20 = vector.load %arg1[%c1, %c0_10, %c0_11] : memref<2x144x1536xbf16, #tpu.memory_space<vmem>>, vector<1x144x1536xbf16>
    %21 = vector.shape_cast %20 : vector<1x144x1536xbf16> to vector<144x1536xbf16>
    %cst_12 = arith.constant dense<0.000000e+00> : vector<32x1536xf32>
    %22 = tpu.matmul %0, %21, %cst_12 {dimension_numbers = #tpu.dot_dimension_numbers<[1], [0], [0], [1], [0, 0, 1, 1], [], []>} : vector<32x144xbf16>, vector<144x1536xbf16>, vector<32x1536xf32> -> vector<32x1536xf32>
    %23 = vector.extract_strided_slice %22 {offsets = [0, 0], sizes = [32, 384], strides = [1, 1]} : vector<32x1536xf32> to vector<32x384xf32>
    %24 = vector.extract_strided_slice %22 {offsets = [0, 384], sizes = [32, 384], strides = [1, 1]} : vector<32x1536xf32> to vector<32x384xf32>
    %25 = arith.maximumf %23, %24 : vector<32x384xf32>
    %26 = vector.extract_strided_slice %22 {offsets = [0, 768], sizes = [32, 384], strides = [1, 1]} : vector<32x1536xf32> to vector<32x384xf32>
    %27 = vector.extract_strided_slice %22 {offsets = [0, 1152], sizes = [32, 384], strides = [1, 1]} : vector<32x1536xf32> to vector<32x384xf32>
    %28 = arith.maximumf %26, %27 : vector<32x384xf32>
    %29 = arith.maximumf %25, %28 : vector<32x384xf32>
    %30 = vector.broadcast %1 : vector<32x1xf32> to vector<32x384xf32>
    %31 = arith.addf %29, %30 : vector<32x384xf32>
    %cst_13 = arith.constant 0.000000e+00 : f32
    %32 = vector.broadcast %cst_13 : f32 to vector<32x384xf32>
    %33 = arith.maximumf %31, %32 : vector<32x384xf32>
    %34 = arith.truncf %33 : vector<32x384xf32> to vector<32x384xbf16>
    %c1_14 = arith.constant 1 : index
    %c0_15 = arith.constant 0 : index
    %c0_16 = arith.constant 0 : index
    %35 = vector.load %arg4[%c1_14, %c0_15, %c0_16] : memref<2x32x384xbf16, #tpu.memory_space<vmem>>, vector<1x32x384xbf16>
    %36 = vector.shape_cast %35 : vector<1x32x384xbf16> to vector<32x384xbf16>
    %37 = vector.shape_cast %34 : vector<32x384xbf16> to vector<1x32x384xbf16>
    tpu.vector_store %arg4[%c1_14, %c0_15, %c0_16], %37 {strides = array<i32>} : memref<2x32x384xbf16, #tpu.memory_space<vmem>>, vector<1x32x384xbf16>,
    return
  }
  func.func @transform_0(%arg0: i32) -> (i32, i32, i32) {
    %c0_i32 = arith.constant 0 : i32
    %c0_i32_0 = arith.constant 0 : i32
    %c0_i32_1 = arith.constant 0 : i32
    return %arg0, %c0_i32, %c0_i32_0 : i32, i32, i32
  }
  func.func @transform_1(%arg0: i32) -> (i32, i32) {
    %c0_i32 = arith.constant 0 : i32
    %c0_i32_0 = arith.constant 0 : i32
    %c0_i32_1 = arith.constant 0 : i32
    return %c0_i32, %c0_i32_0 : i32, i32
  }
  func.func @transform_2(%arg0: i32) -> (i32, i32) {
    %c0_i32 = arith.constant 0 : i32
    %c0_i32_0 = arith.constant 0 : i32
    %c0_i32_1 = arith.constant 0 : i32
    return %c0_i32, %c0_i32_0 : i32, i32
  }
  func.func @transform_3(%arg0: i32) -> (i32, i32, i32) {
    %c0_i32 = arith.constant 0 : i32
    %c0_i32_0 = arith.constant 0 : i32
    %c0_i32_1 = arith.constant 0 : i32
    return %arg0, %c0_i32, %c0_i32_0 : i32, i32, i32
  }
}

module attributes {stable_mosaic.version = 11 : i64} {
  func.func @_fc_head_kernel(%arg0: i32, %arg1: memref<2x8512xbf16, #tpu.memory_space<vmem>>, %arg2: memref<8512x200xbf16, #tpu.memory_space<vmem>>, %arg3: memref<1x200xf32, #tpu.memory_space<vmem>>, %arg4: memref<200x5xf32, #tpu.memory_space<vmem>>, %arg5: memref<1x5xf32, #tpu.memory_space<vmem>>, %arg6: memref<2x5xf32, #tpu.memory_space<vmem>>) attributes {dimension_semantics = [#tpu.dimension_semantics<parallel>], iteration_bounds = array<i64: 1>, scalar_prefetch = 0 : i64, scratch_operands = 0 : i64, tpu.core_type = #tpu.core_type<tc>, window_params = [{transform_indices = @transform_0, window_bounds = array<i64: 2, 8512>}, {pipeline_mode = #tpu.pipeline_mode<synchronous>, transform_indices = @transform_1, window_bounds = array<i64: 8512, 200>}, {pipeline_mode = #tpu.pipeline_mode<synchronous>, transform_indices = @transform_2, window_bounds = array<i64: 1, 200>}, {pipeline_mode = #tpu.pipeline_mode<synchronous>, transform_indices = @transform_3, window_bounds = array<i64: 200, 5>}, {pipeline_mode = #tpu.pipeline_mode<synchronous>, transform_indices = @transform_4, window_bounds = array<i64: 1, 5>}, {transform_indices = @transform_5, window_bounds = array<i64: 2, 5>}]} {
    %c0 = arith.constant 0 : index
    %c0_0 = arith.constant 0 : index
    %0 = vector.load %arg1[%c0, %c0_0] : memref<2x8512xbf16, #tpu.memory_space<vmem>>, vector<2x8512xbf16>
    %c0_1 = arith.constant 0 : index
    %c0_2 = arith.constant 0 : index
    %1 = vector.load %arg2[%c0_1, %c0_2] : memref<8512x200xbf16, #tpu.memory_space<vmem>>, vector<8512x200xbf16>
    %cst = arith.constant dense<0.000000e+00> : vector<2x200xf32>
    %2 = tpu.matmul %0, %1, %cst {dimension_numbers = #tpu.dot_dimension_numbers<[1], [0], [0], [1], [0, 0, 1, 1], [], []>} : vector<2x8512xbf16>, vector<8512x200xbf16>, vector<2x200xf32> -> vector<2x200xf32>
    %c0_3 = arith.constant 0 : index
    %c0_4 = arith.constant 0 : index
    %3 = vector.load %arg3[%c0_3, %c0_4] : memref<1x200xf32, #tpu.memory_space<vmem>>, vector<1x200xf32>
    %4 = vector.broadcast %3 : vector<1x200xf32> to vector<2x200xf32>
    %5 = arith.addf %2, %4 : vector<2x200xf32>
    %cst_5 = arith.constant 0.000000e+00 : f32
    %6 = vector.broadcast %cst_5 : f32 to vector<2x200xf32>
    %7 = arith.maximumf %5, %6 : vector<2x200xf32>
    %c0_6 = arith.constant 0 : index
    %c0_7 = arith.constant 0 : index
    %8 = vector.load %arg4[%c0_6, %c0_7] : memref<200x5xf32, #tpu.memory_space<vmem>>, vector<200x5xf32>
    %cst_8 = arith.constant dense<0.000000e+00> : vector<2x5xf32>
    %9 = tpu.matmul %7, %8, %cst_8 {dimension_numbers = #tpu.dot_dimension_numbers<[1], [0], [0], [1], [0, 0, 1, 1], [], []>} : vector<2x200xf32>, vector<200x5xf32>, vector<2x5xf32> -> vector<2x5xf32>
    %c0_9 = arith.constant 0 : index
    %c0_10 = arith.constant 0 : index
    %10 = vector.load %arg5[%c0_9, %c0_10] : memref<1x5xf32, #tpu.memory_space<vmem>>, vector<1x5xf32>
    %11 = vector.broadcast %10 : vector<1x5xf32> to vector<2x5xf32>
    %12 = arith.addf %9, %11 : vector<2x5xf32>
    %c0_11 = arith.constant 0 : index
    %c0_12 = arith.constant 0 : index
    %13 = vector.load %arg6[%c0_11, %c0_12] : memref<2x5xf32, #tpu.memory_space<vmem>>, vector<2x5xf32>
    tpu.vector_store %arg6[%c0_11, %c0_12], %12 {strides = array<i32>} : memref<2x5xf32, #tpu.memory_space<vmem>>, vector<2x5xf32>,
    return
  }
  func.func @transform_0(%arg0: i32) -> (i32, i32) {
    %c0_i32 = arith.constant 0 : i32
    %c0_i32_0 = arith.constant 0 : i32
    return %arg0, %c0_i32 : i32, i32
  }
  func.func @transform_1(%arg0: i32) -> (i32, i32) {
    %c0_i32 = arith.constant 0 : i32
    %c0_i32_0 = arith.constant 0 : i32
    %c0_i32_1 = arith.constant 0 : i32
    return %c0_i32, %c0_i32_0 : i32, i32
  }
  func.func @transform_2(%arg0: i32) -> (i32, i32) {
    %c0_i32 = arith.constant 0 : i32
    %c0_i32_0 = arith.constant 0 : i32
    %c0_i32_1 = arith.constant 0 : i32
    return %c0_i32, %c0_i32_0 : i32, i32
  }
  func.func @transform_3(%arg0: i32) -> (i32, i32) {
    %c0_i32 = arith.constant 0 : i32
    %c0_i32_0 = arith.constant 0 : i32
    %c0_i32_1 = arith.constant 0 : i32
    return %c0_i32, %c0_i32_0 : i32, i32
  }
  func.func @transform_4(%arg0: i32) -> (i32, i32) {
    %c0_i32 = arith.constant 0 : i32
    %c0_i32_0 = arith.constant 0 : i32
    %c0_i32_1 = arith.constant 0 : i32
    return %c0_i32, %c0_i32_0 : i32, i32
  }
  func.func @transform_5(%arg0: i32) -> (i32, i32) {
    %c0_i32 = arith.constant 0 : i32
    %c0_i32_0 = arith.constant 0 : i32
    return %arg0, %c0_i32 : i32, i32
  }
}

</mosaic_0001>

<llo_original>
// kernel: conv_nn_forward.3
$region0: #{conv_nn_forward.3}
  #allocation0 [shape = 'u32[]', space=smem, size = 0x4, offset = 0x4, fixed_abs, tag = 'smem constant byte address 0x4 - core index']
  #allocation1 [shape = 'u32[144,128]{1,0:T(1,128)}', space=vmem, size = 0x12000, scoped, tag = 'internal scratch']
  %s0 = inlined_call_operand.vmem [shape: bf16[2,32,5120], index: 0, kind: input, shape index: {}]
  %s1 = inlined_call_operand.vmem [shape: bf16[16,32], index: 1, kind: input, shape index: {}]
  %s2 = inlined_call_operand.vmem [shape: f32[16,1], index: 2, kind: input, shape index: {}]
  %s3 = inlined_call_operand.vmem [shape: bf16[2,16,1280], index: 3, kind: output, shape index: {}]
  %s4 = sld [smem:[#allocation0]]
  $region22: #{conv_nn_forward.3} parent=0
    _
  %s6 = ssub.s32 1, %s4
  %s7 = scalar_select 0, %s6, %s4
  // Predicated region
  $region2: #{conv_nn_forward.3} parent=0 // pred_check
    _
  $region3: #{conv_nn_forward.3} parent=0 // pred_check_branch
    %9 = sbr.rel (0) target = $region5
  $region4: #{conv_nn_forward.3} parent=0 // pred_region
    _
  $region5: #{conv_nn_forward.3} parent=0 // pred_fallthru
    _
  // Predicated region
  $region6: #{conv_nn_forward.3} parent=0 // pred_check
    _
  $region7: #{conv_nn_forward.3} parent=0 // pred_check_branch
    %11 = sbr.rel (0) target = $region9
  $region8: #{conv_nn_forward.3} parent=0 // pred_region
    _
  $region9: #{conv_nn_forward.3} parent=0 // pred_fallthru
    _
  // Predicated region
  $region10: #{conv_nn_forward.3} parent=0 // pred_check
    _
  $region11: #{conv_nn_forward.3} parent=0 // pred_check_branch
    %13 = sbr.rel (0) target = $region13
  $region12: #{conv_nn_forward.3} parent=0 // pred_region
    _
  $region13: #{conv_nn_forward.3} parent=0 // pred_fallthru
    _
  %v15 = vld [vmem:[%s1] sm:$0xf]
  %v16 = vld [vmem:[%s1 + $0x4] sm:$0xf]
  %v17 = vld [vmem:[%s2] sm:$0xff]
  %v18 = vld [vmem:[%s2 + $0x8] sm:$0xff]
  %v19 = vld [vmem:[%s0] sm:$0xff]
  %v20 = vld [vmem:[%s0 + $0x8] sm:$0xff]
  %v21 = vld [vmem:[%s0 + $0x10] sm:$0xff]
  %v22 = vld [vmem:[%s0 + $0x18] sm:$0xff]
  %v23 = vld [vmem:[%s0 + $0x20] sm:$0xff]
  %v24 = vld [vmem:[%s0 + $0x28] sm:$0xff]
  %v25 = vld [vmem:[%s0 + $0x30] sm:$0xff]
  %v26 = vld [vmem:[%s0 + $0x38] sm:$0xff]
  %v27 = vld [vmem:[%s0 + $0x40] sm:$0xff]
  %v28 = vld [vmem:[%s0 + $0x48] sm:$0xff]
  %v29 = vld [vmem:[%s0 + $0x50] sm:$0xff]
  %v30 = vld [vmem:[%s0 + $0x58] sm:$0xff]
  %v31 = vld [vmem:[%s0 + $0x60] sm:$0xff]
  %v32 = vld [vmem:[%s0 + $0x68] sm:$0xff]
  %v33 = vld [vmem:[%s0 + $0x70] sm:$0xff]
  %v34 = vld [vmem:[%s0 + $0x78] sm:$0xff]
  %v35 = vld [vmem:[%s0 + $0x80] sm:$0xff]
  %v36 = vld [vmem:[%s0 + $0x88] sm:$0xff]
  %v37 = vld [vmem:[%s0 + $0x90] sm:$0xff]
  %v38 = vld [vmem:[%s0 + $0x98] sm:$0xff]
  %v39 = vld [vmem:[%s0 + $0xa0] sm:$0xff]
  %v40 = vld [vmem:[%s0 + $0xa8] sm:$0xff]
  %v41 = vld [vmem:[%s0 + $0xb0] sm:$0xff]
  %v42 = vld [vmem:[%s0 + $0xb8] sm:$0xff]
  %v43 = vld [vmem:[%s0 + $0xc0] sm:$0xff]
  %v44 = vld [vmem:[%s0 + $0xc8] sm:$0xff]
  %v45 = vld [vmem:[%s0 + $0xd0] sm:$0xff]
  %v46 = vld [vmem:[%s0 + $0xd8] sm:$0xff]
  %v47 = vld [vmem:[%s0 + $0xe0] sm:$0xff]
  %v48 = vld [vmem:[%s0 + $0xe8] sm:$0xff]
  %v49 = vld [vmem:[%s0 + $0xf0] sm:$0xff]
  %v50 = vld [vmem:[%s0 + $0xf8] sm:$0xff]
  %v51 = vld [vmem:[%s0 + $0x100] sm:$0xff]
  %v52 = vld [vmem:[%s0 + $0x108] sm:$0xff]
  %v53 = vld [vmem:[%s0 + $0x110] sm:$0xff]
  %v54 = vld [vmem:[%s0 + $0x118] sm:$0xff]
  %v55 = vld [vmem:[%s0 + $0x120] sm:$0xff]
  %v56 = vld [vmem:[%s0 + $0x128] sm:$0xff]
  %v57 = vld [vmem:[%s0 + $0x130] sm:$0xff]
  %v58 = vld [vmem:[%s0 + $0x138] sm:$0xff]
  %v59 = vld [vmem:[%s0 + $0x140] sm:$0xff]
  %v60 = vld [vmem:[%s0 + $0x148] sm:$0xff]
  %v61 = vld [vmem:[%s0 + $0x150] sm:$0xff]
  %v62 = vld [vmem:[%s0 + $0x158] sm:$0xff]
  %v63 = vld [vmem:[%s0 + $0x160] sm:$0xff]
  %v64 = vld [vmem:[%s0 + $0x168] sm:$0xff]
  %v65 = vld [vmem:[%s0 + $0x170] sm:$0xff]
  %v66 = vld [vmem:[%s0 + $0x178] sm:$0xff]
  %v67 = vld [vmem:[%s0 + $0x180] sm:$0xff]
  %v68 = vld [vmem:[%s0 + $0x188] sm:$0xff]
  %v69 = vld [vmem:[%s0 + $0x190] sm:$0xff]
  %v70 = vld [vmem:[%s0 + $0x198] sm:$0xff]
  %v71 = vld [vmem:[%s0 + $0x1a0] sm:$0xff]
  %v72 = vld [vmem:[%s0 + $0x1a8] sm:$0xff]
  %v73 = vld [vmem:[%s0 + $0x1b0] sm:$0xff]
  %v74 = vld [vmem:[%s0 + $0x1b8] sm:$0xff]
  %v75 = vld [vmem:[%s0 + $0x1c0] sm:$0xff]
  %v76 = vld [vmem:[%s0 + $0x1c8] sm:$0xff]
  %v77 = vld [vmem:[%s0 + $0x1d0] sm:$0xff]
  %v78 = vld [vmem:[%s0 + $0x1d8] sm:$0xff]
  %v79 = vld [vmem:[%s0 + $0x1e0] sm:$0xff]
  %v80 = vld [vmem:[%s0 + $0x1e8] sm:$0xff]
  %v81 = vld [vmem:[%s0 + $0x1f0] sm:$0xff]
  %v82 = vld [vmem:[%s0 + $0x1f8] sm:$0xff]
  %v83 = vld [vmem:[%s0 + $0x200] sm:$0xff]
  %v84 = vld [vmem:[%s0 + $0x208] sm:$0xff]
  %v85 = vld [vmem:[%s0 + $0x210] sm:$0xff]
  %v86 = vld [vmem:[%s0 + $0x218] sm:$0xff]
  %v87 = vld [vmem:[%s0 + $0x220] sm:$0xff]
  %v88 = vld [vmem:[%s0 + $0x228] sm:$0xff]
  %v89 = vld [vmem:[%s0 + $0x230] sm:$0xff]
  %v90 = vld [vmem:[%s0 + $0x238] sm:$0xff]
  %v91 = vld [vmem:[%s0 + $0x240] sm:$0xff]
  %v92 = vld [vmem:[%s0 + $0x248] sm:$0xff]
  %v93 = vld [vmem:[%s0 + $0x250] sm:$0xff]
  %v94 = vld [vmem:[%s0 + $0x258] sm:$0xff]
  %v95 = vld [vmem:[%s0 + $0x260] sm:$0xff]
  %v96 = vld [vmem:[%s0 + $0x268] sm:$0xff]
  %v97 = vld [vmem:[%s0 + $0x270] sm:$0xff]
  %v98 = vld [vmem:[%s0 + $0x278] sm:$0xff]
  %v101 = vunpack.c.l.b16 %v15
  %v102 = vunpack.c.l.b16 %v16
  %v103 = vpack.c.b16 %v102, %v101
  %v184 = vunpack.c.l.b16 %v19
  %v185 = vunpack.c.h.b16 %v19
  %v186 = vunpack.c.l.b16 %v20
  %v187 = vunpack.c.h.b16 %v20
  %v188 = vunpack.c.l.b16 %v21
  %v189 = vunpack.c.h.b16 %v21
  %v190 = vunpack.c.l.b16 %v22
  %v191 = vunpack.c.h.b16 %v22
  %v192 = vunpack.c.l.b16 %v23
  %v193 = vunpack.c.h.b16 %v23
  %v194 = vunpack.c.l.b16 %v24
  %v195 = vunpack.c.h.b16 %v24
  %v196 = vunpack.c.l.b16 %v25
  %v197 = vunpack.c.h.b16 %v25
  %v198 = vunpack.c.l.b16 %v26
  %v199 = vunpack.c.h.b16 %v26
  %v200 = vunpack.c.l.b16 %v27
  %v201 = vunpack.c.h.b16 %v27
  %v202 = vunpack.c.l.b16 %v28
  %v203 = vunpack.c.h.b16 %v28
  %v204 = vunpack.c.l.b16 %v29
  %v205 = vunpack.c.h.b16 %v29
  %v206 = vunpack.c.l.b16 %v30
  %v207 = vunpack.c.h.b16 %v30
  %v208 = vunpack.c.l.b16 %v31
  %v209 = vunpack.c.h.b16 %v31
  %v210 = vunpack.c.l.b16 %v32
  %v211 = vunpack.c.h.b16 %v32
  %v212 = vunpack.c.l.b16 %v33
  %v213 = vunpack.c.h.b16 %v33
  %v214 = vunpack.c.l.b16 %v34
  %v215 = vunpack.c.h.b16 %v34
  %v216 = vunpack.c.l.b16 %v35
  %v217 = vunpack.c.h.b16 %v35
  %v218 = vunpack.c.l.b16 %v36
  %v219 = vunpack.c.h.b16 %v36
  %v220 = vunpack.c.l.b16 %v37
  %v221 = vunpack.c.h.b16 %v37
  %v222 = vunpack.c.l.b16 %v38
  %v223 = vunpack.c.h.b16 %v38
  %v224 = vunpack.c.l.b16 %v39
  %v225 = vunpack.c.h.b16 %v39
  %v226 = vunpack.c.l.b16 %v40
  %v227 = vunpack.c.h.b16 %v40
  %v228 = vunpack.c.l.b16 %v41
  %v229 = vunpack.c.h.b16 %v41
  %v230 = vunpack.c.l.b16 %v42
  %v231 = vunpack.c.h.b16 %v42
  %v232 = vunpack.c.l.b16 %v43
  %v233 = vunpack.c.h.b16 %v43
  %v234 = vunpack.c.l.b16 %v44
  %v235 = vunpack.c.h.b16 %v44
  %v236 = vunpack.c.l.b16 %v45
  %v237 = vunpack.c.h.b16 %v45
  %v238 = vunpack.c.l.b16 %v46
  %v239 = vunpack.c.h.b16 %v46
  %v240 = vunpack.c.l.b16 %v47
  %v241 = vunpack.c.h.b16 %v47
  %v242 = vunpack.c.l.b16 %v48
  %v243 = vunpack.c.h.b16 %v48
  %v244 = vunpack.c.l.b16 %v49
  %v245 = vunpack.c.h.b16 %v49
  %v246 = vunpack.c.l.b16 %v50
  %v247 = vunpack.c.h.b16 %v50
  %v248 = vunpack.c.l.b16 %v51
  %v249 = vunpack.c.h.b16 %v51
  %v250 = vunpack.c.l.b16 %v52
  %v251 = vunpack.c.h.b16 %v52
  %v252 = vunpack.c.l.b16 %v53
  %v253 = vunpack.c.h.b16 %v53
  %v254 = vunpack.c.l.b16 %v54
  %v255 = vunpack.c.h.b16 %v54
  %v256 = vunpack.c.l.b16 %v55
  %v257 = vunpack.c.h.b16 %v55
  %v258 = vunpack.c.l.b16 %v56
  %v259 = vunpack.c.h.b16 %v56
  %v260 = vunpack.c.l.b16 %v57
  %v261 = vunpack.c.h.b16 %v57
  %v262 = vunpack.c.l.b16 %v58
  %v263 = vunpack.c.h.b16 %v58
  %v264 = vunpack.c.l.b16 %v59
  %v265 = vunpack.c.h.b16 %v59
  %v266 = vunpack.c.l.b16 %v60
  %v267 = vunpack.c.h.b16 %v60
  %v268 = vunpack.c.l.b16 %v61
  %v269 = vunpack.c.h.b16 %v61
  %v270 = vunpack.c.l.b16 %v62
  %v271 = vunpack.c.h.b16 %v62
  %v272 = vunpack.c.l.b16 %v63
  %v273 = vunpack.c.h.b16 %v63
  %v274 = vunpack.c.l.b16 %v64
  %v275 = vunpack.c.h.b16 %v64
  %v276 = vunpack.c.l.b16 %v65
  %v277 = vunpack.c.h.b16 %v65
  %v278 = vunpack.c.l.b16 %v66
  %v279 = vunpack.c.h.b16 %v66
  %v280 = vunpack.c.l.b16 %v67
  %v281 = vunpack.c.h.b16 %v67
  %v282 = vunpack.c.l.b16 %v68
  %v283 = vunpack.c.h.b16 %v68
  %v284 = vunpack.c.l.b16 %v69
  %v285 = vunpack.c.h.b16 %v69
  %v286 = vunpack.c.l.b16 %v70
  %v287 = vunpack.c.h.b16 %v70
  %v288 = vunpack.c.l.b16 %v71
  %v289 = vunpack.c.h.b16 %v71
  %v290 = vunpack.c.l.b16 %v72
  %v291 = vunpack.c.h.b16 %v72
  %v292 = vunpack.c.l.b16 %v73
  %v293 = vunpack.c.h.b16 %v73
  %v294 = vunpack.c.l.b16 %v74
  %v295 = vunpack.c.h.b16 %v74
  %v296 = vunpack.c.l.b16 %v75
  %v297 = vunpack.c.h.b16 %v75
  %v298 = vunpack.c.l.b16 %v76
  %v299 = vunpack.c.h.b16 %v76
  %v300 = vunpack.c.l.b16 %v77
  %v301 = vunpack.c.h.b16 %v77
  %v302 = vunpack.c.l.b16 %v78
  %v303 = vunpack.c.h.b16 %v78
  %v304 = vunpack.c.l.b16 %v79
  %v305 = vunpack.c.h.b16 %v79
  %v306 = vunpack.c.l.b16 %v80
  %v307 = vunpack.c.h.b16 %v80
  %v308 = vunpack.c.l.b16 %v81
  %v309 = vunpack.c.h.b16 %v81
  %v310 = vunpack.c.l.b16 %v82
  %v311 = vunpack.c.h.b16 %v82
  %v312 = vunpack.c.l.b16 %v83
  %v313 = vunpack.c.h.b16 %v83
  %v314 = vunpack.c.l.b16 %v84
  %v315 = vunpack.c.h.b16 %v84
  %v316 = vunpack.c.l.b16 %v85
  %v317 = vunpack.c.h.b16 %v85
  %v318 = vunpack.c.l.b16 %v86
  %v319 = vunpack.c.h.b16 %v86
  %v320 = vunpack.c.l.b16 %v87
  %v321 = vunpack.c.h.b16 %v87
  %v322 = vunpack.c.l.b16 %v88
  %v323 = vunpack.c.h.b16 %v88
  %v324 = vunpack.c.l.b16 %v89
  %v325 = vunpack.c.h.b16 %v89
  %v326 = vunpack.c.l.b16 %v90
  %v327 = vunpack.c.h.b16 %v90
  %v328 = vunpack.c.l.b16 %v91
  %v329 = vunpack.c.h.b16 %v91
  %v330 = vunpack.c.l.b16 %v92
  %v331 = vunpack.c.h.b16 %v92
  %v332 = vunpack.c.l.b16 %v93
  %v333 = vunpack.c.h.b16 %v93
  %v334 = vunpack.c.l.b16 %v94
  %v335 = vunpack.c.h.b16 %v94
  %v336 = vunpack.c.l.b16 %v95
  %v337 = vunpack.c.h.b16 %v95
  %v338 = vunpack.c.l.b16 %v96
  %v339 = vunpack.c.h.b16 %v96
  %v340 = vunpack.c.l.b16 %v97
  %v341 = vunpack.c.h.b16 %v97
  %v342 = vunpack.c.l.b16 %v98
  %v343 = vunpack.c.h.b16 %v98
  %v344 = vpack.c.b16 %v224, %v184
  %v345 = vpack.c.b16 %v225, %v185
  %v346 = vpack.c.b16 %v226, %v186
  %v347 = vpack.c.b16 %v227, %v187
  %v348 = vpack.c.b16 %v228, %v188
  %v349 = vpack.c.b16 %v229, %v189
  %v350 = vpack.c.b16 %v230, %v190
  %v351 = vpack.c.b16 %v231, %v191
  %v352 = vpack.c.b16 %v232, %v192
  %v353 = vpack.c.b16 %v233, %v193
  %v354 = vpack.c.b16 %v234, %v194
  %v355 = vpack.c.b16 %v235, %v195
  %v356 = vpack.c.b16 %v236, %v196
  %v357 = vpack.c.b16 %v237, %v197
  %v358 = vpack.c.b16 %v238, %v198
  %v359 = vpack.c.b16 %v239, %v199
  %v360 = vpack.c.b16 %v240, %v200
  %v361 = vpack.c.b16 %v241, %v201
  %v362 = vpack.c.b16 %v242, %v202
  %v363 = vpack.c.b16 %v243, %v203
  %v364 = vpack.c.b16 %v244, %v204
  %v365 = vpack.c.b16 %v245, %v205
  %v366 = vpack.c.b16 %v246, %v206
  %v367 = vpack.c.b16 %v247, %v207
  %v368 = vpack.c.b16 %v248, %v208
  %v369 = vpack.c.b16 %v249, %v209
  %v370 = vpack.c.b16 %v250, %v210
  %v371 = vpack.c.b16 %v251, %v211
  %v372 = vpack.c.b16 %v252, %v212
  %v373 = vpack.c.b16 %v253, %v213
  %v374 = vpack.c.b16 %v254, %v214
  %v375 = vpack.c.b16 %v255, %v215
  %v376 = vpack.c.b16 %v256, %v216
  %v377 = vpack.c.b16 %v257, %v217
  %v378 = vpack.c.b16 %v258, %v218
  %v379 = vpack.c.b16 %v259, %v219
  %v380 = vpack.c.b16 %v260, %v220
  %v381 = vpack.c.b16 %v261, %v221
  %v382 = vpack.c.b16 %v262, %v222
  %v383 = vpack.c.b16 %v263, %v223
  %v384 = vpack.c.b16 %v304, %v264
  %v385 = vpack.c.b16 %v305, %v265
  %v386 = vpack.c.b16 %v306, %v266
  %v387 = vpack.c.b16 %v307, %v267
  %v388 = vpack.c.b16 %v308, %v268
  %v389 = vpack.c.b16 %v309, %v269
  %v390 = vpack.c.b16 %v310, %v270
  %v391 = vpack.c.b16 %v311, %v271
  %v392 = vpack.c.b16 %v312, %v272
  %v393 = vpack.c.b16 %v313, %v273
  %v394 = vpack.c.b16 %v314, %v274
  %v395 = vpack.c.b16 %v315, %v275
  %v396 = vpack.c.b16 %v316, %v276
  %v397 = vpack.c.b16 %v317, %v277
  %v398 = vpack.c.b16 %v318, %v278
  %v399 = vpack.c.b16 %v319, %v279
  %v400 = vpack.c.b16 %v320, %v280
  %v401 = vpack.c.b16 %v321, %v281
  %v402 = vpack.c.b16 %v322, %v282
  %v403 = vpack.c.b16 %v323, %v283
  %v404 = vpack.c.b16 %v324, %v284
  %v405 = vpack.c.b16 %v325, %v285
  %v406 = vpack.c.b16 %v326, %v286
  %v407 = vpack.c.b16 %v327, %v287
  %v408 = vpack.c.b16 %v328, %v288
  %v409 = vpack.c.b16 %v329, %v289
  %v410 = vpack.c.b16 %v330, %v290
  %v411 = vpack.c.b16 %v331, %v291
  %v412 = vpack.c.b16 %v332, %v292
  %v413 = vpack.c.b16 %v333, %v293
  %v414 = vpack.c.b16 %v334, %v294
  %v415 = vpack.c.b16 %v335, %v295
  %v416 = vpack.c.b16 %v336, %v296
  %v417 = vpack.c.b16 %v337, %v297
  %v418 = vpack.c.b16 %v338, %v298
  %v419 = vpack.c.b16 %v339, %v299
  %v420 = vpack.c.b16 %v340, %v300
  %v421 = vpack.c.b16 %v341, %v301
  %v422 = vpack.c.b16 %v342, %v302
  %v423 = vpack.c.b16 %v343, %v303
  %vm504 = vcmask 261120
  %v506 = vsel %vm504, %v103, 0
  %508 = vmatprep.subr.bf16.mxu0 %v345
  %509 = vmatpush1.bf16.msra.mxu0 %v344
  %510 = vmatprep.subr.bf16.mxu0 %v385
  %511 = vmatpush1.bf16.msra.mxu0 %v384
  %512 = vmatprep.subr.bf16.mxu0 0
  %513 = vmatpush1.bf16.msra.mxu0 0
  %514 = vmatprep.subr.bf16.mxu0 0
  %515 = vmatpush1.bf16.msra.mxu0 0
  %516 = vmatprep.subr.bf16.mxu0 0
  %517 = vmatpush1.bf16.msra.mxu0 0
  %518 = vmatprep.subr.bf16.mxu0 0
  %519 = vmatpush1.bf16.msra.mxu0 0
  %520 = vmatprep.subr.bf16.mxu0 0
  %521 = vmatpush1.bf16.msra.mxu0 0
  %522 = vmatprep.subr.bf16.mxu0 0
  %523 = vmatpush1.bf16.msra.mxu0 0
  %524 = vmatprep.subr.bf16.mxu0 0
  %525 = vmatpush1.bf16.msra.mxu0 0
  %526 = vmatprep.subr.bf16.mxu0 0
  %527 = vmatpush1.bf16.msra.mxu0 0
  %528 = vmatprep.subr.bf16.mxu0 0
  %529 = vmatpush1.bf16.msra.mxu0 0
  %530 = vmatprep.subr.bf16.mxu0 0
  %531 = vmatpush1.bf16.msra.mxu0 0
  %532 = vmatprep.subr.bf16.mxu0 0
  %533 = vmatpush1.bf16.msra.mxu0 0
  %534 = vmatprep.subr.bf16.mxu0 0
  %535 = vmatpush1.bf16.msra.mxu0 0
  %536 = vmatprep.subr.bf16.mxu0 0
  %537 = vmatpush1.bf16.msra.mxu0 0
  %538 = vmatprep.subr.bf16.mxu0 0
  %539 = vmatpush1.bf16.msra.mxu0 0
  %540 = vmatprep.mubr.bf16.mxu0 0
  %541 = vmatmul.mubr.bf16.gmra.mrb[0].mxu0 %v506
  %v542 = vpop.f32.mrb[0].mxu0
  %v543 = vadd.f32 0.0, %v542
  %v544 = vpop.f32.mrb[0].mxu0
  %v545 = vadd.f32 0.0, %v544
  %v546 = vpop.f32.mrb[0].mxu0
  %v547 = vadd.f32 0.0, %v546
  %v548 = vpop.f32.mrb[0].mxu0
  %v549 = vadd.f32 0.0, %v548
  %550 = vdwg.mxu0
  %551 = vmatprep.subr.bf16.mxu0 %v347
  %552 = vmatpush1.bf16.msra.mxu0 %v346
  %553 = vmatprep.subr.bf16.mxu0 %v387
  %554 = vmatpush1.bf16.msra.mxu0 %v386
  %555 = vmatprep.subr.bf16.mxu0 0
  %556 = vmatpush1.bf16.msra.mxu0 0
  %557 = vmatprep.subr.bf16.mxu0 0
  %558 = vmatpush1.bf16.msra.mxu0 0
  %559 = vmatprep.subr.bf16.mxu0 0
  %560 = vmatpush1.bf16.msra.mxu0 0
  %561 = vmatprep.subr.bf16.mxu0 0
  %562 = vmatpush1.bf16.msra.mxu0 0
  %563 = vmatprep.subr.bf16.mxu0 0
  %564 = vmatpush1.bf16.msra.mxu0 0
  %565 = vmatprep.subr.bf16.mxu0 0
  %566 = vmatpush1.bf16.msra.mxu0 0
  %567 = vmatprep.subr.bf16.mxu0 0
  %568 = vmatpush1.bf16.msra.mxu0 0
  %569 = vmatprep.subr.bf16.mxu0 0
  %570 = vmatpush1.bf16.msra.mxu0 0
  %571 = vmatprep.subr.bf16.mxu0 0
  %572 = vmatpush1.bf16.msra.mxu0 0
  %573 = vmatprep.subr.bf16.mxu0 0
  %574 = vmatpush1.bf16.msra.mxu0 0
  %575 = vmatprep.subr.bf16.mxu0 0
  %576 = vmatpush1.bf16.msra.mxu0 0
  %577 = vmatprep.subr.bf16.mxu0 0
  %578 = vmatpush1.bf16.msra.mxu0 0
  %579 = vmatprep.subr.bf16.mxu0 0
  %580 = vmatpush1.bf16.msra.mxu0 0
  %581 = vmatprep.subr.bf16.mxu0 0
  %582 = vmatpush1.bf16.msra.mxu0 0
  %583 = vmatprep.mubr.bf16.mxu0 0
  %584 = vmatmul.mubr.bf16.gmra.mrb[0].mxu0 %v506
  %v585 = vpop.f32.mrb[0].mxu0
  %v586 = vadd.f32 0.0, %v585
  %v587 = vpop.f32.mrb[0].mxu0
  %v588 = vadd.f32 0.0, %v587
  %v589 = vpop.f32.mrb[0].mxu0
  %v590 = vadd.f32 0.0, %v589
  %v591 = vpop.f32.mrb[0].mxu0
  %v592 = vadd.f32 0.0, %v591
  %593 = vdwg.mxu0
  %594 = vmatprep.subr.bf16.mxu0 %v349
  %595 = vmatpush1.bf16.msra.mxu0 %v348
  %596 = vmatprep.subr.bf16.mxu0 %v389
  %597 = vmatpush1.bf16.msra.mxu0 %v388
  %598 = vmatprep.subr.bf16.mxu0 0
  %599 = vmatpush1.bf16.msra.mxu0 0
  %600 = vmatprep.subr.bf16.mxu0 0
  %601 = vmatpush1.bf16.msra.mxu0 0
  %602 = vmatprep.subr.bf16.mxu0 0
  %603 = vmatpush1.bf16.msra.mxu0 0
  %604 = vmatprep.subr.bf16.mxu0 0
  %605 = vmatpush1.bf16.msra.mxu0 0
  %606 = vmatprep.subr.bf16.mxu0 0
  %607 = vmatpush1.bf16.msra.mxu0 0
  %608 = vmatprep.subr.bf16.mxu0 0
  %609 = vmatpush1.bf16.msra.mxu0 0
  %610 = vmatprep.subr.bf16.mxu0 0
  %611 = vmatpush1.bf16.msra.mxu0 0
  %612 = vmatprep.subr.bf16.mxu0 0
  %613 = vmatpush1.bf16.msra.mxu0 0
  %614 = vmatprep.subr.bf16.mxu0 0
  %615 = vmatpush1.bf16.msra.mxu0 0
  %616 = vmatprep.subr.bf16.mxu0 0
  %617 = vmatpush1.bf16.msra.mxu0 0
  %618 = vmatprep.subr.bf16.mxu0 0
  %619 = vmatpush1.bf16.msra.mxu0 0
  %620 = vmatprep.subr.bf16.mxu0 0
  %621 = vmatpush1.bf16.msra.mxu0 0
  %622 = vmatprep.subr.bf16.mxu0 0
  %623 = vmatpush1.bf16.msra.mxu0 0
  %624 = vmatprep.subr.bf16.mxu0 0
  %625 = vmatpush1.bf16.msra.mxu0 0
  %626 = vmatprep.mubr.bf16.mxu0 0
  %627 = vmatmul.mubr.bf16.gmra.mrb[0].mxu0 %v506
  %v628 = vpop.f32.mrb[0].mxu0
  %v629 = vadd.f32 0.0, %v628
  %v630 = vpop.f32.mrb[0].mxu0
  %v631 = vadd.f32 0.0, %v630
  %v632 = vpop.f32.mrb[0].mxu0
  %v633 = vadd.f32 0.0, %v632
  %v634 = vpop.f32.mrb[0].mxu0
  %v635 = vadd.f32 0.0, %v634
  %636 = vdwg.mxu0
  %637 = vmatprep.subr.bf16.mxu0 %v351
  %638 = vmatpush1.bf16.msra.mxu0 %v350
  %639 = vmatprep.subr.bf16.mxu0 %v391
  %640 = vmatpush1.bf16.msra.mxu0 %v390
  %641 = vmatprep.subr.bf16.mxu0 0
  %642 = vmatpush1.bf16.msra.mxu0 0
  %643 = vmatprep.subr.bf16.mxu0 0
  %644 = vmatpush1.bf16.msra.mxu0 0
  %645 = vmatprep.subr.bf16.mxu0 0
  %646 = vmatpush1.bf16.msra.mxu0 0
  %647 = vmatprep.subr.bf16.mxu0 0
  %648 = vmatpush1.bf16.msra.mxu0 0
  %649 = vmatprep.subr.bf16.mxu0 0
  %650 = vmatpush1.bf16.msra.mxu0 0
  %651 = vmatprep.subr.bf16.mxu0 0
  %652 = vmatpush1.bf16.msra.mxu0 0
  %653 = vmatprep.subr.bf16.mxu0 0
  %654 = vmatpush1.bf16.msra.mxu0 0
  %655 = vmatprep.subr.bf16.mxu0 0
  %656 = vmatpush1.bf16.msra.mxu0 0
  %657 = vmatprep.subr.bf16.mxu0 0
  %658 = vmatpush1.bf16.msra.mxu0 0
  %659 = vmatprep.subr.bf16.mxu0 0
  %660 = vmatpush1.bf16.msra.mxu0 0
  %661 = vmatprep.subr.bf16.mxu0 0
  %662 = vmatpush1.bf16.msra.mxu0 0
  %663 = vmatprep.subr.bf16.mxu0 0
  %664 = vmatpush1.bf16.msra.mxu0 0
  %665 = vmatprep.subr.bf16.mxu0 0
  %666 = vmatpush1.bf16.msra.mxu0 0
  %667 = vmatprep.subr.bf16.mxu0 0
  %668 = vmatpush1.bf16.msra.mxu0 0
  %669 = vmatprep.mubr.bf16.mxu0 0
  %670 = vmatmul.mubr.bf16.gmra.mrb[0].mxu0 %v506
  %v671 = vpop.f32.mrb[0].mxu0
  %v672 = vadd.f32 0.0, %v671
  %v673 = vpop.f32.mrb[0].mxu0
  %v674 = vadd.f32 0.0, %v673
  %v675 = vpop.f32.mrb[0].mxu0
  %v676 = vadd.f32 0.0, %v675
  %v677 = vpop.f32.mrb[0].mxu0
  %v678 = vadd.f32 0.0, %v677
  %679 = vdwg.mxu0
  %680 = vmatprep.subr.bf16.mxu0 %v353
  %681 = vmatpush1.bf16.msra.mxu0 %v352
  %682 = vmatprep.subr.bf16.mxu0 %v393
  %683 = vmatpush1.bf16.msra.mxu0 %v392
  %684 = vmatprep.subr.bf16.mxu0 0
  %685 = vmatpush1.bf16.msra.mxu0 0
  %686 = vmatprep.subr.bf16.mxu0 0
  %687 = vmatpush1.bf16.msra.mxu0 0
  %688 = vmatprep.subr.bf16.mxu0 0
  %689 = vmatpush1.bf16.msra.mxu0 0
  %690 = vmatprep.subr.bf16.mxu0 0
  %691 = vmatpush1.bf16.msra.mxu0 0
  %692 = vmatprep.subr.bf16.mxu0 0
  %693 = vmatpush1.bf16.msra.mxu0 0
  %694 = vmatprep.subr.bf16.mxu0 0
  %695 = vmatpush1.bf16.msra.mxu0 0
  %696 = vmatprep.subr.bf16.mxu0 0
  %697 = vmatpush1.bf16.msra.mxu0 0
  %698 = vmatprep.subr.bf16.mxu0 0
  %699 = vmatpush1.bf16.msra.mxu0 0
  %700 = vmatprep.subr.bf16.mxu0 0
  %701 = vmatpush1.bf16.msra.mxu0 0
  %702 = vmatprep.subr.bf16.mxu0 0
  %703 = vmatpush1.bf16.msra.mxu0 0
  %704 = vmatprep.subr.bf16.mxu0 0
  %705 = vmatpush1.bf16.msra.mxu0 0
  %706 = vmatprep.subr.bf16.mxu0 0
  %707 = vmatpush1.bf16.msra.mxu0 0
  %708 = vmatprep.subr.bf16.mxu0 0
  %709 = vmatpush1.bf16.msra.mxu0 0
  %710 = vmatprep.subr.bf16.mxu0 0
  %711 = vmatpush1.bf16.msra.mxu0 0
  %712 = vmatprep.mubr.bf16.mxu0 0
  %713 = vmatmul.mubr.bf16.gmra.mrb[0].mxu0 %v506
  %v714 = vpop.f32.mrb[0].mxu0
  %v715 = vadd.f32 0.0, %v714
  %v716 = vpop.f32.mrb[0].mxu0
  %v717 = vadd.f32 0.0, %v716
  %v718 = vpop.f32.mrb[0].mxu0
  %v719 = vadd.f32 0.0, %v718
  %v720 = vpop.f32.mrb[0].mxu0
  %v721 = vadd.f32 0.0, %v720
  %722 = vdwg.mxu0
  %723 = vmatprep.subr.bf16.mxu0 %v355
  %724 = vmatpush1.bf16.msra.mxu0 %v354
  %725 = vmatprep.subr.bf16.mxu0 %v395
  %726 = vmatpush1.bf16.msra.mxu0 %v394
  %727 = vmatprep.subr.bf16.mxu0 0
  %728 = vmatpush1.bf16.msra.mxu0 0
  %729 = vmatprep.subr.bf16.mxu0 0
  %730 = vmatpush1.bf16.msra.mxu0 0
  %731 = vmatprep.subr.bf16.mxu0 0
  %732 = vmatpush1.bf16.msra.mxu0 0
  %733 = vmatprep.subr.bf16.mxu0 0
  %734 = vmatpush1.bf16.msra.mxu0 0
  %735 = vmatprep.subr.bf16.mxu0 0
  %736 = vmatpush1.bf16.msra.mxu0 0
  %737 = vmatprep.subr.bf16.mxu0 0
  %738 = vmatpush1.bf16.msra.mxu0 0
  %739 = vmatprep.subr.bf16.mxu0 0
  %740 = vmatpush1.bf16.msra.mxu0 0
  %741 = vmatprep.subr.bf16.mxu0 0
  %742 = vmatpush1.bf16.msra.mxu0 0
  %743 = vmatprep.subr.bf16.mxu0 0
  %744 = vmatpush1.bf16.msra.mxu0 0
  %745 = vmatprep.subr.bf16.mxu0 0
  %746 = vmatpush1.bf16.msra.mxu0 0
  %747 = vmatprep.subr.bf16.mxu0 0
  %748 = vmatpush1.bf16.msra.mxu0 0
  %749 = vmatprep.subr.bf16.mxu0 0
  %750 = vmatpush1.bf16.msra.mxu0 0
  %751 = vmatprep.subr.bf16.mxu0 0
  %752 = vmatpush1.bf16.msra.mxu0 0
  %753 = vmatprep.subr.bf16.mxu0 0
  %754 = vmatpush1.bf16.msra.mxu0 0
  %755 = vmatprep.mubr.bf16.mxu0 0
  %756 = vmatmul.mubr.bf16.gmra.mrb[0].mxu0 %v506
  %v757 = vpop.f32.mrb[0].mxu0
  %v758 = vadd.f32 0.0, %v757
  %v759 = vpop.f32.mrb[0].mxu0
  %v760 = vadd.f32 0.0, %v759
  %v761 = vpop.f32.mrb[0].mxu0
  %v762 = vadd.f32 0.0, %v761
  %v763 = vpop.f32.mrb[0].mxu0
  %v764 = vadd.f32 0.0, %v763
  %765 = vdwg.mxu0
  %766 = vmatprep.subr.bf16.mxu0 %v357
  %767 = vmatpush1.bf16.msra.mxu0 %v356
  %768 = vmatprep.subr.bf16.mxu0 %v397
  %769 = vmatpush1.bf16.msra.mxu0 %v396
  %770 = vmatprep.subr.bf16.mxu0 0
  %771 = vmatpush1.bf16.msra.mxu0 0
  %772 = vmatprep.subr.bf16.mxu0 0
  %773 = vmatpush1.bf16.msra.mxu0 0
  %774 = vmatprep.subr.bf16.mxu0 0
  %775 = vmatpush1.bf16.msra.mxu0 0
  %776 = vmatprep.subr.bf16.mxu0 0
  %777 = vmatpush1.bf16.msra.mxu0 0
  %778 = vmatprep.subr.bf16.mxu0 0
  %779 = vmatpush1.bf16.msra.mxu0 0
  %780 = vmatprep.subr.bf16.mxu0 0
  %781 = vmatpush1.bf16.msra.mxu0 0
  %782 = vmatprep.subr.bf16.mxu0 0
  %783 = vmatpush1.bf16.msra.mxu0 0
  %784 = vmatprep.subr.bf16.mxu0 0
  %785 = vmatpush1.bf16.msra.mxu0 0
  %786 = vmatprep.subr.bf16.mxu0 0
  %787 = vmatpush1.bf16.msra.mxu0 0
  %788 = vmatprep.subr.bf16.mxu0 0
  %789 = vmatpush1.bf16.msra.mxu0 0
  %790 = vmatprep.subr.bf16.mxu0 0
  %791 = vmatpush1.bf16.msra.mxu0 0
  %792 = vmatprep.subr.bf16.mxu0 0
  %793 = vmatpush1.bf16.msra.mxu0 0
  %794 = vmatprep.subr.bf16.mxu0 0
  %795 = vmatpush1.bf16.msra.mxu0 0
  %796 = vmatprep.subr.bf16.mxu0 0
  %797 = vmatpush1.bf16.msra.mxu0 0
  %798 = vmatprep.mubr.bf16.mxu0 0
  %799 = vmatmul.mubr.bf16.gmra.mrb[0].mxu0 %v506
  %v800 = vpop.f32.mrb[0].mxu0
  %v801 = vadd.f32 0.0, %v800
  %v802 = vpop.f32.mrb[0].mxu0
  %v803 = vadd.f32 0.0, %v802
  %v804 = vpop.f32.mrb[0].mxu0
  %v805 = vadd.f32 0.0, %v804
  %v806 = vpop.f32.mrb[0].mxu0
  %v807 = vadd.f32 0.0, %v806
  %808 = vdwg.mxu0
  %809 = vmatprep.subr.bf16.mxu0 %v359
  %810 = vmatpush1.bf16.msra.mxu0 %v358
  %811 = vmatprep.subr.bf16.mxu0 %v399
  %812 = vmatpush1.bf16.msra.mxu0 %v398
  %813 = vmatprep.subr.bf16.mxu0 0
  %814 = vmatpush1.bf16.msra.mxu0 0
  %815 = vmatprep.subr.bf16.mxu0 0
  %816 = vmatpush1.bf16.msra.mxu0 0
  %817 = vmatprep.subr.bf16.mxu0 0
  %818 = vmatpush1.bf16.msra.mxu0 0
  %819 = vmatprep.subr.bf16.mxu0 0
  %820 = vmatpush1.bf16.msra.mxu0 0
  %821 = vmatprep.subr.bf16.mxu0 0
  %822 = vmatpush1.bf16.msra.mxu0 0
  %823 = vmatprep.subr.bf16.mxu0 0
  %824 = vmatpush1.bf16.msra.mxu0 0
  %825 = vmatprep.subr.bf16.mxu0 0
  %826 = vmatpush1.bf16.msra.mxu0 0
  %827 = vmatprep.subr.bf16.mxu0 0
  %828 = vmatpush1.bf16.msra.mxu0 0
  %829 = vmatprep.subr.bf16.mxu0 0
  %830 = vmatpush1.bf16.msra.mxu0 0
  %831 = vmatprep.subr.bf16.mxu0 0
  %832 = vmatpush1.bf16.msra.mxu0 0
  %833 = vmatprep.subr.bf16.mxu0 0
  %834 = vmatpush1.bf16.msra.mxu0 0
  %835 = vmatprep.subr.bf16.mxu0 0
  %836 = vmatpush1.bf16.msra.mxu0 0
  %837 = vmatprep.subr.bf16.mxu0 0
  %838 = vmatpush1.bf16.msra.mxu0 0
  %839 = vmatprep.subr.bf16.mxu0 0
  %840 = vmatpush1.bf16.msra.mxu0 0
  %841 = vmatprep.mubr.bf16.mxu0 0
  %842 = vmatmul.mubr.bf16.gmra.mrb[0].mxu0 %v506
  %v843 = vpop.f32.mrb[0].mxu0
  %v844 = vadd.f32 0.0, %v843
  %v845 = vpop.f32.mrb[0].mxu0
  %v846 = vadd.f32 0.0, %v845
  %v847 = vpop.f32.mrb[0].mxu0
  %v848 = vadd.f32 0.0, %v847
  %v849 = vpop.f32.mrb[0].mxu0
  %v850 = vadd.f32 0.0, %v849
  %851 = vdwg.mxu0
  %852 = vmatprep.subr.bf16.mxu0 %v361
  %853 = vmatpush1.bf16.msra.mxu0 %v360
  %854 = vmatprep.subr.bf16.mxu0 %v401
  %855 = vmatpush1.bf16.msra.mxu0 %v400
  %856 = vmatprep.subr.bf16.mxu0 0
  %857 = vmatpush1.bf16.msra.mxu0 0
  %858 = vmatprep.subr.bf16.mxu0 0
  %859 = vmatpush1.bf16.msra.mxu0 0
  %860 = vmatprep.subr.bf16.mxu0 0
  %861 = vmatpush1.bf16.msra.mxu0 0
  %862 = vmatprep.subr.bf16.mxu0 0
  %863 = vmatpush1.bf16.msra.mxu0 0
  %864 = vmatprep.subr.bf16.mxu0 0
  %865 = vmatpush1.bf16.msra.mxu0 0
  %866 = vmatprep.subr.bf16.mxu0 0
  %867 = vmatpush1.bf16.msra.mxu0 0
  %868 = vmatprep.subr.bf16.mxu0 0
  %869 = vmatpush1.bf16.msra.mxu0 0
  %870 = vmatprep.subr.bf16.mxu0 0
  %871 = vmatpush1.bf16.msra.mxu0 0
  %872 = vmatprep.subr.bf16.mxu0 0
  %873 = vmatpush1.bf16.msra.mxu0 0
  %874 = vmatprep.subr.bf16.mxu0 0
  %875 = vmatpush1.bf16.msra.mxu0 0
  %876 = vmatprep.subr.bf16.mxu0 0
  %877 = vmatpush1.bf16.msra.mxu0 0
  %878 = vmatprep.subr.bf16.mxu0 0
  %879 = vmatpush1.bf16.msra.mxu0 0
  %880 = vmatprep.subr.bf16.mxu0 0
  %881 = vmatpush1.bf16.msra.mxu0 0
  %882 = vmatprep.subr.bf16.mxu0 0
  %883 = vmatpush1.bf16.msra.mxu0 0
  %884 = vmatprep.mubr.bf16.mxu0 0
  %885 = vmatmul.mubr.bf16.gmra.mrb[0].mxu0 %v506
  %v886 = vpop.f32.mrb[0].mxu0
  %v887 = vadd.f32 0.0, %v886
  %v888 = vpop.f32.mrb[0].mxu0
  %v889 = vadd.f32 0.0, %v888
  %v890 = vpop.f32.mrb[0].mxu0
  %v891 = vadd.f32 0.0, %v890
  %v892 = vpop.f32.mrb[0].mxu0
  %v893 = vadd.f32 0.0, %v892
  %894 = vdwg.mxu0
  %895 = vmatprep.subr.bf16.mxu0 %v363
  %896 = vmatpush1.bf16.msra.mxu0 %v362
  %897 = vmatprep.subr.bf16.mxu0 %v403
  %898 = vmatpush1.bf16.msra.mxu0 %v402
  %899 = vmatprep.subr.bf16.mxu0 0
  %900 = vmatpush1.bf16.msra.mxu0 0
  %901 = vmatprep.subr.bf16.mxu0 0
  %902 = vmatpush1.bf16.msra.mxu0 0
  %903 = vmatprep.subr.bf16.mxu0 0
  %904 = vmatpush1.bf16.msra.mxu0 0
  %905 = vmatprep.subr.bf16.mxu0 0
  %906 = vmatpush1.bf16.msra.mxu0 0
  %907 = vmatprep.subr.bf16.mxu0 0
  %908 = vmatpush1.bf16.msra.mxu0 0
  %909 = vmatprep.subr.bf16.mxu0 0
  %910 = vmatpush1.bf16.msra.mxu0 0
  %911 = vmatprep.subr.bf16.mxu0 0
  %912 = vmatpush1.bf16.msra.mxu0 0
  %913 = vmatprep.subr.bf16.mxu0 0
  %914 = vmatpush1.bf16.msra.mxu0 0
  %915 = vmatprep.subr.bf16.mxu0 0
  %916 = vmatpush1.bf16.msra.mxu0 0
  %917 = vmatprep.subr.bf16.mxu0 0
  %918 = vmatpush1.bf16.msra.mxu0 0
  %919 = vmatprep.subr.bf16.mxu0 0
  %920 = vmatpush1.bf16.msra.mxu0 0
  %921 = vmatprep.subr.bf16.mxu0 0
  %922 = vmatpush1.bf16.msra.mxu0 0
  %923 = vmatprep.subr.bf16.mxu0 0
  %924 = vmatpush1.bf16.msra.mxu0 0
  %925 = vmatprep.subr.bf16.mxu0 0
  %926 = vmatpush1.bf16.msra.mxu0 0
  %927 = vmatprep.mubr.bf16.mxu0 0
  %928 = vmatmul.mubr.bf16.gmra.mrb[0].mxu0 %v506
  %v929 = vpop.f32.mrb[0].mxu0
  %v930 = vadd.f32 0.0, %v929
  %v931 = vpop.f32.mrb[0].mxu0
  %v932 = vadd.f32 0.0, %v931
  %v933 = vpop.f32.mrb[0].mxu0
  %v934 = vadd.f32 0.0, %v933
  %v935 = vpop.f32.mrb[0].mxu0
  %v936 = vadd.f32 0.0, %v935
  %937 = vdwg.mxu0
  %938 = vmatprep.subr.bf16.mxu0 %v365
  %939 = vmatpush1.bf16.msra.mxu0 %v364
  %940 = vmatprep.subr.bf16.mxu0 %v405
  %941 = vmatpush1.bf16.msra.mxu0 %v404
  %942 = vmatprep.subr.bf16.mxu0 0
  %943 = vmatpush1.bf16.msra.mxu0 0
  %944 = vmatprep.subr.bf16.mxu0 0
  %945 = vmatpush1.bf16.msra.mxu0 0
  %946 = vmatprep.subr.bf16.mxu0 0
  %947 = vmatpush1.bf16.msra.mxu0 0
  %948 = vmatprep.subr.bf16.mxu0 0
  %949 = vmatpush1.bf16.msra.mxu0 0
  %950 = vmatprep.subr.bf16.mxu0 0
  %951 = vmatpush1.bf16.msra.mxu0 0
  %952 = vmatprep.subr.bf16.mxu0 0
  %953 = vmatpush1.bf16.msra.mxu0 0
  %954 = vmatprep.subr.bf16.mxu0 0
  %955 = vmatpush1.bf16.msra.mxu0 0
  %956 = vmatprep.subr.bf16.mxu0 0
  %957 = vmatpush1.bf16.msra.mxu0 0
  %958 = vmatprep.subr.bf16.mxu0 0
  %959 = vmatpush1.bf16.msra.mxu0 0
  %960 = vmatprep.subr.bf16.mxu0 0
  %961 = vmatpush1.bf16.msra.mxu0 0
  %962 = vmatprep.subr.bf16.mxu0 0
  %963 = vmatpush1.bf16.msra.mxu0 0
  %964 = vmatprep.subr.bf16.mxu0 0
  %965 = vmatpush1.bf16.msra.mxu0 0
  %966 = vmatprep.subr.bf16.mxu0 0
  %967 = vmatpush1.bf16.msra.mxu0 0
  %968 = vmatprep.subr.bf16.mxu0 0
  %969 = vmatpush1.bf16.msra.mxu0 0
  %970 = vmatprep.mubr.bf16.mxu0 0
  %971 = vmatmul.mubr.bf16.gmra.mrb[0].mxu0 %v506
  %v972 = vpop.f32.mrb[0].mxu0
  %v973 = vadd.f32 0.0, %v972
  %v974 = vpop.f32.mrb[0].mxu0
  %v975 = vadd.f32 0.0, %v974
  %v976 = vpop.f32.mrb[0].mxu0
  %v977 = vadd.f32 0.0, %v976
  %v978 = vpop.f32.mrb[0].mxu0
  %v979 = vadd.f32 0.0, %v978
  %980 = vdwg.mxu0
  %981 = vmatprep.subr.bf16.mxu0 %v367
  %982 = vmatpush1.bf16.msra.mxu0 %v366
  %983 = vmatprep.subr.bf16.mxu0 %v407
  %984 = vmatpush1.bf16.msra.mxu0 %v406
  %985 = vmatprep.subr.bf16.mxu0 0
  %986 = vmatpush1.bf16.msra.mxu0 0
  %987 = vmatprep.subr.bf16.mxu0 0
  %988 = vmatpush1.bf16.msra.mxu0 0
  %989 = vmatprep.subr.bf16.mxu0 0
  %990 = vmatpush1.bf16.msra.mxu0 0
  %991 = vmatprep.subr.bf16.mxu0 0
  %992 = vmatpush1.bf16.msra.mxu0 0
  %993 = vmatprep.subr.bf16.mxu0 0
  %994 = vmatpush1.bf16.msra.mxu0 0
  %995 = vmatprep.subr.bf16.mxu0 0
  %996 = vmatpush1.bf16.msra.mxu0 0
  %997 = vmatprep.subr.bf16.mxu0 0
  %998 = vmatpush1.bf16.msra.mxu0 0
  %999 = vmatprep.subr.bf16.mxu0 0
  %1000 = vmatpush1.bf16.msra.mxu0 0
  %1001 = vmatprep.subr.bf16.mxu0 0
  %1002 = vmatpush1.bf16.msra.mxu0 0
  %1003 = vmatprep.subr.bf16.mxu0 0
  %1004 = vmatpush1.bf16.msra.mxu0 0
  %1005 = vmatprep.subr.bf16.mxu0 0
  %1006 = vmatpush1.bf16.msra.mxu0 0
  %1007 = vmatprep.subr.bf16.mxu0 0
  %1008 = vmatpush1.bf16.msra.mxu0 0
  %1009 = vmatprep.subr.bf16.mxu0 0
  %1010 = vmatpush1.bf16.msra.mxu0 0
  %1011 = vmatprep.subr.bf16.mxu0 0
  %1012 = vmatpush1.bf16.msra.mxu0 0
  %1013 = vmatprep.mubr.bf16.mxu0 0
  %1014 = vmatmul.mubr.bf16.gmra.mrb[0].mxu0 %v506
  %v1015 = vpop.f32.mrb[0].mxu0
  %v1016 = vadd.f32 0.0, %v1015
  %v1017 = vpop.f32.mrb[0].mxu0
  %v1018 = vadd.f32 0.0, %v1017
  %v1019 = vpop.f32.mrb[0].mxu0
  %v1020 = vadd.f32 0.0, %v1019
  %v1021 = vpop.f32.mrb[0].mxu0
  %v1022 = vadd.f32 0.0, %v1021
  %1023 = vdwg.mxu0
  %1024 = vmatprep.subr.bf16.mxu0 %v369
  %1025 = vmatpush1.bf16.msra.mxu0 %v368
  %1026 = vmatprep.subr.bf16.mxu0 %v409
  %1027 = vmatpush1.bf16.msra.mxu0 %v408
  %1028 = vmatprep.subr.bf16.mxu0 0
  %1029 = vmatpush1.bf16.msra.mxu0 0
  %1030 = vmatprep.subr.bf16.mxu0 0
  %1031 = vmatpush1.bf16.msra.mxu0 0
  %1032 = vmatprep.subr.bf16.mxu0 0
  %1033 = vmatpush1.bf16.msra.mxu0 0
  %1034 = vmatprep.subr.bf16.mxu0 0
  %1035 = vmatpush1.bf16.msra.mxu0 0
  %1036 = vmatprep.subr.bf16.mxu0 0
  %1037 = vmatpush1.bf16.msra.mxu0 0
  %1038 = vmatprep.subr.bf16.mxu0 0
  %1039 = vmatpush1.bf16.msra.mxu0 0
  %1040 = vmatprep.subr.bf16.mxu0 0
  %1041 = vmatpush1.bf16.msra.mxu0 0
  %1042 = vmatprep.subr.bf16.mxu0 0
  %1043 = vmatpush1.bf16.msra.mxu0 0
  %1044 = vmatprep.subr.bf16.mxu0 0
  %1045 = vmatpush1.bf16.msra.mxu0 0
  %1046 = vmatprep.subr.bf16.mxu0 0
  %1047 = vmatpush1.bf16.msra.mxu0 0
  %1048 = vmatprep.subr.bf16.mxu0 0
  %1049 = vmatpush1.bf16.msra.mxu0 0
  %1050 = vmatprep.subr.bf16.mxu0 0
  %1051 = vmatpush1.bf16.msra.mxu0 0
  %1052 = vmatprep.subr.bf16.mxu0 0
  %1053 = vmatpush1.bf16.msra.mxu0 0
  %1054 = vmatprep.subr.bf16.mxu0 0
  %1055 = vmatpush1.bf16.msra.mxu0 0
  %1056 = vmatprep.mubr.bf16.mxu0 0
  %1057 = vmatmul.mubr.bf16.gmra.mrb[0].mxu0 %v506
  %v1058 = vpop.f32.mrb[0].mxu0
  %v1059 = vadd.f32 0.0, %v1058
  %v1060 = vpop.f32.mrb[0].mxu0
  %v1061 = vadd.f32 0.0, %v1060
  %v1062 = vpop.f32.mrb[0].mxu0
  %v1063 = vadd.f32 0.0, %v1062
  %v1064 = vpop.f32.mrb[0].mxu0
  %v1065 = vadd.f32 0.0, %v1064
  %1066 = vdwg.mxu0
  %1067 = vmatprep.subr.bf16.mxu0 %v371
  %1068 = vmatpush1.bf16.msra.mxu0 %v370
  %1069 = vmatprep.subr.bf16.mxu0 %v411
  %1070 = vmatpush1.bf16.msra.mxu0 %v410
  %1071 = vmatprep.subr.bf16.mxu0 0
  %1072 = vmatpush1.bf16.msra.mxu0 0
  %1073 = vmatprep.subr.bf16.mxu0 0
  %1074 = vmatpush1.bf16.msra.mxu0 0
  %1075 = vmatprep.subr.bf16.mxu0 0
  %1076 = vmatpush1.bf16.msra.mxu0 0
  %1077 = vmatprep.subr.bf16.mxu0 0
  %1078 = vmatpush1.bf16.msra.mxu0 0
  %1079 = vmatprep.subr.bf16.mxu0 0
  %1080 = vmatpush1.bf16.msra.mxu0 0
  %1081 = vmatprep.subr.bf16.mxu0 0
  %1082 = vmatpush1.bf16.msra.mxu0 0
  %1083 = vmatprep.subr.bf16.mxu0 0
  %1084 = vmatpush1.bf16.msra.mxu0 0
  %1085 = vmatprep.subr.bf16.mxu0 0
  %1086 = vmatpush1.bf16.msra.mxu0 0
  %1087 = vmatprep.subr.bf16.mxu0 0
  %1088 = vmatpush1.bf16.msra.mxu0 0
  %1089 = vmatprep.subr.bf16.mxu0 0
  %1090 = vmatpush1.bf16.msra.mxu0 0
  %1091 = vmatprep.subr.bf16.mxu0 0
  %1092 = vmatpush1.bf16.msra.mxu0 0
  %1093 = vmatprep.subr.bf16.mxu0 0
  %1094 = vmatpush1.bf16.msra.mxu0 0
  %1095 = vmatprep.subr.bf16.mxu0 0
  %1096 = vmatpush1.bf16.msra.mxu0 0
  %1097 = vmatprep.subr.bf16.mxu0 0
  %1098 = vmatpush1.bf16.msra.mxu0 0
  %1099 = vmatprep.mubr.bf16.mxu0 0
  %1100 = vmatmul.mubr.bf16.gmra.mrb[0].mxu0 %v506
  %v1101 = vpop.f32.mrb[0].mxu0
  %v1102 = vadd.f32 0.0, %v1101
  %v1103 = vpop.f32.mrb[0].mxu0
  %v1104 = vadd.f32 0.0, %v1103
  %v1105 = vpop.f32.mrb[0].mxu0
  %v1106 = vadd.f32 0.0, %v1105
  %v1107 = vpop.f32.mrb[0].mxu0
  %v1108 = vadd.f32 0.0, %v1107
  %1109 = vdwg.mxu0
  %1110 = vmatprep.subr.bf16.mxu0 %v373
  %1111 = vmatpush1.bf16.msra.mxu0 %v372
  %1112 = vmatprep.subr.bf16.mxu0 %v413
  %1113 = vmatpush1.bf16.msra.mxu0 %v412
  %1114 = vmatprep.subr.bf16.mxu0 0
  %1115 = vmatpush1.bf16.msra.mxu0 0
  %1116 = vmatprep.subr.bf16.mxu0 0
  %1117 = vmatpush1.bf16.msra.mxu0 0
  %1118 = vmatprep.subr.bf16.mxu0 0
  %1119 = vmatpush1.bf16.msra.mxu0 0
  %1120 = vmatprep.subr.bf16.mxu0 0
  %1121 = vmatpush1.bf16.msra.mxu0 0
  %1122 = vmatprep.subr.bf16.mxu0 0
  %1123 = vmatpush1.bf16.msra.mxu0 0
  %1124 = vmatprep.subr.bf16.mxu0 0
  %1125 = vmatpush1.bf16.msra.mxu0 0
  %1126 = vmatprep.subr.bf16.mxu0 0
  %1127 = vmatpush1.bf16.msra.mxu0 0
  %1128 = vmatprep.subr.bf16.mxu0 0
  %1129 = vmatpush1.bf16.msra.mxu0 0
  %1130 = vmatprep.subr.bf16.mxu0 0
  %1131 = vmatpush1.bf16.msra.mxu0 0
  %1132 = vmatprep.subr.bf16.mxu0 0
  %1133 = vmatpush1.bf16.msra.mxu0 0
  %1134 = vmatprep.subr.bf16.mxu0 0
  %1135 = vmatpush1.bf16.msra.mxu0 0
  %1136 = vmatprep.subr.bf16.mxu0 0
  %1137 = vmatpush1.bf16.msra.mxu0 0
  %1138 = vmatprep.subr.bf16.mxu0 0
  %1139 = vmatpush1.bf16.msra.mxu0 0
  %1140 = vmatprep.subr.bf16.mxu0 0
  %1141 = vmatpush1.bf16.msra.mxu0 0
  %1142 = vmatprep.mubr.bf16.mxu0 0
  %1143 = vmatmul.mubr.bf16.gmra.mrb[0].mxu0 %v506
  %v1144 = vpop.f32.mrb[0].mxu0
  %v1145 = vadd.f32 0.0, %v1144
  %v1146 = vpop.f32.mrb[0].mxu0
  %v1147 = vadd.f32 0.0, %v1146
  %v1148 = vpop.f32.mrb[0].mxu0
  %v1149 = vadd.f32 0.0, %v1148
  %v1150 = vpop.f32.mrb[0].mxu0
  %v1151 = vadd.f32 0.0, %v1150
  %1152 = vdwg.mxu0
  %1153 = vmatprep.subr.bf16.mxu0 %v375
  %1154 = vmatpush1.bf16.msra.mxu0 %v374
  %1155 = vmatprep.subr.bf16.mxu0 %v415
  %1156 = vmatpush1.bf16.msra.mxu0 %v414
  %1157 = vmatprep.subr.bf16.mxu0 0
  %1158 = vmatpush1.bf16.msra.mxu0 0
  %1159 = vmatprep.subr.bf16.mxu0 0
  %1160 = vmatpush1.bf16.msra.mxu0 0
  %1161 = vmatprep.subr.bf16.mxu0 0
  %1162 = vmatpush1.bf16.msra.mxu0 0
  %1163 = vmatprep.subr.bf16.mxu0 0
  %1164 = vmatpush1.bf16.msra.mxu0 0
  %1165 = vmatprep.subr.bf16.mxu0 0
  %1166 = vmatpush1.bf16.msra.mxu0 0
  %1167 = vmatprep.subr.bf16.mxu0 0
  %1168 = vmatpush1.bf16.msra.mxu0 0
  %1169 = vmatprep.subr.bf16.mxu0 0
  %1170 = vmatpush1.bf16.msra.mxu0 0
  %1171 = vmatprep.subr.bf16.mxu0 0
  %1172 = vmatpush1.bf16.msra.mxu0 0
  %1173 = vmatprep.subr.bf16.mxu0 0
  %1174 = vmatpush1.bf16.msra.mxu0 0
  %1175 = vmatprep.subr.bf16.mxu0 0
  %1176 = vmatpush1.bf16.msra.mxu0 0
  %1177 = vmatprep.subr.bf16.mxu0 0
  %1178 = vmatpush1.bf16.msra.mxu0 0
  %1179 = vmatprep.subr.bf16.mxu0 0
  %1180 = vmatpush1.bf16.msra.mxu0 0
  %1181 = vmatprep.subr.bf16.mxu0 0
  %1182 = vmatpush1.bf16.msra.mxu0 0
  %1183 = vmatprep.subr.bf16.mxu0 0
  %1184 = vmatpush1.bf16.msra.mxu0 0
  %1185 = vmatprep.mubr.bf16.mxu0 0
  %1186 = vmatmul.mubr.bf16.gmra.mrb[0].mxu0 %v506
  %v1187 = vpop.f32.mrb[0].mxu0
  %v1188 = vadd.f32 0.0, %v1187
  %v1189 = vpop.f32.mrb[0].mxu0
  %v1190 = vadd.f32 0.0, %v1189
  %v1191 = vpop.f32.mrb[0].mxu0
  %v1192 = vadd.f32 0.0, %v1191
  %v1193 = vpop.f32.mrb[0].mxu0
  %v1194 = vadd.f32 0.0, %v1193
  %1195 = vdwg.mxu0
  %1196 = vmatprep.subr.bf16.mxu0 %v377
  %1197 = vmatpush1.bf16.msra.mxu0 %v376
  %1198 = vmatprep.subr.bf16.mxu0 %v417
  %1199 = vmatpush1.bf16.msra.mxu0 %v416
  %1200 = vmatprep.subr.bf16.mxu0 0
  %1201 = vmatpush1.bf16.msra.mxu0 0
  %1202 = vmatprep.subr.bf16.mxu0 0
  %1203 = vmatpush1.bf16.msra.mxu0 0
  %1204 = vmatprep.subr.bf16.mxu0 0
  %1205 = vmatpush1.bf16.msra.mxu0 0
  %1206 = vmatprep.subr.bf16.mxu0 0
  %1207 = vmatpush1.bf16.msra.mxu0 0
  %1208 = vmatprep.subr.bf16.mxu0 0
  %1209 = vmatpush1.bf16.msra.mxu0 0
  %1210 = vmatprep.subr.bf16.mxu0 0
  %1211 = vmatpush1.bf16.msra.mxu0 0
  %1212 = vmatprep.subr.bf16.mxu0 0
  %1213 = vmatpush1.bf16.msra.mxu0 0
  %1214 = vmatprep.subr.bf16.mxu0 0
  %1215 = vmatpush1.bf16.msra.mxu0 0
  %1216 = vmatprep.subr.bf16.mxu0 0
  %1217 = vmatpush1.bf16.msra.mxu0 0
  %1218 = vmatprep.subr.bf16.mxu0 0
  %1219 = vmatpush1.bf16.msra.mxu0 0
  %1220 = vmatprep.subr.bf16.mxu0 0
  %1221 = vmatpush1.bf16.msra.mxu0 0
  %1222 = vmatprep.subr.bf16.mxu0 0
  %1223 = vmatpush1.bf16.msra.mxu0 0
  %1224 = vmatprep.subr.bf16.mxu0 0
  %1225 = vmatpush1.bf16.msra.mxu0 0
  %1226 = vmatprep.subr.bf16.mxu0 0
  %1227 = vmatpush1.bf16.msra.mxu0 0
  %1228 = vmatprep.mubr.bf16.mxu0 0
  %1229 = vmatmul.mubr.bf16.gmra.mrb[0].mxu0 %v506
  %v1230 = vpop.f32.mrb[0].mxu0
  %v1231 = vadd.f32 0.0, %v1230
  %v1232 = vpop.f32.mrb[0].mxu0
  %v1233 = vadd.f32 0.0, %v1232
  %v1234 = vpop.f32.mrb[0].mxu0
  %v1235 = vadd.f32 0.0, %v1234
  %v1236 = vpop.f32.mrb[0].mxu0
  %v1237 = vadd.f32 0.0, %v1236
  %1238 = vdwg.mxu0
  %1239 = vmatprep.subr.bf16.mxu0 %v379
  %1240 = vmatpush1.bf16.msra.mxu0 %v378
  %1241 = vmatprep.subr.bf16.mxu0 %v419
  %1242 = vmatpush1.bf16.msra.mxu0 %v418
  %1243 = vmatprep.subr.bf16.mxu0 0
  %1244 = vmatpush1.bf16.msra.mxu0 0
  %1245 = vmatprep.subr.bf16.mxu0 0
  %1246 = vmatpush1.bf16.msra.mxu0 0
  %1247 = vmatprep.subr.bf16.mxu0 0
  %1248 = vmatpush1.bf16.msra.mxu0 0
  %1249 = vmatprep.subr.bf16.mxu0 0
  %1250 = vmatpush1.bf16.msra.mxu0 0
  %1251 = vmatprep.subr.bf16.mxu0 0
  %1252 = vmatpush1.bf16.msra.mxu0 0
  %1253 = vmatprep.subr.bf16.mxu0 0
  %1254 = vmatpush1.bf16.msra.mxu0 0
  %1255 = vmatprep.subr.bf16.mxu0 0
  %1256 = vmatpush1.bf16.msra.mxu0 0
  %1257 = vmatprep.subr.bf16.mxu0 0
  %1258 = vmatpush1.bf16.msra.mxu0 0
  %1259 = vmatprep.subr.bf16.mxu0 0
  %1260 = vmatpush1.bf16.msra.mxu0 0
  %1261 = vmatprep.subr.bf16.mxu0 0
  %1262 = vmatpush1.bf16.msra.mxu0 0
  %1263 = vmatprep.subr.bf16.mxu0 0
  %1264 = vmatpush1.bf16.msra.mxu0 0
  %1265 = vmatprep.subr.bf16.mxu0 0
  %1266 = vmatpush1.bf16.msra.mxu0 0
  %1267 = vmatprep.subr.bf16.mxu0 0
  %1268 = vmatpush1.bf16.msra.mxu0 0
  %1269 = vmatprep.subr.bf16.mxu0 0
  %1270 = vmatpush1.bf16.msra.mxu0 0
  %1271 = vmatprep.mubr.bf16.mxu0 0
  %1272 = vmatmul.mubr.bf16.gmra.mrb[0].mxu0 %v506
  %v1273 = vpop.f32.mrb[0].mxu0
  %v1274 = vadd.f32 0.0, %v1273
  %v1275 = vpop.f32.mrb[0].mxu0
  %v1276 = vadd.f32 0.0, %v1275
  %v1277 = vpop.f32.mrb[0].mxu0
  %v1278 = vadd.f32 0.0, %v1277
  %v1279 = vpop.f32.mrb[0].mxu0
  %v1280 = vadd.f32 0.0, %v1279
  %1281 = vdwg.mxu0
  %1282 = vmatprep.subr.bf16.mxu0 %v381
  %1283 = vmatpush1.bf16.msra.mxu0 %v380
  %1284 = vmatprep.subr.bf16.mxu0 %v421
  %1285 = vmatpush1.bf16.msra.mxu0 %v420
  %1286 = vmatprep.subr.bf16.mxu0 0
  %1287 = vmatpush1.bf16.msra.mxu0 0
  %1288 = vmatprep.subr.bf16.mxu0 0
  %1289 = vmatpush1.bf16.msra.mxu0 0
  %1290 = vmatprep.subr.bf16.mxu0 0
  %1291 = vmatpush1.bf16.msra.mxu0 0
  %1292 = vmatprep.subr.bf16.mxu0 0
  %1293 = vmatpush1.bf16.msra.mxu0 0
  %1294 = vmatprep.subr.bf16.mxu0 0
  %1295 = vmatpush1.bf16.msra.mxu0 0
  %1296 = vmatprep.subr.bf16.mxu0 0
  %1297 = vmatpush1.bf16.msra.mxu0 0
  %1298 = vmatprep.subr.bf16.mxu0 0
  %1299 = vmatpush1.bf16.msra.mxu0 0
  %1300 = vmatprep.subr.bf16.mxu0 0
  %1301 = vmatpush1.bf16.msra.mxu0 0
  %1302 = vmatprep.subr.bf16.mxu0 0
  %1303 = vmatpush1.bf16.msra.mxu0 0
  %1304 = vmatprep.subr.bf16.mxu0 0
  %1305 = vmatpush1.bf16.msra.mxu0 0
  %1306 = vmatprep.subr.bf16.mxu0 0
  %1307 = vmatpush1.bf16.msra.mxu0 0
  %1308 = vmatprep.subr.bf16.mxu0 0
  %1309 = vmatpush1.bf16.msra.mxu0 0
  %1310 = vmatprep.subr.bf16.mxu0 0
  %1311 = vmatpush1.bf16.msra.mxu0 0
  %1312 = vmatprep.subr.bf16.mxu0 0
  %1313 = vmatpush1.bf16.msra.mxu0 0
  %1314 = vmatprep.mubr.bf16.mxu0 0
  %1315 = vmatmul.mubr.bf16.gmra.mrb[0].mxu0 %v506
  %v1316 = vpop.f32.mrb[0].mxu0
  %v1317 = vadd.f32 0.0, %v1316
  %v1318 = vpop.f32.mrb[0].mxu0
  %v1319 = vadd.f32 0.0, %v1318
  %v1320 = vpop.f32.mrb[0].mxu0
  %v1321 = vadd.f32 0.0, %v1320
  %v1322 = vpop.f32.mrb[0].mxu0
  %v1323 = vadd.f32 0.0, %v1322
  %1324 = vdwg.mxu0
  %1325 = vmatprep.subr.bf16.mxu0 %v383
  %1326 = vmatpush1.bf16.msra.mxu0 %v382
  %1327 = vmatprep.subr.bf16.mxu0 %v423
  %1328 = vmatpush1.bf16.msra.mxu0 %v422
  %1329 = vmatprep.subr.bf16.mxu0 0
  %1330 = vmatpush1.bf16.msra.mxu0 0
  %1331 = vmatprep.subr.bf16.mxu0 0
  %1332 = vmatpush1.bf16.msra.mxu0 0
  %1333 = vmatprep.subr.bf16.mxu0 0
  %1334 = vmatpush1.bf16.msra.mxu0 0
  %1335 = vmatprep.subr.bf16.mxu0 0
  %1336 = vmatpush1.bf16.msra.mxu0 0
  %1337 = vmatprep.subr.bf16.mxu0 0
  %1338 = vmatpush1.bf16.msra.mxu0 0
  %1339 = vmatprep.subr.bf16.mxu0 0
  %1340 = vmatpush1.bf16.msra.mxu0 0
  %1341 = vmatprep.subr.bf16.mxu0 0
  %1342 = vmatpush1.bf16.msra.mxu0 0
  %1343 = vmatprep.subr.bf16.mxu0 0
  %1344 = vmatpush1.bf16.msra.mxu0 0
  %1345 = vmatprep.subr.bf16.mxu0 0
  %1346 = vmatpush1.bf16.msra.mxu0 0
  %1347 = vmatprep.subr.bf16.mxu0 0
  %1348 = vmatpush1.bf16.msra.mxu0 0
  %1349 = vmatprep.subr.bf16.mxu0 0
  %1350 = vmatpush1.bf16.msra.mxu0 0
  %1351 = vmatprep.subr.bf16.mxu0 0
  %1352 = vmatpush1.bf16.msra.mxu0 0
  %1353 = vmatprep.subr.bf16.mxu0 0
  %1354 = vmatpush1.bf16.msra.mxu0 0
  %1355 = vmatprep.subr.bf16.mxu0 0
  %1356 = vmatpush1.bf16.msra.mxu0 0
  %1357 = vmatprep.mubr.bf16.mxu0 0
  %1358 = vmatmul.mubr.bf16.gmra.mrb[0].mxu0 %v506
  %v1359 = vpop.f32.mrb[0].mxu0
  %v1360 = vadd.f32 0.0, %v1359
  %v1361 = vpop.f32.mrb[0].mxu0
  %v1362 = vadd.f32 0.0, %v1361
  %v1363 = vpop.f32.mrb[0].mxu0
  %v1364 = vadd.f32 0.0, %v1363
  %v1365 = vpop.f32.mrb[0].mxu0
  %v1366 = vadd.f32 0.0, %v1365
  %1367 = vdwg.mxu0
  %v1368 = vmax.f32 %v543, %v758
  %v1369 = vmax.f32 %v545, %v760
  %v1370 = vmax.f32 %v586, %v801
  %v1371 = vmax.f32 %v588, %v803
  %v1372 = vmax.f32 %v629, %v844
  %v1373 = vmax.f32 %v631, %v846
  %v1374 = vmax.f32 %v672, %v887
  %v1375 = vmax.f32 %v674, %v889
  %v1376 = vmax.f32 %v715, %v930
  %v1377 = vmax.f32 %v717, %v932
  %v1378 = vmax.f32 %v547, %v762
  %v1379 = vmax.f32 %v549, %v764
  %v1380 = vmax.f32 %v590, %v805
  %v1381 = vmax.f32 %v592, %v807
  %v1382 = vmax.f32 %v633, %v848
  %v1383 = vmax.f32 %v635, %v850
  %v1384 = vmax.f32 %v676, %v891
  %v1385 = vmax.f32 %v678, %v893
  %v1386 = vmax.f32 %v719, %v934
  %v1387 = vmax.f32 %v721, %v936
  %v1388 = vmax.f32 %v973, %v1188
  %v1389 = vmax.f32 %v975, %v1190
  %v1390 = vmax.f32 %v1016, %v1231
  %v1391 = vmax.f32 %v1018, %v1233
  %v1392 = vmax.f32 %v1059, %v1274
  %v1393 = vmax.f32 %v1061, %v1276
  %v1394 = vmax.f32 %v1102, %v1317
  %v1395 = vmax.f32 %v1104, %v1319
  %v1396 = vmax.f32 %v1145, %v1360
  %v1397 = vmax.f32 %v1147, %v1362
  %v1398 = vmax.f32 %v977, %v1192
  %v1399 = vmax.f32 %v979, %v1194
  %v1400 = vmax.f32 %v1020, %v1235
  %v1401 = vmax.f32 %v1022, %v1237
  %v1402 = vmax.f32 %v1063, %v1278
  %v1403 = vmax.f32 %v1065, %v1280
  %v1404 = vmax.f32 %v1106, %v1321
  %v1405 = vmax.f32 %v1108, %v1323
  %v1406 = vmax.f32 %v1149, %v1364
  %v1407 = vmax.f32 %v1151, %v1366
  %v1408 = vmax.f32 %v1368, %v1388
  %v1409 = vmax.f32 %v1369, %v1389
  %v1410 = vmax.f32 %v1370, %v1390
  %v1411 = vmax.f32 %v1371, %v1391
  %v1412 = vmax.f32 %v1372, %v1392
  %v1413 = vmax.f32 %v1373, %v1393
  %v1414 = vmax.f32 %v1374, %v1394
  %v1415 = vmax.f32 %v1375, %v1395
  %v1416 = vmax.f32 %v1376, %v1396
  %v1417 = vmax.f32 %v1377, %v1397
  %v1418 = vmax.f32 %v1378, %v1398
  %v1419 = vmax.f32 %v1379, %v1399
  %v1420 = vmax.f32 %v1380, %v1400
  %v1421 = vmax.f32 %v1381, %v1401
  %v1422 = vmax.f32 %v1382, %v1402
  %v1423 = vmax.f32 %v1383, %v1403
  %v1424 = vmax.f32 %v1384, %v1404
  %v1425 = vmax.f32 %v1385, %v1405
  %v1426 = vmax.f32 %v1386, %v1406
  %v1427 = vmax.f32 %v1387, %v1407
  %1429 = vset.pattern.permute.xlu0 0
  %1430 = vperm.xlu0 %1429, %v17
  %v1431 = vpop.permute.xlu0 %1430
  %1434 = vset.pattern.permute.xlu0 0
  %1435 = vperm.xlu0 %1434, %v18
  %v1436 = vpop.permute.xlu0 %1435
  %v1438 = vadd.f32 %v1408, %v1431
  %v1439 = vadd.f32 %v1409, %v1431
  %v1440 = vadd.f32 %v1410, %v1431
  %v1441 = vadd.f32 %v1411, %v1431
  %v1442 = vadd.f32 %v1412, %v1431
  %v1443 = vadd.f32 %v1413, %v1431
  %v1444 = vadd.f32 %v1414, %v1431
  %v1445 = vadd.f32 %v1415, %v1431
  %v1446 = vadd.f32 %v1416, %v1431
  %v1447 = vadd.f32 %v1417, %v1431
  %v1448 = vadd.f32 %v1418, %v1436
  %v1449 = vadd.f32 %v1419, %v1436
  %v1450 = vadd.f32 %v1420, %v1436
  %v1451 = vadd.f32 %v1421, %v1436
  %v1452 = vadd.f32 %v1422, %v1436
  %v1453 = vadd.f32 %v1423, %v1436
  %v1454 = vadd.f32 %v1424, %v1436
  %v1455 = vadd.f32 %v1425, %v1436
  %v1456 = vadd.f32 %v1426, %v1436
  %v1457 = vadd.f32 %v1427, %v1436
  %v1458 = vmax.f32 %v1438, 0.0
  %v1459 = vmax.f32 %v1439, 0.0
  %v1460 = vmax.f32 %v1440, 0.0
  %v1461 = vmax.f32 %v1441, 0.0
  %v1462 = vmax.f32 %v1442, 0.0
  %v1463 = vmax.f32 %v1443, 0.0
  %v1464 = vmax.f32 %v1444, 0.0
  %v1465 = vmax.f32 %v1445, 0.0
  %v1466 = vmax.f32 %v1446, 0.0
  %v1467 = vmax.f32 %v1447, 0.0
  %v1468 = vmax.f32 %v1448, 0.0
  %v1469 = vmax.f32 %v1449, 0.0
  %v1470 = vmax.f32 %v1450, 0.0
  %v1471 = vmax.f32 %v1451, 0.0
  %v1472 = vmax.f32 %v1452, 0.0
  %v1473 = vmax.f32 %v1453, 0.0
  %v1474 = vmax.f32 %v1454, 0.0
  %v1475 = vmax.f32 %v1455, 0.0
  %v1476 = vmax.f32 %v1456, 0.0
  %v1477 = vmax.f32 %v1457, 0.0
  %v1478 = vpack.c.bf16 %v1468, %v1458
  %v1479 = vpack.c.bf16 %v1469, %v1459
  %v1480 = vpack.c.bf16 %v1470, %v1460
  %v1481 = vpack.c.bf16 %v1471, %v1461
  %v1482 = vpack.c.bf16 %v1472, %v1462
  %v1483 = vpack.c.bf16 %v1473, %v1463
  %v1484 = vpack.c.bf16 %v1474, %v1464
  %v1485 = vpack.c.bf16 %v1475, %v1465
  %v1486 = vpack.c.bf16 %v1476, %v1466
  %v1487 = vpack.c.bf16 %v1477, %v1467
  %v1498 = vunpack.c.l.b16 %v1478
  %v1499 = vunpack.c.l.b16 %v1479
  %v1500 = vunpack.c.l.b16 %v1480
  %v1501 = vunpack.c.l.b16 %v1481
  %v1502 = vunpack.c.l.b16 %v1482
  %v1503 = vunpack.c.l.b16 %v1483
  %v1504 = vunpack.c.l.b16 %v1484
  %v1505 = vunpack.c.l.b16 %v1485
  %v1506 = vunpack.c.l.b16 %v1486
  %v1507 = vunpack.c.l.b16 %v1487
  %v1508 = vunpack.c.h.b16 %v1478
  %v1509 = vunpack.c.h.b16 %v1479
  %v1510 = vunpack.c.h.b16 %v1480
  %v1511 = vunpack.c.h.b16 %v1481
  %v1512 = vunpack.c.h.b16 %v1482
  %v1513 = vunpack.c.h.b16 %v1483
  %v1514 = vunpack.c.h.b16 %v1484
  %v1515 = vunpack.c.h.b16 %v1485
  %v1516 = vunpack.c.h.b16 %v1486
  %v1517 = vunpack.c.h.b16 %v1487
  %v1518 = vpack.c.b16 %v1499, %v1498
  %v1519 = vpack.c.b16 %v1501, %v1500
  %v1520 = vpack.c.b16 %v1503, %v1502
  %v1521 = vpack.c.b16 %v1505, %v1504
  %v1522 = vpack.c.b16 %v1507, %v1506
  %v1523 = vpack.c.b16 %v1509, %v1508
  %v1524 = vpack.c.b16 %v1511, %v1510
  %v1525 = vpack.c.b16 %v1513, %v1512
  %v1526 = vpack.c.b16 %v1515, %v1514
  %v1527 = vpack.c.b16 %v1517, %v1516
  %1538 = vst [vmem:[%s3] sm:$0xff] %v1518
  %1539 = vst [vmem:[%s3 + $0x8] sm:$0xff] %v1519
  %1540 = vst [vmem:[%s3 + $0x10] sm:$0xff] %v1520
  %1541 = vst [vmem:[%s3 + $0x18] sm:$0xff] %v1521
  %1542 = vst [vmem:[%s3 + $0x20] sm:$0xff] %v1522
  %1543 = vst [vmem:[%s3 + $0x28] sm:$0xff] %v1523
  %1544 = vst [vmem:[%s3 + $0x30] sm:$0xff] %v1524
  %1545 = vst [vmem:[%s3 + $0x38] sm:$0xff] %v1525
  %1546 = vst [vmem:[%s3 + $0x40] sm:$0xff] %v1526
  %1547 = vst [vmem:[%s3 + $0x48] sm:$0xff] %v1527
  %s1548 = scalar_lea.vmem %s0, 640
  %v1549 = vld [vmem:[%s1548] sm:$0xff]
  %v1550 = vld [vmem:[%s1548 + $0x8] sm:$0xff]
  %v1551 = vld [vmem:[%s1548 + $0x10] sm:$0xff]
  %v1552 = vld [vmem:[%s1548 + $0x18] sm:$0xff]
  %v1553 = vld [vmem:[%s1548 + $0x20] sm:$0xff]
  %v1554 = vld [vmem:[%s1548 + $0x28] sm:$0xff]
  %v1555 = vld [vmem:[%s1548 + $0x30] sm:$0xff]
  %v1556 = vld [vmem:[%s1548 + $0x38] sm:$0xff]
  %v1557 = vld [vmem:[%s1548 + $0x40] sm:$0xff]
  %v1558 = vld [vmem:[%s1548 + $0x48] sm:$0xff]
  %v1559 = vld [vmem:[%s1548 + $0x50] sm:$0xff]
  %v1560 = vld [vmem:[%s1548 + $0x58] sm:$0xff]
  %v1561 = vld [vmem:[%s1548 + $0x60] sm:$0xff]
  %v1562 = vld [vmem:[%s1548 + $0x68] sm:$0xff]
  %v1563 = vld [vmem:[%s1548 + $0x70] sm:$0xff]
  %v1564 = vld [vmem:[%s1548 + $0x78] sm:$0xff]
  %v1565 = vld [vmem:[%s1548 + $0x80] sm:$0xff]
  %v1566 = vld [vmem:[%s1548 + $0x88] sm:$0xff]
  %v1567 = vld [vmem:[%s1548 + $0x90] sm:$0xff]
  %v1568 = vld [vmem:[%s1548 + $0x98] sm:$0xff]
  %v1569 = vld [vmem:[%s1548 + $0xa0] sm:$0xff]
  %v1570 = vld [vmem:[%s1548 + $0xa8] sm:$0xff]
  %v1571 = vld [vmem:[%s1548 + $0xb0] sm:$0xff]
  %v1572 = vld [vmem:[%s1548 + $0xb8] sm:$0xff]
  %v1573 = vld [vmem:[%s1548 + $0xc0] sm:$0xff]
  %v1574 = vld [vmem:[%s1548 + $0xc8] sm:$0xff]
  %v1575 = vld [vmem:[%s1548 + $0xd0] sm:$0xff]
  %v1576 = vld [vmem:[%s1548 + $0xd8] sm:$0xff]
  %v1577 = vld [vmem:[%s1548 + $0xe0] sm:$0xff]
  %v1578 = vld [vmem:[%s1548 + $0xe8] sm:$0xff]
  %v1579 = vld [vmem:[%s1548 + $0xf0] sm:$0xff]
  %v1580 = vld [vmem:[%s1548 + $0xf8] sm:$0xff]
  %v1581 = vld [vmem:[%s1548 + $0x100] sm:$0xff]
  %v1582 = vld [vmem:[%s1548 + $0x108] sm:$0xff]
  %v1583 = vld [vmem:[%s1548 + $0x110] sm:$0xff]
  %v1584 = vld [vmem:[%s1548 + $0x118] sm:$0xff]
  %v1585 = vld [vmem:[%s1548 + $0x120] sm:$0xff]
  %v1586 = vld [vmem:[%s1548 + $0x128] sm:$0xff]
  %v1587 = vld [vmem:[%s1548 + $0x130] sm:$0xff]
  %v1588 = vld [vmem:[%s1548 + $0x138] sm:$0xff]
  %v1589 = vld [vmem:[%s1548 + $0x140] sm:$0xff]
  %v1590 = vld [vmem:[%s1548 + $0x148] sm:$0xff]
  %v1591 = vld [vmem:[%s1548 + $0x150] sm:$0xff]
  %v1592 = vld [vmem:[%s1548 + $0x158] sm:$0xff]
  %v1593 = vld [vmem:[%s1548 + $0x160] sm:$0xff]
  %v1594 = vld [vmem:[%s1548 + $0x168] sm:$0xff]
  %v1595 = vld [vmem:[%s1548 + $0x170] sm:$0xff]
  %v1596 = vld [vmem:[%s1548 + $0x178] sm:$0xff]
  %v1597 = vld [vmem:[%s1548 + $0x180] sm:$0xff]
  %v1598 = vld [vmem:[%s1548 + $0x188] sm:$0xff]
  %v1599 = vld [vmem:[%s1548 + $0x190] sm:$0xff]
  %v1600 = vld [vmem:[%s1548 + $0x198] sm:$0xff]
  %v1601 = vld [vmem:[%s1548 + $0x1a0] sm:$0xff]
  %v1602 = vld [vmem:[%s1548 + $0x1a8] sm:$0xff]
  %v1603 = vld [vmem:[%s1548 + $0x1b0] sm:$0xff]
  %v1604 = vld [vmem:[%s1548 + $0x1b8] sm:$0xff]
  %v1605 = vld [vmem:[%s1548 + $0x1c0] sm:$0xff]
  %v1606 = vld [vmem:[%s1548 + $0x1c8] sm:$0xff]
  %v1607 = vld [vmem:[%s1548 + $0x1d0] sm:$0xff]
  %v1608 = vld [vmem:[%s1548 + $0x1d8] sm:$0xff]
  %v1609 = vld [vmem:[%s1548 + $0x1e0] sm:$0xff]
  %v1610 = vld [vmem:[%s1548 + $0x1e8] sm:$0xff]
  %v1611 = vld [vmem:[%s1548 + $0x1f0] sm:$0xff]
  %v1612 = vld [vmem:[%s1548 + $0x1f8] sm:$0xff]
  %v1613 = vld [vmem:[%s1548 + $0x200] sm:$0xff]
  %v1614 = vld [vmem:[%s1548 + $0x208] sm:$0xff]
  %v1615 = vld [vmem:[%s1548 + $0x210] sm:$0xff]
  %v1616 = vld [vmem:[%s1548 + $0x218] sm:$0xff]
  %v1617 = vld [vmem:[%s1548 + $0x220] sm:$0xff]
  %v1618 = vld [vmem:[%s1548 + $0x228] sm:$0xff]
  %v1619 = vld [vmem:[%s1548 + $0x230] sm:$0xff]
  %v1620 = vld [vmem:[%s1548 + $0x238] sm:$0xff]
  %v1621 = vld [vmem:[%s1548 + $0x240] sm:$0xff]
  %v1622 = vld [vmem:[%s1548 + $0x248] sm:$0xff]
  %v1623 = vld [vmem:[%s1548 + $0x250] sm:$0xff]
  %v1624 = vld [vmem:[%s1548 + $0x258] sm:$0xff]
  %v1625 = vld [vmem:[%s1548 + $0x260] sm:$0xff]
  %v1626 = vld [vmem:[%s1548 + $0x268] sm:$0xff]
  %v1627 = vld [vmem:[%s1548 + $0x270] sm:$0xff]
  %v1628 = vld [vmem:[%s1548 + $0x278] sm:$0xff]
  %v1709 = vunpack.c.l.b16 %v1549
  %v1710 = vunpack.c.h.b16 %v1549
  %v1711 = vunpack.c.l.b16 %v1550
  %v1712 = vunpack.c.h.b16 %v1550
  %v1713 = vunpack.c.l.b16 %v1551
  %v1714 = vunpack.c.h.b16 %v1551
  %v1715 = vunpack.c.l.b16 %v1552
  %v1716 = vunpack.c.h.b16 %v1552
  %v1717 = vunpack.c.l.b16 %v1553
  %v1718 = vunpack.c.h.b16 %v1553
  %v1719 = vunpack.c.l.b16 %v1554
  %v1720 = vunpack.c.h.b16 %v1554
  %v1721 = vunpack.c.l.b16 %v1555
  %v1722 = vunpack.c.h.b16 %v1555
  %v1723 = vunpack.c.l.b16 %v1556
  %v1724 = vunpack.c.h.b16 %v1556
  %v1725 = vunpack.c.l.b16 %v1557
  %v1726 = vunpack.c.h.b16 %v1557
  %v1727 = vunpack.c.l.b16 %v1558
  %v1728 = vunpack.c.h.b16 %v1558
  %v1729 = vunpack.c.l.b16 %v1559
  %v1730 = vunpack.c.h.b16 %v1559
  %v1731 = vunpack.c.l.b16 %v1560
  %v1732 = vunpack.c.h.b16 %v1560
  %v1733 = vunpack.c.l.b16 %v1561
  %v1734 = vunpack.c.h.b16 %v1561
  %v1735 = vunpack.c.l.b16 %v1562
  %v1736 = vunpack.c.h.b16 %v1562
  %v1737 = vunpack.c.l.b16 %v1563
  %v1738 = vunpack.c.h.b16 %v1563
  %v1739 = vunpack.c.l.b16 %v1564
  %v1740 = vunpack.c.h.b16 %v1564
  %v1741 = vunpack.c.l.b16 %v1565
  %v1742 = vunpack.c.h.b16 %v1565
  %v1743 = vunpack.c.l.b16 %v1566
  %v1744 = vunpack.c.h.b16 %v1566
  %v1745 = vunpack.c.l.b16 %v1567
  %v1746 = vunpack.c.h.b16 %v1567
  %v1747 = vunpack.c.l.b16 %v1568
  %v1748 = vunpack.c.h.b16 %v1568
  %v1749 = vunpack.c.l.b16 %v1569
  %v1750 = vunpack.c.h.b16 %v1569
  %v1751 = vunpack.c.l.b16 %v1570
  %v1752 = vunpack.c.h.b16 %v1570
  %v1753 = vunpack.c.l.b16 %v1571
  %v1754 = vunpack.c.h.b16 %v1571
  %v1755 = vunpack.c.l.b16 %v1572
  %v1756 = vunpack.c.h.b16 %v1572
  %v1757 = vunpack.c.l.b16 %v1573
  %v1758 = vunpack.c.h.b16 %v1573
  %v1759 = vunpack.c.l.b16 %v1574
  %v1760 = vunpack.c.h.b16 %v1574
  %v1761 = vunpack.c.l.b16 %v1575
  %v1762 = vunpack.c.h.b16 %v1575
  %v1763 = vunpack.c.l.b16 %v1576
  %v1764 = vunpack.c.h.b16 %v1576
  %v1765 = vunpack.c.l.b16 %v1577
  %v1766 = vunpack.c.h.b16 %v1577
  %v1767 = vunpack.c.l.b16 %v1578
  %v1768 = vunpack.c.h.b16 %v1578
  %v1769 = vunpack.c.l.b16 %v1579
  %v1770 = vunpack.c.h.b16 %v1579
  %v1771 = vunpack.c.l.b16 %v1580
  %v1772 = vunpack.c.h.b16 %v1580
  %v1773 = vunpack.c.l.b16 %v1581
  %v1774 = vunpack.c.h.b16 %v1581
  %v1775 = vunpack.c.l.b16 %v1582
  %v1776 = vunpack.c.h.b16 %v1582
  %v1777 = vunpack.c.l.b16 %v1583
  %v1778 = vunpack.c.h.b16 %v1583
  %v1779 = vunpack.c.l.b16 %v1584
  %v1780 = vunpack.c.h.b16 %v1584
  %v1781 = vunpack.c.l.b16 %v1585
  %v1782 = vunpack.c.h.b16 %v1585
  %v1783 = vunpack.c.l.b16 %v1586
  %v1784 = vunpack.c.h.b16 %v1586
  %v1785 = vunpack.c.l.b16 %v1587
  %v1786 = vunpack.c.h.b16 %v1587
  %v1787 = vunpack.c.l.b16 %v1588
  %v1788 = vunpack.c.h.b16 %v1588
  %v1789 = vunpack.c.l.b16 %v1589
  %v1790 = vunpack.c.h.b16 %v1589
  %v1791 = vunpack.c.l.b16 %v1590
  %v1792 = vunpack.c.h.b16 %v1590
  %v1793 = vunpack.c.l.b16 %v1591
  %v1794 = vunpack.c.h.b16 %v1591
  %v1795 = vunpack.c.l.b16 %v1592
  %v1796 = vunpack.c.h.b16 %v1592
  %v1797 = vunpack.c.l.b16 %v1593
  %v1798 = vunpack.c.h.b16 %v1593
  %v1799 = vunpack.c.l.b16 %v1594
  %v1800 = vunpack.c.h.b16 %v1594
  %v1801 = vunpack.c.l.b16 %v1595
  %v1802 = vunpack.c.h.b16 %v1595
  %v1803 = vunpack.c.l.b16 %v1596
  %v1804 = vunpack.c.h.b16 %v1596
  %v1805 = vunpack.c.l.b16 %v1597
  %v1806 = vunpack.c.h.b16 %v1597
  %v1807 = vunpack.c.l.b16 %v1598
  %v1808 = vunpack.c.h.b16 %v1598
  %v1809 = vunpack.c.l.b16 %v1599
  %v1810 = vunpack.c.h.b16 %v1599
  %v1811 = vunpack.c.l.b16 %v1600
  %v1812 = vunpack.c.h.b16 %v1600
  %v1813 = vunpack.c.l.b16 %v1601
  %v1814 = vunpack.c.h.b16 %v1601
  %v1815 = vunpack.c.l.b16 %v1602
  %v1816 = vunpack.c.h.b16 %v1602
  %v1817 = vunpack.c.l.b16 %v1603
  %v1818 = vunpack.c.h.b16 %v1603
  %v1819 = vunpack.c.l.b16 %v1604
  %v1820 = vunpack.c.h.b16 %v1604
  %v1821 = vunpack.c.l.b16 %v1605
  %v1822 = vunpack.c.h.b16 %v1605
  %v1823 = vunpack.c.l.b16 %v1606
  %v1824 = vunpack.c.h.b16 %v1606
  %v1825 = vunpack.c.l.b16 %v1607
  %v1826 = vunpack.c.h.b16 %v1607
  %v1827 = vunpack.c.l.b16 %v1608
  %v1828 = vunpack.c.h.b16 %v1608
  %v1829 = vunpack.c.l.b16 %v1609
  %v1830 = vunpack.c.h.b16 %v1609
  %v1831 = vunpack.c.l.b16 %v1610
  %v1832 = vunpack.c.h.b16 %v1610
  %v1833 = vunpack.c.l.b16 %v1611
  %v1834 = vunpack.c.h.b16 %v1611
  %v1835 = vunpack.c.l.b16 %v1612
  %v1836 = vunpack.c.h.b16 %v1612
  %v1837 = vunpack.c.l.b16 %v1613
  %v1838 = vunpack.c.h.b16 %v1613
  %v1839 = vunpack.c.l.b16 %v1614
  %v1840 = vunpack.c.h.b16 %v1614
  %v1841 = vunpack.c.l.b16 %v1615
  %v1842 = vunpack.c.h.b16 %v1615
  %v1843 = vunpack.c.l.b16 %v1616
  %v1844 = vunpack.c.h.b16 %v1616
  %v1845 = vunpack.c.l.b16 %v1617
  %v1846 = vunpack.c.h.b16 %v1617
  %v1847 = vunpack.c.l.b16 %v1618
  %v1848 = vunpack.c.h.b16 %v1618
  %v1849 = vunpack.c.l.b16 %v1619
  %v1850 = vunpack.c.h.b16 %v1619
  %v1851 = vunpack.c.l.b16 %v1620
  %v1852 = vunpack.c.h.b16 %v1620
  %v1853 = vunpack.c.l.b16 %v1621
  %v1854 = vunpack.c.h.b16 %v1621
  %v1855 = vunpack.c.l.b16 %v1622
  %v1856 = vunpack.c.h.b16 %v1622
  %v1857 = vunpack.c.l.b16 %v1623
  %v1858 = vunpack.c.h.b16 %v1623
  %v1859 = vunpack.c.l.b16 %v1624
  %v1860 = vunpack.c.h.b16 %v1624
  %v1861 = vunpack.c.l.b16 %v1625
  %v1862 = vunpack.c.h.b16 %v1625
  %v1863 = vunpack.c.l.b16 %v1626
  %v1864 = vunpack.c.h.b16 %v1626
  %v1865 = vunpack.c.l.b16 %v1627
  %v1866 = vunpack.c.h.b16 %v1627
  %v1867 = vunpack.c.l.b16 %v1628
  %v1868 = vunpack.c.h.b16 %v1628
  %v1869 = vpack.c.b16 %v1749, %v1709
  %v1870 = vpack.c.b16 %v1750, %v1710
  %v1871 = vpack.c.b16 %v1751, %v1711
  %v1872 = vpack.c.b16 %v1752, %v1712
  %v1873 = vpack.c.b16 %v1753, %v1713
  %v1874 = vpack.c.b16 %v1754, %v1714
  %v1875 = vpack.c.b16 %v1755, %v1715
  %v1876 = vpack.c.b16 %v1756, %v1716
  %v1877 = vpack.c.b16 %v1757, %v1717
  %v1878 = vpack.c.b16 %v1758, %v1718
  %v1879 = vpack.c.b16 %v1759, %v1719
  %v1880 = vpack.c.b16 %v1760, %v1720
  %v1881 = vpack.c.b16 %v1761, %v1721
  %v1882 = vpack.c.b16 %v1762, %v1722
  %v1883 = vpack.c.b16 %v1763, %v1723
  %v1884 = vpack.c.b16 %v1764, %v1724
  %v1885 = vpack.c.b16 %v1765, %v1725
  %v1886 = vpack.c.b16 %v1766, %v1726
  %v1887 = vpack.c.b16 %v1767, %v1727
  %v1888 = vpack.c.b16 %v1768, %v1728
  %v1889 = vpack.c.b16 %v1769, %v1729
  %v1890 = vpack.c.b16 %v1770, %v1730
  %v1891 = vpack.c.b16 %v1771, %v1731
  %v1892 = vpack.c.b16 %v1772, %v1732
  %v1893 = vpack.c.b16 %v1773, %v1733
  %v1894 = vpack.c.b16 %v1774, %v1734
  %v1895 = vpack.c.b16 %v1775, %v1735
  %v1896 = vpack.c.b16 %v1776, %v1736
  %v1897 = vpack.c.b16 %v1777, %v1737
  %v1898 = vpack.c.b16 %v1778, %v1738
  %v1899 = vpack.c.b16 %v1779, %v1739
  %v1900 = vpack.c.b16 %v1780, %v1740
  %v1901 = vpack.c.b16 %v1781, %v1741
  %v1902 = vpack.c.b16 %v1782, %v1742
  %v1903 = vpack.c.b16 %v1783, %v1743
  %v1904 = vpack.c.b16 %v1784, %v1744
  %v1905 = vpack.c.b16 %v1785, %v1745
  %v1906 = vpack.c.b16 %v1786, %v1746
  %v1907 = vpack.c.b16 %v1787, %v1747
  %v1908 = vpack.c.b16 %v1788, %v1748
  %v1909 = vpack.c.b16 %v1829, %v1789
  %v1910 = vpack.c.b16 %v1830, %v1790
  %v1911 = vpack.c.b16 %v1831, %v1791
  %v1912 = vpack.c.b16 %v1832, %v1792
  %v1913 = vpack.c.b16 %v1833, %v1793
  %v1914 = vpack.c.b16 %v1834, %v1794
  %v1915 = vpack.c.b16 %v1835, %v1795
  %v1916 = vpack.c.b16 %v1836, %v1796
  %v1917 = vpack.c.b16 %v1837, %v1797
  %v1918 = vpack.c.b16 %v1838, %v1798
  %v1919 = vpack.c.b16 %v1839, %v1799
  %v1920 = vpack.c.b16 %v1840, %v1800
  %v1921 = vpack.c.b16 %v1841, %v1801
  %v1922 = vpack.c.b16 %v1842, %v1802
  %v1923 = vpack.c.b16 %v1843, %v1803
  %v1924 = vpack.c.b16 %v1844, %v1804
  %v1925 = vpack.c.b16 %v1845, %v1805
  %v1926 = vpack.c.b16 %v1846, %v1806
  %v1927 = vpack.c.b16 %v1847, %v1807
  %v1928 = vpack.c.b16 %v1848, %v1808
  %v1929 = vpack.c.b16 %v1849, %v1809
  %v1930 = vpack.c.b16 %v1850, %v1810
  %v1931 = vpack.c.b16 %v1851, %v1811
  %v1932 = vpack.c.b16 %v1852, %v1812
  %v1933 = vpack.c.b16 %v1853, %v1813
  %v1934 = vpack.c.b16 %v1854, %v1814
  %v1935 = vpack.c.b16 %v1855, %v1815
  %v1936 = vpack.c.b16 %v1856, %v1816
  %v1937 = vpack.c.b16 %v1857, %v1817
  %v1938 = vpack.c.b16 %v1858, %v1818
  %v1939 = vpack.c.b16 %v1859, %v1819
  %v1940 = vpack.c.b16 %v1860, %v1820
  %v1941 = vpack.c.b16 %v1861, %v1821
  %v1942 = vpack.c.b16 %v1862, %v1822
  %v1943 = vpack.c.b16 %v1863, %v1823
  %v1944 = vpack.c.b16 %v1864, %v1824
  %v1945 = vpack.c.b16 %v1865, %v1825
  %v1946 = vpack.c.b16 %v1866, %v1826
  %v1947 = vpack.c.b16 %v1867, %v1827
  %v1948 = vpack.c.b16 %v1868, %v1828
  %2029 = vmatprep.subr.bf16.mxu0 %v1870
  %2030 = vmatpush1.bf16.msra.mxu0 %v1869
  %2031 = vmatprep.subr.bf16.mxu0 %v1910
  %2032 = vmatpush1.bf16.msra.mxu0 %v1909
  %2033 = vmatprep.subr.bf16.mxu0 0
  %2034 = vmatpush1.bf16.msra.mxu0 0
  %2035 = vmatprep.subr.bf16.mxu0 0
  %2036 = vmatpush1.bf16.msra.mxu0 0
  %2037 = vmatprep.subr.bf16.mxu0 0
  %2038 = vmatpush1.bf16.msra.mxu0 0
  %2039 = vmatprep.subr.bf16.mxu0 0
  %2040 = vmatpush1.bf16.msra.mxu0 0
  %2041 = vmatprep.subr.bf16.mxu0 0
  %2042 = vmatpush1.bf16.msra.mxu0 0
  %2043 = vmatprep.subr.bf16.mxu0 0
  %2044 = vmatpush1.bf16.msra.mxu0 0
  %2045 = vmatprep.subr.bf16.mxu0 0
  %2046 = vmatpush1.bf16.msra.mxu0 0
  %2047 = vmatprep.subr.bf16.mxu0 0
  %2048 = vmatpush1.bf16.msra.mxu0 0
  %2049 = vmatprep.subr.bf16.mxu0 0
  %2050 = vmatpush1.bf16.msra.mxu0 0
  %2051 = vmatprep.subr.bf16.mxu0 0
  %2052 = vmatpush1.bf16.msra.mxu0 0
  %2053 = vmatprep.subr.bf16.mxu0 0
  %2054 = vmatpush1.bf16.msra.mxu0 0
  %2055 = vmatprep.subr.bf16.mxu0 0
  %2056 = vmatpush1.bf16.msra.mxu0 0
  %2057 = vmatprep.subr.bf16.mxu0 0
  %2058 = vmatpush1.bf16.msra.mxu0 0
  %2059 = vmatprep.subr.bf16.mxu0 0
  %2060 = vmatpush1.bf16.msra.mxu0 0
  %2061 = vmatprep.mubr.bf16.mxu0 0
  %2062 = vmatmul.mubr.bf16.gmra.mrb[0].mxu0 %v506
  %v2063 = vpop.f32.mrb[0].mxu0
  %v2064 = vadd.f32 0.0, %v2063
  %v2065 = vpop.f32.mrb[0].mxu0
  %v2066 = vadd.f32 0.0, %v2065
  %v2067 = vpop.f32.mrb[0].mxu0
  %v2068 = vadd.f32 0.0, %v2067
  %v2069 = vpop.f32.mrb[0].mxu0
  %v2070 = vadd.f32 0.0, %v2069
  %2071 = vdwg.mxu0
  %2072 = vmatprep.subr.bf16.mxu0 %v1872
  %2073 = vmatpush1.bf16.msra.mxu0 %v1871
  %2074 = vmatprep.subr.bf16.mxu0 %v1912
  %2075 = vmatpush1.bf16.msra.mxu0 %v1911
  %2076 = vmatprep.subr.bf16.mxu0 0
  %2077 = vmatpush1.bf16.msra.mxu0 0
  %2078 = vmatprep.subr.bf16.mxu0 0
  %2079 = vmatpush1.bf16.msra.mxu0 0
  %2080 = vmatprep.subr.bf16.mxu0 0
  %2081 = vmatpush1.bf16.msra.mxu0 0
  %2082 = vmatprep.subr.bf16.mxu0 0
  %2083 = vmatpush1.bf16.msra.mxu0 0
  %2084 = vmatprep.subr.bf16.mxu0 0
  %2085 = vmatpush1.bf16.msra.mxu0 0
  %2086 = vmatprep.subr.bf16.mxu0 0
  %2087 = vmatpush1.bf16.msra.mxu0 0
  %2088 = vmatprep.subr.bf16.mxu0 0
  %2089 = vmatpush1.bf16.msra.mxu0 0
  %2090 = vmatprep.subr.bf16.mxu0 0
  %2091 = vmatpush1.bf16.msra.mxu0 0
  %2092 = vmatprep.subr.bf16.mxu0 0
  %2093 = vmatpush1.bf16.msra.mxu0 0
  %2094 = vmatprep.subr.bf16.mxu0 0
  %2095 = vmatpush1.bf16.msra.mxu0 0
  %2096 = vmatprep.subr.bf16.mxu0 0
  %2097 = vmatpush1.bf16.msra.mxu0 0
  %2098 = vmatprep.subr.bf16.mxu0 0
  %2099 = vmatpush1.bf16.msra.mxu0 0
  %2100 = vmatprep.subr.bf16.mxu0 0
  %2101 = vmatpush1.bf16.msra.mxu0 0
  %2102 = vmatprep.subr.bf16.mxu0 0
  %2103 = vmatpush1.bf16.msra.mxu0 0
  %2104 = vmatprep.mubr.bf16.mxu0 0
  %2105 = vmatmul.mubr.bf16.gmra.mrb[0].mxu0 %v506
  %v2106 = vpop.f32.mrb[0].mxu0
  %v2107 = vadd.f32 0.0, %v2106
  %v2108 = vpop.f32.mrb[0].mxu0
  %v2109 = vadd.f32 0.0, %v2108
  %v2110 = vpop.f32.mrb[0].mxu0
  %v2111 = vadd.f32 0.0, %v2110
  %v2112 = vpop.f32.mrb[0].mxu0
  %v2113 = vadd.f32 0.0, %v2112
  %2114 = vdwg.mxu0
  %2115 = vmatprep.subr.bf16.mxu0 %v1874
  %2116 = vmatpush1.bf16.msra.mxu0 %v1873
  %2117 = vmatprep.subr.bf16.mxu0 %v1914
  %2118 = vmatpush1.bf16.msra.mxu0 %v1913
  %2119 = vmatprep.subr.bf16.mxu0 0
  %2120 = vmatpush1.bf16.msra.mxu0 0
  %2121 = vmatprep.subr.bf16.mxu0 0
  %2122 = vmatpush1.bf16.msra.mxu0 0
  %2123 = vmatprep.subr.bf16.mxu0 0
  %2124 = vmatpush1.bf16.msra.mxu0 0
  %2125 = vmatprep.subr.bf16.mxu0 0
  %2126 = vmatpush1.bf16.msra.mxu0 0
  %2127 = vmatprep.subr.bf16.mxu0 0
  %2128 = vmatpush1.bf16.msra.mxu0 0
  %2129 = vmatprep.subr.bf16.mxu0 0
  %2130 = vmatpush1.bf16.msra.mxu0 0
  %2131 = vmatprep.subr.bf16.mxu0 0
  %2132 = vmatpush1.bf16.msra.mxu0 0
  %2133 = vmatprep.subr.bf16.mxu0 0
  %2134 = vmatpush1.bf16.msra.mxu0 0
  %2135 = vmatprep.subr.bf16.mxu0 0
  %2136 = vmatpush1.bf16.msra.mxu0 0
  %2137 = vmatprep.subr.bf16.mxu0 0
  %2138 = vmatpush1.bf16.msra.mxu0 0
  %2139 = vmatprep.subr.bf16.mxu0 0
  %2140 = vmatpush1.bf16.msra.mxu0 0
  %2141 = vmatprep.subr.bf16.mxu0 0
  %2142 = vmatpush1.bf16.msra.mxu0 0
  %2143 = vmatprep.subr.bf16.mxu0 0
  %2144 = vmatpush1.bf16.msra.mxu0 0
  %2145 = vmatprep.subr.bf16.mxu0 0
  %2146 = vmatpush1.bf16.msra.mxu0 0
  %2147 = vmatprep.mubr.bf16.mxu0 0
  %2148 = vmatmul.mubr.bf16.gmra.mrb[0].mxu0 %v506
  %v2149 = vpop.f32.mrb[0].mxu0
  %v2150 = vadd.f32 0.0, %v2149
  %v2151 = vpop.f32.mrb[0].mxu0
  %v2152 = vadd.f32 0.0, %v2151
  %v2153 = vpop.f32.mrb[0].mxu0
  %v2154 = vadd.f32 0.0, %v2153
  %v2155 = vpop.f32.mrb[0].mxu0
  %v2156 = vadd.f32 0.0, %v2155
  %2157 = vdwg.mxu0
  %2158 = vmatprep.subr.bf16.mxu0 %v1876
  %2159 = vmatpush1.bf16.msra.mxu0 %v1875
  %2160 = vmatprep.subr.bf16.mxu0 %v1916
  %2161 = vmatpush1.bf16.msra.mxu0 %v1915
  %2162 = vmatprep.subr.bf16.mxu0 0
  %2163 = vmatpush1.bf16.msra.mxu0 0
  %2164 = vmatprep.subr.bf16.mxu0 0
  %2165 = vmatpush1.bf16.msra.mxu0 0
  %2166 = vmatprep.subr.bf16.mxu0 0
  %2167 = vmatpush1.bf16.msra.mxu0 0
  %2168 = vmatprep.subr.bf16.mxu0 0
  %2169 = vmatpush1.bf16.msra.mxu0 0
  %2170 = vmatprep.subr.bf16.mxu0 0
  %2171 = vmatpush1.bf16.msra.mxu0 0
  %2172 = vmatprep.subr.bf16.mxu0 0
  %2173 = vmatpush1.bf16.msra.mxu0 0
  %2174 = vmatprep.subr.bf16.mxu0 0
  %2175 = vmatpush1.bf16.msra.mxu0 0
  %2176 = vmatprep.subr.bf16.mxu0 0
  %2177 = vmatpush1.bf16.msra.mxu0 0
  %2178 = vmatprep.subr.bf16.mxu0 0
  %2179 = vmatpush1.bf16.msra.mxu0 0
  %2180 = vmatprep.subr.bf16.mxu0 0
  %2181 = vmatpush1.bf16.msra.mxu0 0
  %2182 = vmatprep.subr.bf16.mxu0 0
  %2183 = vmatpush1.bf16.msra.mxu0 0
  %2184 = vmatprep.subr.bf16.mxu0 0
  %2185 = vmatpush1.bf16.msra.mxu0 0
  %2186 = vmatprep.subr.bf16.mxu0 0
  %2187 = vmatpush1.bf16.msra.mxu0 0
  %2188 = vmatprep.subr.bf16.mxu0 0
  %2189 = vmatpush1.bf16.msra.mxu0 0
  %2190 = vmatprep.mubr.bf16.mxu0 0
  %2191 = vmatmul.mubr.bf16.gmra.mrb[0].mxu0 %v506
  %v2192 = vpop.f32.mrb[0].mxu0
  %v2193 = vadd.f32 0.0, %v2192
  %v2194 = vpop.f32.mrb[0].mxu0
  %v2195 = vadd.f32 0.0, %v2194
  %v2196 = vpop.f32.mrb[0].mxu0
  %v2197 = vadd.f32 0.0, %v2196
  %v2198 = vpop.f32.mrb[0].mxu0
  %v2199 = vadd.f32 0.0, %v2198
  %2200 = vdwg.mxu0
  %2201 = vmatprep.subr.bf16.mxu0 %v1878
  %2202 = vmatpush1.bf16.msra.mxu0 %v1877
  %2203 = vmatprep.subr.bf16.mxu0 %v1918
  %2204 = vmatpush1.bf16.msra.mxu0 %v1917
  %2205 = vmatprep.subr.bf16.mxu0 0
  %2206 = vmatpush1.bf16.msra.mxu0 0
  %2207 = vmatprep.subr.bf16.mxu0 0
  %2208 = vmatpush1.bf16.msra.mxu0 0
  %2209 = vmatprep.subr.bf16.mxu0 0
  %2210 = vmatpush1.bf16.msra.mxu0 0
  %2211 = vmatprep.subr.bf16.mxu0 0
  %2212 = vmatpush1.bf16.msra.mxu0 0
  %2213 = vmatprep.subr.bf16.mxu0 0
  %2214 = vmatpush1.bf16.msra.mxu0 0
  %2215 = vmatprep.subr.bf16.mxu0 0
  %2216 = vmatpush1.bf16.msra.mxu0 0
  %2217 = vmatprep.subr.bf16.mxu0 0
  %2218 = vmatpush1.bf16.msra.mxu0 0
  %2219 = vmatprep.subr.bf16.mxu0 0
  %2220 = vmatpush1.bf16.msra.mxu0 0
  %2221 = vmatprep.subr.bf16.mxu0 0
  %2222 = vmatpush1.bf16.msra.mxu0 0
  %2223 = vmatprep.subr.bf16.mxu0 0
  %2224 = vmatpush1.bf16.msra.mxu0 0
  %2225 = vmatprep.subr.bf16.mxu0 0
  %2226 = vmatpush1.bf16.msra.mxu0 0
  %2227 = vmatprep.subr.bf16.mxu0 0
  %2228 = vmatpush1.bf16.msra.mxu0 0
  %2229 = vmatprep.subr.bf16.mxu0 0
  %2230 = vmatpush1.bf16.msra.mxu0 0
  %2231 = vmatprep.subr.bf16.mxu0 0
  %2232 = vmatpush1.bf16.msra.mxu0 0
  %2233 = vmatprep.mubr.bf16.mxu0 0
  %2234 = vmatmul.mubr.bf16.gmra.mrb[0].mxu0 %v506
  %v2235 = vpop.f32.mrb[0].mxu0
  %v2236 = vadd.f32 0.0, %v2235
  %v2237 = vpop.f32.mrb[0].mxu0
  %v2238 = vadd.f32 0.0, %v2237
  %v2239 = vpop.f32.mrb[0].mxu0
  %v2240 = vadd.f32 0.0, %v2239
  %v2241 = vpop.f32.mrb[0].mxu0
  %v2242 = vadd.f32 0.0, %v2241
  %2243 = vdwg.mxu0
  %2244 = vmatprep.subr.bf16.mxu0 %v1880
  %2245 = vmatpush1.bf16.msra.mxu0 %v1879
  %2246 = vmatprep.subr.bf16.mxu0 %v1920
  %2247 = vmatpush1.bf16.msra.mxu0 %v1919
  %2248 = vmatprep.subr.bf16.mxu0 0
  %2249 = vmatpush1.bf16.msra.mxu0 0
  %2250 = vmatprep.subr.bf16.mxu0 0
  %2251 = vmatpush1.bf16.msra.mxu0 0
  %2252 = vmatprep.subr.bf16.mxu0 0
  %2253 = vmatpush1.bf16.msra.mxu0 0
  %2254 = vmatprep.subr.bf16.mxu0 0
  %2255 = vmatpush1.bf16.msra.mxu0 0
  %2256 = vmatprep.subr.bf16.mxu0 0
  %2257 = vmatpush1.bf16.msra.mxu0 0
  %2258 = vmatprep.subr.bf16.mxu0 0
  %2259 = vmatpush1.bf16.msra.mxu0 0
  %2260 = vmatprep.subr.bf16.mxu0 0
  %2261 = vmatpush1.bf16.msra.mxu0 0
  %2262 = vmatprep.subr.bf16.mxu0 0
  %2263 = vmatpush1.bf16.msra.mxu0 0
  %2264 = vmatprep.subr.bf16.mxu0 0
  %2265 = vmatpush1.bf16.msra.mxu0 0
  %2266 = vmatprep.subr.bf16.mxu0 0
  %2267 = vmatpush1.bf16.msra.mxu0 0
  %2268 = vmatprep.subr.bf16.mxu0 0
  %2269 = vmatpush1.bf16.msra.mxu0 0
  %2270 = vmatprep.subr.bf16.mxu0 0
  %2271 = vmatpush1.bf16.msra.mxu0 0
  %2272 = vmatprep.subr.bf16.mxu0 0
  %2273 = vmatpush1.bf16.msra.mxu0 0
  %2274 = vmatprep.subr.bf16.mxu0 0
  %2275 = vmatpush1.bf16.msra.mxu0 0
  %2276 = vmatprep.mubr.bf16.mxu0 0
  %2277 = vmatmul.mubr.bf16.gmra.mrb[0].mxu0 %v506
  %v2278 = vpop.f32.mrb[0].mxu0
  %v2279 = vadd.f32 0.0, %v2278
  %v2280 = vpop.f32.mrb[0].mxu0
  %v2281 = vadd.f32 0.0, %v2280
  %v2282 = vpop.f32.mrb[0].mxu0
  %v2283 = vadd.f32 0.0, %v2282
  %v2284 = vpop.f32.mrb[0].mxu0
  %v2285 = vadd.f32 0.0, %v2284
  %2286 = vdwg.mxu0
  %2287 = vmatprep.subr.bf16.mxu0 %v1882
  %2288 = vmatpush1.bf16.msra.mxu0 %v1881
  %2289 = vmatprep.subr.bf16.mxu0 %v1922
  %2290 = vmatpush1.bf16.msra.mxu0 %v1921
  %2291 = vmatprep.subr.bf16.mxu0 0
  %2292 = vmatpush1.bf16.msra.mxu0 0
  %2293 = vmatprep.subr.bf16.mxu0 0
  %2294 = vmatpush1.bf16.msra.mxu0 0
  %2295 = vmatprep.subr.bf16.mxu0 0
  %2296 = vmatpush1.bf16.msra.mxu0 0
  %2297 = vmatprep.subr.bf16.mxu0 0
  %2298 = vmatpush1.bf16.msra.mxu0 0
  %2299 = vmatprep.subr.bf16.mxu0 0
  %2300 = vmatpush1.bf16.msra.mxu0 0
  %2301 = vmatprep.subr.bf16.mxu0 0
  %2302 = vmatpush1.bf16.msra.mxu0 0
  %2303 = vmatprep.subr.bf16.mxu0 0
  %2304 = vmatpush1.bf16.msra.mxu0 0
  %2305 = vmatprep.subr.bf16.mxu0 0
  %2306 = vmatpush1.bf16.msra.mxu0 0
  %2307 = vmatprep.subr.bf16.mxu0 0
  %2308 = vmatpush1.bf16.msra.mxu0 0
  %2309 = vmatprep.subr.bf16.mxu0 0
  %2310 = vmatpush1.bf16.msra.mxu0 0
  %2311 = vmatprep.subr.bf16.mxu0 0
  %2312 = vmatpush1.bf16.msra.mxu0 0
  %2313 = vmatprep.subr.bf16.mxu0 0
  %2314 = vmatpush1.bf16.msra.mxu0 0
  %2315 = vmatprep.subr.bf16.mxu0 0
  %2316 = vmatpush1.bf16.msra.mxu0 0
  %2317 = vmatprep.subr.bf16.mxu0 0
  %2318 = vmatpush1.bf16.msra.mxu0 0
  %2319 = vmatprep.mubr.bf16.mxu0 0
  %2320 = vmatmul.mubr.bf16.gmra.mrb[0].mxu0 %v506
  %v2321 = vpop.f32.mrb[0].mxu0
  %v2322 = vadd.f32 0.0, %v2321
  %v2323 = vpop.f32.mrb[0].mxu0
  %v2324 = vadd.f32 0.0, %v2323
  %v2325 = vpop.f32.mrb[0].mxu0
  %v2326 = vadd.f32 0.0, %v2325
  %v2327 = vpop.f32.mrb[0].mxu0
  %v2328 = vadd.f32 0.0, %v2327
  %2329 = vdwg.mxu0
  %2330 = vmatprep.subr.bf16.mxu0 %v1884
  %2331 = vmatpush1.bf16.msra.mxu0 %v1883
  %2332 = vmatprep.subr.bf16.mxu0 %v1924
  %2333 = vmatpush1.bf16.msra.mxu0 %v1923
  %2334 = vmatprep.subr.bf16.mxu0 0
  %2335 = vmatpush1.bf16.msra.mxu0 0
  %2336 = vmatprep.subr.bf16.mxu0 0
  %2337 = vmatpush1.bf16.msra.mxu0 0
  %2338 = vmatprep.subr.bf16.mxu0 0
  %2339 = vmatpush1.bf16.msra.mxu0 0
  %2340 = vmatprep.subr.bf16.mxu0 0
  %2341 = vmatpush1.bf16.msra.mxu0 0
  %2342 = vmatprep.subr.bf16.mxu0 0
  %2343 = vmatpush1.bf16.msra.mxu0 0
  %2344 = vmatprep.subr.bf16.mxu0 0
  %2345 = vmatpush1.bf16.msra.mxu0 0
  %2346 = vmatprep.subr.bf16.mxu0 0
  %2347 = vmatpush1.bf16.msra.mxu0 0
  %2348 = vmatprep.subr.bf16.mxu0 0
  %2349 = vmatpush1.bf16.msra.mxu0 0
  %2350 = vmatprep.subr.bf16.mxu0 0
  %2351 = vmatpush1.bf16.msra.mxu0 0
  %2352 = vmatprep.subr.bf16.mxu0 0
  %2353 = vmatpush1.bf16.msra.mxu0 0
  %2354 = vmatprep.subr.bf16.mxu0 0
  %2355 = vmatpush1.bf16.msra.mxu0 0
  %2356 = vmatprep.subr.bf16.mxu0 0
  %2357 = vmatpush1.bf16.msra.mxu0 0
  %2358 = vmatprep.subr.bf16.mxu0 0
  %2359 = vmatpush1.bf16.msra.mxu0 0
  %2360 = vmatprep.subr.bf16.mxu0 0
  %2361 = vmatpush1.bf16.msra.mxu0 0
  %2362 = vmatprep.mubr.bf16.mxu0 0
  %2363 = vmatmul.mubr.bf16.gmra.mrb[0].mxu0 %v506
  %v2364 = vpop.f32.mrb[0].mxu0
  %v2365 = vadd.f32 0.0, %v2364
  %v2366 = vpop.f32.mrb[0].mxu0
  %v2367 = vadd.f32 0.0, %v2366
  %v2368 = vpop.f32.mrb[0].mxu0
  %v2369 = vadd.f32 0.0, %v2368
  %v2370 = vpop.f32.mrb[0].mxu0
  %v2371 = vadd.f32 0.0, %v2370
  %2372 = vdwg.mxu0
  %2373 = vmatprep.subr.bf16.mxu0 %v1886
  %2374 = vmatpush1.bf16.msra.mxu0 %v1885
  %2375 = vmatprep.subr.bf16.mxu0 %v1926
  %2376 = vmatpush1.bf16.msra.mxu0 %v1925
  %2377 = vmatprep.subr.bf16.mxu0 0
  %2378 = vmatpush1.bf16.msra.mxu0 0
  %2379 = vmatprep.subr.bf16.mxu0 0
  %2380 = vmatpush1.bf16.msra.mxu0 0
  %2381 = vmatprep.subr.bf16.mxu0 0
  %2382 = vmatpush1.bf16.msra.mxu0 0
  %2383 = vmatprep.subr.bf16.mxu0 0
  %2384 = vmatpush1.bf16.msra.mxu0 0
  %2385 = vmatprep.subr.bf16.mxu0 0
  %2386 = vmatpush1.bf16.msra.mxu0 0
  %2387 = vmatprep.subr.bf16.mxu0 0
  %2388 = vmatpush1.bf16.msra.mxu0 0
  %2389 = vmatprep.subr.bf16.mxu0 0
  %2390 = vmatpush1.bf16.msra.mxu0 0
  %2391 = vmatprep.subr.bf16.mxu0 0
  %2392 = vmatpush1.bf16.msra.mxu0 0
  %2393 = vmatprep.subr.bf16.mxu0 0
  %2394 = vmatpush1.bf16.msra.mxu0 0
  %2395 = vmatprep.subr.bf16.mxu0 0
  %2396 = vmatpush1.bf16.msra.mxu0 0
  %2397 = vmatprep.subr.bf16.mxu0 0
  %2398 = vmatpush1.bf16.msra.mxu0 0
  %2399 = vmatprep.subr.bf16.mxu0 0
  %2400 = vmatpush1.bf16.msra.mxu0 0
  %2401 = vmatprep.subr.bf16.mxu0 0
  %2402 = vmatpush1.bf16.msra.mxu0 0
  %2403 = vmatprep.subr.bf16.mxu0 0
  %2404 = vmatpush1.bf16.msra.mxu0 0
  %2405 = vmatprep.mubr.bf16.mxu0 0
  %2406 = vmatmul.mubr.bf16.gmra.mrb[0].mxu0 %v506
  %v2407 = vpop.f32.mrb[0].mxu0
  %v2408 = vadd.f32 0.0, %v2407
  %v2409 = vpop.f32.mrb[0].mxu0
  %v2410 = vadd.f32 0.0, %v2409
  %v2411 = vpop.f32.mrb[0].mxu0
  %v2412 = vadd.f32 0.0, %v2411
  %v2413 = vpop.f32.mrb[0].mxu0
  %v2414 = vadd.f32 0.0, %v2413
  %2415 = vdwg.mxu0
  %2416 = vmatprep.subr.bf16.mxu0 %v1888
  %2417 = vmatpush1.bf16.msra.mxu0 %v1887
  %2418 = vmatprep.subr.bf16.mxu0 %v1928
  %2419 = vmatpush1.bf16.msra.mxu0 %v1927
  %2420 = vmatprep.subr.bf16.mxu0 0
  %2421 = vmatpush1.bf16.msra.mxu0 0
  %2422 = vmatprep.subr.bf16.mxu0 0
  %2423 = vmatpush1.bf16.msra.mxu0 0
  %2424 = vmatprep.subr.bf16.mxu0 0
  %2425 = vmatpush1.bf16.msra.mxu0 0
  %2426 = vmatprep.subr.bf16.mxu0 0
  %2427 = vmatpush1.bf16.msra.mxu0 0
  %2428 = vmatprep.subr.bf16.mxu0 0
  %2429 = vmatpush1.bf16.msra.mxu0 0
  %2430 = vmatprep.subr.bf16.mxu0 0
  %2431 = vmatpush1.bf16.msra.mxu0 0
  %2432 = vmatprep.subr.bf16.mxu0 0
  %2433 = vmatpush1.bf16.msra.mxu0 0
  %2434 = vmatprep.subr.bf16.mxu0 0
  %2435 = vmatpush1.bf16.msra.mxu0 0
  %2436 = vmatprep.subr.bf16.mxu0 0
  %2437 = vmatpush1.bf16.msra.mxu0 0
  %2438 = vmatprep.subr.bf16.mxu0 0
  %2439 = vmatpush1.bf16.msra.mxu0 0
  %2440 = vmatprep.subr.bf16.mxu0 0
  %2441 = vmatpush1.bf16.msra.mxu0 0
  %2442 = vmatprep.subr.bf16.mxu0 0
  %2443 = vmatpush1.bf16.msra.mxu0 0
  %2444 = vmatprep.subr.bf16.mxu0 0
  %2445 = vmatpush1.bf16.msra.mxu0 0
  %2446 = vmatprep.subr.bf16.mxu0 0
  %2447 = vmatpush1.bf16.msra.mxu0 0
  %2448 = vmatprep.mubr.bf16.mxu0 0
  %2449 = vmatmul.mubr.bf16.gmra.mrb[0].mxu0 %v506
  %v2450 = vpop.f32.mrb[0].mxu0
  %v2451 = vadd.f32 0.0, %v2450
  %v2452 = vpop.f32.mrb[0].mxu0
  %v2453 = vadd.f32 0.0, %v2452
  %v2454 = vpop.f32.mrb[0].mxu0
  %v2455 = vadd.f32 0.0, %v2454
  %v2456 = vpop.f32.mrb[0].mxu0
  %v2457 = vadd.f32 0.0, %v2456
  %2458 = vdwg.mxu0
  %2459 = vmatprep.subr.bf16.mxu0 %v1890
  %2460 = vmatpush1.bf16.msra.mxu0 %v1889
  %2461 = vmatprep.subr.bf16.mxu0 %v1930
  %2462 = vmatpush1.bf16.msra.mxu0 %v1929
  %2463 = vmatprep.subr.bf16.mxu0 0
  %2464 = vmatpush1.bf16.msra.mxu0 0
  %2465 = vmatprep.subr.bf16.mxu0 0
  %2466 = vmatpush1.bf16.msra.mxu0 0
  %2467 = vmatprep.subr.bf16.mxu0 0
  %2468 = vmatpush1.bf16.msra.mxu0 0
  %2469 = vmatprep.subr.bf16.mxu0 0
  %2470 = vmatpush1.bf16.msra.mxu0 0
  %2471 = vmatprep.subr.bf16.mxu0 0
  %2472 = vmatpush1.bf16.msra.mxu0 0
  %2473 = vmatprep.subr.bf16.mxu0 0
  %2474 = vmatpush1.bf16.msra.mxu0 0
  %2475 = vmatprep.subr.bf16.mxu0 0
  %2476 = vmatpush1.bf16.msra.mxu0 0
  %2477 = vmatprep.subr.bf16.mxu0 0
  %2478 = vmatpush1.bf16.msra.mxu0 0
  %2479 = vmatprep.subr.bf16.mxu0 0
  %2480 = vmatpush1.bf16.msra.mxu0 0
  %2481 = vmatprep.subr.bf16.mxu0 0
  %2482 = vmatpush1.bf16.msra.mxu0 0
  %2483 = vmatprep.subr.bf16.mxu0 0
  %2484 = vmatpush1.bf16.msra.mxu0 0
  %2485 = vmatprep.subr.bf16.mxu0 0
  %2486 = vmatpush1.bf16.msra.mxu0 0
  %2487 = vmatprep.subr.bf16.mxu0 0
  %2488 = vmatpush1.bf16.msra.mxu0 0
  %2489 = vmatprep.subr.bf16.mxu0 0
  %2490 = vmatpush1.bf16.msra.mxu0 0
  %2491 = vmatprep.mubr.bf16.mxu0 0
  %2492 = vmatmul.mubr.bf16.gmra.mrb[0].mxu0 %v506
  %v2493 = vpop.f32.mrb[0].mxu0
  %v2494 = vadd.f32 0.0, %v2493
  %v2495 = vpop.f32.mrb[0].mxu0
  %v2496 = vadd.f32 0.0, %v2495
  %v2497 = vpop.f32.mrb[0].mxu0
  %v2498 = vadd.f32 0.0, %v2497
  %v2499 = vpop.f32.mrb[0].mxu0
  %v2500 = vadd.f32 0.0, %v2499
  %2501 = vdwg.mxu0
  %2502 = vmatprep.subr.bf16.mxu0 %v1892
  %2503 = vmatpush1.bf16.msra.mxu0 %v1891
  %2504 = vmatprep.subr.bf16.mxu0 %v1932
  %2505 = vmatpush1.bf16.msra.mxu0 %v1931
  %2506 = vmatprep.subr.bf16.mxu0 0
  %2507 = vmatpush1.bf16.msra.mxu0 0
  %2508 = vmatprep.subr.bf16.mxu0 0
  %2509 = vmatpush1.bf16.msra.mxu0 0
  %2510 = vmatprep.subr.bf16.mxu0 0
  %2511 = vmatpush1.bf16.msra.mxu0 0
  %2512 = vmatprep.subr.bf16.mxu0 0
  %2513 = vmatpush1.bf16.msra.mxu0 0
  %2514 = vmatprep.subr.bf16.mxu0 0
  %2515 = vmatpush1.bf16.msra.mxu0 0
  %2516 = vmatprep.subr.bf16.mxu0 0
  %2517 = vmatpush1.bf16.msra.mxu0 0
  %2518 = vmatprep.subr.bf16.mxu0 0
  %2519 = vmatpush1.bf16.msra.mxu0 0
  %2520 = vmatprep.subr.bf16.mxu0 0
  %2521 = vmatpush1.bf16.msra.mxu0 0
  %2522 = vmatprep.subr.bf16.mxu0 0
  %2523 = vmatpush1.bf16.msra.mxu0 0
  %2524 = vmatprep.subr.bf16.mxu0 0
  %2525 = vmatpush1.bf16.msra.mxu0 0
  %2526 = vmatprep.subr.bf16.mxu0 0
  %2527 = vmatpush1.bf16.msra.mxu0 0
  %2528 = vmatprep.subr.bf16.mxu0 0
  %2529 = vmatpush1.bf16.msra.mxu0 0
  %2530 = vmatprep.subr.bf16.mxu0 0
  %2531 = vmatpush1.bf16.msra.mxu0 0
  %2532 = vmatprep.subr.bf16.mxu0 0
  %2533 = vmatpush1.bf16.msra.mxu0 0
  %2534 = vmatprep.mubr.bf16.mxu0 0
  %2535 = vmatmul.mubr.bf16.gmra.mrb[0].mxu0 %v506
  %v2536 = vpop.f32.mrb[0].mxu0
  %v2537 = vadd.f32 0.0, %v2536
  %v2538 = vpop.f32.mrb[0].mxu0
  %v2539 = vadd.f32 0.0, %v2538
  %v2540 = vpop.f32.mrb[0].mxu0
  %v2541 = vadd.f32 0.0, %v2540
  %v2542 = vpop.f32.mrb[0].mxu0
  %v2543 = vadd.f32 0.0, %v2542
  %2544 = vdwg.mxu0
  %2545 = vmatprep.subr.bf16.mxu0 %v1894
  %2546 = vmatpush1.bf16.msra.mxu0 %v1893
  %2547 = vmatprep.subr.bf16.mxu0 %v1934
  %2548 = vmatpush1.bf16.msra.mxu0 %v1933
  %2549 = vmatprep.subr.bf16.mxu0 0
  %2550 = vmatpush1.bf16.msra.mxu0 0
  %2551 = vmatprep.subr.bf16.mxu0 0
  %2552 = vmatpush1.bf16.msra.mxu0 0
  %2553 = vmatprep.subr.bf16.mxu0 0
  %2554 = vmatpush1.bf16.msra.mxu0 0
  %2555 = vmatprep.subr.bf16.mxu0 0
  %2556 = vmatpush1.bf16.msra.mxu0 0
  %2557 = vmatprep.subr.bf16.mxu0 0
  %2558 = vmatpush1.bf16.msra.mxu0 0
  %2559 = vmatprep.subr.bf16.mxu0 0
  %2560 = vmatpush1.bf16.msra.mxu0 0
  %2561 = vmatprep.subr.bf16.mxu0 0
  %2562 = vmatpush1.bf16.msra.mxu0 0
  %2563 = vmatprep.subr.bf16.mxu0 0
  %2564 = vmatpush1.bf16.msra.mxu0 0
  %2565 = vmatprep.subr.bf16.mxu0 0
  %2566 = vmatpush1.bf16.msra.mxu0 0
  %2567 = vmatprep.subr.bf16.mxu0 0
  %2568 = vmatpush1.bf16.msra.mxu0 0
  %2569 = vmatprep.subr.bf16.mxu0 0
  %2570 = vmatpush1.bf16.msra.mxu0 0
  %2571 = vmatprep.subr.bf16.mxu0 0
  %2572 = vmatpush1.bf16.msra.mxu0 0
  %2573 = vmatprep.subr.bf16.mxu0 0
  %2574 = vmatpush1.bf16.msra.mxu0 0
  %2575 = vmatprep.subr.bf16.mxu0 0
  %2576 = vmatpush1.bf16.msra.mxu0 0
  %2577 = vmatprep.mubr.bf16.mxu0 0
  %2578 = vmatmul.mubr.bf16.gmra.mrb[0].mxu0 %v506
  %v2579 = vpop.f32.mrb[0].mxu0
  %v2580 = vadd.f32 0.0, %v2579
  %v2581 = vpop.f32.mrb[0].mxu0
  %v2582 = vadd.f32 0.0, %v2581
  %v2583 = vpop.f32.mrb[0].mxu0
  %v2584 = vadd.f32 0.0, %v2583
  %v2585 = vpop.f32.mrb[0].mxu0
  %v2586 = vadd.f32 0.0, %v2585
  %2587 = vdwg.mxu0
  %2588 = vmatprep.subr.bf16.mxu0 %v1896
  %2589 = vmatpush1.bf16.msra.mxu0 %v1895
  %2590 = vmatprep.subr.bf16.mxu0 %v1936
  %2591 = vmatpush1.bf16.msra.mxu0 %v1935
  %2592 = vmatprep.subr.bf16.mxu0 0
  %2593 = vmatpush1.bf16.msra.mxu0 0
  %2594 = vmatprep.subr.bf16.mxu0 0
  %2595 = vmatpush1.bf16.msra.mxu0 0
  %2596 = vmatprep.subr.bf16.mxu0 0
  %2597 = vmatpush1.bf16.msra.mxu0 0
  %2598 = vmatprep.subr.bf16.mxu0 0
  %2599 = vmatpush1.bf16.msra.mxu0 0
  %2600 = vmatprep.subr.bf16.mxu0 0
  %2601 = vmatpush1.bf16.msra.mxu0 0
  %2602 = vmatprep.subr.bf16.mxu0 0
  %2603 = vmatpush1.bf16.msra.mxu0 0
  %2604 = vmatprep.subr.bf16.mxu0 0
  %2605 = vmatpush1.bf16.msra.mxu0 0
  %2606 = vmatprep.subr.bf16.mxu0 0
  %2607 = vmatpush1.bf16.msra.mxu0 0
  %2608 = vmatprep.subr.bf16.mxu0 0
  %2609 = vmatpush1.bf16.msra.mxu0 0
  %2610 = vmatprep.subr.bf16.mxu0 0
  %2611 = vmatpush1.bf16.msra.mxu0 0
  %2612 = vmatprep.subr.bf16.mxu0 0
  %2613 = vmatpush1.bf16.msra.mxu0 0
  %2614 = vmatprep.subr.bf16.mxu0 0
  %2615 = vmatpush1.bf16.msra.mxu0 0
  %2616 = vmatprep.subr.bf16.mxu0 0
  %2617 = vmatpush1.bf16.msra.mxu0 0
  %2618 = vmatprep.subr.bf16.mxu0 0
  %2619 = vmatpush1.bf16.msra.mxu0 0
  %2620 = vmatprep.mubr.bf16.mxu0 0
  %2621 = vmatmul.mubr.bf16.gmra.mrb[0].mxu0 %v506
  %v2622 = vpop.f32.mrb[0].mxu0
  %v2623 = vadd.f32 0.0, %v2622
  %v2624 = vpop.f32.mrb[0].mxu0
  %v2625 = vadd.f32 0.0, %v2624
  %v2626 = vpop.f32.mrb[0].mxu0
  %v2627 = vadd.f32 0.0, %v2626
  %v2628 = vpop.f32.mrb[0].mxu0
  %v2629 = vadd.f32 0.0, %v2628
  %2630 = vdwg.mxu0
  %2631 = vmatprep.subr.bf16.mxu0 %v1898
  %2632 = vmatpush1.bf16.msra.mxu0 %v1897
  %2633 = vmatprep.subr.bf16.mxu0 %v1938
  %2634 = vmatpush1.bf16.msra.mxu0 %v1937
  %2635 = vmatprep.subr.bf16.mxu0 0
  %2636 = vmatpush1.bf16.msra.mxu0 0
  %2637 = vmatprep.subr.bf16.mxu0 0
  %2638 = vmatpush1.bf16.msra.mxu0 0
  %2639 = vmatprep.subr.bf16.mxu0 0
  %2640 = vmatpush1.bf16.msra.mxu0 0
  %2641 = vmatprep.subr.bf16.mxu0 0
  %2642 = vmatpush1.bf16.msra.mxu0 0
  %2643 = vmatprep.subr.bf16.mxu0 0
  %2644 = vmatpush1.bf16.msra.mxu0 0
  %2645 = vmatprep.subr.bf16.mxu0 0
  %2646 = vmatpush1.bf16.msra.mxu0 0
  %2647 = vmatprep.subr.bf16.mxu0 0
  %2648 = vmatpush1.bf16.msra.mxu0 0
  %2649 = vmatprep.subr.bf16.mxu0 0
  %2650 = vmatpush1.bf16.msra.mxu0 0
  %2651 = vmatprep.subr.bf16.mxu0 0
  %2652 = vmatpush1.bf16.msra.mxu0 0
  %2653 = vmatprep.subr.bf16.mxu0 0
  %2654 = vmatpush1.bf16.msra.mxu0 0
  %2655 = vmatprep.subr.bf16.mxu0 0
  %2656 = vmatpush1.bf16.msra.mxu0 0
  %2657 = vmatprep.subr.bf16.mxu0 0
  %2658 = vmatpush1.bf16.msra.mxu0 0
  %2659 = vmatprep.subr.bf16.mxu0 0
  %2660 = vmatpush1.bf16.msra.mxu0 0
  %2661 = vmatprep.subr.bf16.mxu0 0
  %2662 = vmatpush1.bf16.msra.mxu0 0
  %2663 = vmatprep.mubr.bf16.mxu0 0
  %2664 = vmatmul.mubr.bf16.gmra.mrb[0].mxu0 %v506
  %v2665 = vpop.f32.mrb[0].mxu0
  %v2666 = vadd.f32 0.0, %v2665
  %v2667 = vpop.f32.mrb[0].mxu0
  %v2668 = vadd.f32 0.0, %v2667
  %v2669 = vpop.f32.mrb[0].mxu0
  %v2670 = vadd.f32 0.0, %v2669
  %v2671 = vpop.f32.mrb[0].mxu0
  %v2672 = vadd.f32 0.0, %v2671
  %2673 = vdwg.mxu0
  %2674 = vmatprep.subr.bf16.mxu0 %v1900
  %2675 = vmatpush1.bf16.msra.mxu0 %v1899
  %2676 = vmatprep.subr.bf16.mxu0 %v1940
  %2677 = vmatpush1.bf16.msra.mxu0 %v1939
  %2678 = vmatprep.subr.bf16.mxu0 0
  %2679 = vmatpush1.bf16.msra.mxu0 0
  %2680 = vmatprep.subr.bf16.mxu0 0
  %2681 = vmatpush1.bf16.msra.mxu0 0
  %2682 = vmatprep.subr.bf16.mxu0 0
  %2683 = vmatpush1.bf16.msra.mxu0 0
  %2684 = vmatprep.subr.bf16.mxu0 0
  %2685 = vmatpush1.bf16.msra.mxu0 0
  %2686 = vmatprep.subr.bf16.mxu0 0
  %2687 = vmatpush1.bf16.msra.mxu0 0
  %2688 = vmatprep.subr.bf16.mxu0 0
  %2689 = vmatpush1.bf16.msra.mxu0 0
  %2690 = vmatprep.subr.bf16.mxu0 0
  %2691 = vmatpush1.bf16.msra.mxu0 0
  %2692 = vmatprep.subr.bf16.mxu0 0
  %2693 = vmatpush1.bf16.msra.mxu0 0
  %2694 = vmatprep.subr.bf16.mxu0 0
  %2695 = vmatpush1.bf16.msra.mxu0 0
  %2696 = vmatprep.subr.bf16.mxu0 0
  %2697 = vmatpush1.bf16.msra.mxu0 0
  %2698 = vmatprep.subr.bf16.mxu0 0
  %2699 = vmatpush1.bf16.msra.mxu0 0
  %2700 = vmatprep.subr.bf16.mxu0 0
  %2701 = vmatpush1.bf16.msra.mxu0 0
  %2702 = vmatprep.subr.bf16.mxu0 0
  %2703 = vmatpush1.bf16.msra.mxu0 0
  %2704 = vmatprep.subr.bf16.mxu0 0
  %2705 = vmatpush1.bf16.msra.mxu0 0
  %2706 = vmatprep.mubr.bf16.mxu0 0
  %2707 = vmatmul.mubr.bf16.gmra.mrb[0].mxu0 %v506
  %v2708 = vpop.f32.mrb[0].mxu0
  %v2709 = vadd.f32 0.0, %v2708
  %v2710 = vpop.f32.mrb[0].mxu0
  %v2711 = vadd.f32 0.0, %v2710
  %v2712 = vpop.f32.mrb[0].mxu0
  %v2713 = vadd.f32 0.0, %v2712
  %v2714 = vpop.f32.mrb[0].mxu0
  %v2715 = vadd.f32 0.0, %v2714
  %2716 = vdwg.mxu0
  %2717 = vmatprep.subr.bf16.mxu0 %v1902
  %2718 = vmatpush1.bf16.msra.mxu0 %v1901
  %2719 = vmatprep.subr.bf16.mxu0 %v1942
  %2720 = vmatpush1.bf16.msra.mxu0 %v1941
  %2721 = vmatprep.subr.bf16.mxu0 0
  %2722 = vmatpush1.bf16.msra.mxu0 0
  %2723 = vmatprep.subr.bf16.mxu0 0
  %2724 = vmatpush1.bf16.msra.mxu0 0
  %2725 = vmatprep.subr.bf16.mxu0 0
  %2726 = vmatpush1.bf16.msra.mxu0 0
  %2727 = vmatprep.subr.bf16.mxu0 0
  %2728 = vmatpush1.bf16.msra.mxu0 0
  %2729 = vmatprep.subr.bf16.mxu0 0
  %2730 = vmatpush1.bf16.msra.mxu0 0
  %2731 = vmatprep.subr.bf16.mxu0 0
  %2732 = vmatpush1.bf16.msra.mxu0 0
  %2733 = vmatprep.subr.bf16.mxu0 0
  %2734 = vmatpush1.bf16.msra.mxu0 0
  %2735 = vmatprep.subr.bf16.mxu0 0
  %2736 = vmatpush1.bf16.msra.mxu0 0
  %2737 = vmatprep.subr.bf16.mxu0 0
  %2738 = vmatpush1.bf16.msra.mxu0 0
  %2739 = vmatprep.subr.bf16.mxu0 0
  %2740 = vmatpush1.bf16.msra.mxu0 0
  %2741 = vmatprep.subr.bf16.mxu0 0
  %2742 = vmatpush1.bf16.msra.mxu0 0
  %2743 = vmatprep.subr.bf16.mxu0 0
  %2744 = vmatpush1.bf16.msra.mxu0 0
  %2745 = vmatprep.subr.bf16.mxu0 0
  %2746 = vmatpush1.bf16.msra.mxu0 0
  %2747 = vmatprep.subr.bf16.mxu0 0
  %2748 = vmatpush1.bf16.msra.mxu0 0
  %2749 = vmatprep.mubr.bf16.mxu0 0
  %2750 = vmatmul.mubr.bf16.gmra.mrb[0].mxu0 %v506
  %v2751 = vpop.f32.mrb[0].mxu0
  %v2752 = vadd.f32 0.0, %v2751
  %v2753 = vpop.f32.mrb[0].mxu0
  %v2754 = vadd.f32 0.0, %v2753
  %v2755 = vpop.f32.mrb[0].mxu0
  %v2756 = vadd.f32 0.0, %v2755
  %v2757 = vpop.f32.mrb[0].mxu0
  %v2758 = vadd.f32 0.0, %v2757
  %2759 = vdwg.mxu0
  %2760 = vmatprep.subr.bf16.mxu0 %v1904
  %2761 = vmatpush1.bf16.msra.mxu0 %v1903
  %2762 = vmatprep.subr.bf16.mxu0 %v1944
  %2763 = vmatpush1.bf16.msra.mxu0 %v1943
  %2764 = vmatprep.subr.bf16.mxu0 0
  %2765 = vmatpush1.bf16.msra.mxu0 0
  %2766 = vmatprep.subr.bf16.mxu0 0
  %2767 = vmatpush1.bf16.msra.mxu0 0
  %2768 = vmatprep.subr.bf16.mxu0 0
  %2769 = vmatpush1.bf16.msra.mxu0 0
  %2770 = vmatprep.subr.bf16.mxu0 0
  %2771 = vmatpush1.bf16.msra.mxu0 0
  %2772 = vmatprep.subr.bf16.mxu0 0
  %2773 = vmatpush1.bf16.msra.mxu0 0
  %2774 = vmatprep.subr.bf16.mxu0 0
  %2775 = vmatpush1.bf16.msra.mxu0 0
  %2776 = vmatprep.subr.bf16.mxu0 0
  %2777 = vmatpush1.bf16.msra.mxu0 0
  %2778 = vmatprep.subr.bf16.mxu0 0
  %2779 = vmatpush1.bf16.msra.mxu0 0
  %2780 = vmatprep.subr.bf16.mxu0 0
  %2781 = vmatpush1.bf16.msra.mxu0 0
  %2782 = vmatprep.subr.bf16.mxu0 0
  %2783 = vmatpush1.bf16.msra.mxu0 0
  %2784 = vmatprep.subr.bf16.mxu0 0
  %2785 = vmatpush1.bf16.msra.mxu0 0
  %2786 = vmatprep.subr.bf16.mxu0 0
  %2787 = vmatpush1.bf16.msra.mxu0 0
  %2788 = vmatprep.subr.bf16.mxu0 0
  %2789 = vmatpush1.bf16.msra.mxu0 0
  %2790 = vmatprep.subr.bf16.mxu0 0
  %2791 = vmatpush1.bf16.msra.mxu0 0
  %2792 = vmatprep.mubr.bf16.mxu0 0
  %2793 = vmatmul.mubr.bf16.gmra.mrb[0].mxu0 %v506
  %v2794 = vpop.f32.mrb[0].mxu0
  %v2795 = vadd.f32 0.0, %v2794
  %v2796 = vpop.f32.mrb[0].mxu0
  %v2797 = vadd.f32 0.0, %v2796
  %v2798 = vpop.f32.mrb[0].mxu0
  %v2799 = vadd.f32 0.0, %v2798
  %v2800 = vpop.f32.mrb[0].mxu0
  %v2801 = vadd.f32 0.0, %v2800
  %2802 = vdwg.mxu0
  %2803 = vmatprep.subr.bf16.mxu0 %v1906
  %2804 = vmatpush1.bf16.msra.mxu0 %v1905
  %2805 = vmatprep.subr.bf16.mxu0 %v1946
  %2806 = vmatpush1.bf16.msra.mxu0 %v1945
  %2807 = vmatprep.subr.bf16.mxu0 0
  %2808 = vmatpush1.bf16.msra.mxu0 0
  %2809 = vmatprep.subr.bf16.mxu0 0
  %2810 = vmatpush1.bf16.msra.mxu0 0
  %2811 = vmatprep.subr.bf16.mxu0 0
  %2812 = vmatpush1.bf16.msra.mxu0 0
  %2813 = vmatprep.subr.bf16.mxu0 0
  %2814 = vmatpush1.bf16.msra.mxu0 0
  %2815 = vmatprep.subr.bf16.mxu0 0
  %2816 = vmatpush1.bf16.msra.mxu0 0
  %2817 = vmatprep.subr.bf16.mxu0 0
  %2818 = vmatpush1.bf16.msra.mxu0 0
  %2819 = vmatprep.subr.bf16.mxu0 0
  %2820 = vmatpush1.bf16.msra.mxu0 0
  %2821 = vmatprep.subr.bf16.mxu0 0
  %2822 = vmatpush1.bf16.msra.mxu0 0
  %2823 = vmatprep.subr.bf16.mxu0 0
  %2824 = vmatpush1.bf16.msra.mxu0 0
  %2825 = vmatprep.subr.bf16.mxu0 0
  %2826 = vmatpush1.bf16.msra.mxu0 0
  %2827 = vmatprep.subr.bf16.mxu0 0
  %2828 = vmatpush1.bf16.msra.mxu0 0
  %2829 = vmatprep.subr.bf16.mxu0 0
  %2830 = vmatpush1.bf16.msra.mxu0 0
  %2831 = vmatprep.subr.bf16.mxu0 0
  %2832 = vmatpush1.bf16.msra.mxu0 0
  %2833 = vmatprep.subr.bf16.mxu0 0
  %2834 = vmatpush1.bf16.msra.mxu0 0
  %2835 = vmatprep.mubr.bf16.mxu0 0
  %2836 = vmatmul.mubr.bf16.gmra.mrb[0].mxu0 %v506
  %v2837 = vpop.f32.mrb[0].mxu0
  %v2838 = vadd.f32 0.0, %v2837
  %v2839 = vpop.f32.mrb[0].mxu0
  %v2840 = vadd.f32 0.0, %v2839
  %v2841 = vpop.f32.mrb[0].mxu0
  %v2842 = vadd.f32 0.0, %v2841
  %v2843 = vpop.f32.mrb[0].mxu0
  %v2844 = vadd.f32 0.0, %v2843
  %2845 = vdwg.mxu0
  %2846 = vmatprep.subr.bf16.mxu0 %v1908
  %2847 = vmatpush1.bf16.msra.mxu0 %v1907
  %2848 = vmatprep.subr.bf16.mxu0 %v1948
  %2849 = vmatpush1.bf16.msra.mxu0 %v1947
  %2850 = vmatprep.subr.bf16.mxu0 0
  %2851 = vmatpush1.bf16.msra.mxu0 0
  %2852 = vmatprep.subr.bf16.mxu0 0
  %2853 = vmatpush1.bf16.msra.mxu0 0
  %2854 = vmatprep.subr.bf16.mxu0 0
  %2855 = vmatpush1.bf16.msra.mxu0 0
  %2856 = vmatprep.subr.bf16.mxu0 0
  %2857 = vmatpush1.bf16.msra.mxu0 0
  %2858 = vmatprep.subr.bf16.mxu0 0
  %2859 = vmatpush1.bf16.msra.mxu0 0
  %2860 = vmatprep.subr.bf16.mxu0 0
  %2861 = vmatpush1.bf16.msra.mxu0 0
  %2862 = vmatprep.subr.bf16.mxu0 0
  %2863 = vmatpush1.bf16.msra.mxu0 0
  %2864 = vmatprep.subr.bf16.mxu0 0
  %2865 = vmatpush1.bf16.msra.mxu0 0
  %2866 = vmatprep.subr.bf16.mxu0 0
  %2867 = vmatpush1.bf16.msra.mxu0 0
  %2868 = vmatprep.subr.bf16.mxu0 0
  %2869 = vmatpush1.bf16.msra.mxu0 0
  %2870 = vmatprep.subr.bf16.mxu0 0
  %2871 = vmatpush1.bf16.msra.mxu0 0
  %2872 = vmatprep.subr.bf16.mxu0 0
  %2873 = vmatpush1.bf16.msra.mxu0 0
  %2874 = vmatprep.subr.bf16.mxu0 0
  %2875 = vmatpush1.bf16.msra.mxu0 0
  %2876 = vmatprep.subr.bf16.mxu0 0
  %2877 = vmatpush1.bf16.msra.mxu0 0
  %2878 = vmatprep.mubr.bf16.mxu0 0
  %2879 = vmatmul.mubr.bf16.gmra.mrb[0].mxu0 %v506
  %v2880 = vpop.f32.mrb[0].mxu0
  %v2881 = vadd.f32 0.0, %v2880
  %v2882 = vpop.f32.mrb[0].mxu0
  %v2883 = vadd.f32 0.0, %v2882
  %v2884 = vpop.f32.mrb[0].mxu0
  %v2885 = vadd.f32 0.0, %v2884
  %v2886 = vpop.f32.mrb[0].mxu0
  %v2887 = vadd.f32 0.0, %v2886
  %2888 = vdwg.mxu0
  %v2889 = vmax.f32 %v2064, %v2279
  %v2890 = vmax.f32 %v2066, %v2281
  %v2891 = vmax.f32 %v2107, %v2322
  %v2892 = vmax.f32 %v2109, %v2324
  %v2893 = vmax.f32 %v2150, %v2365
  %v2894 = vmax.f32 %v2152, %v2367
  %v2895 = vmax.f32 %v2193, %v2408
  %v2896 = vmax.f32 %v2195, %v2410
  %v2897 = vmax.f32 %v2236, %v2451
  %v2898 = vmax.f32 %v2238, %v2453
  %v2899 = vmax.f32 %v2068, %v2283
  %v2900 = vmax.f32 %v2070, %v2285
  %v2901 = vmax.f32 %v2111, %v2326
  %v2902 = vmax.f32 %v2113, %v2328
  %v2903 = vmax.f32 %v2154, %v2369
  %v2904 = vmax.f32 %v2156, %v2371
  %v2905 = vmax.f32 %v2197, %v2412
  %v2906 = vmax.f32 %v2199, %v2414
  %v2907 = vmax.f32 %v2240, %v2455
  %v2908 = vmax.f32 %v2242, %v2457
  %v2909 = vmax.f32 %v2494, %v2709
  %v2910 = vmax.f32 %v2496, %v2711
  %v2911 = vmax.f32 %v2537, %v2752
  %v2912 = vmax.f32 %v2539, %v2754
  %v2913 = vmax.f32 %v2580, %v2795
  %v2914 = vmax.f32 %v2582, %v2797
  %v2915 = vmax.f32 %v2623, %v2838
  %v2916 = vmax.f32 %v2625, %v2840
  %v2917 = vmax.f32 %v2666, %v2881
  %v2918 = vmax.f32 %v2668, %v2883
  %v2919 = vmax.f32 %v2498, %v2713
  %v2920 = vmax.f32 %v2500, %v2715
  %v2921 = vmax.f32 %v2541, %v2756
  %v2922 = vmax.f32 %v2543, %v2758
  %v2923 = vmax.f32 %v2584, %v2799
  %v2924 = vmax.f32 %v2586, %v2801
  %v2925 = vmax.f32 %v2627, %v2842
  %v2926 = vmax.f32 %v2629, %v2844
  %v2927 = vmax.f32 %v2670, %v2885
  %v2928 = vmax.f32 %v2672, %v2887
  %v2929 = vmax.f32 %v2889, %v2909
  %v2930 = vmax.f32 %v2890, %v2910
  %v2931 = vmax.f32 %v2891, %v2911
  %v2932 = vmax.f32 %v2892, %v2912
  %v2933 = vmax.f32 %v2893, %v2913
  %v2934 = vmax.f32 %v2894, %v2914
  %v2935 = vmax.f32 %v2895, %v2915
  %v2936 = vmax.f32 %v2896, %v2916
  %v2937 = vmax.f32 %v2897, %v2917
  %v2938 = vmax.f32 %v2898, %v2918
  %v2939 = vmax.f32 %v2899, %v2919
  %v2940 = vmax.f32 %v2900, %v2920
  %v2941 = vmax.f32 %v2901, %v2921
  %v2942 = vmax.f32 %v2902, %v2922
  %v2943 = vmax.f32 %v2903, %v2923
  %v2944 = vmax.f32 %v2904, %v2924
  %v2945 = vmax.f32 %v2905, %v2925
  %v2946 = vmax.f32 %v2906, %v2926
  %v2947 = vmax.f32 %v2907, %v2927
  %v2948 = vmax.f32 %v2908, %v2928
  %v2949 = vadd.f32 %v2929, %v1431
  %v2950 = vadd.f32 %v2930, %v1431
  %v2951 = vadd.f32 %v2931, %v1431
  %v2952 = vadd.f32 %v2932, %v1431
  %v2953 = vadd.f32 %v2933, %v1431
  %v2954 = vadd.f32 %v2934, %v1431
  %v2955 = vadd.f32 %v2935, %v1431
  %v2956 = vadd.f32 %v2936, %v1431
  %v2957 = vadd.f32 %v2937, %v1431
  %v2958 = vadd.f32 %v2938, %v1431
  %v2959 = vadd.f32 %v2939, %v1436
  %v2960 = vadd.f32 %v2940, %v1436
  %v2961 = vadd.f32 %v2941, %v1436
  %v2962 = vadd.f32 %v2942, %v1436
  %v2963 = vadd.f32 %v2943, %v1436
  %v2964 = vadd.f32 %v2944, %v1436
  %v2965 = vadd.f32 %v2945, %v1436
  %v2966 = vadd.f32 %v2946, %v1436
  %v2967 = vadd.f32 %v2947, %v1436
  %v2968 = vadd.f32 %v2948, %v1436
  %v2969 = vmax.f32 %v2949, 0.0
  %v2970 = vmax.f32 %v2950, 0.0
  %v2971 = vmax.f32 %v2951, 0.0
  %v2972 = vmax.f32 %v2952, 0.0
  %v2973 = vmax.f32 %v2953, 0.0
  %v2974 = vmax.f32 %v2954, 0.0
  %v2975 = vmax.f32 %v2955, 0.0
  %v2976 = vmax.f32 %v2956, 0.0
  %v2977 = vmax.f32 %v2957, 0.0
  %v2978 = vmax.f32 %v2958, 0.0
  %v2979 = vmax.f32 %v2959, 0.0
  %v2980 = vmax.f32 %v2960, 0.0
  %v2981 = vmax.f32 %v2961, 0.0
  %v2982 = vmax.f32 %v2962, 0.0
  %v2983 = vmax.f32 %v2963, 0.0
  %v2984 = vmax.f32 %v2964, 0.0
  %v2985 = vmax.f32 %v2965, 0.0
  %v2986 = vmax.f32 %v2966, 0.0
  %v2987 = vmax.f32 %v2967, 0.0
  %v2988 = vmax.f32 %v2968, 0.0
  %v2989 = vpack.c.bf16 %v2979, %v2969
  %v2990 = vpack.c.bf16 %v2980, %v2970
  %v2991 = vpack.c.bf16 %v2981, %v2971
  %v2992 = vpack.c.bf16 %v2982, %v2972
  %v2993 = vpack.c.bf16 %v2983, %v2973
  %v2994 = vpack.c.bf16 %v2984, %v2974
  %v2995 = vpack.c.bf16 %v2985, %v2975
  %v2996 = vpack.c.bf16 %v2986, %v2976
  %v2997 = vpack.c.bf16 %v2987, %v2977
  %v2998 = vpack.c.bf16 %v2988, %v2978
  %v3009 = vunpack.c.l.b16 %v2989
  %v3010 = vunpack.c.l.b16 %v2990
  %v3011 = vunpack.c.l.b16 %v2991
  %v3012 = vunpack.c.l.b16 %v2992
  %v3013 = vunpack.c.l.b16 %v2993
  %v3014 = vunpack.c.l.b16 %v2994
  %v3015 = vunpack.c.l.b16 %v2995
  %v3016 = vunpack.c.l.b16 %v2996
  %v3017 = vunpack.c.l.b16 %v2997
  %v3018 = vunpack.c.l.b16 %v2998
  %v3019 = vunpack.c.h.b16 %v2989
  %v3020 = vunpack.c.h.b16 %v2990
  %v3021 = vunpack.c.h.b16 %v2991
  %v3022 = vunpack.c.h.b16 %v2992
  %v3023 = vunpack.c.h.b16 %v2993
  %v3024 = vunpack.c.h.b16 %v2994
  %v3025 = vunpack.c.h.b16 %v2995
  %v3026 = vunpack.c.h.b16 %v2996
  %v3027 = vunpack.c.h.b16 %v2997
  %v3028 = vunpack.c.h.b16 %v2998
  %v3029 = vpack.c.b16 %v3010, %v3009
  %v3030 = vpack.c.b16 %v3012, %v3011
  %v3031 = vpack.c.b16 %v3014, %v3013
  %v3032 = vpack.c.b16 %v3016, %v3015
  %v3033 = vpack.c.b16 %v3018, %v3017
  %v3034 = vpack.c.b16 %v3020, %v3019
  %v3035 = vpack.c.b16 %v3022, %v3021
  %v3036 = vpack.c.b16 %v3024, %v3023
  %v3037 = vpack.c.b16 %v3026, %v3025
  %v3038 = vpack.c.b16 %v3028, %v3027
  %s3049 = scalar_lea.vmem %s3, 80
  %3050 = vst [vmem:[%s3049] sm:$0xff] %v3029
  %3051 = vst [vmem:[%s3049 + $0x8] sm:$0xff] %v3030
  %3052 = vst [vmem:[%s3049 + $0x10] sm:$0xff] %v3031
  %3053 = vst [vmem:[%s3049 + $0x18] sm:$0xff] %v3032
  %3054 = vst [vmem:[%s3049 + $0x20] sm:$0xff] %v3033
  %3055 = vst [vmem:[%s3049 + $0x28] sm:$0xff] %v3034
  %3056 = vst [vmem:[%s3049 + $0x30] sm:$0xff] %v3035
  %3057 = vst [vmem:[%s3049 + $0x38] sm:$0xff] %v3036
  %3058 = vst [vmem:[%s3049 + $0x40] sm:$0xff] %v3037
  %3059 = vst [vmem:[%s3049 + $0x48] sm:$0xff] %v3038
  // Predicated region
  $region14: #{conv_nn_forward.3} parent=0 // pred_check
    _
  $region15: #{conv_nn_forward.3} parent=0 // pred_check_branch
    %3061 = sbr.rel (0) target = $region17
  $region16: #{conv_nn_forward.3} parent=0 // pred_region
    _
  $region17: #{conv_nn_forward.3} parent=0 // pred_fallthru
    _
  // Predicated region
  $region18: #{conv_nn_forward.3} parent=0 // pred_check
    _
  $region19: #{conv_nn_forward.3} parent=0 // pred_check_branch
    %3063 = sbr.rel (0) target = $region21
  $region20: #{conv_nn_forward.3} parent=0 // pred_region
    _
  $region21: #{conv_nn_forward.3} parent=0 // pred_fallthru
    _

// kernel: conv_nn_forward.4
$region0: #{conv_nn_forward.4}
  #allocation0 [shape = 'u32[]', space=smem, size = 0x4, offset = 0x4, fixed_abs, tag = 'smem constant byte address 0x4 - core index']
  #allocation1 [shape = 'u32[144,128]{1,0:T(1,128)}', space=vmem, size = 0x12000, scoped, tag = 'internal scratch']
  %s0 = inlined_call_operand.vmem [shape: bf16[2,144,1536], index: 0, kind: input, shape index: {}]
  %s1 = inlined_call_operand.vmem [shape: bf16[32,144], index: 1, kind: input, shape index: {}]
  %s2 = inlined_call_operand.vmem [shape: f32[32,1], index: 2, kind: input, shape index: {}]
  %s3 = inlined_call_operand.vmem [shape: bf16[2,32,384], index: 3, kind: output, shape index: {}]
  %s4 = sld [smem:[#allocation0]]
  $region22: #{conv_nn_forward.4} parent=0
    _
  %s6 = ssub.s32 1, %s4
  %s7 = scalar_select 0, %s6, %s4
  // Predicated region
  $region2: #{conv_nn_forward.4} parent=0 // pred_check
    _
  $region3: #{conv_nn_forward.4} parent=0 // pred_check_branch
    %9 = sbr.rel (0) target = $region5
  $region4: #{conv_nn_forward.4} parent=0 // pred_region
    _
  $region5: #{conv_nn_forward.4} parent=0 // pred_fallthru
    _
  // Predicated region
  $region6: #{conv_nn_forward.4} parent=0 // pred_check
    _
  $region7: #{conv_nn_forward.4} parent=0 // pred_check_branch
    %11 = sbr.rel (0) target = $region9
  $region8: #{conv_nn_forward.4} parent=0 // pred_region
    _
  $region9: #{conv_nn_forward.4} parent=0 // pred_fallthru
    _
  // Predicated region
  $region10: #{conv_nn_forward.4} parent=0 // pred_check
    _
  $region11: #{conv_nn_forward.4} parent=0 // pred_check_branch
    %13 = sbr.rel (0) target = $region13
  $region12: #{conv_nn_forward.4} parent=0 // pred_region
    _
  $region13: #{conv_nn_forward.4} parent=0 // pred_fallthru
    _
  %v15 = vld [vmem:[%s1] sm:$0xff]
  %v16 = vld [vmem:[%s1 + $0x8] sm:$0xff]
  %v17 = vld [vmem:[%s1 + $0x10] sm:$0xff]
  %v18 = vld [vmem:[%s1 + $0x18] sm:$0xff]
  %v19 = vld [vmem:[%s2] sm:$0xff]
  %v20 = vld [vmem:[%s2 + $0x8] sm:$0xff]
  %v21 = vld [vmem:[%s2 + $0x10] sm:$0xff]
  %v22 = vld [vmem:[%s2 + $0x18] sm:$0xff]
  %v23 = vld [vmem:[%s0] sm:$0xff]
  %v24 = vld [vmem:[%s0 + $0x8] sm:$0xff]
  %v25 = vld [vmem:[%s0 + $0x10] sm:$0xff]
  %v26 = vld [vmem:[%s0 + $0x18] sm:$0xff]
  %v27 = vld [vmem:[%s0 + $0x20] sm:$0xff]
  %v28 = vld [vmem:[%s0 + $0x28] sm:$0xff]
  %v29 = vld [vmem:[%s0 + $0x30] sm:$0xff]
  %v30 = vld [vmem:[%s0 + $0x38] sm:$0xff]
  %v31 = vld [vmem:[%s0 + $0x40] sm:$0xff]
  %v32 = vld [vmem:[%s0 + $0x48] sm:$0xff]
  %v33 = vld [vmem:[%s0 + $0x50] sm:$0xff]
  %v34 = vld [vmem:[%s0 + $0x58] sm:$0xff]
  %v35 = vld [vmem:[%s0 + $0x60] sm:$0xff]
  %v36 = vld [vmem:[%s0 + $0x68] sm:$0xff]
  %v37 = vld [vmem:[%s0 + $0x70] sm:$0xff]
  %v38 = vld [vmem:[%s0 + $0x78] sm:$0xff]
  %v39 = vld [vmem:[%s0 + $0x80] sm:$0xff]
  %v40 = vld [vmem:[%s0 + $0x88] sm:$0xff]
  %v41 = vld [vmem:[%s0 + $0x90] sm:$0xff]
  %v42 = vld [vmem:[%s0 + $0x98] sm:$0xff]
  %v43 = vld [vmem:[%s0 + $0xa0] sm:$0xff]
  %v44 = vld [vmem:[%s0 + $0xa8] sm:$0xff]
  %v45 = vld [vmem:[%s0 + $0xb0] sm:$0xff]
  %v46 = vld [vmem:[%s0 + $0xb8] sm:$0xff]
  %v47 = vld [vmem:[%s0 + $0xc0] sm:$0xff]
  %v48 = vld [vmem:[%s0 + $0xc8] sm:$0xff]
  %v49 = vld [vmem:[%s0 + $0xd0] sm:$0xff]
  %v50 = vld [vmem:[%s0 + $0xd8] sm:$0xff]
  %v51 = vld [vmem:[%s0 + $0xe0] sm:$0xff]
  %v52 = vld [vmem:[%s0 + $0xe8] sm:$0xff]
  %v53 = vld [vmem:[%s0 + $0xf0] sm:$0xff]
  %v54 = vld [vmem:[%s0 + $0xf8] sm:$0xff]
  %v55 = vld [vmem:[%s0 + $0x100] sm:$0xff]
  %v56 = vld [vmem:[%s0 + $0x108] sm:$0xff]
  %v57 = vld [vmem:[%s0 + $0x110] sm:$0xff]
  %v58 = vld [vmem:[%s0 + $0x118] sm:$0xff]
  %v59 = vld [vmem:[%s0 + $0x120] sm:$0xff]
  %v60 = vld [vmem:[%s0 + $0x128] sm:$0xff]
  %v61 = vld [vmem:[%s0 + $0x130] sm:$0xff]
  %v62 = vld [vmem:[%s0 + $0x138] sm:$0xff]
  %v63 = vld [vmem:[%s0 + $0x140] sm:$0xff]
  %v64 = vld [vmem:[%s0 + $0x148] sm:$0xff]
  %v65 = vld [vmem:[%s0 + $0x150] sm:$0xff]
  %v66 = vld [vmem:[%s0 + $0x158] sm:$0xff]
  %v67 = vld [vmem:[%s0 + $0x160] sm:$0xff]
  %v68 = vld [vmem:[%s0 + $0x168] sm:$0xff]
  %v69 = vld [vmem:[%s0 + $0x170] sm:$0xff]
  %v70 = vld [vmem:[%s0 + $0x178] sm:$0xff]
  %v71 = vld [vmem:[%s0 + $0x180] sm:$0xff]
  %v72 = vld [vmem:[%s0 + $0x188] sm:$0xff]
  %v73 = vld [vmem:[%s0 + $0x190] sm:$0xff]
  %v74 = vld [vmem:[%s0 + $0x198] sm:$0xff]
  %v75 = vld [vmem:[%s0 + $0x1a0] sm:$0xff]
  %v76 = vld [vmem:[%s0 + $0x1a8] sm:$0xff]
  %v77 = vld [vmem:[%s0 + $0x1b0] sm:$0xff]
  %v78 = vld [vmem:[%s0 + $0x1b8] sm:$0xff]
  %v79 = vld [vmem:[%s0 + $0x1c0] sm:$0xff]
  %v80 = vld [vmem:[%s0 + $0x1c8] sm:$0xff]
  %v81 = vld [vmem:[%s0 + $0x1d0] sm:$0xff]
  %v82 = vld [vmem:[%s0 + $0x1d8] sm:$0xff]
  %v83 = vld [vmem:[%s0 + $0x1e0] sm:$0xff]
  %v84 = vld [vmem:[%s0 + $0x1e8] sm:$0xff]
  %v85 = vld [vmem:[%s0 + $0x1f0] sm:$0xff]
  %v86 = vld [vmem:[%s0 + $0x1f8] sm:$0xff]
  %v87 = vld [vmem:[%s0 + $0x200] sm:$0xff]
  %v88 = vld [vmem:[%s0 + $0x208] sm:$0xff]
  %v89 = vld [vmem:[%s0 + $0x210] sm:$0xff]
  %v90 = vld [vmem:[%s0 + $0x218] sm:$0xff]
  %v91 = vld [vmem:[%s0 + $0x220] sm:$0xff]
  %v92 = vld [vmem:[%s0 + $0x228] sm:$0xff]
  %v93 = vld [vmem:[%s0 + $0x230] sm:$0xff]
  %v94 = vld [vmem:[%s0 + $0x238] sm:$0xff]
  %v95 = vld [vmem:[%s0 + $0x240] sm:$0xff]
  %v96 = vld [vmem:[%s0 + $0x248] sm:$0xff]
  %v97 = vld [vmem:[%s0 + $0x250] sm:$0xff]
  %v98 = vld [vmem:[%s0 + $0x258] sm:$0xff]
  %v99 = vld [vmem:[%s0 + $0x260] sm:$0xff]
  %v100 = vld [vmem:[%s0 + $0x268] sm:$0xff]
  %v101 = vld [vmem:[%s0 + $0x270] sm:$0xff]
  %v102 = vld [vmem:[%s0 + $0x278] sm:$0xff]
  %v103 = vld [vmem:[%s0 + $0x280] sm:$0xff]
  %v104 = vld [vmem:[%s0 + $0x288] sm:$0xff]
  %v105 = vld [vmem:[%s0 + $0x290] sm:$0xff]
  %v106 = vld [vmem:[%s0 + $0x298] sm:$0xff]
  %v107 = vld [vmem:[%s0 + $0x2a0] sm:$0xff]
  %v108 = vld [vmem:[%s0 + $0x2a8] sm:$0xff]
  %v109 = vld [vmem:[%s0 + $0x2b0] sm:$0xff]
  %v110 = vld [vmem:[%s0 + $0x2b8] sm:$0xff]
  %v111 = vld [vmem:[%s0 + $0x2c0] sm:$0xff]
  %v112 = vld [vmem:[%s0 + $0x2c8] sm:$0xff]
  %v113 = vld [vmem:[%s0 + $0x2d0] sm:$0xff]
  %v114 = vld [vmem:[%s0 + $0x2d8] sm:$0xff]
  %v115 = vld [vmem:[%s0 + $0x2e0] sm:$0xff]
  %v116 = vld [vmem:[%s0 + $0x2e8] sm:$0xff]
  %v117 = vld [vmem:[%s0 + $0x2f0] sm:$0xff]
  %v118 = vld [vmem:[%s0 + $0x2f8] sm:$0xff]
  %v119 = vld [vmem:[%s0 + $0x300] sm:$0xff]
  %v120 = vld [vmem:[%s0 + $0x308] sm:$0xff]
  %v121 = vld [vmem:[%s0 + $0x310] sm:$0xff]
  %v122 = vld [vmem:[%s0 + $0x318] sm:$0xff]
  %v123 = vld [vmem:[%s0 + $0x320] sm:$0xff]
  %v124 = vld [vmem:[%s0 + $0x328] sm:$0xff]
  %v125 = vld [vmem:[%s0 + $0x330] sm:$0xff]
  %v126 = vld [vmem:[%s0 + $0x338] sm:$0xff]
  %v127 = vld [vmem:[%s0 + $0x340] sm:$0xff]
  %v128 = vld [vmem:[%s0 + $0x348] sm:$0xff]
  %v129 = vld [vmem:[%s0 + $0x350] sm:$0xff]
  %v130 = vld [vmem:[%s0 + $0x358] sm:$0xff]
  %v135 = vunpack.c.l.b16 %v15
  %v136 = vunpack.c.h.b16 %v15
  %v137 = vunpack.c.l.b16 %v16
  %v138 = vunpack.c.h.b16 %v16
  %v139 = vunpack.c.l.b16 %v17
  %v140 = vunpack.c.h.b16 %v17
  %v141 = vunpack.c.l.b16 %v18
  %v142 = vunpack.c.h.b16 %v18
  %v143 = vpack.c.b16 %v137, %v135
  %v144 = vpack.c.b16 %v138, %v136
  %v145 = vpack.c.b16 %v141, %v139
  %v146 = vpack.c.b16 %v142, %v140
  %v257 = vunpack.c.l.b16 %v23
  %v258 = vunpack.c.h.b16 %v23
  %v259 = vunpack.c.l.b16 %v24
  %v260 = vunpack.c.h.b16 %v24
  %v261 = vunpack.c.l.b16 %v25
  %v262 = vunpack.c.h.b16 %v25
  %v263 = vunpack.c.l.b16 %v26
  %v264 = vunpack.c.h.b16 %v26
  %v265 = vunpack.c.l.b16 %v27
  %v266 = vunpack.c.h.b16 %v27
  %v267 = vunpack.c.l.b16 %v28
  %v268 = vunpack.c.h.b16 %v28
  %v269 = vunpack.c.l.b16 %v29
  %v270 = vunpack.c.h.b16 %v29
  %v271 = vunpack.c.l.b16 %v30
  %v272 = vunpack.c.h.b16 %v30
  %v273 = vunpack.c.l.b16 %v31
  %v274 = vunpack.c.h.b16 %v31
  %v275 = vunpack.c.l.b16 %v32
  %v276 = vunpack.c.h.b16 %v32
  %v277 = vunpack.c.l.b16 %v33
  %v278 = vunpack.c.h.b16 %v33
  %v279 = vunpack.c.l.b16 %v34
  %v280 = vunpack.c.h.b16 %v34
  %v281 = vunpack.c.l.b16 %v35
  %v282 = vunpack.c.h.b16 %v35
  %v283 = vunpack.c.l.b16 %v36
  %v284 = vunpack.c.h.b16 %v36
  %v285 = vunpack.c.l.b16 %v37
  %v286 = vunpack.c.h.b16 %v37
  %v287 = vunpack.c.l.b16 %v38
  %v288 = vunpack.c.h.b16 %v38
  %v289 = vunpack.c.l.b16 %v39
  %v290 = vunpack.c.h.b16 %v39
  %v291 = vunpack.c.l.b16 %v40
  %v292 = vunpack.c.h.b16 %v40
  %v293 = vunpack.c.l.b16 %v41
  %v294 = vunpack.c.h.b16 %v41
  %v295 = vunpack.c.l.b16 %v42
  %v296 = vunpack.c.h.b16 %v42
  %v297 = vunpack.c.l.b16 %v43
  %v298 = vunpack.c.h.b16 %v43
  %v299 = vunpack.c.l.b16 %v44
  %v300 = vunpack.c.h.b16 %v44
  %v301 = vunpack.c.l.b16 %v45
  %v302 = vunpack.c.h.b16 %v45
  %v303 = vunpack.c.l.b16 %v46
  %v304 = vunpack.c.h.b16 %v46
  %v305 = vunpack.c.l.b16 %v47
  %v306 = vunpack.c.h.b16 %v47
  %v307 = vunpack.c.l.b16 %v48
  %v308 = vunpack.c.h.b16 %v48
  %v309 = vunpack.c.l.b16 %v49
  %v310 = vunpack.c.h.b16 %v49
  %v311 = vunpack.c.l.b16 %v50
  %v312 = vunpack.c.h.b16 %v50
  %v313 = vunpack.c.l.b16 %v51
  %v314 = vunpack.c.h.b16 %v51
  %v315 = vunpack.c.l.b16 %v52
  %v316 = vunpack.c.h.b16 %v52
  %v317 = vunpack.c.l.b16 %v53
  %v318 = vunpack.c.h.b16 %v53
  %v319 = vunpack.c.l.b16 %v54
  %v320 = vunpack.c.h.b16 %v54
  %v321 = vunpack.c.l.b16 %v55
  %v322 = vunpack.c.h.b16 %v55
  %v323 = vunpack.c.l.b16 %v56
  %v324 = vunpack.c.h.b16 %v56
  %v325 = vunpack.c.l.b16 %v57
  %v326 = vunpack.c.h.b16 %v57
  %v327 = vunpack.c.l.b16 %v58
  %v328 = vunpack.c.h.b16 %v58
  %v329 = vunpack.c.l.b16 %v59
  %v330 = vunpack.c.h.b16 %v59
  %v331 = vunpack.c.l.b16 %v60
  %v332 = vunpack.c.h.b16 %v60
  %v333 = vunpack.c.l.b16 %v61
  %v334 = vunpack.c.h.b16 %v61
  %v335 = vunpack.c.l.b16 %v62
  %v336 = vunpack.c.h.b16 %v62
  %v337 = vunpack.c.l.b16 %v63
  %v338 = vunpack.c.h.b16 %v63
  %v339 = vunpack.c.l.b16 %v64
  %v340 = vunpack.c.h.b16 %v64
  %v341 = vunpack.c.l.b16 %v65
  %v342 = vunpack.c.h.b16 %v65
  %v343 = vunpack.c.l.b16 %v66
  %v344 = vunpack.c.h.b16 %v66
  %v345 = vunpack.c.l.b16 %v67
  %v346 = vunpack.c.h.b16 %v67
  %v347 = vunpack.c.l.b16 %v68
  %v348 = vunpack.c.h.b16 %v68
  %v349 = vunpack.c.l.b16 %v69
  %v350 = vunpack.c.h.b16 %v69
  %v351 = vunpack.c.l.b16 %v70
  %v352 = vunpack.c.h.b16 %v70
  %v353 = vunpack.c.l.b16 %v71
  %v354 = vunpack.c.h.b16 %v71
  %v355 = vunpack.c.l.b16 %v72
  %v356 = vunpack.c.h.b16 %v72
  %v357 = vunpack.c.l.b16 %v73
  %v358 = vunpack.c.h.b16 %v73
  %v359 = vunpack.c.l.b16 %v74
  %v360 = vunpack.c.h.b16 %v74
  %v361 = vunpack.c.l.b16 %v75
  %v362 = vunpack.c.h.b16 %v75
  %v363 = vunpack.c.l.b16 %v76
  %v364 = vunpack.c.h.b16 %v76
  %v365 = vunpack.c.l.b16 %v77
  %v366 = vunpack.c.h.b16 %v77
  %v367 = vunpack.c.l.b16 %v78
  %v368 = vunpack.c.h.b16 %v78
  %v369 = vunpack.c.l.b16 %v79
  %v370 = vunpack.c.h.b16 %v79
  %v371 = vunpack.c.l.b16 %v80
  %v372 = vunpack.c.h.b16 %v80
  %v373 = vunpack.c.l.b16 %v81
  %v374 = vunpack.c.h.b16 %v81
  %v375 = vunpack.c.l.b16 %v82
  %v376 = vunpack.c.h.b16 %v82
  %v377 = vunpack.c.l.b16 %v83
  %v378 = vunpack.c.h.b16 %v83
  %v379 = vunpack.c.l.b16 %v84
  %v380 = vunpack.c.h.b16 %v84
  %v381 = vunpack.c.l.b16 %v85
  %v382 = vunpack.c.h.b16 %v85
  %v383 = vunpack.c.l.b16 %v86
  %v384 = vunpack.c.h.b16 %v86
  %v385 = vunpack.c.l.b16 %v87
  %v386 = vunpack.c.h.b16 %v87
  %v387 = vunpack.c.l.b16 %v88
  %v388 = vunpack.c.h.b16 %v88
  %v389 = vunpack.c.l.b16 %v89
  %v390 = vunpack.c.h.b16 %v89
  %v391 = vunpack.c.l.b16 %v90
  %v392 = vunpack.c.h.b16 %v90
  %v393 = vunpack.c.l.b16 %v91
  %v394 = vunpack.c.h.b16 %v91
  %v395 = vunpack.c.l.b16 %v92
  %v396 = vunpack.c.h.b16 %v92
  %v397 = vunpack.c.l.b16 %v93
  %v398 = vunpack.c.h.b16 %v93
  %v399 = vunpack.c.l.b16 %v94
  %v400 = vunpack.c.h.b16 %v94
  %v401 = vunpack.c.l.b16 %v95
  %v402 = vunpack.c.h.b16 %v95
  %v403 = vunpack.c.l.b16 %v96
  %v404 = vunpack.c.h.b16 %v96
  %v405 = vunpack.c.l.b16 %v97
  %v406 = vunpack.c.h.b16 %v97
  %v407 = vunpack.c.l.b16 %v98
  %v408 = vunpack.c.h.b16 %v98
  %v409 = vunpack.c.l.b16 %v99
  %v410 = vunpack.c.h.b16 %v99
  %v411 = vunpack.c.l.b16 %v100
  %v412 = vunpack.c.h.b16 %v100
  %v413 = vunpack.c.l.b16 %v101
  %v414 = vunpack.c.h.b16 %v101
  %v415 = vunpack.c.l.b16 %v102
  %v416 = vunpack.c.h.b16 %v102
  %v417 = vunpack.c.l.b16 %v103
  %v418 = vunpack.c.h.b16 %v103
  %v419 = vunpack.c.l.b16 %v104
  %v420 = vunpack.c.h.b16 %v104
  %v421 = vunpack.c.l.b16 %v105
  %v422 = vunpack.c.h.b16 %v105
  %v423 = vunpack.c.l.b16 %v106
  %v424 = vunpack.c.h.b16 %v106
  %v425 = vunpack.c.l.b16 %v107
  %v426 = vunpack.c.h.b16 %v107
  %v427 = vunpack.c.l.b16 %v108
  %v428 = vunpack.c.h.b16 %v108
  %v429 = vunpack.c.l.b16 %v109
  %v430 = vunpack.c.h.b16 %v109
  %v431 = vunpack.c.l.b16 %v110
  %v432 = vunpack.c.h.b16 %v110
  %v433 = vunpack.c.l.b16 %v111
  %v434 = vunpack.c.h.b16 %v111
  %v435 = vunpack.c.l.b16 %v112
  %v436 = vunpack.c.h.b16 %v112
  %v437 = vunpack.c.l.b16 %v113
  %v438 = vunpack.c.h.b16 %v113
  %v439 = vunpack.c.l.b16 %v114
  %v440 = vunpack.c.h.b16 %v114
  %v441 = vunpack.c.l.b16 %v115
  %v442 = vunpack.c.h.b16 %v115
  %v443 = vunpack.c.l.b16 %v116
  %v444 = vunpack.c.h.b16 %v116
  %v445 = vunpack.c.l.b16 %v117
  %v446 = vunpack.c.h.b16 %v117
  %v447 = vunpack.c.l.b16 %v118
  %v448 = vunpack.c.h.b16 %v118
  %v449 = vunpack.c.l.b16 %v119
  %v450 = vunpack.c.h.b16 %v119
  %v451 = vunpack.c.l.b16 %v120
  %v452 = vunpack.c.h.b16 %v120
  %v453 = vunpack.c.l.b16 %v121
  %v454 = vunpack.c.h.b16 %v121
  %v455 = vunpack.c.l.b16 %v122
  %v456 = vunpack.c.h.b16 %v122
  %v457 = vunpack.c.l.b16 %v123
  %v458 = vunpack.c.h.b16 %v123
  %v459 = vunpack.c.l.b16 %v124
  %v460 = vunpack.c.h.b16 %v124
  %v461 = vunpack.c.l.b16 %v125
  %v462 = vunpack.c.h.b16 %v125
  %v463 = vunpack.c.l.b16 %v126
  %v464 = vunpack.c.h.b16 %v126
  %v465 = vunpack.c.l.b16 %v127
  %v466 = vunpack.c.h.b16 %v127
  %v467 = vunpack.c.l.b16 %v128
  %v468 = vunpack.c.h.b16 %v128
  %v469 = vunpack.c.l.b16 %v129
  %v470 = vunpack.c.h.b16 %v129
  %v471 = vunpack.c.l.b16 %v130
  %v472 = vunpack.c.h.b16 %v130
  %v473 = vpack.c.b16 %v269, %v257
  %v474 = vpack.c.b16 %v270, %v258
  %v475 = vpack.c.b16 %v271, %v259
  %v476 = vpack.c.b16 %v272, %v260
  %v477 = vpack.c.b16 %v273, %v261
  %v478 = vpack.c.b16 %v274, %v262
  %v479 = vpack.c.b16 %v275, %v263
  %v480 = vpack.c.b16 %v276, %v264
  %v481 = vpack.c.b16 %v277, %v265
  %v482 = vpack.c.b16 %v278, %v266
  %v483 = vpack.c.b16 %v279, %v267
  %v484 = vpack.c.b16 %v280, %v268
  %v485 = vpack.c.b16 %v293, %v281
  %v486 = vpack.c.b16 %v294, %v282
  %v487 = vpack.c.b16 %v295, %v283
  %v488 = vpack.c.b16 %v296, %v284
  %v489 = vpack.c.b16 %v297, %v285
  %v490 = vpack.c.b16 %v298, %v286
  %v491 = vpack.c.b16 %v299, %v287
  %v492 = vpack.c.b16 %v300, %v288
  %v493 = vpack.c.b16 %v301, %v289
  %v494 = vpack.c.b16 %v302, %v290
  %v495 = vpack.c.b16 %v303, %v291
  %v496 = vpack.c.b16 %v304, %v292
  %v497 = vpack.c.b16 %v317, %v305
  %v498 = vpack.c.b16 %v318, %v306
  %v499 = vpack.c.b16 %v319, %v307
  %v500 = vpack.c.b16 %v320, %v308
  %v501 = vpack.c.b16 %v321, %v309
  %v502 = vpack.c.b16 %v322, %v310
  %v503 = vpack.c.b16 %v323, %v311
  %v504 = vpack.c.b16 %v324, %v312
  %v505 = vpack.c.b16 %v325, %v313
  %v506 = vpack.c.b16 %v326, %v314
  %v507 = vpack.c.b16 %v327, %v315
  %v508 = vpack.c.b16 %v328, %v316
  %v509 = vpack.c.b16 %v341, %v329
  %v510 = vpack.c.b16 %v342, %v330
  %v511 = vpack.c.b16 %v343, %v331
  %v512 = vpack.c.b16 %v344, %v332
  %v513 = vpack.c.b16 %v345, %v333
  %v514 = vpack.c.b16 %v346, %v334
  %v515 = vpack.c.b16 %v347, %v335
  %v516 = vpack.c.b16 %v348, %v336
  %v517 = vpack.c.b16 %v349, %v337
  %v518 = vpack.c.b16 %v350, %v338
  %v519 = vpack.c.b16 %v351, %v339
  %v520 = vpack.c.b16 %v352, %v340
  %v521 = vpack.c.b16 %v365, %v353
  %v522 = vpack.c.b16 %v366, %v354
  %v523 = vpack.c.b16 %v367, %v355
  %v524 = vpack.c.b16 %v368, %v356
  %v525 = vpack.c.b16 %v369, %v357
  %v526 = vpack.c.b16 %v370, %v358
  %v527 = vpack.c.b16 %v371, %v359
  %v528 = vpack.c.b16 %v372, %v360
  %v529 = vpack.c.b16 %v373, %v361
  %v530 = vpack.c.b16 %v374, %v362
  %v531 = vpack.c.b16 %v375, %v363
  %v532 = vpack.c.b16 %v376, %v364
  %v533 = vpack.c.b16 %v389, %v377
  %v534 = vpack.c.b16 %v390, %v378
  %v535 = vpack.c.b16 %v391, %v379
  %v536 = vpack.c.b16 %v392, %v380
  %v537 = vpack.c.b16 %v393, %v381
  %v538 = vpack.c.b16 %v394, %v382
  %v539 = vpack.c.b16 %v395, %v383
  %v540 = vpack.c.b16 %v396, %v384
  %v541 = vpack.c.b16 %v397, %v385
  %v542 = vpack.c.b16 %v398, %v386
  %v543 = vpack.c.b16 %v399, %v387
  %v544 = vpack.c.b16 %v400, %v388
  %v545 = vpack.c.b16 %v413, %v401
  %v546 = vpack.c.b16 %v414, %v402
  %v547 = vpack.c.b16 %v415, %v403
  %v548 = vpack.c.b16 %v416, %v404
  %v549 = vpack.c.b16 %v417, %v405
  %v550 = vpack.c.b16 %v418, %v406
  %v551 = vpack.c.b16 %v419, %v407
  %v552 = vpack.c.b16 %v420, %v408
  %v553 = vpack.c.b16 %v421, %v409
  %v554 = vpack.c.b16 %v422, %v410
  %v555 = vpack.c.b16 %v423, %v411
  %v556 = vpack.c.b16 %v424, %v412
  %v557 = vpack.c.b16 %v437, %v425
  %v558 = vpack.c.b16 %v438, %v426
  %v559 = vpack.c.b16 %v439, %v427
  %v560 = vpack.c.b16 %v440, %v428
  %v561 = vpack.c.b16 %v441, %v429
  %v562 = vpack.c.b16 %v442, %v430
  %v563 = vpack.c.b16 %v443, %v431
  %v564 = vpack.c.b16 %v444, %v432
  %v565 = vpack.c.b16 %v445, %v433
  %v566 = vpack.c.b16 %v446, %v434
  %v567 = vpack.c.b16 %v447, %v435
  %v568 = vpack.c.b16 %v448, %v436
  %v569 = vpack.c.b16 %v461, %v449
  %v570 = vpack.c.b16 %v462, %v450
  %v571 = vpack.c.b16 %v463, %v451
  %v572 = vpack.c.b16 %v464, %v452
  %v573 = vpack.c.b16 %v465, %v453
  %v574 = vpack.c.b16 %v466, %v454
  %v575 = vpack.c.b16 %v467, %v455
  %v576 = vpack.c.b16 %v468, %v456
  %v577 = vpack.c.b16 %v469, %v457
  %v578 = vpack.c.b16 %v470, %v458
  %v579 = vpack.c.b16 %v471, %v459
  %v580 = vpack.c.b16 %v472, %v460
  %vm689 = vcmask 130048
  %v691 = vsel %vm689, %v144, 0
  %v694 = vsel %vm689, %v146, 0
  %696 = vmatprep.subr.bf16.mxu0 %v474
  %697 = vmatpush1.bf16.msra.mxu0 %v473
  %698 = vmatprep.subr.bf16.mxu0 %v486
  %699 = vmatpush1.bf16.msra.mxu0 %v485
  %700 = vmatprep.subr.bf16.mxu0 %v498
  %701 = vmatpush1.bf16.msra.mxu0 %v497
  %702 = vmatprep.subr.bf16.mxu0 %v510
  %703 = vmatpush1.bf16.msra.mxu0 %v509
  %704 = vmatprep.subr.bf16.mxu0 %v522
  %705 = vmatpush1.bf16.msra.mxu0 %v521
  %706 = vmatprep.subr.bf16.mxu0 %v534
  %707 = vmatpush1.bf16.msra.mxu0 %v533
  %708 = vmatprep.subr.bf16.mxu0 %v546
  %709 = vmatpush1.bf16.msra.mxu0 %v545
  %710 = vmatprep.subr.bf16.mxu0 %v558
  %711 = vmatpush1.bf16.msra.mxu0 %v557
  %712 = vmatprep.subr.bf16.mxu0 %v570
  %713 = vmatpush1.bf16.msra.mxu0 %v569
  %714 = vmatprep.subr.bf16.mxu0 0
  %715 = vmatpush1.bf16.msra.mxu0 0
  %716 = vmatprep.subr.bf16.mxu0 0
  %717 = vmatpush1.bf16.msra.mxu0 0
  %718 = vmatprep.subr.bf16.mxu0 0
  %719 = vmatpush1.bf16.msra.mxu0 0
  %720 = vmatprep.subr.bf16.mxu0 0
  %721 = vmatpush1.bf16.msra.mxu0 0
  %722 = vmatprep.subr.bf16.mxu0 0
  %723 = vmatpush1.bf16.msra.mxu0 0
  %724 = vmatprep.subr.bf16.mxu0 0
  %725 = vmatpush1.bf16.msra.mxu0 0
  %726 = vmatprep.subr.bf16.mxu0 0
  %727 = vmatpush1.bf16.msra.mxu0 0
  %728 = vmatprep.mubr.bf16.mxu0 %v691
  %729 = vmatmul.mubr.bf16.gmra.mrb[0].mxu0 %v143
  %v730 = vpop.f32.mrb[0].mxu0
  %v731 = vadd.f32 0.0, %v730
  %v732 = vpop.f32.mrb[0].mxu0
  %v733 = vadd.f32 0.0, %v732
  %v734 = vpop.f32.mrb[0].mxu0
  %v735 = vadd.f32 0.0, %v734
  %v736 = vpop.f32.mrb[0].mxu0
  %v737 = vadd.f32 0.0, %v736
  %738 = vmatprep.mubr.bf16.mxu0 %v694
  %739 = vmatmul.mubr.bf16.gmra.mrb[0].mxu0 %v145
  %v740 = vpop.f32.mrb[0].mxu0
  %v741 = vadd.f32 0.0, %v740
  %v742 = vpop.f32.mrb[0].mxu0
  %v743 = vadd.f32 0.0, %v742
  %v744 = vpop.f32.mrb[0].mxu0
  %v745 = vadd.f32 0.0, %v744
  %v746 = vpop.f32.mrb[0].mxu0
  %v747 = vadd.f32 0.0, %v746
  %748 = vdwg.mxu0
  %749 = vmatprep.subr.bf16.mxu0 %v476
  %750 = vmatpush1.bf16.msra.mxu0 %v475
  %751 = vmatprep.subr.bf16.mxu0 %v488
  %752 = vmatpush1.bf16.msra.mxu0 %v487
  %753 = vmatprep.subr.bf16.mxu0 %v500
  %754 = vmatpush1.bf16.msra.mxu0 %v499
  %755 = vmatprep.subr.bf16.mxu0 %v512
  %756 = vmatpush1.bf16.msra.mxu0 %v511
  %757 = vmatprep.subr.bf16.mxu0 %v524
  %758 = vmatpush1.bf16.msra.mxu0 %v523
  %759 = vmatprep.subr.bf16.mxu0 %v536
  %760 = vmatpush1.bf16.msra.mxu0 %v535
  %761 = vmatprep.subr.bf16.mxu0 %v548
  %762 = vmatpush1.bf16.msra.mxu0 %v547
  %763 = vmatprep.subr.bf16.mxu0 %v560
  %764 = vmatpush1.bf16.msra.mxu0 %v559
  %765 = vmatprep.subr.bf16.mxu0 %v572
  %766 = vmatpush1.bf16.msra.mxu0 %v571
  %767 = vmatprep.subr.bf16.mxu0 0
  %768 = vmatpush1.bf16.msra.mxu0 0
  %769 = vmatprep.subr.bf16.mxu0 0
  %770 = vmatpush1.bf16.msra.mxu0 0
  %771 = vmatprep.subr.bf16.mxu0 0
  %772 = vmatpush1.bf16.msra.mxu0 0
  %773 = vmatprep.subr.bf16.mxu0 0
  %774 = vmatpush1.bf16.msra.mxu0 0
  %775 = vmatprep.subr.bf16.mxu0 0
  %776 = vmatpush1.bf16.msra.mxu0 0
  %777 = vmatprep.subr.bf16.mxu0 0
  %778 = vmatpush1.bf16.msra.mxu0 0
  %779 = vmatprep.subr.bf16.mxu0 0
  %780 = vmatpush1.bf16.msra.mxu0 0
  %781 = vmatprep.mubr.bf16.mxu0 %v691
  %782 = vmatmul.mubr.bf16.gmra.mrb[0].mxu0 %v143
  %v783 = vpop.f32.mrb[0].mxu0
  %v784 = vadd.f32 0.0, %v783
  %v785 = vpop.f32.mrb[0].mxu0
  %v786 = vadd.f32 0.0, %v785
  %v787 = vpop.f32.mrb[0].mxu0
  %v788 = vadd.f32 0.0, %v787
  %v789 = vpop.f32.mrb[0].mxu0
  %v790 = vadd.f32 0.0, %v789
  %791 = vmatprep.mubr.bf16.mxu0 %v694
  %792 = vmatmul.mubr.bf16.gmra.mrb[0].mxu0 %v145
  %v793 = vpop.f32.mrb[0].mxu0
  %v794 = vadd.f32 0.0, %v793
  %v795 = vpop.f32.mrb[0].mxu0
  %v796 = vadd.f32 0.0, %v795
  %v797 = vpop.f32.mrb[0].mxu0
  %v798 = vadd.f32 0.0, %v797
  %v799 = vpop.f32.mrb[0].mxu0
  %v800 = vadd.f32 0.0, %v799
  %801 = vdwg.mxu0
  %802 = vmatprep.subr.bf16.mxu0 %v478
  %803 = vmatpush1.bf16.msra.mxu0 %v477
  %804 = vmatprep.subr.bf16.mxu0 %v490
  %805 = vmatpush1.bf16.msra.mxu0 %v489
  %806 = vmatprep.subr.bf16.mxu0 %v502
  %807 = vmatpush1.bf16.msra.mxu0 %v501
  %808 = vmatprep.subr.bf16.mxu0 %v514
  %809 = vmatpush1.bf16.msra.mxu0 %v513
  %810 = vmatprep.subr.bf16.mxu0 %v526
  %811 = vmatpush1.bf16.msra.mxu0 %v525
  %812 = vmatprep.subr.bf16.mxu0 %v538
  %813 = vmatpush1.bf16.msra.mxu0 %v537
  %814 = vmatprep.subr.bf16.mxu0 %v550
  %815 = vmatpush1.bf16.msra.mxu0 %v549
  %816 = vmatprep.subr.bf16.mxu0 %v562
  %817 = vmatpush1.bf16.msra.mxu0 %v561
  %818 = vmatprep.subr.bf16.mxu0 %v574
  %819 = vmatpush1.bf16.msra.mxu0 %v573
  %820 = vmatprep.subr.bf16.mxu0 0
  %821 = vmatpush1.bf16.msra.mxu0 0
  %822 = vmatprep.subr.bf16.mxu0 0
  %823 = vmatpush1.bf16.msra.mxu0 0
  %824 = vmatprep.subr.bf16.mxu0 0
  %825 = vmatpush1.bf16.msra.mxu0 0
  %826 = vmatprep.subr.bf16.mxu0 0
  %827 = vmatpush1.bf16.msra.mxu0 0
  %828 = vmatprep.subr.bf16.mxu0 0
  %829 = vmatpush1.bf16.msra.mxu0 0
  %830 = vmatprep.subr.bf16.mxu0 0
  %831 = vmatpush1.bf16.msra.mxu0 0
  %832 = vmatprep.subr.bf16.mxu0 0
  %833 = vmatpush1.bf16.msra.mxu0 0
  %834 = vmatprep.mubr.bf16.mxu0 %v691
  %835 = vmatmul.mubr.bf16.gmra.mrb[0].mxu0 %v143
  %v836 = vpop.f32.mrb[0].mxu0
  %v837 = vadd.f32 0.0, %v836
  %v838 = vpop.f32.mrb[0].mxu0
  %v839 = vadd.f32 0.0, %v838
  %v840 = vpop.f32.mrb[0].mxu0
  %v841 = vadd.f32 0.0, %v840
  %v842 = vpop.f32.mrb[0].mxu0
  %v843 = vadd.f32 0.0, %v842
  %844 = vmatprep.mubr.bf16.mxu0 %v694
  %845 = vmatmul.mubr.bf16.gmra.mrb[0].mxu0 %v145
  %v846 = vpop.f32.mrb[0].mxu0
  %v847 = vadd.f32 0.0, %v846
  %v848 = vpop.f32.mrb[0].mxu0
  %v849 = vadd.f32 0.0, %v848
  %v850 = vpop.f32.mrb[0].mxu0
  %v851 = vadd.f32 0.0, %v850
  %v852 = vpop.f32.mrb[0].mxu0
  %v853 = vadd.f32 0.0, %v852
  %854 = vdwg.mxu0
  %855 = vmatprep.subr.bf16.mxu0 %v480
  %856 = vmatpush1.bf16.msra.mxu0 %v479
  %857 = vmatprep.subr.bf16.mxu0 %v492
  %858 = vmatpush1.bf16.msra.mxu0 %v491
  %859 = vmatprep.subr.bf16.mxu0 %v504
  %860 = vmatpush1.bf16.msra.mxu0 %v503
  %861 = vmatprep.subr.bf16.mxu0 %v516
  %862 = vmatpush1.bf16.msra.mxu0 %v515
  %863 = vmatprep.subr.bf16.mxu0 %v528
  %864 = vmatpush1.bf16.msra.mxu0 %v527
  %865 = vmatprep.subr.bf16.mxu0 %v540
  %866 = vmatpush1.bf16.msra.mxu0 %v539
  %867 = vmatprep.subr.bf16.mxu0 %v552
  %868 = vmatpush1.bf16.msra.mxu0 %v551
  %869 = vmatprep.subr.bf16.mxu0 %v564
  %870 = vmatpush1.bf16.msra.mxu0 %v563
  %871 = vmatprep.subr.bf16.mxu0 %v576
  %872 = vmatpush1.bf16.msra.mxu0 %v575
  %873 = vmatprep.subr.bf16.mxu0 0
  %874 = vmatpush1.bf16.msra.mxu0 0
  %875 = vmatprep.subr.bf16.mxu0 0
  %876 = vmatpush1.bf16.msra.mxu0 0
  %877 = vmatprep.subr.bf16.mxu0 0
  %878 = vmatpush1.bf16.msra.mxu0 0
  %879 = vmatprep.subr.bf16.mxu0 0
  %880 = vmatpush1.bf16.msra.mxu0 0
  %881 = vmatprep.subr.bf16.mxu0 0
  %882 = vmatpush1.bf16.msra.mxu0 0
  %883 = vmatprep.subr.bf16.mxu0 0
  %884 = vmatpush1.bf16.msra.mxu0 0
  %885 = vmatprep.subr.bf16.mxu0 0
  %886 = vmatpush1.bf16.msra.mxu0 0
  %887 = vmatprep.mubr.bf16.mxu0 %v691
  %888 = vmatmul.mubr.bf16.gmra.mrb[0].mxu0 %v143
  %v889 = vpop.f32.mrb[0].mxu0
  %v890 = vadd.f32 0.0, %v889
  %v891 = vpop.f32.mrb[0].mxu0
  %v892 = vadd.f32 0.0, %v891
  %v893 = vpop.f32.mrb[0].mxu0
  %v894 = vadd.f32 0.0, %v893
  %v895 = vpop.f32.mrb[0].mxu0
  %v896 = vadd.f32 0.0, %v895
  %897 = vmatprep.mubr.bf16.mxu0 %v694
  %898 = vmatmul.mubr.bf16.gmra.mrb[0].mxu0 %v145
  %v899 = vpop.f32.mrb[0].mxu0
  %v900 = vadd.f32 0.0, %v899
  %v901 = vpop.f32.mrb[0].mxu0
  %v902 = vadd.f32 0.0, %v901
  %v903 = vpop.f32.mrb[0].mxu0
  %v904 = vadd.f32 0.0, %v903
  %v905 = vpop.f32.mrb[0].mxu0
  %v906 = vadd.f32 0.0, %v905
  %907 = vdwg.mxu0
  %908 = vmatprep.subr.bf16.mxu0 %v482
  %909 = vmatpush1.bf16.msra.mxu0 %v481
  %910 = vmatprep.subr.bf16.mxu0 %v494
  %911 = vmatpush1.bf16.msra.mxu0 %v493
  %912 = vmatprep.subr.bf16.mxu0 %v506
  %913 = vmatpush1.bf16.msra.mxu0 %v505
  %914 = vmatprep.subr.bf16.mxu0 %v518
  %915 = vmatpush1.bf16.msra.mxu0 %v517
  %916 = vmatprep.subr.bf16.mxu0 %v530
  %917 = vmatpush1.bf16.msra.mxu0 %v529
  %918 = vmatprep.subr.bf16.mxu0 %v542
  %919 = vmatpush1.bf16.msra.mxu0 %v541
  %920 = vmatprep.subr.bf16.mxu0 %v554
  %921 = vmatpush1.bf16.msra.mxu0 %v553
  %922 = vmatprep.subr.bf16.mxu0 %v566
  %923 = vmatpush1.bf16.msra.mxu0 %v565
  %924 = vmatprep.subr.bf16.mxu0 %v578
  %925 = vmatpush1.bf16.msra.mxu0 %v577
  %926 = vmatprep.subr.bf16.mxu0 0
  %927 = vmatpush1.bf16.msra.mxu0 0
  %928 = vmatprep.subr.bf16.mxu0 0
  %929 = vmatpush1.bf16.msra.mxu0 0
  %930 = vmatprep.subr.bf16.mxu0 0
  %931 = vmatpush1.bf16.msra.mxu0 0
  %932 = vmatprep.subr.bf16.mxu0 0
  %933 = vmatpush1.bf16.msra.mxu0 0
  %934 = vmatprep.subr.bf16.mxu0 0
  %935 = vmatpush1.bf16.msra.mxu0 0
  %936 = vmatprep.subr.bf16.mxu0 0
  %937 = vmatpush1.bf16.msra.mxu0 0
  %938 = vmatprep.subr.bf16.mxu0 0
  %939 = vmatpush1.bf16.msra.mxu0 0
  %940 = vmatprep.mubr.bf16.mxu0 %v691
  %941 = vmatmul.mubr.bf16.gmra.mrb[0].mxu0 %v143
  %v942 = vpop.f32.mrb[0].mxu0
  %v943 = vadd.f32 0.0, %v942
  %v944 = vpop.f32.mrb[0].mxu0
  %v945 = vadd.f32 0.0, %v944
  %v946 = vpop.f32.mrb[0].mxu0
  %v947 = vadd.f32 0.0, %v946
  %v948 = vpop.f32.mrb[0].mxu0
  %v949 = vadd.f32 0.0, %v948
  %950 = vmatprep.mubr.bf16.mxu0 %v694
  %951 = vmatmul.mubr.bf16.gmra.mrb[0].mxu0 %v145
  %v952 = vpop.f32.mrb[0].mxu0
  %v953 = vadd.f32 0.0, %v952
  %v954 = vpop.f32.mrb[0].mxu0
  %v955 = vadd.f32 0.0, %v954
  %v956 = vpop.f32.mrb[0].mxu0
  %v957 = vadd.f32 0.0, %v956
  %v958 = vpop.f32.mrb[0].mxu0
  %v959 = vadd.f32 0.0, %v958
  %960 = vdwg.mxu0
  %961 = vmatprep.subr.bf16.mxu0 %v484
  %962 = vmatpush1.bf16.msra.mxu0 %v483
  %963 = vmatprep.subr.bf16.mxu0 %v496
  %964 = vmatpush1.bf16.msra.mxu0 %v495
  %965 = vmatprep.subr.bf16.mxu0 %v508
  %966 = vmatpush1.bf16.msra.mxu0 %v507
  %967 = vmatprep.subr.bf16.mxu0 %v520
  %968 = vmatpush1.bf16.msra.mxu0 %v519
  %969 = vmatprep.subr.bf16.mxu0 %v532
  %970 = vmatpush1.bf16.msra.mxu0 %v531
  %971 = vmatprep.subr.bf16.mxu0 %v544
  %972 = vmatpush1.bf16.msra.mxu0 %v543
  %973 = vmatprep.subr.bf16.mxu0 %v556
  %974 = vmatpush1.bf16.msra.mxu0 %v555
  %975 = vmatprep.subr.bf16.mxu0 %v568
  %976 = vmatpush1.bf16.msra.mxu0 %v567
  %977 = vmatprep.subr.bf16.mxu0 %v580
  %978 = vmatpush1.bf16.msra.mxu0 %v579
  %979 = vmatprep.subr.bf16.mxu0 0
  %980 = vmatpush1.bf16.msra.mxu0 0
  %981 = vmatprep.subr.bf16.mxu0 0
  %982 = vmatpush1.bf16.msra.mxu0 0
  %983 = vmatprep.subr.bf16.mxu0 0
  %984 = vmatpush1.bf16.msra.mxu0 0
  %985 = vmatprep.subr.bf16.mxu0 0
  %986 = vmatpush1.bf16.msra.mxu0 0
  %987 = vmatprep.subr.bf16.mxu0 0
  %988 = vmatpush1.bf16.msra.mxu0 0
  %989 = vmatprep.subr.bf16.mxu0 0
  %990 = vmatpush1.bf16.msra.mxu0 0
  %991 = vmatprep.subr.bf16.mxu0 0
  %992 = vmatpush1.bf16.msra.mxu0 0
  %993 = vmatprep.mubr.bf16.mxu0 %v691
  %994 = vmatmul.mubr.bf16.gmra.mrb[0].mxu0 %v143
  %v995 = vpop.f32.mrb[0].mxu0
  %v996 = vadd.f32 0.0, %v995
  %v997 = vpop.f32.mrb[0].mxu0
  %v998 = vadd.f32 0.0, %v997
  %v999 = vpop.f32.mrb[0].mxu0
  %v1000 = vadd.f32 0.0, %v999
  %v1001 = vpop.f32.mrb[0].mxu0
  %v1002 = vadd.f32 0.0, %v1001
  %1003 = vmatprep.mubr.bf16.mxu0 %v694
  %1004 = vmatmul.mubr.bf16.gmra.mrb[0].mxu0 %v145
  %v1005 = vpop.f32.mrb[0].mxu0
  %v1006 = vadd.f32 0.0, %v1005
  %v1007 = vpop.f32.mrb[0].mxu0
  %v1008 = vadd.f32 0.0, %v1007
  %v1009 = vpop.f32.mrb[0].mxu0
  %v1010 = vadd.f32 0.0, %v1009
  %v1011 = vpop.f32.mrb[0].mxu0
  %v1012 = vadd.f32 0.0, %v1011
  %1013 = vdwg.mxu0
  %v1014 = vmax.f32 %v731, %v786
  %v1015 = vmax.f32 %v733, %v837
  %v1016 = vmax.f32 %v784, %v839
  %v1017 = vmax.f32 %v735, %v790
  %v1018 = vmax.f32 %v737, %v841
  %v1019 = vmax.f32 %v788, %v843
  %v1020 = vmax.f32 %v741, %v796
  %v1021 = vmax.f32 %v743, %v847
  %v1022 = vmax.f32 %v794, %v849
  %v1023 = vmax.f32 %v745, %v800
  %v1024 = vmax.f32 %v747, %v851
  %v1025 = vmax.f32 %v798, %v853
  %v1026 = vmax.f32 %v890, %v945
  %v1027 = vmax.f32 %v892, %v996
  %v1028 = vmax.f32 %v943, %v998
  %v1029 = vmax.f32 %v894, %v949
  %v1030 = vmax.f32 %v896, %v1000
  %v1031 = vmax.f32 %v947, %v1002
  %v1032 = vmax.f32 %v900, %v955
  %v1033 = vmax.f32 %v902, %v1006
  %v1034 = vmax.f32 %v953, %v1008
  %v1035 = vmax.f32 %v904, %v959
  %v1036 = vmax.f32 %v906, %v1010
  %v1037 = vmax.f32 %v957, %v1012
  %v1038 = vmax.f32 %v1014, %v1026
  %v1039 = vmax.f32 %v1015, %v1027
  %v1040 = vmax.f32 %v1016, %v1028
  %v1041 = vmax.f32 %v1017, %v1029
  %v1042 = vmax.f32 %v1018, %v1030
  %v1043 = vmax.f32 %v1019, %v1031
  %v1044 = vmax.f32 %v1020, %v1032
  %v1045 = vmax.f32 %v1021, %v1033
  %v1046 = vmax.f32 %v1022, %v1034
  %v1047 = vmax.f32 %v1023, %v1035
  %v1048 = vmax.f32 %v1024, %v1036
  %v1049 = vmax.f32 %v1025, %v1037
  %1051 = vset.pattern.permute.xlu0 0
  %1052 = vperm.xlu0 %1051, %v19
  %v1053 = vpop.permute.xlu0 %1052
  %1056 = vset.pattern.permute.xlu0 0
  %1057 = vperm.xlu0 %1056, %v20
  %v1058 = vpop.permute.xlu0 %1057
  %1061 = vset.pattern.permute.xlu0 0
  %1062 = vperm.xlu0 %1061, %v21
  %v1063 = vpop.permute.xlu0 %1062
  %1066 = vset.pattern.permute.xlu0 0
  %1067 = vperm.xlu0 %1066, %v22
  %v1068 = vpop.permute.xlu0 %1067
  %v1070 = vadd.f32 %v1038, %v1053
  %v1071 = vadd.f32 %v1039, %v1053
  %v1072 = vadd.f32 %v1040, %v1053
  %v1073 = vadd.f32 %v1041, %v1058
  %v1074 = vadd.f32 %v1042, %v1058
  %v1075 = vadd.f32 %v1043, %v1058
  %v1076 = vadd.f32 %v1044, %v1063
  %v1077 = vadd.f32 %v1045, %v1063
  %v1078 = vadd.f32 %v1046, %v1063
  %v1079 = vadd.f32 %v1047, %v1068
  %v1080 = vadd.f32 %v1048, %v1068
  %v1081 = vadd.f32 %v1049, %v1068
  %v1082 = vmax.f32 %v1070, 0.0
  %v1083 = vmax.f32 %v1071, 0.0
  %v1084 = vmax.f32 %v1072, 0.0
  %v1085 = vmax.f32 %v1073, 0.0
  %v1086 = vmax.f32 %v1074, 0.0
  %v1087 = vmax.f32 %v1075, 0.0
  %v1088 = vmax.f32 %v1076, 0.0
  %v1089 = vmax.f32 %v1077, 0.0
  %v1090 = vmax.f32 %v1078, 0.0
  %v1091 = vmax.f32 %v1079, 0.0
  %v1092 = vmax.f32 %v1080, 0.0
  %v1093 = vmax.f32 %v1081, 0.0
  %v1094 = vpack.c.bf16 %v1085, %v1082
  %v1095 = vpack.c.bf16 %v1086, %v1083
  %v1096 = vpack.c.bf16 %v1087, %v1084
  %v1097 = vpack.c.bf16 %v1091, %v1088
  %v1098 = vpack.c.bf16 %v1092, %v1089
  %v1099 = vpack.c.bf16 %v1093, %v1090
  %v1106 = vunpack.c.l.b16 %v1094
  %v1107 = vunpack.c.l.b16 %v1095
  %v1108 = vunpack.c.l.b16 %v1096
  %v1109 = vunpack.c.h.b16 %v1094
  %v1110 = vunpack.c.h.b16 %v1095
  %v1111 = vunpack.c.h.b16 %v1096
  %v1112 = vunpack.c.l.b16 %v1097
  %v1113 = vunpack.c.l.b16 %v1098
  %v1114 = vunpack.c.l.b16 %v1099
  %v1115 = vunpack.c.h.b16 %v1097
  %v1116 = vunpack.c.h.b16 %v1098
  %v1117 = vunpack.c.h.b16 %v1099
  %v1118 = vpack.c.b16 %v1107, %v1106
  %v1119 = vpack.c.b16 %v1108, %v1108
  %v1120 = vpack.c.b16 %v1110, %v1109
  %v1121 = vpack.c.b16 %v1111, %v1111
  %v1122 = vpack.c.b16 %v1113, %v1112
  %v1123 = vpack.c.b16 %v1114, %v1114
  %v1124 = vpack.c.b16 %v1116, %v1115
  %v1125 = vpack.c.b16 %v1117, %v1117
  %1134 = vst [vmem:[%s3] sm:$0xff] %v1118
  %1135 = vst [vmem:[%s3 + $0x8] sm:$0xf] %v1119
  %1136 = vst [vmem:[%s3 + $0xc] sm:$0xff] %v1120
  %1137 = vst [vmem:[%s3 + $0x14] sm:$0xf] %v1121
  %1138 = vst [vmem:[%s3 + $0x18] sm:$0xff] %v1122
  %1139 = vst [vmem:[%s3 + $0x20] sm:$0xf] %v1123
  %1140 = vst [vmem:[%s3 + $0x24] sm:$0xff] %v1124
  %1141 = vst [vmem:[%s3 + $0x2c] sm:$0xf] %v1125
  %s1142 = scalar_lea.vmem %s0, 864
  %v1143 = vld [vmem:[%s1142] sm:$0xff]
  %v1144 = vld [vmem:[%s1142 + $0x8] sm:$0xff]
  %v1145 = vld [vmem:[%s1142 + $0x10] sm:$0xff]
  %v1146 = vld [vmem:[%s1142 + $0x18] sm:$0xff]
  %v1147 = vld [vmem:[%s1142 + $0x20] sm:$0xff]
  %v1148 = vld [vmem:[%s1142 + $0x28] sm:$0xff]
  %v1149 = vld [vmem:[%s1142 + $0x30] sm:$0xff]
  %v1150 = vld [vmem:[%s1142 + $0x38] sm:$0xff]
  %v1151 = vld [vmem:[%s1142 + $0x40] sm:$0xff]
  %v1152 = vld [vmem:[%s1142 + $0x48] sm:$0xff]
  %v1153 = vld [vmem:[%s1142 + $0x50] sm:$0xff]
  %v1154 = vld [vmem:[%s1142 + $0x58] sm:$0xff]
  %v1155 = vld [vmem:[%s1142 + $0x60] sm:$0xff]
  %v1156 = vld [vmem:[%s1142 + $0x68] sm:$0xff]
  %v1157 = vld [vmem:[%s1142 + $0x70] sm:$0xff]
  %v1158 = vld [vmem:[%s1142 + $0x78] sm:$0xff]
  %v1159 = vld [vmem:[%s1142 + $0x80] sm:$0xff]
  %v1160 = vld [vmem:[%s1142 + $0x88] sm:$0xff]
  %v1161 = vld [vmem:[%s1142 + $0x90] sm:$0xff]
  %v1162 = vld [vmem:[%s1142 + $0x98] sm:$0xff]
  %v1163 = vld [vmem:[%s1142 + $0xa0] sm:$0xff]
  %v1164 = vld [vmem:[%s1142 + $0xa8] sm:$0xff]
  %v1165 = vld [vmem:[%s1142 + $0xb0] sm:$0xff]
  %v1166 = vld [vmem:[%s1142 + $0xb8] sm:$0xff]
  %v1167 = vld [vmem:[%s1142 + $0xc0] sm:$0xff]
  %v1168 = vld [vmem:[%s1142 + $0xc8] sm:$0xff]
  %v1169 = vld [vmem:[%s1142 + $0xd0] sm:$0xff]
  %v1170 = vld [vmem:[%s1142 + $0xd8] sm:$0xff]
  %v1171 = vld [vmem:[%s1142 + $0xe0] sm:$0xff]
  %v1172 = vld [vmem:[%s1142 + $0xe8] sm:$0xff]
  %v1173 = vld [vmem:[%s1142 + $0xf0] sm:$0xff]
  %v1174 = vld [vmem:[%s1142 + $0xf8] sm:$0xff]
  %v1175 = vld [vmem:[%s1142 + $0x100] sm:$0xff]
  %v1176 = vld [vmem:[%s1142 + $0x108] sm:$0xff]
  %v1177 = vld [vmem:[%s1142 + $0x110] sm:$0xff]
  %v1178 = vld [vmem:[%s1142 + $0x118] sm:$0xff]
  %v1179 = vld [vmem:[%s1142 + $0x120] sm:$0xff]
  %v1180 = vld [vmem:[%s1142 + $0x128] sm:$0xff]
  %v1181 = vld [vmem:[%s1142 + $0x130] sm:$0xff]
  %v1182 = vld [vmem:[%s1142 + $0x138] sm:$0xff]
  %v1183 = vld [vmem:[%s1142 + $0x140] sm:$0xff]
  %v1184 = vld [vmem:[%s1142 + $0x148] sm:$0xff]
  %v1185 = vld [vmem:[%s1142 + $0x150] sm:$0xff]
  %v1186 = vld [vmem:[%s1142 + $0x158] sm:$0xff]
  %v1187 = vld [vmem:[%s1142 + $0x160] sm:$0xff]
  %v1188 = vld [vmem:[%s1142 + $0x168] sm:$0xff]
  %v1189 = vld [vmem:[%s1142 + $0x170] sm:$0xff]
  %v1190 = vld [vmem:[%s1142 + $0x178] sm:$0xff]
  %v1191 = vld [vmem:[%s1142 + $0x180] sm:$0xff]
  %v1192 = vld [vmem:[%s1142 + $0x188] sm:$0xff]
  %v1193 = vld [vmem:[%s1142 + $0x190] sm:$0xff]
  %v1194 = vld [vmem:[%s1142 + $0x198] sm:$0xff]
  %v1195 = vld [vmem:[%s1142 + $0x1a0] sm:$0xff]
  %v1196 = vld [vmem:[%s1142 + $0x1a8] sm:$0xff]
  %v1197 = vld [vmem:[%s1142 + $0x1b0] sm:$0xff]
  %v1198 = vld [vmem:[%s1142 + $0x1b8] sm:$0xff]
  %v1199 = vld [vmem:[%s1142 + $0x1c0] sm:$0xff]
  %v1200 = vld [vmem:[%s1142 + $0x1c8] sm:$0xff]
  %v1201 = vld [vmem:[%s1142 + $0x1d0] sm:$0xff]
  %v1202 = vld [vmem:[%s1142 + $0x1d8] sm:$0xff]
  %v1203 = vld [vmem:[%s1142 + $0x1e0] sm:$0xff]
  %v1204 = vld [vmem:[%s1142 + $0x1e8] sm:$0xff]
  %v1205 = vld [vmem:[%s1142 + $0x1f0] sm:$0xff]
  %v1206 = vld [vmem:[%s1142 + $0x1f8] sm:$0xff]
  %v1207 = vld [vmem:[%s1142 + $0x200] sm:$0xff]
  %v1208 = vld [vmem:[%s1142 + $0x208] sm:$0xff]
  %v1209 = vld [vmem:[%s1142 + $0x210] sm:$0xff]
  %v1210 = vld [vmem:[%s1142 + $0x218] sm:$0xff]
  %v1211 = vld [vmem:[%s1142 + $0x220] sm:$0xff]
  %v1212 = vld [vmem:[%s1142 + $0x228] sm:$0xff]
  %v1213 = vld [vmem:[%s1142 + $0x230] sm:$0xff]
  %v1214 = vld [vmem:[%s1142 + $0x238] sm:$0xff]
  %v1215 = vld [vmem:[%s1142 + $0x240] sm:$0xff]
  %v1216 = vld [vmem:[%s1142 + $0x248] sm:$0xff]
  %v1217 = vld [vmem:[%s1142 + $0x250] sm:$0xff]
  %v1218 = vld [vmem:[%s1142 + $0x258] sm:$0xff]
  %v1219 = vld [vmem:[%s1142 + $0x260] sm:$0xff]
  %v1220 = vld [vmem:[%s1142 + $0x268] sm:$0xff]
  %v1221 = vld [vmem:[%s1142 + $0x270] sm:$0xff]
  %v1222 = vld [vmem:[%s1142 + $0x278] sm:$0xff]
  %v1223 = vld [vmem:[%s1142 + $0x280] sm:$0xff]
  %v1224 = vld [vmem:[%s1142 + $0x288] sm:$0xff]
  %v1225 = vld [vmem:[%s1142 + $0x290] sm:$0xff]
  %v1226 = vld [vmem:[%s1142 + $0x298] sm:$0xff]
  %v1227 = vld [vmem:[%s1142 + $0x2a0] sm:$0xff]
  %v1228 = vld [vmem:[%s1142 + $0x2a8] sm:$0xff]
  %v1229 = vld [vmem:[%s1142 + $0x2b0] sm:$0xff]
  %v1230 = vld [vmem:[%s1142 + $0x2b8] sm:$0xff]
  %v1231 = vld [vmem:[%s1142 + $0x2c0] sm:$0xff]
  %v1232 = vld [vmem:[%s1142 + $0x2c8] sm:$0xff]
  %v1233 = vld [vmem:[%s1142 + $0x2d0] sm:$0xff]
  %v1234 = vld [vmem:[%s1142 + $0x2d8] sm:$0xff]
  %v1235 = vld [vmem:[%s1142 + $0x2e0] sm:$0xff]
  %v1236 = vld [vmem:[%s1142 + $0x2e8] sm:$0xff]
  %v1237 = vld [vmem:[%s1142 + $0x2f0] sm:$0xff]
  %v1238 = vld [vmem:[%s1142 + $0x2f8] sm:$0xff]
  %v1239 = vld [vmem:[%s1142 + $0x300] sm:$0xff]
  %v1240 = vld [vmem:[%s1142 + $0x308] sm:$0xff]
  %v1241 = vld [vmem:[%s1142 + $0x310] sm:$0xff]
  %v1242 = vld [vmem:[%s1142 + $0x318] sm:$0xff]
  %v1243 = vld [vmem:[%s1142 + $0x320] sm:$0xff]
  %v1244 = vld [vmem:[%s1142 + $0x328] sm:$0xff]
  %v1245 = vld [vmem:[%s1142 + $0x330] sm:$0xff]
  %v1246 = vld [vmem:[%s1142 + $0x338] sm:$0xff]
  %v1247 = vld [vmem:[%s1142 + $0x340] sm:$0xff]
  %v1248 = vld [vmem:[%s1142 + $0x348] sm:$0xff]
  %v1249 = vld [vmem:[%s1142 + $0x350] sm:$0xff]
  %v1250 = vld [vmem:[%s1142 + $0x358] sm:$0xff]
  %v1359 = vunpack.c.l.b16 %v1143
  %v1360 = vunpack.c.h.b16 %v1143
  %v1361 = vunpack.c.l.b16 %v1144
  %v1362 = vunpack.c.h.b16 %v1144
  %v1363 = vunpack.c.l.b16 %v1145
  %v1364 = vunpack.c.h.b16 %v1145
  %v1365 = vunpack.c.l.b16 %v1146
  %v1366 = vunpack.c.h.b16 %v1146
  %v1367 = vunpack.c.l.b16 %v1147
  %v1368 = vunpack.c.h.b16 %v1147
  %v1369 = vunpack.c.l.b16 %v1148
  %v1370 = vunpack.c.h.b16 %v1148
  %v1371 = vunpack.c.l.b16 %v1149
  %v1372 = vunpack.c.h.b16 %v1149
  %v1373 = vunpack.c.l.b16 %v1150
  %v1374 = vunpack.c.h.b16 %v1150
  %v1375 = vunpack.c.l.b16 %v1151
  %v1376 = vunpack.c.h.b16 %v1151
  %v1377 = vunpack.c.l.b16 %v1152
  %v1378 = vunpack.c.h.b16 %v1152
  %v1379 = vunpack.c.l.b16 %v1153
  %v1380 = vunpack.c.h.b16 %v1153
  %v1381 = vunpack.c.l.b16 %v1154
  %v1382 = vunpack.c.h.b16 %v1154
  %v1383 = vunpack.c.l.b16 %v1155
  %v1384 = vunpack.c.h.b16 %v1155
  %v1385 = vunpack.c.l.b16 %v1156
  %v1386 = vunpack.c.h.b16 %v1156
  %v1387 = vunpack.c.l.b16 %v1157
  %v1388 = vunpack.c.h.b16 %v1157
  %v1389 = vunpack.c.l.b16 %v1158
  %v1390 = vunpack.c.h.b16 %v1158
  %v1391 = vunpack.c.l.b16 %v1159
  %v1392 = vunpack.c.h.b16 %v1159
  %v1393 = vunpack.c.l.b16 %v1160
  %v1394 = vunpack.c.h.b16 %v1160
  %v1395 = vunpack.c.l.b16 %v1161
  %v1396 = vunpack.c.h.b16 %v1161
  %v1397 = vunpack.c.l.b16 %v1162
  %v1398 = vunpack.c.h.b16 %v1162
  %v1399 = vunpack.c.l.b16 %v1163
  %v1400 = vunpack.c.h.b16 %v1163
  %v1401 = vunpack.c.l.b16 %v1164
  %v1402 = vunpack.c.h.b16 %v1164
  %v1403 = vunpack.c.l.b16 %v1165
  %v1404 = vunpack.c.h.b16 %v1165
  %v1405 = vunpack.c.l.b16 %v1166
  %v1406 = vunpack.c.h.b16 %v1166
  %v1407 = vunpack.c.l.b16 %v1167
  %v1408 = vunpack.c.h.b16 %v1167
  %v1409 = vunpack.c.l.b16 %v1168
  %v1410 = vunpack.c.h.b16 %v1168
  %v1411 = vunpack.c.l.b16 %v1169
  %v1412 = vunpack.c.h.b16 %v1169
  %v1413 = vunpack.c.l.b16 %v1170
  %v1414 = vunpack.c.h.b16 %v1170
  %v1415 = vunpack.c.l.b16 %v1171
  %v1416 = vunpack.c.h.b16 %v1171
  %v1417 = vunpack.c.l.b16 %v1172
  %v1418 = vunpack.c.h.b16 %v1172
  %v1419 = vunpack.c.l.b16 %v1173
  %v1420 = vunpack.c.h.b16 %v1173
  %v1421 = vunpack.c.l.b16 %v1174
  %v1422 = vunpack.c.h.b16 %v1174
  %v1423 = vunpack.c.l.b16 %v1175
  %v1424 = vunpack.c.h.b16 %v1175
  %v1425 = vunpack.c.l.b16 %v1176
  %v1426 = vunpack.c.h.b16 %v1176
  %v1427 = vunpack.c.l.b16 %v1177
  %v1428 = vunpack.c.h.b16 %v1177
  %v1429 = vunpack.c.l.b16 %v1178
  %v1430 = vunpack.c.h.b16 %v1178
  %v1431 = vunpack.c.l.b16 %v1179
  %v1432 = vunpack.c.h.b16 %v1179
  %v1433 = vunpack.c.l.b16 %v1180
  %v1434 = vunpack.c.h.b16 %v1180
  %v1435 = vunpack.c.l.b16 %v1181
  %v1436 = vunpack.c.h.b16 %v1181
  %v1437 = vunpack.c.l.b16 %v1182
  %v1438 = vunpack.c.h.b16 %v1182
  %v1439 = vunpack.c.l.b16 %v1183
  %v1440 = vunpack.c.h.b16 %v1183
  %v1441 = vunpack.c.l.b16 %v1184
  %v1442 = vunpack.c.h.b16 %v1184
  %v1443 = vunpack.c.l.b16 %v1185
  %v1444 = vunpack.c.h.b16 %v1185
  %v1445 = vunpack.c.l.b16 %v1186
  %v1446 = vunpack.c.h.b16 %v1186
  %v1447 = vunpack.c.l.b16 %v1187
  %v1448 = vunpack.c.h.b16 %v1187
  %v1449 = vunpack.c.l.b16 %v1188
  %v1450 = vunpack.c.h.b16 %v1188
  %v1451 = vunpack.c.l.b16 %v1189
  %v1452 = vunpack.c.h.b16 %v1189
  %v1453 = vunpack.c.l.b16 %v1190
  %v1454 = vunpack.c.h.b16 %v1190
  %v1455 = vunpack.c.l.b16 %v1191
  %v1456 = vunpack.c.h.b16 %v1191
  %v1457 = vunpack.c.l.b16 %v1192
  %v1458 = vunpack.c.h.b16 %v1192
  %v1459 = vunpack.c.l.b16 %v1193
  %v1460 = vunpack.c.h.b16 %v1193
  %v1461 = vunpack.c.l.b16 %v1194
  %v1462 = vunpack.c.h.b16 %v1194
  %v1463 = vunpack.c.l.b16 %v1195
  %v1464 = vunpack.c.h.b16 %v1195
  %v1465 = vunpack.c.l.b16 %v1196
  %v1466 = vunpack.c.h.b16 %v1196
  %v1467 = vunpack.c.l.b16 %v1197
  %v1468 = vunpack.c.h.b16 %v1197
  %v1469 = vunpack.c.l.b16 %v1198
  %v1470 = vunpack.c.h.b16 %v1198
  %v1471 = vunpack.c.l.b16 %v1199
  %v1472 = vunpack.c.h.b16 %v1199
  %v1473 = vunpack.c.l.b16 %v1200
  %v1474 = vunpack.c.h.b16 %v1200
  %v1475 = vunpack.c.l.b16 %v1201
  %v1476 = vunpack.c.h.b16 %v1201
  %v1477 = vunpack.c.l.b16 %v1202
  %v1478 = vunpack.c.h.b16 %v1202
  %v1479 = vunpack.c.l.b16 %v1203
  %v1480 = vunpack.c.h.b16 %v1203
  %v1481 = vunpack.c.l.b16 %v1204
  %v1482 = vunpack.c.h.b16 %v1204
  %v1483 = vunpack.c.l.b16 %v1205
  %v1484 = vunpack.c.h.b16 %v1205
  %v1485 = vunpack.c.l.b16 %v1206
  %v1486 = vunpack.c.h.b16 %v1206
  %v1487 = vunpack.c.l.b16 %v1207
  %v1488 = vunpack.c.h.b16 %v1207
  %v1489 = vunpack.c.l.b16 %v1208
  %v1490 = vunpack.c.h.b16 %v1208
  %v1491 = vunpack.c.l.b16 %v1209
  %v1492 = vunpack.c.h.b16 %v1209
  %v1493 = vunpack.c.l.b16 %v1210
  %v1494 = vunpack.c.h.b16 %v1210
  %v1495 = vunpack.c.l.b16 %v1211
  %v1496 = vunpack.c.h.b16 %v1211
  %v1497 = vunpack.c.l.b16 %v1212
  %v1498 = vunpack.c.h.b16 %v1212
  %v1499 = vunpack.c.l.b16 %v1213
  %v1500 = vunpack.c.h.b16 %v1213
  %v1501 = vunpack.c.l.b16 %v1214
  %v1502 = vunpack.c.h.b16 %v1214
  %v1503 = vunpack.c.l.b16 %v1215
  %v1504 = vunpack.c.h.b16 %v1215
  %v1505 = vunpack.c.l.b16 %v1216
  %v1506 = vunpack.c.h.b16 %v1216
  %v1507 = vunpack.c.l.b16 %v1217
  %v1508 = vunpack.c.h.b16 %v1217
  %v1509 = vunpack.c.l.b16 %v1218
  %v1510 = vunpack.c.h.b16 %v1218
  %v1511 = vunpack.c.l.b16 %v1219
  %v1512 = vunpack.c.h.b16 %v1219
  %v1513 = vunpack.c.l.b16 %v1220
  %v1514 = vunpack.c.h.b16 %v1220
  %v1515 = vunpack.c.l.b16 %v1221
  %v1516 = vunpack.c.h.b16 %v1221
  %v1517 = vunpack.c.l.b16 %v1222
  %v1518 = vunpack.c.h.b16 %v1222
  %v1519 = vunpack.c.l.b16 %v1223
  %v1520 = vunpack.c.h.b16 %v1223
  %v1521 = vunpack.c.l.b16 %v1224
  %v1522 = vunpack.c.h.b16 %v1224
  %v1523 = vunpack.c.l.b16 %v1225
  %v1524 = vunpack.c.h.b16 %v1225
  %v1525 = vunpack.c.l.b16 %v1226
  %v1526 = vunpack.c.h.b16 %v1226
  %v1527 = vunpack.c.l.b16 %v1227
  %v1528 = vunpack.c.h.b16 %v1227
  %v1529 = vunpack.c.l.b16 %v1228
  %v1530 = vunpack.c.h.b16 %v1228
  %v1531 = vunpack.c.l.b16 %v1229
  %v1532 = vunpack.c.h.b16 %v1229
  %v1533 = vunpack.c.l.b16 %v1230
  %v1534 = vunpack.c.h.b16 %v1230
  %v1535 = vunpack.c.l.b16 %v1231
  %v1536 = vunpack.c.h.b16 %v1231
  %v1537 = vunpack.c.l.b16 %v1232
  %v1538 = vunpack.c.h.b16 %v1232
  %v1539 = vunpack.c.l.b16 %v1233
  %v1540 = vunpack.c.h.b16 %v1233
  %v1541 = vunpack.c.l.b16 %v1234
  %v1542 = vunpack.c.h.b16 %v1234
  %v1543 = vunpack.c.l.b16 %v1235
  %v1544 = vunpack.c.h.b16 %v1235
  %v1545 = vunpack.c.l.b16 %v1236
  %v1546 = vunpack.c.h.b16 %v1236
  %v1547 = vunpack.c.l.b16 %v1237
  %v1548 = vunpack.c.h.b16 %v1237
  %v1549 = vunpack.c.l.b16 %v1238
  %v1550 = vunpack.c.h.b16 %v1238
  %v1551 = vunpack.c.l.b16 %v1239
  %v1552 = vunpack.c.h.b16 %v1239
  %v1553 = vunpack.c.l.b16 %v1240
  %v1554 = vunpack.c.h.b16 %v1240
  %v1555 = vunpack.c.l.b16 %v1241
  %v1556 = vunpack.c.h.b16 %v1241
  %v1557 = vunpack.c.l.b16 %v1242
  %v1558 = vunpack.c.h.b16 %v1242
  %v1559 = vunpack.c.l.b16 %v1243
  %v1560 = vunpack.c.h.b16 %v1243
  %v1561 = vunpack.c.l.b16 %v1244
  %v1562 = vunpack.c.h.b16 %v1244
  %v1563 = vunpack.c.l.b16 %v1245
  %v1564 = vunpack.c.h.b16 %v1245
  %v1565 = vunpack.c.l.b16 %v1246
  %v1566 = vunpack.c.h.b16 %v1246
  %v1567 = vunpack.c.l.b16 %v1247
  %v1568 = vunpack.c.h.b16 %v1247
  %v1569 = vunpack.c.l.b16 %v1248
  %v1570 = vunpack.c.h.b16 %v1248
  %v1571 = vunpack.c.l.b16 %v1249
  %v1572 = vunpack.c.h.b16 %v1249
  %v1573 = vunpack.c.l.b16 %v1250
  %v1574 = vunpack.c.h.b16 %v1250
  %v1575 = vpack.c.b16 %v1371, %v1359
  %v1576 = vpack.c.b16 %v1372, %v1360
  %v1577 = vpack.c.b16 %v1373, %v1361
  %v1578 = vpack.c.b16 %v1374, %v1362
  %v1579 = vpack.c.b16 %v1375, %v1363
  %v1580 = vpack.c.b16 %v1376, %v1364
  %v1581 = vpack.c.b16 %v1377, %v1365
  %v1582 = vpack.c.b16 %v1378, %v1366
  %v1583 = vpack.c.b16 %v1379, %v1367
  %v1584 = vpack.c.b16 %v1380, %v1368
  %v1585 = vpack.c.b16 %v1381, %v1369
  %v1586 = vpack.c.b16 %v1382, %v1370
  %v1587 = vpack.c.b16 %v1395, %v1383
  %v1588 = vpack.c.b16 %v1396, %v1384
  %v1589 = vpack.c.b16 %v1397, %v1385
  %v1590 = vpack.c.b16 %v1398, %v1386
  %v1591 = vpack.c.b16 %v1399, %v1387
  %v1592 = vpack.c.b16 %v1400, %v1388
  %v1593 = vpack.c.b16 %v1401, %v1389
  %v1594 = vpack.c.b16 %v1402, %v1390
  %v1595 = vpack.c.b16 %v1403, %v1391
  %v1596 = vpack.c.b16 %v1404, %v1392
  %v1597 = vpack.c.b16 %v1405, %v1393
  %v1598 = vpack.c.b16 %v1406, %v1394
  %v1599 = vpack.c.b16 %v1419, %v1407
  %v1600 = vpack.c.b16 %v1420, %v1408
  %v1601 = vpack.c.b16 %v1421, %v1409
  %v1602 = vpack.c.b16 %v1422, %v1410
  %v1603 = vpack.c.b16 %v1423, %v1411
  %v1604 = vpack.c.b16 %v1424, %v1412
  %v1605 = vpack.c.b16 %v1425, %v1413
  %v1606 = vpack.c.b16 %v1426, %v1414
  %v1607 = vpack.c.b16 %v1427, %v1415
  %v1608 = vpack.c.b16 %v1428, %v1416
  %v1609 = vpack.c.b16 %v1429, %v1417
  %v1610 = vpack.c.b16 %v1430, %v1418
  %v1611 = vpack.c.b16 %v1443, %v1431
  %v1612 = vpack.c.b16 %v1444, %v1432
  %v1613 = vpack.c.b16 %v1445, %v1433
  %v1614 = vpack.c.b16 %v1446, %v1434
  %v1615 = vpack.c.b16 %v1447, %v1435
  %v1616 = vpack.c.b16 %v1448, %v1436
  %v1617 = vpack.c.b16 %v1449, %v1437
  %v1618 = vpack.c.b16 %v1450, %v1438
  %v1619 = vpack.c.b16 %v1451, %v1439
  %v1620 = vpack.c.b16 %v1452, %v1440
  %v1621 = vpack.c.b16 %v1453, %v1441
  %v1622 = vpack.c.b16 %v1454, %v1442
  %v1623 = vpack.c.b16 %v1467, %v1455
  %v1624 = vpack.c.b16 %v1468, %v1456
  %v1625 = vpack.c.b16 %v1469, %v1457
  %v1626 = vpack.c.b16 %v1470, %v1458
  %v1627 = vpack.c.b16 %v1471, %v1459
  %v1628 = vpack.c.b16 %v1472, %v1460
  %v1629 = vpack.c.b16 %v1473, %v1461
  %v1630 = vpack.c.b16 %v1474, %v1462
  %v1631 = vpack.c.b16 %v1475, %v1463
  %v1632 = vpack.c.b16 %v1476, %v1464
  %v1633 = vpack.c.b16 %v1477, %v1465
  %v1634 = vpack.c.b16 %v1478, %v1466
  %v1635 = vpack.c.b16 %v1491, %v1479
  %v1636 = vpack.c.b16 %v1492, %v1480
  %v1637 = vpack.c.b16 %v1493, %v1481
  %v1638 = vpack.c.b16 %v1494, %v1482
  %v1639 = vpack.c.b16 %v1495, %v1483
  %v1640 = vpack.c.b16 %v1496, %v1484
  %v1641 = vpack.c.b16 %v1497, %v1485
  %v1642 = vpack.c.b16 %v1498, %v1486
  %v1643 = vpack.c.b16 %v1499, %v1487
  %v1644 = vpack.c.b16 %v1500, %v1488
  %v1645 = vpack.c.b16 %v1501, %v1489
  %v1646 = vpack.c.b16 %v1502, %v1490
  %v1647 = vpack.c.b16 %v1515, %v1503
  %v1648 = vpack.c.b16 %v1516, %v1504
  %v1649 = vpack.c.b16 %v1517, %v1505
  %v1650 = vpack.c.b16 %v1518, %v1506
  %v1651 = vpack.c.b16 %v1519, %v1507
  %v1652 = vpack.c.b16 %v1520, %v1508
  %v1653 = vpack.c.b16 %v1521, %v1509
  %v1654 = vpack.c.b16 %v1522, %v1510
  %v1655 = vpack.c.b16 %v1523, %v1511
  %v1656 = vpack.c.b16 %v1524, %v1512
  %v1657 = vpack.c.b16 %v1525, %v1513
  %v1658 = vpack.c.b16 %v1526, %v1514
  %v1659 = vpack.c.b16 %v1539, %v1527
  %v1660 = vpack.c.b16 %v1540, %v1528
  %v1661 = vpack.c.b16 %v1541, %v1529
  %v1662 = vpack.c.b16 %v1542, %v1530
  %v1663 = vpack.c.b16 %v1543, %v1531
  %v1664 = vpack.c.b16 %v1544, %v1532
  %v1665 = vpack.c.b16 %v1545, %v1533
  %v1666 = vpack.c.b16 %v1546, %v1534
  %v1667 = vpack.c.b16 %v1547, %v1535
  %v1668 = vpack.c.b16 %v1548, %v1536
  %v1669 = vpack.c.b16 %v1549, %v1537
  %v1670 = vpack.c.b16 %v1550, %v1538
  %v1671 = vpack.c.b16 %v1563, %v1551
  %v1672 = vpack.c.b16 %v1564, %v1552
  %v1673 = vpack.c.b16 %v1565, %v1553
  %v1674 = vpack.c.b16 %v1566, %v1554
  %v1675 = vpack.c.b16 %v1567, %v1555
  %v1676 = vpack.c.b16 %v1568, %v1556
  %v1677 = vpack.c.b16 %v1569, %v1557
  %v1678 = vpack.c.b16 %v1570, %v1558
  %v1679 = vpack.c.b16 %v1571, %v1559
  %v1680 = vpack.c.b16 %v1572, %v1560
  %v1681 = vpack.c.b16 %v1573, %v1561
  %v1682 = vpack.c.b16 %v1574, %v1562
  %1791 = vmatprep.subr.bf16.mxu0 %v1576
  %1792 = vmatpush1.bf16.msra.mxu0 %v1575
  %1793 = vmatprep.subr.bf16.mxu0 %v1588
  %1794 = vmatpush1.bf16.msra.mxu0 %v1587
  %1795 = vmatprep.subr.bf16.mxu0 %v1600
  %1796 = vmatpush1.bf16.msra.mxu0 %v1599
  %1797 = vmatprep.subr.bf16.mxu0 %v1612
  %1798 = vmatpush1.bf16.msra.mxu0 %v1611
  %1799 = vmatprep.subr.bf16.mxu0 %v1624
  %1800 = vmatpush1.bf16.msra.mxu0 %v1623
  %1801 = vmatprep.subr.bf16.mxu0 %v1636
  %1802 = vmatpush1.bf16.msra.mxu0 %v1635
  %1803 = vmatprep.subr.bf16.mxu0 %v1648
  %1804 = vmatpush1.bf16.msra.mxu0 %v1647
  %1805 = vmatprep.subr.bf16.mxu0 %v1660
  %1806 = vmatpush1.bf16.msra.mxu0 %v1659
  %1807 = vmatprep.subr.bf16.mxu0 %v1672
  %1808 = vmatpush1.bf16.msra.mxu0 %v1671
  %1809 = vmatprep.subr.bf16.mxu0 0
  %1810 = vmatpush1.bf16.msra.mxu0 0
  %1811 = vmatprep.subr.bf16.mxu0 0
  %1812 = vmatpush1.bf16.msra.mxu0 0
  %1813 = vmatprep.subr.bf16.mxu0 0
  %1814 = vmatpush1.bf16.msra.mxu0 0
  %1815 = vmatprep.subr.bf16.mxu0 0
  %1816 = vmatpush1.bf16.msra.mxu0 0
  %1817 = vmatprep.subr.bf16.mxu0 0
  %1818 = vmatpush1.bf16.msra.mxu0 0
  %1819 = vmatprep.subr.bf16.mxu0 0
  %1820 = vmatpush1.bf16.msra.mxu0 0
  %1821 = vmatprep.subr.bf16.mxu0 0
  %1822 = vmatpush1.bf16.msra.mxu0 0
  %1823 = vmatprep.mubr.bf16.mxu0 %v691
  %1824 = vmatmul.mubr.bf16.gmra.mrb[0].mxu0 %v143
  %v1825 = vpop.f32.mrb[0].mxu0
  %v1826 = vadd.f32 0.0, %v1825
  %v1827 = vpop.f32.mrb[0].mxu0
  %v1828 = vadd.f32 0.0, %v1827
  %v1829 = vpop.f32.mrb[0].mxu0
  %v1830 = vadd.f32 0.0, %v1829
  %v1831 = vpop.f32.mrb[0].mxu0
  %v1832 = vadd.f32 0.0, %v1831
  %1833 = vmatprep.mubr.bf16.mxu0 %v694
  %1834 = vmatmul.mubr.bf16.gmra.mrb[0].mxu0 %v145
  %v1835 = vpop.f32.mrb[0].mxu0
  %v1836 = vadd.f32 0.0, %v1835
  %v1837 = vpop.f32.mrb[0].mxu0
  %v1838 = vadd.f32 0.0, %v1837
  %v1839 = vpop.f32.mrb[0].mxu0
  %v1840 = vadd.f32 0.0, %v1839
  %v1841 = vpop.f32.mrb[0].mxu0
  %v1842 = vadd.f32 0.0, %v1841
  %1843 = vdwg.mxu0
  %1844 = vmatprep.subr.bf16.mxu0 %v1578
  %1845 = vmatpush1.bf16.msra.mxu0 %v1577
  %1846 = vmatprep.subr.bf16.mxu0 %v1590
  %1847 = vmatpush1.bf16.msra.mxu0 %v1589
  %1848 = vmatprep.subr.bf16.mxu0 %v1602
  %1849 = vmatpush1.bf16.msra.mxu0 %v1601
  %1850 = vmatprep.subr.bf16.mxu0 %v1614
  %1851 = vmatpush1.bf16.msra.mxu0 %v1613
  %1852 = vmatprep.subr.bf16.mxu0 %v1626
  %1853 = vmatpush1.bf16.msra.mxu0 %v1625
  %1854 = vmatprep.subr.bf16.mxu0 %v1638
  %1855 = vmatpush1.bf16.msra.mxu0 %v1637
  %1856 = vmatprep.subr.bf16.mxu0 %v1650
  %1857 = vmatpush1.bf16.msra.mxu0 %v1649
  %1858 = vmatprep.subr.bf16.mxu0 %v1662
  %1859 = vmatpush1.bf16.msra.mxu0 %v1661
  %1860 = vmatprep.subr.bf16.mxu0 %v1674
  %1861 = vmatpush1.bf16.msra.mxu0 %v1673
  %1862 = vmatprep.subr.bf16.mxu0 0
  %1863 = vmatpush1.bf16.msra.mxu0 0
  %1864 = vmatprep.subr.bf16.mxu0 0
  %1865 = vmatpush1.bf16.msra.mxu0 0
  %1866 = vmatprep.subr.bf16.mxu0 0
  %1867 = vmatpush1.bf16.msra.mxu0 0
  %1868 = vmatprep.subr.bf16.mxu0 0
  %1869 = vmatpush1.bf16.msra.mxu0 0
  %1870 = vmatprep.subr.bf16.mxu0 0
  %1871 = vmatpush1.bf16.msra.mxu0 0
  %1872 = vmatprep.subr.bf16.mxu0 0
  %1873 = vmatpush1.bf16.msra.mxu0 0
  %1874 = vmatprep.subr.bf16.mxu0 0
  %1875 = vmatpush1.bf16.msra.mxu0 0
  %1876 = vmatprep.mubr.bf16.mxu0 %v691
  %1877 = vmatmul.mubr.bf16.gmra.mrb[0].mxu0 %v143
  %v1878 = vpop.f32.mrb[0].mxu0
  %v1879 = vadd.f32 0.0, %v1878
  %v1880 = vpop.f32.mrb[0].mxu0
  %v1881 = vadd.f32 0.0, %v1880
  %v1882 = vpop.f32.mrb[0].mxu0
  %v1883 = vadd.f32 0.0, %v1882
  %v1884 = vpop.f32.mrb[0].mxu0
  %v1885 = vadd.f32 0.0, %v1884
  %1886 = vmatprep.mubr.bf16.mxu0 %v694
  %1887 = vmatmul.mubr.bf16.gmra.mrb[0].mxu0 %v145
  %v1888 = vpop.f32.mrb[0].mxu0
  %v1889 = vadd.f32 0.0, %v1888
  %v1890 = vpop.f32.mrb[0].mxu0
  %v1891 = vadd.f32 0.0, %v1890
  %v1892 = vpop.f32.mrb[0].mxu0
  %v1893 = vadd.f32 0.0, %v1892
  %v1894 = vpop.f32.mrb[0].mxu0
  %v1895 = vadd.f32 0.0, %v1894
  %1896 = vdwg.mxu0
  %1897 = vmatprep.subr.bf16.mxu0 %v1580
  %1898 = vmatpush1.bf16.msra.mxu0 %v1579
  %1899 = vmatprep.subr.bf16.mxu0 %v1592
  %1900 = vmatpush1.bf16.msra.mxu0 %v1591
  %1901 = vmatprep.subr.bf16.mxu0 %v1604
  %1902 = vmatpush1.bf16.msra.mxu0 %v1603
  %1903 = vmatprep.subr.bf16.mxu0 %v1616
  %1904 = vmatpush1.bf16.msra.mxu0 %v1615
  %1905 = vmatprep.subr.bf16.mxu0 %v1628
  %1906 = vmatpush1.bf16.msra.mxu0 %v1627
  %1907 = vmatprep.subr.bf16.mxu0 %v1640
  %1908 = vmatpush1.bf16.msra.mxu0 %v1639
  %1909 = vmatprep.subr.bf16.mxu0 %v1652
  %1910 = vmatpush1.bf16.msra.mxu0 %v1651
  %1911 = vmatprep.subr.bf16.mxu0 %v1664
  %1912 = vmatpush1.bf16.msra.mxu0 %v1663
  %1913 = vmatprep.subr.bf16.mxu0 %v1676
  %1914 = vmatpush1.bf16.msra.mxu0 %v1675
  %1915 = vmatprep.subr.bf16.mxu0 0
  %1916 = vmatpush1.bf16.msra.mxu0 0
  %1917 = vmatprep.subr.bf16.mxu0 0
  %1918 = vmatpush1.bf16.msra.mxu0 0
  %1919 = vmatprep.subr.bf16.mxu0 0
  %1920 = vmatpush1.bf16.msra.mxu0 0
  %1921 = vmatprep.subr.bf16.mxu0 0
  %1922 = vmatpush1.bf16.msra.mxu0 0
  %1923 = vmatprep.subr.bf16.mxu0 0
  %1924 = vmatpush1.bf16.msra.mxu0 0
  %1925 = vmatprep.subr.bf16.mxu0 0
  %1926 = vmatpush1.bf16.msra.mxu0 0
  %1927 = vmatprep.subr.bf16.mxu0 0
  %1928 = vmatpush1.bf16.msra.mxu0 0
  %1929 = vmatprep.mubr.bf16.mxu0 %v691
  %1930 = vmatmul.mubr.bf16.gmra.mrb[0].mxu0 %v143
  %v1931 = vpop.f32.mrb[0].mxu0
  %v1932 = vadd.f32 0.0, %v1931
  %v1933 = vpop.f32.mrb[0].mxu0
  %v1934 = vadd.f32 0.0, %v1933
  %v1935 = vpop.f32.mrb[0].mxu0
  %v1936 = vadd.f32 0.0, %v1935
  %v1937 = vpop.f32.mrb[0].mxu0
  %v1938 = vadd.f32 0.0, %v1937
  %1939 = vmatprep.mubr.bf16.mxu0 %v694
  %1940 = vmatmul.mubr.bf16.gmra.mrb[0].mxu0 %v145
  %v1941 = vpop.f32.mrb[0].mxu0
  %v1942 = vadd.f32 0.0, %v1941
  %v1943 = vpop.f32.mrb[0].mxu0
  %v1944 = vadd.f32 0.0, %v1943
  %v1945 = vpop.f32.mrb[0].mxu0
  %v1946 = vadd.f32 0.0, %v1945
  %v1947 = vpop.f32.mrb[0].mxu0
  %v1948 = vadd.f32 0.0, %v1947
  %1949 = vdwg.mxu0
  %1950 = vmatprep.subr.bf16.mxu0 %v1582
  %1951 = vmatpush1.bf16.msra.mxu0 %v1581
  %1952 = vmatprep.subr.bf16.mxu0 %v1594
  %1953 = vmatpush1.bf16.msra.mxu0 %v1593
  %1954 = vmatprep.subr.bf16.mxu0 %v1606
  %1955 = vmatpush1.bf16.msra.mxu0 %v1605
  %1956 = vmatprep.subr.bf16.mxu0 %v1618
  %1957 = vmatpush1.bf16.msra.mxu0 %v1617
  %1958 = vmatprep.subr.bf16.mxu0 %v1630
  %1959 = vmatpush1.bf16.msra.mxu0 %v1629
  %1960 = vmatprep.subr.bf16.mxu0 %v1642
  %1961 = vmatpush1.bf16.msra.mxu0 %v1641
  %1962 = vmatprep.subr.bf16.mxu0 %v1654
  %1963 = vmatpush1.bf16.msra.mxu0 %v1653
  %1964 = vmatprep.subr.bf16.mxu0 %v1666
  %1965 = vmatpush1.bf16.msra.mxu0 %v1665
  %1966 = vmatprep.subr.bf16.mxu0 %v1678
  %1967 = vmatpush1.bf16.msra.mxu0 %v1677
  %1968 = vmatprep.subr.bf16.mxu0 0
  %1969 = vmatpush1.bf16.msra.mxu0 0
  %1970 = vmatprep.subr.bf16.mxu0 0
  %1971 = vmatpush1.bf16.msra.mxu0 0
  %1972 = vmatprep.subr.bf16.mxu0 0
  %1973 = vmatpush1.bf16.msra.mxu0 0
  %1974 = vmatprep.subr.bf16.mxu0 0
  %1975 = vmatpush1.bf16.msra.mxu0 0
  %1976 = vmatprep.subr.bf16.mxu0 0
  %1977 = vmatpush1.bf16.msra.mxu0 0
  %1978 = vmatprep.subr.bf16.mxu0 0
  %1979 = vmatpush1.bf16.msra.mxu0 0
  %1980 = vmatprep.subr.bf16.mxu0 0
  %1981 = vmatpush1.bf16.msra.mxu0 0
  %1982 = vmatprep.mubr.bf16.mxu0 %v691
  %1983 = vmatmul.mubr.bf16.gmra.mrb[0].mxu0 %v143
  %v1984 = vpop.f32.mrb[0].mxu0
  %v1985 = vadd.f32 0.0, %v1984
  %v1986 = vpop.f32.mrb[0].mxu0
  %v1987 = vadd.f32 0.0, %v1986
  %v1988 = vpop.f32.mrb[0].mxu0
  %v1989 = vadd.f32 0.0, %v1988
  %v1990 = vpop.f32.mrb[0].mxu0
  %v1991 = vadd.f32 0.0, %v1990
  %1992 = vmatprep.mubr.bf16.mxu0 %v694
  %1993 = vmatmul.mubr.bf16.gmra.mrb[0].mxu0 %v145
  %v1994 = vpop.f32.mrb[0].mxu0
  %v1995 = vadd.f32 0.0, %v1994
  %v1996 = vpop.f32.mrb[0].mxu0
  %v1997 = vadd.f32 0.0, %v1996
  %v1998 = vpop.f32.mrb[0].mxu0
  %v1999 = vadd.f32 0.0, %v1998
  %v2000 = vpop.f32.mrb[0].mxu0
  %v2001 = vadd.f32 0.0, %v2000
  %2002 = vdwg.mxu0
  %2003 = vmatprep.subr.bf16.mxu0 %v1584
  %2004 = vmatpush1.bf16.msra.mxu0 %v1583
  %2005 = vmatprep.subr.bf16.mxu0 %v1596
  %2006 = vmatpush1.bf16.msra.mxu0 %v1595
  %2007 = vmatprep.subr.bf16.mxu0 %v1608
  %2008 = vmatpush1.bf16.msra.mxu0 %v1607
  %2009 = vmatprep.subr.bf16.mxu0 %v1620
  %2010 = vmatpush1.bf16.msra.mxu0 %v1619
  %2011 = vmatprep.subr.bf16.mxu0 %v1632
  %2012 = vmatpush1.bf16.msra.mxu0 %v1631
  %2013 = vmatprep.subr.bf16.mxu0 %v1644
  %2014 = vmatpush1.bf16.msra.mxu0 %v1643
  %2015 = vmatprep.subr.bf16.mxu0 %v1656
  %2016 = vmatpush1.bf16.msra.mxu0 %v1655
  %2017 = vmatprep.subr.bf16.mxu0 %v1668
  %2018 = vmatpush1.bf16.msra.mxu0 %v1667
  %2019 = vmatprep.subr.bf16.mxu0 %v1680
  %2020 = vmatpush1.bf16.msra.mxu0 %v1679
  %2021 = vmatprep.subr.bf16.mxu0 0
  %2022 = vmatpush1.bf16.msra.mxu0 0
  %2023 = vmatprep.subr.bf16.mxu0 0
  %2024 = vmatpush1.bf16.msra.mxu0 0
  %2025 = vmatprep.subr.bf16.mxu0 0
  %2026 = vmatpush1.bf16.msra.mxu0 0
  %2027 = vmatprep.subr.bf16.mxu0 0
  %2028 = vmatpush1.bf16.msra.mxu0 0
  %2029 = vmatprep.subr.bf16.mxu0 0
  %2030 = vmatpush1.bf16.msra.mxu0 0
  %2031 = vmatprep.subr.bf16.mxu0 0
  %2032 = vmatpush1.bf16.msra.mxu0 0
  %2033 = vmatprep.subr.bf16.mxu0 0
  %2034 = vmatpush1.bf16.msra.mxu0 0
  %2035 = vmatprep.mubr.bf16.mxu0 %v691
  %2036 = vmatmul.mubr.bf16.gmra.mrb[0].mxu0 %v143
  %v2037 = vpop.f32.mrb[0].mxu0
  %v2038 = vadd.f32 0.0, %v2037
  %v2039 = vpop.f32.mrb[0].mxu0
  %v2040 = vadd.f32 0.0, %v2039
  %v2041 = vpop.f32.mrb[0].mxu0
  %v2042 = vadd.f32 0.0, %v2041
  %v2043 = vpop.f32.mrb[0].mxu0
  %v2044 = vadd.f32 0.0, %v2043
  %2045 = vmatprep.mubr.bf16.mxu0 %v694
  %2046 = vmatmul.mubr.bf16.gmra.mrb[0].mxu0 %v145
  %v2047 = vpop.f32.mrb[0].mxu0
  %v2048 = vadd.f32 0.0, %v2047
  %v2049 = vpop.f32.mrb[0].mxu0
  %v2050 = vadd.f32 0.0, %v2049
  %v2051 = vpop.f32.mrb[0].mxu0
  %v2052 = vadd.f32 0.0, %v2051
  %v2053 = vpop.f32.mrb[0].mxu0
  %v2054 = vadd.f32 0.0, %v2053
  %2055 = vdwg.mxu0
  %2056 = vmatprep.subr.bf16.mxu0 %v1586
  %2057 = vmatpush1.bf16.msra.mxu0 %v1585
  %2058 = vmatprep.subr.bf16.mxu0 %v1598
  %2059 = vmatpush1.bf16.msra.mxu0 %v1597
  %2060 = vmatprep.subr.bf16.mxu0 %v1610
  %2061 = vmatpush1.bf16.msra.mxu0 %v1609
  %2062 = vmatprep.subr.bf16.mxu0 %v1622
  %2063 = vmatpush1.bf16.msra.mxu0 %v1621
  %2064 = vmatprep.subr.bf16.mxu0 %v1634
  %2065 = vmatpush1.bf16.msra.mxu0 %v1633
  %2066 = vmatprep.subr.bf16.mxu0 %v1646
  %2067 = vmatpush1.bf16.msra.mxu0 %v1645
  %2068 = vmatprep.subr.bf16.mxu0 %v1658
  %2069 = vmatpush1.bf16.msra.mxu0 %v1657
  %2070 = vmatprep.subr.bf16.mxu0 %v1670
  %2071 = vmatpush1.bf16.msra.mxu0 %v1669
  %2072 = vmatprep.subr.bf16.mxu0 %v1682
  %2073 = vmatpush1.bf16.msra.mxu0 %v1681
  %2074 = vmatprep.subr.bf16.mxu0 0
  %2075 = vmatpush1.bf16.msra.mxu0 0
  %2076 = vmatprep.subr.bf16.mxu0 0
  %2077 = vmatpush1.bf16.msra.mxu0 0
  %2078 = vmatprep.subr.bf16.mxu0 0
  %2079 = vmatpush1.bf16.msra.mxu0 0
  %2080 = vmatprep.subr.bf16.mxu0 0
  %2081 = vmatpush1.bf16.msra.mxu0 0
  %2082 = vmatprep.subr.bf16.mxu0 0
  %2083 = vmatpush1.bf16.msra.mxu0 0
  %2084 = vmatprep.subr.bf16.mxu0 0
  %2085 = vmatpush1.bf16.msra.mxu0 0
  %2086 = vmatprep.subr.bf16.mxu0 0
  %2087 = vmatpush1.bf16.msra.mxu0 0
  %2088 = vmatprep.mubr.bf16.mxu0 %v691
  %2089 = vmatmul.mubr.bf16.gmra.mrb[0].mxu0 %v143
  %v2090 = vpop.f32.mrb[0].mxu0
  %v2091 = vadd.f32 0.0, %v2090
  %v2092 = vpop.f32.mrb[0].mxu0
  %v2093 = vadd.f32 0.0, %v2092
  %v2094 = vpop.f32.mrb[0].mxu0
  %v2095 = vadd.f32 0.0, %v2094
  %v2096 = vpop.f32.mrb[0].mxu0
  %v2097 = vadd.f32 0.0, %v2096
  %2098 = vmatprep.mubr.bf16.mxu0 %v694
  %2099 = vmatmul.mubr.bf16.gmra.mrb[0].mxu0 %v145
  %v2100 = vpop.f32.mrb[0].mxu0
  %v2101 = vadd.f32 0.0, %v2100
  %v2102 = vpop.f32.mrb[0].mxu0
  %v2103 = vadd.f32 0.0, %v2102
  %v2104 = vpop.f32.mrb[0].mxu0
  %v2105 = vadd.f32 0.0, %v2104
  %v2106 = vpop.f32.mrb[0].mxu0
  %v2107 = vadd.f32 0.0, %v2106
  %2108 = vdwg.mxu0
  %v2109 = vmax.f32 %v1826, %v1881
  %v2110 = vmax.f32 %v1828, %v1932
  %v2111 = vmax.f32 %v1879, %v1934
  %v2112 = vmax.f32 %v1830, %v1885
  %v2113 = vmax.f32 %v1832, %v1936
  %v2114 = vmax.f32 %v1883, %v1938
  %v2115 = vmax.f32 %v1836, %v1891
  %v2116 = vmax.f32 %v1838, %v1942
  %v2117 = vmax.f32 %v1889, %v1944
  %v2118 = vmax.f32 %v1840, %v1895
  %v2119 = vmax.f32 %v1842, %v1946
  %v2120 = vmax.f32 %v1893, %v1948
  %v2121 = vmax.f32 %v1985, %v2040
  %v2122 = vmax.f32 %v1987, %v2091
  %v2123 = vmax.f32 %v2038, %v2093
  %v2124 = vmax.f32 %v1989, %v2044
  %v2125 = vmax.f32 %v1991, %v2095
  %v2126 = vmax.f32 %v2042, %v2097
  %v2127 = vmax.f32 %v1995, %v2050
  %v2128 = vmax.f32 %v1997, %v2101
  %v2129 = vmax.f32 %v2048, %v2103
  %v2130 = vmax.f32 %v1999, %v2054
  %v2131 = vmax.f32 %v2001, %v2105
  %v2132 = vmax.f32 %v2052, %v2107
  %v2133 = vmax.f32 %v2109, %v2121
  %v2134 = vmax.f32 %v2110, %v2122
  %v2135 = vmax.f32 %v2111, %v2123
  %v2136 = vmax.f32 %v2112, %v2124
  %v2137 = vmax.f32 %v2113, %v2125
  %v2138 = vmax.f32 %v2114, %v2126
  %v2139 = vmax.f32 %v2115, %v2127
  %v2140 = vmax.f32 %v2116, %v2128
  %v2141 = vmax.f32 %v2117, %v2129
  %v2142 = vmax.f32 %v2118, %v2130
  %v2143 = vmax.f32 %v2119, %v2131
  %v2144 = vmax.f32 %v2120, %v2132
  %v2145 = vadd.f32 %v2133, %v1053
  %v2146 = vadd.f32 %v2134, %v1053
  %v2147 = vadd.f32 %v2135, %v1053
  %v2148 = vadd.f32 %v2136, %v1058
  %v2149 = vadd.f32 %v2137, %v1058
  %v2150 = vadd.f32 %v2138, %v1058
  %v2151 = vadd.f32 %v2139, %v1063
  %v2152 = vadd.f32 %v2140, %v1063
  %v2153 = vadd.f32 %v2141, %v1063
  %v2154 = vadd.f32 %v2142, %v1068
  %v2155 = vadd.f32 %v2143, %v1068
  %v2156 = vadd.f32 %v2144, %v1068
  %v2157 = vmax.f32 %v2145, 0.0
  %v2158 = vmax.f32 %v2146, 0.0
  %v2159 = vmax.f32 %v2147, 0.0
  %v2160 = vmax.f32 %v2148, 0.0
  %v2161 = vmax.f32 %v2149, 0.0
  %v2162 = vmax.f32 %v2150, 0.0
  %v2163 = vmax.f32 %v2151, 0.0
  %v2164 = vmax.f32 %v2152, 0.0
  %v2165 = vmax.f32 %v2153, 0.0
  %v2166 = vmax.f32 %v2154, 0.0
  %v2167 = vmax.f32 %v2155, 0.0
  %v2168 = vmax.f32 %v2156, 0.0
  %v2169 = vpack.c.bf16 %v2160, %v2157
  %v2170 = vpack.c.bf16 %v2161, %v2158
  %v2171 = vpack.c.bf16 %v2162, %v2159
  %v2172 = vpack.c.bf16 %v2166, %v2163
  %v2173 = vpack.c.bf16 %v2167, %v2164
  %v2174 = vpack.c.bf16 %v2168, %v2165
  %v2181 = vunpack.c.l.b16 %v2169
  %v2182 = vunpack.c.l.b16 %v2170
  %v2183 = vunpack.c.l.b16 %v2171
  %v2184 = vunpack.c.h.b16 %v2169
  %v2185 = vunpack.c.h.b16 %v2170
  %v2186 = vunpack.c.h.b16 %v2171
  %v2187 = vunpack.c.l.b16 %v2172
  %v2188 = vunpack.c.l.b16 %v2173
  %v2189 = vunpack.c.l.b16 %v2174
  %v2190 = vunpack.c.h.b16 %v2172
  %v2191 = vunpack.c.h.b16 %v2173
  %v2192 = vunpack.c.h.b16 %v2174
  %v2193 = vpack.c.b16 %v2182, %v2181
  %v2194 = vpack.c.b16 %v2183, %v2183
  %v2195 = vpack.c.b16 %v2185, %v2184
  %v2196 = vpack.c.b16 %v2186, %v2186
  %v2197 = vpack.c.b16 %v2188, %v2187
  %v2198 = vpack.c.b16 %v2189, %v2189
  %v2199 = vpack.c.b16 %v2191, %v2190
  %v2200 = vpack.c.b16 %v2192, %v2192
  %s2209 = scalar_lea.vmem %s3, 48
  %2210 = vst [vmem:[%s2209] sm:$0xff] %v2193
  %2211 = vst [vmem:[%s2209 + $0x8] sm:$0xf] %v2194
  %2212 = vst [vmem:[%s2209 + $0xc] sm:$0xff] %v2195
  %2213 = vst [vmem:[%s2209 + $0x14] sm:$0xf] %v2196
  %2214 = vst [vmem:[%s2209 + $0x18] sm:$0xff] %v2197
  %2215 = vst [vmem:[%s2209 + $0x20] sm:$0xf] %v2198
  %2216 = vst [vmem:[%s2209 + $0x24] sm:$0xff] %v2199
  %2217 = vst [vmem:[%s2209 + $0x2c] sm:$0xf] %v2200
  // Predicated region
  $region14: #{conv_nn_forward.4} parent=0 // pred_check
    _
  $region15: #{conv_nn_forward.4} parent=0 // pred_check_branch
    %2219 = sbr.rel (0) target = $region17
  $region16: #{conv_nn_forward.4} parent=0 // pred_region
    _
  $region17: #{conv_nn_forward.4} parent=0 // pred_fallthru
    _
  // Predicated region
  $region18: #{conv_nn_forward.4} parent=0 // pred_check
    _
  $region19: #{conv_nn_forward.4} parent=0 // pred_check_branch
    %2221 = sbr.rel (0) target = $region21
  $region20: #{conv_nn_forward.4} parent=0 // pred_region
    _
  $region21: #{conv_nn_forward.4} parent=0 // pred_fallthru
    _

// kernel: conv_nn_forward.5
$region0: #{conv_nn_forward.5}
  #allocation0 [shape = 'u32[]', space=smem, size = 0x4, offset = 0x4, fixed_abs, tag = 'smem constant byte address 0x4 - core index']
  #allocation1 [shape = 'u32[144,128]{1,0:T(1,128)}', space=vmem, size = 0x12000, scoped, tag = 'internal scratch']
  %s0 = inlined_call_operand.vmem [shape: bf16[2,8512], index: 0, kind: input, shape index: {}]
  %s1 = inlined_call_operand.vmem [shape: bf16[8512,200], index: 1, kind: input, shape index: {}]
  %s2 = inlined_call_operand.vmem [shape: f32[1,200], index: 2, kind: input, shape index: {}]
  %s3 = inlined_call_operand.vmem [shape: f32[200,5], index: 3, kind: input, shape index: {}]
  %s4 = inlined_call_operand.vmem [shape: f32[1,5], index: 4, kind: input, shape index: {}]
  %s5 = inlined_call_operand.hbm [shape: f32[2,5], index: 5, kind: output, shape index: {}]
  %s6 = sld [smem:[#allocation0]]
  $region30: #{conv_nn_forward.5} parent=0
    _
  %s8 = ssub.s32 1, %s6
  %s9 = scalar_select 0, %s8, %s6
  $region1: #{conv_nn_forward.5} parent=0
    #allocation2 [shape = 'u8[1024]{0}', space=vmem, size = 0x400, scoped, tag = 'output window, operand 0, single buffered']
    #allocation3 [shape = 's32[1]{0}', space=sflag, size = 0x4, scoped, tag = 'scoped memory for conv_nn_forward.5']
    %10 = vsyncpa [#allocation3], 0
    // Predicated region
    $region2: #{conv_nn_forward.5} parent=1 // pred_check
      _
    $region3: #{conv_nn_forward.5} parent=1 // pred_check_branch
      %12 = sbr.rel (0) target = $region5
    $region4: #{conv_nn_forward.5} parent=1 // pred_region
      _
    $region5: #{conv_nn_forward.5} parent=1 // pred_fallthru
      _
    // Predicated region
    $region6: #{conv_nn_forward.5} parent=1 // pred_check
      _
    $region7: #{conv_nn_forward.5} parent=1 // pred_check_branch
      %14 = sbr.rel (0) target = $region9
    $region8: #{conv_nn_forward.5} parent=1 // pred_region
      _
    $region9: #{conv_nn_forward.5} parent=1 // pred_fallthru
      _
    // Predicated region
    $region10: #{conv_nn_forward.5} parent=1 // pred_check
      _
    $region11: #{conv_nn_forward.5} parent=1 // pred_check_branch
      %16 = sbr.rel (0) target = $region13
    $region12: #{conv_nn_forward.5} parent=1 // pred_region
      _
    $region13: #{conv_nn_forward.5} parent=1 // pred_fallthru
      _
    // Predicated region
    $region14: #{conv_nn_forward.5} parent=1 // pred_check
      _
    $region15: #{conv_nn_forward.5} parent=1 // pred_check_branch
      %18 = sbr.rel (0) target = $region17
    $region16: #{conv_nn_forward.5} parent=1 // pred_region
      _
    $region17: #{conv_nn_forward.5} parent=1 // pred_fallthru
      _
    // Predicated region
    $region18: #{conv_nn_forward.5} parent=1 // pred_check
      _
    $region19: #{conv_nn_forward.5} parent=1 // pred_check_branch
      %20 = sbr.rel (0) target = $region21
    $region20: #{conv_nn_forward.5} parent=1 // pred_region
      _
    $region21: #{conv_nn_forward.5} parent=1 // pred_fallthru
      _
    %v22 = vld [vmem:[%s0] sm:$0xff]
    %v23 = vld [vmem:[%s0 + $0x8] sm:$0xff]
    %v24 = vld [vmem:[%s0 + $0x10] sm:$0xff]
    %v25 = vld [vmem:[%s0 + $0x18] sm:$0xff]
    %v26 = vld [vmem:[%s0 + $0x20] sm:$0xff]
    %v27 = vld [vmem:[%s0 + $0x28] sm:$0xff]
    %v28 = vld [vmem:[%s0 + $0x30] sm:$0xff]
    %v29 = vld [vmem:[%s0 + $0x38] sm:$0xff]
    %v30 = vld [vmem:[%s0 + $0x40] sm:$0x7]
    %v31 = vld [vmem:[%s1] sm:$0xff]
    %v32 = vld [vmem:[%s1 + $0x8] sm:$0xff]
    %v33 = vld [vmem:[%s1 + $0x10] sm:$0xff]
    %v34 = vld [vmem:[%s1 + $0x18] sm:$0xff]
    %v35 = vld [vmem:[%s1 + $0x20] sm:$0xff]
    %v36 = vld [vmem:[%s1 + $0x28] sm:$0xff]
    %v37 = vld [vmem:[%s1 + $0x30] sm:$0xff]
    %v38 = vld [vmem:[%s1 + $0x38] sm:$0xff]
    %v39 = vld [vmem:[%s1 + $0x40] sm:$0xff]
    %v40 = vld [vmem:[%s1 + $0x48] sm:$0xff]
    %v41 = vld [vmem:[%s1 + $0x50] sm:$0xff]
    %v42 = vld [vmem:[%s1 + $0x58] sm:$0xff]
    %v43 = vld [vmem:[%s1 + $0x60] sm:$0xff]
    %v44 = vld [vmem:[%s1 + $0x68] sm:$0xff]
    %v45 = vld [vmem:[%s1 + $0x70] sm:$0xff]
    %v46 = vld [vmem:[%s1 + $0x78] sm:$0xff]
    %v47 = vld [vmem:[%s1 + $0x80] sm:$0xff]
    %v48 = vld [vmem:[%s1 + $0x88] sm:$0xff]
    %v49 = vld [vmem:[%s1 + $0x90] sm:$0xff]
    %v50 = vld [vmem:[%s1 + $0x98] sm:$0xff]
    %v51 = vld [vmem:[%s1 + $0xa0] sm:$0xff]
    %v52 = vld [vmem:[%s1 + $0xa8] sm:$0xff]
    %v53 = vld [vmem:[%s1 + $0xb0] sm:$0xff]
    %v54 = vld [vmem:[%s1 + $0xb8] sm:$0xff]
    %v55 = vld [vmem:[%s1 + $0xc0] sm:$0xff]
    %v56 = vld [vmem:[%s1 + $0xc8] sm:$0xff]
    %v57 = vld [vmem:[%s1 + $0xd0] sm:$0xff]
    %v58 = vld [vmem:[%s1 + $0xd8] sm:$0xff]
    %v59 = vld [vmem:[%s1 + $0xe0] sm:$0xff]
    %v60 = vld [vmem:[%s1 + $0xe8] sm:$0xff]
    %v61 = vld [vmem:[%s1 + $0xf0] sm:$0xff]
    %v62 = vld [vmem:[%s1 + $0xf8] sm:$0xff]
    %v63 = vld [vmem:[%s1 + $0x100] sm:$0xff]
    %v64 = vld [vmem:[%s1 + $0x108] sm:$0xff]
    %v65 = vld [vmem:[%s1 + $0x110] sm:$0xff]
    %v66 = vld [vmem:[%s1 + $0x118] sm:$0xff]
    %v67 = vld [vmem:[%s1 + $0x120] sm:$0xff]
    %v68 = vld [vmem:[%s1 + $0x128] sm:$0xff]
    %v69 = vld [vmem:[%s1 + $0x130] sm:$0xff]
    %v70 = vld [vmem:[%s1 + $0x138] sm:$0xff]
    %v71 = vld [vmem:[%s1 + $0x140] sm:$0xff]
    %v72 = vld [vmem:[%s1 + $0x148] sm:$0xff]
    %v73 = vld [vmem:[%s1 + $0x150] sm:$0xff]
    %v74 = vld [vmem:[%s1 + $0x158] sm:$0xff]
    %v75 = vld [vmem:[%s1 + $0x160] sm:$0xff]
    %v76 = vld [vmem:[%s1 + $0x168] sm:$0xff]
    %v77 = vld [vmem:[%s1 + $0x170] sm:$0xff]
    %v78 = vld [vmem:[%s1 + $0x178] sm:$0xff]
    %v79 = vld [vmem:[%s1 + $0x180] sm:$0xff]
    %v80 = vld [vmem:[%s1 + $0x188] sm:$0xff]
    %v81 = vld [vmem:[%s1 + $0x190] sm:$0xff]
    %v82 = vld [vmem:[%s1 + $0x198] sm:$0xff]
    %v83 = vld [vmem:[%s1 + $0x1a0] sm:$0xff]
    %v84 = vld [vmem:[%s1 + $0x1a8] sm:$0xff]
    %v85 = vld [vmem:[%s1 + $0x1b0] sm:$0xff]
    %v86 = vld [vmem:[%s1 + $0x1b8] sm:$0xff]
    %v87 = vld [vmem:[%s1 + $0x1c0] sm:$0xff]
    %v88 = vld [vmem:[%s1 + $0x1c8] sm:$0xff]
    %v89 = vld [vmem:[%s1 + $0x1d0] sm:$0xff]
    %v90 = vld [vmem:[%s1 + $0x1d8] sm:$0xff]
    %v91 = vld [vmem:[%s1 + $0x1e0] sm:$0xff]
    %v92 = vld [vmem:[%s1 + $0x1e8] sm:$0xff]
    %v93 = vld [vmem:[%s1 + $0x1f0] sm:$0xff]
    %v94 = vld [vmem:[%s1 + $0x1f8] sm:$0xff]
    %v95 = vld [vmem:[%s1 + $0x200] sm:$0xff]
    %v96 = vld [vmem:[%s1 + $0x208] sm:$0xff]
    %v97 = vld [vmem:[%s1 + $0x210] sm:$0xff]
    %v98 = vld [vmem:[%s1 + $0x218] sm:$0xff]
    %v99 = vld [vmem:[%s1 + $0x220] sm:$0xff]
    %v100 = vld [vmem:[%s1 + $0x228] sm:$0xff]
    %v101 = vld [vmem:[%s1 + $0x230] sm:$0xff]
    %v102 = vld [vmem:[%s1 + $0x238] sm:$0xff]
    %v103 = vld [vmem:[%s1 + $0x240] sm:$0xff]
    %v104 = vld [vmem:[%s1 + $0x248] sm:$0xff]
    %v105 = vld [vmem:[%s1 + $0x250] sm:$0xff]
    %v106 = vld [vmem:[%s1 + $0x258] sm:$0xff]
    %v107 = vld [vmem:[%s1 + $0x260] sm:$0xff]
    %v108 = vld [vmem:[%s1 + $0x268] sm:$0xff]
    %v109 = vld [vmem:[%s1 + $0x270] sm:$0xff]
    %v110 = vld [vmem:[%s1 + $0x278] sm:$0xff]
    %v111 = vld [vmem:[%s1 + $0x280] sm:$0xff]
    %v112 = vld [vmem:[%s1 + $0x288] sm:$0xff]
    %v113 = vld [vmem:[%s1 + $0x290] sm:$0xff]
    %v114 = vld [vmem:[%s1 + $0x298] sm:$0xff]
    %v115 = vld [vmem:[%s1 + $0x2a0] sm:$0xff]
    %v116 = vld [vmem:[%s1 + $0x2a8] sm:$0xff]
    %v117 = vld [vmem:[%s1 + $0x2b0] sm:$0xff]
    %v118 = vld [vmem:[%s1 + $0x2b8] sm:$0xff]
    %v119 = vld [vmem:[%s1 + $0x2c0] sm:$0xff]
    %v120 = vld [vmem:[%s1 + $0x2c8] sm:$0xff]
    %v121 = vld [vmem:[%s1 + $0x2d0] sm:$0xff]
    %v122 = vld [vmem:[%s1 + $0x2d8] sm:$0xff]
    %v123 = vld [vmem:[%s1 + $0x2e0] sm:$0xff]
    %v124 = vld [vmem:[%s1 + $0x2e8] sm:$0xff]
    %v125 = vld [vmem:[%s1 + $0x2f0] sm:$0xff]
    %v126 = vld [vmem:[%s1 + $0x2f8] sm:$0xff]
    %v127 = vld [vmem:[%s1 + $0x300] sm:$0xff]
    %v128 = vld [vmem:[%s1 + $0x308] sm:$0xff]
    %v129 = vld [vmem:[%s1 + $0x310] sm:$0xff]
    %v130 = vld [vmem:[%s1 + $0x318] sm:$0xff]
    %v131 = vld [vmem:[%s1 + $0x320] sm:$0xff]
    %v132 = vld [vmem:[%s1 + $0x328] sm:$0xff]
    %v133 = vld [vmem:[%s1 + $0x330] sm:$0xff]
    %v134 = vld [vmem:[%s1 + $0x338] sm:$0xff]
    %v135 = vld [vmem:[%s1 + $0x340] sm:$0xff]
    %v136 = vld [vmem:[%s1 + $0x348] sm:$0xff]
    %v137 = vld [vmem:[%s1 + $0x350] sm:$0xff]
    %v138 = vld [vmem:[%s1 + $0x358] sm:$0xff]
    %v139 = vld [vmem:[%s1 + $0x360] sm:$0xff]
    %v140 = vld [vmem:[%s1 + $0x368] sm:$0xff]
    %v141 = vld [vmem:[%s1 + $0x370] sm:$0xff]
    %v142 = vld [vmem:[%s1 + $0x378] sm:$0xff]
    %v143 = vld [vmem:[%s1 + $0x380] sm:$0xff]
    %v144 = vld [vmem:[%s1 + $0x388] sm:$0xff]
    %v145 = vld [vmem:[%s1 + $0x390] sm:$0xff]
    %v146 = vld [vmem:[%s1 + $0x398] sm:$0xff]
    %v147 = vld [vmem:[%s1 + $0x3a0] sm:$0xff]
    %v148 = vld [vmem:[%s1 + $0x3a8] sm:$0xff]
    %v149 = vld [vmem:[%s1 + $0x3b0] sm:$0xff]
    %v150 = vld [vmem:[%s1 + $0x3b8] sm:$0xff]
    %v151 = vld [vmem:[%s1 + $0x3c0] sm:$0xff]
    %v152 = vld [vmem:[%s1 + $0x3c8] sm:$0xff]
    %v153 = vld [vmem:[%s1 + $0x3d0] sm:$0xff]
    %v154 = vld [vmem:[%s1 + $0x3d8] sm:$0xff]
    %v155 = vld [vmem:[%s1 + $0x3e0] sm:$0xff]
    %v156 = vld [vmem:[%s1 + $0x3e8] sm:$0xff]
    %v157 = vld [vmem:[%s1 + $0x3f0] sm:$0xff]
    %v158 = vld [vmem:[%s1 + $0x3f8] sm:$0xff]
    %v159 = vld [vmem:[%s1 + $0x400] sm:$0xff]
    %v160 = vld [vmem:[%s1 + $0x408] sm:$0xff]
    %v161 = vld [vmem:[%s1 + $0x410] sm:$0xff]
    %v162 = vld [vmem:[%s1 + $0x418] sm:$0xff]
    %v163 = vld [vmem:[%s1 + $0x420] sm:$0xff]
    %v164 = vld [vmem:[%s1 + $0x428] sm:$0xff]
    %v165 = vld [vmem:[%s1 + $0x430] sm:$0xff]
    %v166 = vld [vmem:[%s1 + $0x438] sm:$0xff]
    %v167 = vld [vmem:[%s1 + $0x440] sm:$0xff]
    %v168 = vld [vmem:[%s1 + $0x448] sm:$0xff]
    %v169 = vld [vmem:[%s1 + $0x450] sm:$0xff]
    %v170 = vld [vmem:[%s1 + $0x458] sm:$0xff]
    %v171 = vld [vmem:[%s1 + $0x460] sm:$0xff]
    %v172 = vld [vmem:[%s1 + $0x468] sm:$0xff]
    %v173 = vld [vmem:[%s1 + $0x470] sm:$0xff]
    %v174 = vld [vmem:[%s1 + $0x478] sm:$0xff]
    %v175 = vld [vmem:[%s1 + $0x480] sm:$0xff]
    %v176 = vld [vmem:[%s1 + $0x488] sm:$0xff]
    %v177 = vld [vmem:[%s1 + $0x490] sm:$0xff]
    %v178 = vld [vmem:[%s1 + $0x498] sm:$0xff]
    %v179 = vld [vmem:[%s1 + $0x4a0] sm:$0xff]
    %v180 = vld [vmem:[%s1 + $0x4a8] sm:$0xff]
    %v181 = vld [vmem:[%s1 + $0x4b0] sm:$0xff]
    %v182 = vld [vmem:[%s1 + $0x4b8] sm:$0xff]
    %v183 = vld [vmem:[%s1 + $0x4c0] sm:$0xff]
    %v184 = vld [vmem:[%s1 + $0x4c8] sm:$0xff]
    %v185 = vld [vmem:[%s1 + $0x4d0] sm:$0xff]
    %v186 = vld [vmem:[%s1 + $0x4d8] sm:$0xff]
    %v187 = vld [vmem:[%s1 + $0x4e0] sm:$0xff]
    %v188 = vld [vmem:[%s1 + $0x4e8] sm:$0xff]
    %v189 = vld [vmem:[%s1 + $0x4f0] sm:$0xff]
    %v190 = vld [vmem:[%s1 + $0x4f8] sm:$0xff]
    %v191 = vld [vmem:[%s1 + $0x500] sm:$0xff]
    %v192 = vld [vmem:[%s1 + $0x508] sm:$0xff]
    %v193 = vld [vmem:[%s1 + $0x510] sm:$0xff]
    %v194 = vld [vmem:[%s1 + $0x518] sm:$0xff]
    %v195 = vld [vmem:[%s1 + $0x520] sm:$0xff]
    %v196 = vld [vmem:[%s1 + $0x528] sm:$0xff]
    %v197 = vld [vmem:[%s1 + $0x530] sm:$0xff]
    %v198 = vld [vmem:[%s1 + $0x538] sm:$0xff]
    %v199 = vld [vmem:[%s1 + $0x540] sm:$0xff]
    %v200 = vld [vmem:[%s1 + $0x548] sm:$0xff]
    %v201 = vld [vmem:[%s1 + $0x550] sm:$0xff]
    %v202 = vld [vmem:[%s1 + $0x558] sm:$0xff]
    %v203 = vld [vmem:[%s1 + $0x560] sm:$0xff]
    %v204 = vld [vmem:[%s1 + $0x568] sm:$0xff]
    %v205 = vld [vmem:[%s1 + $0x570] sm:$0xff]
    %v206 = vld [vmem:[%s1 + $0x578] sm:$0xff]
    %v207 = vld [vmem:[%s1 + $0x580] sm:$0xff]
    %v208 = vld [vmem:[%s1 + $0x588] sm:$0xff]
    %v209 = vld [vmem:[%s1 + $0x590] sm:$0xff]
    %v210 = vld [vmem:[%s1 + $0x598] sm:$0xff]
    %v211 = vld [vmem:[%s1 + $0x5a0] sm:$0xff]
    %v212 = vld [vmem:[%s1 + $0x5a8] sm:$0xff]
    %v213 = vld [vmem:[%s1 + $0x5b0] sm:$0xff]
    %v214 = vld [vmem:[%s1 + $0x5b8] sm:$0xff]
    %v215 = vld [vmem:[%s1 + $0x5c0] sm:$0xff]
    %v216 = vld [vmem:[%s1 + $0x5c8] sm:$0xff]
    %v217 = vld [vmem:[%s1 + $0x5d0] sm:$0xff]
    %v218 = vld [vmem:[%s1 + $0x5d8] sm:$0xff]
    %v219 = vld [vmem:[%s1 + $0x5e0] sm:$0xff]
    %v220 = vld [vmem:[%s1 + $0x5e8] sm:$0xff]
    %v221 = vld [vmem:[%s1 + $0x5f0] sm:$0xff]
    %v222 = vld [vmem:[%s1 + $0x5f8] sm:$0xff]
    %v223 = vld [vmem:[%s1 + $0x600] sm:$0xff]
    %v224 = vld [vmem:[%s1 + $0x608] sm:$0xff]
    %v225 = vld [vmem:[%s1 + $0x610] sm:$0xff]
    %v226 = vld [vmem:[%s1 + $0x618] sm:$0xff]
    %v227 = vld [vmem:[%s1 + $0x620] sm:$0xff]
    %v228 = vld [vmem:[%s1 + $0x628] sm:$0xff]
    %v229 = vld [vmem:[%s1 + $0x630] sm:$0xff]
    %v230 = vld [vmem:[%s1 + $0x638] sm:$0xff]
    %v231 = vld [vmem:[%s1 + $0x640] sm:$0xff]
    %v232 = vld [vmem:[%s1 + $0x648] sm:$0xff]
    %v233 = vld [vmem:[%s1 + $0x650] sm:$0xff]
    %v234 = vld [vmem:[%s1 + $0x658] sm:$0xff]
    %v235 = vld [vmem:[%s1 + $0x660] sm:$0xff]
    %v236 = vld [vmem:[%s1 + $0x668] sm:$0xff]
    %v237 = vld [vmem:[%s1 + $0x670] sm:$0xff]
    %v238 = vld [vmem:[%s1 + $0x678] sm:$0xff]
    %v239 = vld [vmem:[%s1 + $0x680] sm:$0xff]
    %v240 = vld [vmem:[%s1 + $0x688] sm:$0xff]
    %v241 = vld [vmem:[%s1 + $0x690] sm:$0xff]
    %v242 = vld [vmem:[%s1 + $0x698] sm:$0xff]
    %v243 = vld [vmem:[%s1 + $0x6a0] sm:$0xff]
    %v244 = vld [vmem:[%s1 + $0x6a8] sm:$0xff]
    %v245 = vld [vmem:[%s1 + $0x6b0] sm:$0xff]
    %v246 = vld [vmem:[%s1 + $0x6b8] sm:$0xff]
    %v247 = vld [vmem:[%s1 + $0x6c0] sm:$0xff]
    %v248 = vld [vmem:[%s1 + $0x6c8] sm:$0xff]
    %v249 = vld [vmem:[%s1 + $0x6d0] sm:$0xff]
    %v250 = vld [vmem:[%s1 + $0x6d8] sm:$0xff]
    %v251 = vld [vmem:[%s1 + $0x6e0] sm:$0xff]
    %v252 = vld [vmem:[%s1 + $0x6e8] sm:$0xff]
    %v253 = vld [vmem:[%s1 + $0x6f0] sm:$0xff]
    %v254 = vld [vmem:[%s1 + $0x6f8] sm:$0xff]
    %v255 = vld [vmem:[%s1 + $0x700] sm:$0xff]
    %v256 = vld [vmem:[%s1 + $0x708] sm:$0xff]
    %v257 = vld [vmem:[%s1 + $0x710] sm:$0xff]
    %v258 = vld [vmem:[%s1 + $0x718] sm:$0xff]
    %v259 = vld [vmem:[%s1 + $0x720] sm:$0xff]
    %v260 = vld [vmem:[%s1 + $0x728] sm:$0xff]
    %v261 = vld [vmem:[%s1 + $0x730] sm:$0xff]
    %v262 = vld [vmem:[%s1 + $0x738] sm:$0xff]
    %v263 = vld [vmem:[%s1 + $0x740] sm:$0xff]
    %v264 = vld [vmem:[%s1 + $0x748] sm:$0xff]
    %v265 = vld [vmem:[%s1 + $0x750] sm:$0xff]
    %v266 = vld [vmem:[%s1 + $0x758] sm:$0xff]
    %v267 = vld [vmem:[%s1 + $0x760] sm:$0xff]
    %v268 = vld [vmem:[%s1 + $0x768] sm:$0xff]
    %v269 = vld [vmem:[%s1 + $0x770] sm:$0xff]
    %v270 = vld [vmem:[%s1 + $0x778] sm:$0xff]
    %v271 = vld [vmem:[%s1 + $0x780] sm:$0xff]
    %v272 = vld [vmem:[%s1 + $0x788] sm:$0xff]
    %v273 = vld [vmem:[%s1 + $0x790] sm:$0xff]
    %v274 = vld [vmem:[%s1 + $0x798] sm:$0xff]
    %v275 = vld [vmem:[%s1 + $0x7a0] sm:$0xff]
    %v276 = vld [vmem:[%s1 + $0x7a8] sm:$0xff]
    %v277 = vld [vmem:[%s1 + $0x7b0] sm:$0xff]
    %v278 = vld [vmem:[%s1 + $0x7b8] sm:$0xff]
    %v279 = vld [vmem:[%s1 + $0x7c0] sm:$0xff]
    %v280 = vld [vmem:[%s1 + $0x7c8] sm:$0xff]
    %v281 = vld [vmem:[%s1 + $0x7d0] sm:$0xff]
    %v282 = vld [vmem:[%s1 + $0x7d8] sm:$0xff]
    %v283 = vld [vmem:[%s1 + $0x7e0] sm:$0xff]
    %v284 = vld [vmem:[%s1 + $0x7e8] sm:$0xff]
    %v285 = vld [vmem:[%s1 + $0x7f0] sm:$0xff]
    %v286 = vld [vmem:[%s1 + $0x7f8] sm:$0xff]
    %v287 = vld [vmem:[%s1 + $0x800] sm:$0xff]
    %v288 = vld [vmem:[%s1 + $0x808] sm:$0xff]
    %v289 = vld [vmem:[%s1 + $0x810] sm:$0xff]
    %v290 = vld [vmem:[%s1 + $0x818] sm:$0xff]
    %v291 = vld [vmem:[%s1 + $0x820] sm:$0xff]
    %v292 = vld [vmem:[%s1 + $0x828] sm:$0xff]
    %v293 = vld [vmem:[%s1 + $0x830] sm:$0xff]
    %v294 = vld [vmem:[%s1 + $0x838] sm:$0xff]
    %v295 = vld [vmem:[%s1 + $0x840] sm:$0xff]
    %v296 = vld [vmem:[%s1 + $0x848] sm:$0xff]
    %v297 = vld [vmem:[%s1 + $0x850] sm:$0xff]
    %v298 = vld [vmem:[%s1 + $0x858] sm:$0xff]
    %v299 = vld [vmem:[%s1 + $0x860] sm:$0xff]
    %v300 = vld [vmem:[%s1 + $0x868] sm:$0xff]
    %v301 = vld [vmem:[%s1 + $0x870] sm:$0xff]
    %v302 = vld [vmem:[%s1 + $0x878] sm:$0xff]
    %v303 = vld [vmem:[%s1 + $0x880] sm:$0xff]
    %v304 = vld [vmem:[%s1 + $0x888] sm:$0xff]
    %v305 = vld [vmem:[%s1 + $0x890] sm:$0xff]
    %v306 = vld [vmem:[%s1 + $0x898] sm:$0xff]
    %v307 = vld [vmem:[%s1 + $0x8a0] sm:$0xff]
    %v308 = vld [vmem:[%s1 + $0x8a8] sm:$0xff]
    %v309 = vld [vmem:[%s1 + $0x8b0] sm:$0xff]
    %v310 = vld [vmem:[%s1 + $0x8b8] sm:$0xff]
    %v311 = vld [vmem:[%s1 + $0x8c0] sm:$0xff]
    %v312 = vld [vmem:[%s1 + $0x8c8] sm:$0xff]
    %v313 = vld [vmem:[%s1 + $0x8d0] sm:$0xff]
    %v314 = vld [vmem:[%s1 + $0x8d8] sm:$0xff]
    %v315 = vld [vmem:[%s1 + $0x8e0] sm:$0xff]
    %v316 = vld [vmem:[%s1 + $0x8e8] sm:$0xff]
    %v317 = vld [vmem:[%s1 + $0x8f0] sm:$0xff]
    %v318 = vld [vmem:[%s1 + $0x8f8] sm:$0xff]
    %v319 = vld [vmem:[%s1 + $0x900] sm:$0xff]
    %v320 = vld [vmem:[%s1 + $0x908] sm:$0xff]
    %v321 = vld [vmem:[%s1 + $0x910] sm:$0xff]
    %v322 = vld [vmem:[%s1 + $0x918] sm:$0xff]
    %v323 = vld [vmem:[%s1 + $0x920] sm:$0xff]
    %v324 = vld [vmem:[%s1 + $0x928] sm:$0xff]
    %v325 = vld [vmem:[%s1 + $0x930] sm:$0xff]
    %v326 = vld [vmem:[%s1 + $0x938] sm:$0xff]
    %v327 = vld [vmem:[%s1 + $0x940] sm:$0xff]
    %v328 = vld [vmem:[%s1 + $0x948] sm:$0xff]
    %v329 = vld [vmem:[%s1 + $0x950] sm:$0xff]
    %v330 = vld [vmem:[%s1 + $0x958] sm:$0xff]
    %v331 = vld [vmem:[%s1 + $0x960] sm:$0xff]
    %v332 = vld [vmem:[%s1 + $0x968] sm:$0xff]
    %v333 = vld [vmem:[%s1 + $0x970] sm:$0xff]
    %v334 = vld [vmem:[%s1 + $0x978] sm:$0xff]
    %v335 = vld [vmem:[%s1 + $0x980] sm:$0xff]
    %v336 = vld [vmem:[%s1 + $0x988] sm:$0xff]
    %v337 = vld [vmem:[%s1 + $0x990] sm:$0xff]
    %v338 = vld [vmem:[%s1 + $0x998] sm:$0xff]
    %v339 = vld [vmem:[%s1 + $0x9a0] sm:$0xff]
    %v340 = vld [vmem:[%s1 + $0x9a8] sm:$0xff]
    %v341 = vld [vmem:[%s1 + $0x9b0] sm:$0xff]
    %v342 = vld [vmem:[%s1 + $0x9b8] sm:$0xff]
    %v343 = vld [vmem:[%s1 + $0x9c0] sm:$0xff]
    %v344 = vld [vmem:[%s1 + $0x9c8] sm:$0xff]
    %v345 = vld [vmem:[%s1 + $0x9d0] sm:$0xff]
    %v346 = vld [vmem:[%s1 + $0x9d8] sm:$0xff]
    %v347 = vld [vmem:[%s1 + $0x9e0] sm:$0xff]
    %v348 = vld [vmem:[%s1 + $0x9e8] sm:$0xff]
    %v349 = vld [vmem:[%s1 + $0x9f0] sm:$0xff]
    %v350 = vld [vmem:[%s1 + $0x9f8] sm:$0xff]
    %v351 = vld [vmem:[%s1 + $0xa00] sm:$0xff]
    %v352 = vld [vmem:[%s1 + $0xa08] sm:$0xff]
    %v353 = vld [vmem:[%s1 + $0xa10] sm:$0xff]
    %v354 = vld [vmem:[%s1 + $0xa18] sm:$0xff]
    %v355 = vld [vmem:[%s1 + $0xa20] sm:$0xff]
    %v356 = vld [vmem:[%s1 + $0xa28] sm:$0xff]
    %v357 = vld [vmem:[%s1 + $0xa30] sm:$0xff]
    %v358 = vld [vmem:[%s1 + $0xa38] sm:$0xff]
    %v359 = vld [vmem:[%s1 + $0xa40] sm:$0xff]
    %v360 = vld [vmem:[%s1 + $0xa48] sm:$0xff]
    %v361 = vld [vmem:[%s1 + $0xa50] sm:$0xff]
    %v362 = vld [vmem:[%s1 + $0xa58] sm:$0xff]
    %v363 = vld [vmem:[%s1 + $0xa60] sm:$0xff]
    %v364 = vld [vmem:[%s1 + $0xa68] sm:$0xff]
    %v365 = vld [vmem:[%s1 + $0xa70] sm:$0xff]
    %v366 = vld [vmem:[%s1 + $0xa78] sm:$0xff]
    %v367 = vld [vmem:[%s1 + $0xa80] sm:$0xff]
    %v368 = vld [vmem:[%s1 + $0xa88] sm:$0xff]
    %v369 = vld [vmem:[%s1 + $0xa90] sm:$0xff]
    %v370 = vld [vmem:[%s1 + $0xa98] sm:$0xff]
    %v371 = vld [vmem:[%s1 + $0xaa0] sm:$0xff]
    %v372 = vld [vmem:[%s1 + $0xaa8] sm:$0xff]
    %v373 = vld [vmem:[%s1 + $0xab0] sm:$0xff]
    %v374 = vld [vmem:[%s1 + $0xab8] sm:$0xff]
    %v375 = vld [vmem:[%s1 + $0xac0] sm:$0xff]
    %v376 = vld [vmem:[%s1 + $0xac8] sm:$0xff]
    %v377 = vld [vmem:[%s1 + $0xad0] sm:$0xff]
    %v378 = vld [vmem:[%s1 + $0xad8] sm:$0xff]
    %v379 = vld [vmem:[%s1 + $0xae0] sm:$0xff]
    %v380 = vld [vmem:[%s1 + $0xae8] sm:$0xff]
    %v381 = vld [vmem:[%s1 + $0xaf0] sm:$0xff]
    %v382 = vld [vmem:[%s1 + $0xaf8] sm:$0xff]
    %v383 = vld [vmem:[%s1 + $0xb00] sm:$0xff]
    %v384 = vld [vmem:[%s1 + $0xb08] sm:$0xff]
    %v385 = vld [vmem:[%s1 + $0xb10] sm:$0xff]
    %v386 = vld [vmem:[%s1 + $0xb18] sm:$0xff]
    %v387 = vld [vmem:[%s1 + $0xb20] sm:$0xff]
    %v388 = vld [vmem:[%s1 + $0xb28] sm:$0xff]
    %v389 = vld [vmem:[%s1 + $0xb30] sm:$0xff]
    %v390 = vld [vmem:[%s1 + $0xb38] sm:$0xff]
    %v391 = vld [vmem:[%s1 + $0xb40] sm:$0xff]
    %v392 = vld [vmem:[%s1 + $0xb48] sm:$0xff]
    %v393 = vld [vmem:[%s1 + $0xb50] sm:$0xff]
    %v394 = vld [vmem:[%s1 + $0xb58] sm:$0xff]
    %v395 = vld [vmem:[%s1 + $0xb60] sm:$0xff]
    %v396 = vld [vmem:[%s1 + $0xb68] sm:$0xff]
    %v397 = vld [vmem:[%s1 + $0xb70] sm:$0xff]
    %v398 = vld [vmem:[%s1 + $0xb78] sm:$0xff]
    %v399 = vld [vmem:[%s1 + $0xb80] sm:$0xff]
    %v400 = vld [vmem:[%s1 + $0xb88] sm:$0xff]
    %v401 = vld [vmem:[%s1 + $0xb90] sm:$0xff]
    %v402 = vld [vmem:[%s1 + $0xb98] sm:$0xff]
    %v403 = vld [vmem:[%s1 + $0xba0] sm:$0xff]
    %v404 = vld [vmem:[%s1 + $0xba8] sm:$0xff]
    %v405 = vld [vmem:[%s1 + $0xbb0] sm:$0xff]
    %v406 = vld [vmem:[%s1 + $0xbb8] sm:$0xff]
    %v407 = vld [vmem:[%s1 + $0xbc0] sm:$0xff]
    %v408 = vld [vmem:[%s1 + $0xbc8] sm:$0xff]
    %v409 = vld [vmem:[%s1 + $0xbd0] sm:$0xff]
    %v410 = vld [vmem:[%s1 + $0xbd8] sm:$0xff]
    %v411 = vld [vmem:[%s1 + $0xbe0] sm:$0xff]
    %v412 = vld [vmem:[%s1 + $0xbe8] sm:$0xff]
    %v413 = vld [vmem:[%s1 + $0xbf0] sm:$0xff]
    %v414 = vld [vmem:[%s1 + $0xbf8] sm:$0xff]
    %v415 = vld [vmem:[%s1 + $0xc00] sm:$0xff]
    %v416 = vld [vmem:[%s1 + $0xc08] sm:$0xff]
    %v417 = vld [vmem:[%s1 + $0xc10] sm:$0xff]
    %v418 = vld [vmem:[%s1 + $0xc18] sm:$0xff]
    %v419 = vld [vmem:[%s1 + $0xc20] sm:$0xff]
    %v420 = vld [vmem:[%s1 + $0xc28] sm:$0xff]
    %v421 = vld [vmem:[%s1 + $0xc30] sm:$0xff]
    %v422 = vld [vmem:[%s1 + $0xc38] sm:$0xff]
    %v423 = vld [vmem:[%s1 + $0xc40] sm:$0xff]
    %v424 = vld [vmem:[%s1 + $0xc48] sm:$0xff]
    %v425 = vld [vmem:[%s1 + $0xc50] sm:$0xff]
    %v426 = vld [vmem:[%s1 + $0xc58] sm:$0xff]
    %v427 = vld [vmem:[%s1 + $0xc60] sm:$0xff]
    %v428 = vld [vmem:[%s1 + $0xc68] sm:$0xff]
    %v429 = vld [vmem:[%s1 + $0xc70] sm:$0xff]
    %v430 = vld [vmem:[%s1 + $0xc78] sm:$0xff]
    %v431 = vld [vmem:[%s1 + $0xc80] sm:$0xff]
    %v432 = vld [vmem:[%s1 + $0xc88] sm:$0xff]
    %v433 = vld [vmem:[%s1 + $0xc90] sm:$0xff]
    %v434 = vld [vmem:[%s1 + $0xc98] sm:$0xff]
    %v435 = vld [vmem:[%s1 + $0xca0] sm:$0xff]
    %v436 = vld [vmem:[%s1 + $0xca8] sm:$0xff]
    %v437 = vld [vmem:[%s1 + $0xcb0] sm:$0xff]
    %v438 = vld [vmem:[%s1 + $0xcb8] sm:$0xff]
    %v439 = vld [vmem:[%s1 + $0xcc0] sm:$0xff]
    %v440 = vld [vmem:[%s1 + $0xcc8] sm:$0xff]
    %v441 = vld [vmem:[%s1 + $0xcd0] sm:$0xff]
    %v442 = vld [vmem:[%s1 + $0xcd8] sm:$0xff]
    %v443 = vld [vmem:[%s1 + $0xce0] sm:$0xff]
    %v444 = vld [vmem:[%s1 + $0xce8] sm:$0xff]
    %v445 = vld [vmem:[%s1 + $0xcf0] sm:$0xff]
    %v446 = vld [vmem:[%s1 + $0xcf8] sm:$0xff]
    %v447 = vld [vmem:[%s1 + $0xd00] sm:$0xff]
    %v448 = vld [vmem:[%s1 + $0xd08] sm:$0xff]
    %v449 = vld [vmem:[%s1 + $0xd10] sm:$0xff]
    %v450 = vld [vmem:[%s1 + $0xd18] sm:$0xff]
    %v451 = vld [vmem:[%s1 + $0xd20] sm:$0xff]
    %v452 = vld [vmem:[%s1 + $0xd28] sm:$0xff]
    %v453 = vld [vmem:[%s1 + $0xd30] sm:$0xff]
    %v454 = vld [vmem:[%s1 + $0xd38] sm:$0xff]
    %v455 = vld [vmem:[%s1 + $0xd40] sm:$0xff]
    %v456 = vld [vmem:[%s1 + $0xd48] sm:$0xff]
    %v457 = vld [vmem:[%s1 + $0xd50] sm:$0xff]
    %v458 = vld [vmem:[%s1 + $0xd58] sm:$0xff]
    %v459 = vld [vmem:[%s1 + $0xd60] sm:$0xff]
    %v460 = vld [vmem:[%s1 + $0xd68] sm:$0xff]
    %v461 = vld [vmem:[%s1 + $0xd70] sm:$0xff]
    %v462 = vld [vmem:[%s1 + $0xd78] sm:$0xff]
    %v463 = vld [vmem:[%s1 + $0xd80] sm:$0xff]
    %v464 = vld [vmem:[%s1 + $0xd88] sm:$0xff]
    %v465 = vld [vmem:[%s1 + $0xd90] sm:$0xff]
    %v466 = vld [vmem:[%s1 + $0xd98] sm:$0xff]
    %v467 = vld [vmem:[%s1 + $0xda0] sm:$0xff]
    %v468 = vld [vmem:[%s1 + $0xda8] sm:$0xff]
    %v469 = vld [vmem:[%s1 + $0xdb0] sm:$0xff]
    %v470 = vld [vmem:[%s1 + $0xdb8] sm:$0xff]
    %v471 = vld [vmem:[%s1 + $0xdc0] sm:$0xff]
    %v472 = vld [vmem:[%s1 + $0xdc8] sm:$0xff]
    %v473 = vld [vmem:[%s1 + $0xdd0] sm:$0xff]
    %v474 = vld [vmem:[%s1 + $0xdd8] sm:$0xff]
    %v475 = vld [vmem:[%s1 + $0xde0] sm:$0xff]
    %v476 = vld [vmem:[%s1 + $0xde8] sm:$0xff]
    %v477 = vld [vmem:[%s1 + $0xdf0] sm:$0xff]
    %v478 = vld [vmem:[%s1 + $0xdf8] sm:$0xff]
    %v479 = vld [vmem:[%s1 + $0xe00] sm:$0xff]
    %v480 = vld [vmem:[%s1 + $0xe08] sm:$0xff]
    %v481 = vld [vmem:[%s1 + $0xe10] sm:$0xff]
    %v482 = vld [vmem:[%s1 + $0xe18] sm:$0xff]
    %v483 = vld [vmem:[%s1 + $0xe20] sm:$0xff]
    %v484 = vld [vmem:[%s1 + $0xe28] sm:$0xff]
    %v485 = vld [vmem:[%s1 + $0xe30] sm:$0xff]
    %v486 = vld [vmem:[%s1 + $0xe38] sm:$0xff]
    %v487 = vld [vmem:[%s1 + $0xe40] sm:$0xff]
    %v488 = vld [vmem:[%s1 + $0xe48] sm:$0xff]
    %v489 = vld [vmem:[%s1 + $0xe50] sm:$0xff]
    %v490 = vld [vmem:[%s1 + $0xe58] sm:$0xff]
    %v491 = vld [vmem:[%s1 + $0xe60] sm:$0xff]
    %v492 = vld [vmem:[%s1 + $0xe68] sm:$0xff]
    %v493 = vld [vmem:[%s1 + $0xe70] sm:$0xff]
    %v494 = vld [vmem:[%s1 + $0xe78] sm:$0xff]
    %v495 = vld [vmem:[%s1 + $0xe80] sm:$0xff]
    %v496 = vld [vmem:[%s1 + $0xe88] sm:$0xff]
    %v497 = vld [vmem:[%s1 + $0xe90] sm:$0xff]
    %v498 = vld [vmem:[%s1 + $0xe98] sm:$0xff]
    %v499 = vld [vmem:[%s1 + $0xea0] sm:$0xff]
    %v500 = vld [vmem:[%s1 + $0xea8] sm:$0xff]
    %v501 = vld [vmem:[%s1 + $0xeb0] sm:$0xff]
    %v502 = vld [vmem:[%s1 + $0xeb8] sm:$0xff]
    %v503 = vld [vmem:[%s1 + $0xec0] sm:$0xff]
    %v504 = vld [vmem:[%s1 + $0xec8] sm:$0xff]
    %v505 = vld [vmem:[%s1 + $0xed0] sm:$0xff]
    %v506 = vld [vmem:[%s1 + $0xed8] sm:$0xff]
    %v507 = vld [vmem:[%s1 + $0xee0] sm:$0xff]
    %v508 = vld [vmem:[%s1 + $0xee8] sm:$0xff]
    %v509 = vld [vmem:[%s1 + $0xef0] sm:$0xff]
    %v510 = vld [vmem:[%s1 + $0xef8] sm:$0xff]
    %v511 = vld [vmem:[%s1 + $0xf00] sm:$0xff]
    %v512 = vld [vmem:[%s1 + $0xf08] sm:$0xff]
    %v513 = vld [vmem:[%s1 + $0xf10] sm:$0xff]
    %v514 = vld [vmem:[%s1 + $0xf18] sm:$0xff]
    %v515 = vld [vmem:[%s1 + $0xf20] sm:$0xff]
    %v516 = vld [vmem:[%s1 + $0xf28] sm:$0xff]
    %v517 = vld [vmem:[%s1 + $0xf30] sm:$0xff]
    %v518 = vld [vmem:[%s1 + $0xf38] sm:$0xff]
    %v519 = vld [vmem:[%s1 + $0xf40] sm:$0xff]
    %v520 = vld [vmem:[%s1 + $0xf48] sm:$0xff]
    %v521 = vld [vmem:[%s1 + $0xf50] sm:$0xff]
    %v522 = vld [vmem:[%s1 + $0xf58] sm:$0xff]
    %v523 = vld [vmem:[%s1 + $0xf60] sm:$0xff]
    %v524 = vld [vmem:[%s1 + $0xf68] sm:$0xff]
    %v525 = vld [vmem:[%s1 + $0xf70] sm:$0xff]
    %v526 = vld [vmem:[%s1 + $0xf78] sm:$0xff]
    %v527 = vld [vmem:[%s1 + $0xf80] sm:$0xff]
    %v528 = vld [vmem:[%s1 + $0xf88] sm:$0xff]
    %v529 = vld [vmem:[%s1 + $0xf90] sm:$0xff]
    %v530 = vld [vmem:[%s1 + $0xf98] sm:$0xff]
    %v531 = vld [vmem:[%s1 + $0xfa0] sm:$0xff]
    %v532 = vld [vmem:[%s1 + $0xfa8] sm:$0xff]
    %v533 = vld [vmem:[%s1 + $0xfb0] sm:$0xff]
    %v534 = vld [vmem:[%s1 + $0xfb8] sm:$0xff]
    %v535 = vld [vmem:[%s1 + $0xfc0] sm:$0xff]
    %v536 = vld [vmem:[%s1 + $0xfc8] sm:$0xff]
    %v537 = vld [vmem:[%s1 + $0xfd0] sm:$0xff]
    %v538 = vld [vmem:[%s1 + $0xfd8] sm:$0xff]
    %v539 = vld [vmem:[%s1 + $0xfe0] sm:$0xff]
    %v540 = vld [vmem:[%s1 + $0xfe8] sm:$0xff]
    %v541 = vld [vmem:[%s1 + $0xff0] sm:$0xff]
    %v542 = vld [vmem:[%s1 + $0xff8] sm:$0xff]
    %v543 = vld [vmem:[%s1 + $0x1000] sm:$0xff]
    %v544 = vld [vmem:[%s1 + $0x1008] sm:$0xff]
    %v545 = vld [vmem:[%s1 + $0x1010] sm:$0xff]
    %v546 = vld [vmem:[%s1 + $0x1018] sm:$0xff]
    %v547 = vld [vmem:[%s1 + $0x1020] sm:$0xff]
    %v548 = vld [vmem:[%s1 + $0x1028] sm:$0xff]
    %v549 = vld [vmem:[%s1 + $0x1030] sm:$0xff]
    %v550 = vld [vmem:[%s1 + $0x1038] sm:$0xff]
    %v551 = vld [vmem:[%s1 + $0x1040] sm:$0xff]
    %v552 = vld [vmem:[%s1 + $0x1048] sm:$0xff]
    %v553 = vld [vmem:[%s1 + $0x1050] sm:$0xff]
    %v554 = vld [vmem:[%s1 + $0x1058] sm:$0xff]
    %v555 = vld [vmem:[%s1 + $0x1060] sm:$0xff]
    %v556 = vld [vmem:[%s1 + $0x1068] sm:$0xff]
    %v557 = vld [vmem:[%s1 + $0x1070] sm:$0xff]
    %v558 = vld [vmem:[%s1 + $0x1078] sm:$0xff]
    %v559 = vld [vmem:[%s1 + $0x1080] sm:$0xff]
    %v560 = vld [vmem:[%s1 + $0x1088] sm:$0xff]
    %v561 = vld [vmem:[%s1 + $0x1090] sm:$0xff]
    %v562 = vld [vmem:[%s1 + $0x1098] sm:$0xff]
    %v563 = vld [vmem:[%s1 + $0x10a0] sm:$0xff]
    %v564 = vld [vmem:[%s1 + $0x10a8] sm:$0xff]
    %v565 = vld [vmem:[%s1 + $0x10b0] sm:$0xff]
    %v566 = vld [vmem:[%s1 + $0x10b8] sm:$0xff]
    %v567 = vld [vmem:[%s1 + $0x10c0] sm:$0xff]
    %v568 = vld [vmem:[%s1 + $0x10c8] sm:$0xff]
    %v569 = vld [vmem:[%s1 + $0x10d0] sm:$0xff]
    %v570 = vld [vmem:[%s1 + $0x10d8] sm:$0xff]
    %v571 = vld [vmem:[%s1 + $0x10e0] sm:$0xff]
    %v572 = vld [vmem:[%s1 + $0x10e8] sm:$0xff]
    %v573 = vld [vmem:[%s1 + $0x10f0] sm:$0xff]
    %v574 = vld [vmem:[%s1 + $0x10f8] sm:$0xff]
    %v575 = vld [vmem:[%s1 + $0x1100] sm:$0xff]
    %v576 = vld [vmem:[%s1 + $0x1108] sm:$0xff]
    %v577 = vld [vmem:[%s1 + $0x1110] sm:$0xff]
    %v578 = vld [vmem:[%s1 + $0x1118] sm:$0xff]
    %v579 = vld [vmem:[%s1 + $0x1120] sm:$0xff]
    %v580 = vld [vmem:[%s1 + $0x1128] sm:$0xff]
    %v581 = vld [vmem:[%s1 + $0x1130] sm:$0xff]
    %v582 = vld [vmem:[%s1 + $0x1138] sm:$0xff]
    %v583 = vld [vmem:[%s1 + $0x1140] sm:$0xff]
    %v584 = vld [vmem:[%s1 + $0x1148] sm:$0xff]
    %v585 = vld [vmem:[%s1 + $0x1150] sm:$0xff]
    %v586 = vld [vmem:[%s1 + $0x1158] sm:$0xff]
    %v587 = vld [vmem:[%s1 + $0x1160] sm:$0xff]
    %v588 = vld [vmem:[%s1 + $0x1168] sm:$0xff]
    %v589 = vld [vmem:[%s1 + $0x1170] sm:$0xff]
    %v590 = vld [vmem:[%s1 + $0x1178] sm:$0xff]
    %v591 = vld [vmem:[%s1 + $0x1180] sm:$0xff]
    %v592 = vld [vmem:[%s1 + $0x1188] sm:$0xff]
    %v593 = vld [vmem:[%s1 + $0x1190] sm:$0xff]
    %v594 = vld [vmem:[%s1 + $0x1198] sm:$0xff]
    %v595 = vld [vmem:[%s1 + $0x11a0] sm:$0xff]
    %v596 = vld [vmem:[%s1 + $0x11a8] sm:$0xff]
    %v597 = vld [vmem:[%s1 + $0x11b0] sm:$0xff]
    %v598 = vld [vmem:[%s1 + $0x11b8] sm:$0xff]
    %v599 = vld [vmem:[%s1 + $0x11c0] sm:$0xff]
    %v600 = vld [vmem:[%s1 + $0x11c8] sm:$0xff]
    %v601 = vld [vmem:[%s1 + $0x11d0] sm:$0xff]
    %v602 = vld [vmem:[%s1 + $0x11d8] sm:$0xff]
    %v603 = vld [vmem:[%s1 + $0x11e0] sm:$0xff]
    %v604 = vld [vmem:[%s1 + $0x11e8] sm:$0xff]
    %v605 = vld [vmem:[%s1 + $0x11f0] sm:$0xff]
    %v606 = vld [vmem:[%s1 + $0x11f8] sm:$0xff]
    %v607 = vld [vmem:[%s1 + $0x1200] sm:$0xff]
    %v608 = vld [vmem:[%s1 + $0x1208] sm:$0xff]
    %v609 = vld [vmem:[%s1 + $0x1210] sm:$0xff]
    %v610 = vld [vmem:[%s1 + $0x1218] sm:$0xff]
    %v611 = vld [vmem:[%s1 + $0x1220] sm:$0xff]
    %v612 = vld [vmem:[%s1 + $0x1228] sm:$0xff]
    %v613 = vld [vmem:[%s1 + $0x1230] sm:$0xff]
    %v614 = vld [vmem:[%s1 + $0x1238] sm:$0xff]
    %v615 = vld [vmem:[%s1 + $0x1240] sm:$0xff]
    %v616 = vld [vmem:[%s1 + $0x1248] sm:$0xff]
    %v617 = vld [vmem:[%s1 + $0x1250] sm:$0xff]
    %v618 = vld [vmem:[%s1 + $0x1258] sm:$0xff]
    %v619 = vld [vmem:[%s1 + $0x1260] sm:$0xff]
    %v620 = vld [vmem:[%s1 + $0x1268] sm:$0xff]
    %v621 = vld [vmem:[%s1 + $0x1270] sm:$0xff]
    %v622 = vld [vmem:[%s1 + $0x1278] sm:$0xff]
    %v623 = vld [vmem:[%s1 + $0x1280] sm:$0xff]
    %v624 = vld [vmem:[%s1 + $0x1288] sm:$0xff]
    %v625 = vld [vmem:[%s1 + $0x1290] sm:$0xff]
    %v626 = vld [vmem:[%s1 + $0x1298] sm:$0xff]
    %v627 = vld [vmem:[%s1 + $0x12a0] sm:$0xff]
    %v628 = vld [vmem:[%s1 + $0x12a8] sm:$0xff]
    %v629 = vld [vmem:[%s1 + $0x12b0] sm:$0xff]
    %v630 = vld [vmem:[%s1 + $0x12b8] sm:$0xff]
    %v631 = vld [vmem:[%s1 + $0x12c0] sm:$0xff]
    %v632 = vld [vmem:[%s1 + $0x12c8] sm:$0xff]
    %v633 = vld [vmem:[%s1 + $0x12d0] sm:$0xff]
    %v634 = vld [vmem:[%s1 + $0x12d8] sm:$0xff]
    %v635 = vld [vmem:[%s1 + $0x12e0] sm:$0xff]
    %v636 = vld [vmem:[%s1 + $0x12e8] sm:$0xff]
    %v637 = vld [vmem:[%s1 + $0x12f0] sm:$0xff]
    %v638 = vld [vmem:[%s1 + $0x12f8] sm:$0xff]
    %v639 = vld [vmem:[%s1 + $0x1300] sm:$0xff]
    %v640 = vld [vmem:[%s1 + $0x1308] sm:$0xff]
    %v641 = vld [vmem:[%s1 + $0x1310] sm:$0xff]
    %v642 = vld [vmem:[%s1 + $0x1318] sm:$0xff]
    %v643 = vld [vmem:[%s1 + $0x1320] sm:$0xff]
    %v644 = vld [vmem:[%s1 + $0x1328] sm:$0xff]
    %v645 = vld [vmem:[%s1 + $0x1330] sm:$0xff]
    %v646 = vld [vmem:[%s1 + $0x1338] sm:$0xff]
    %v647 = vld [vmem:[%s1 + $0x1340] sm:$0xff]
    %v648 = vld [vmem:[%s1 + $0x1348] sm:$0xff]
    %v649 = vld [vmem:[%s1 + $0x1350] sm:$0xff]
    %v650 = vld [vmem:[%s1 + $0x1358] sm:$0xff]
    %v651 = vld [vmem:[%s1 + $0x1360] sm:$0xff]
    %v652 = vld [vmem:[%s1 + $0x1368] sm:$0xff]
    %v653 = vld [vmem:[%s1 + $0x1370] sm:$0xff]
    %v654 = vld [vmem:[%s1 + $0x1378] sm:$0xff]
    %v655 = vld [vmem:[%s1 + $0x1380] sm:$0xff]
    %v656 = vld [vmem:[%s1 + $0x1388] sm:$0xff]
    %v657 = vld [vmem:[%s1 + $0x1390] sm:$0xff]
    %v658 = vld [vmem:[%s1 + $0x1398] sm:$0xff]
    %v659 = vld [vmem:[%s1 + $0x13a0] sm:$0xff]
    %v660 = vld [vmem:[%s1 + $0x13a8] sm:$0xff]
    %v661 = vld [vmem:[%s1 + $0x13b0] sm:$0xff]
    %v662 = vld [vmem:[%s1 + $0x13b8] sm:$0xff]
    %v663 = vld [vmem:[%s1 + $0x13c0] sm:$0xff]
    %v664 = vld [vmem:[%s1 + $0x13c8] sm:$0xff]
    %v665 = vld [vmem:[%s1 + $0x13d0] sm:$0xff]
    %v666 = vld [vmem:[%s1 + $0x13d8] sm:$0xff]
    %v667 = vld [vmem:[%s1 + $0x13e0] sm:$0xff]
    %v668 = vld [vmem:[%s1 + $0x13e8] sm:$0xff]
    %v669 = vld [vmem:[%s1 + $0x13f0] sm:$0xff]
    %v670 = vld [vmem:[%s1 + $0x13f8] sm:$0xff]
    %v671 = vld [vmem:[%s1 + $0x1400] sm:$0xff]
    %v672 = vld [vmem:[%s1 + $0x1408] sm:$0xff]
    %v673 = vld [vmem:[%s1 + $0x1410] sm:$0xff]
    %v674 = vld [vmem:[%s1 + $0x1418] sm:$0xff]
    %v675 = vld [vmem:[%s1 + $0x1420] sm:$0xff]
    %v676 = vld [vmem:[%s1 + $0x1428] sm:$0xff]
    %v677 = vld [vmem:[%s1 + $0x1430] sm:$0xff]
    %v678 = vld [vmem:[%s1 + $0x1438] sm:$0xff]
    %v679 = vld [vmem:[%s1 + $0x1440] sm:$0xff]
    %v680 = vld [vmem:[%s1 + $0x1448] sm:$0xff]
    %v681 = vld [vmem:[%s1 + $0x1450] sm:$0xff]
    %v682 = vld [vmem:[%s1 + $0x1458] sm:$0xff]
    %v683 = vld [vmem:[%s1 + $0x1460] sm:$0xff]
    %v684 = vld [vmem:[%s1 + $0x1468] sm:$0xff]
    %v685 = vld [vmem:[%s1 + $0x1470] sm:$0xff]
    %v686 = vld [vmem:[%s1 + $0x1478] sm:$0xff]
    %v687 = vld [vmem:[%s1 + $0x1480] sm:$0xff]
    %v688 = vld [vmem:[%s1 + $0x1488] sm:$0xff]
    %v689 = vld [vmem:[%s1 + $0x1490] sm:$0xff]
    %v690 = vld [vmem:[%s1 + $0x1498] sm:$0xff]
    %v691 = vld [vmem:[%s1 + $0x14a0] sm:$0xff]
    %v692 = vld [vmem:[%s1 + $0x14a8] sm:$0xff]
    %v693 = vld [vmem:[%s1 + $0x14b0] sm:$0xff]
    %v694 = vld [vmem:[%s1 + $0x14b8] sm:$0xff]
    %v695 = vld [vmem:[%s1 + $0x14c0] sm:$0xff]
    %v696 = vld [vmem:[%s1 + $0x14c8] sm:$0xff]
    %v697 = vld [vmem:[%s1 + $0x14d0] sm:$0xff]
    %v698 = vld [vmem:[%s1 + $0x14d8] sm:$0xff]
    %v699 = vld [vmem:[%s1 + $0x14e0] sm:$0xff]
    %v700 = vld [vmem:[%s1 + $0x14e8] sm:$0xff]
    %v701 = vld [vmem:[%s1 + $0x14f0] sm:$0xff]
    %v702 = vld [vmem:[%s1 + $0x14f8] sm:$0xff]
    %v703 = vld [vmem:[%s1 + $0x1500] sm:$0xff]
    %v704 = vld [vmem:[%s1 + $0x1508] sm:$0xff]
    %v705 = vld [vmem:[%s1 + $0x1510] sm:$0xff]
    %v706 = vld [vmem:[%s1 + $0x1518] sm:$0xff]
    %v707 = vld [vmem:[%s1 + $0x1520] sm:$0xff]
    %v708 = vld [vmem:[%s1 + $0x1528] sm:$0xff]
    %v709 = vld [vmem:[%s1 + $0x1530] sm:$0xff]
    %v710 = vld [vmem:[%s1 + $0x1538] sm:$0xff]
    %v711 = vld [vmem:[%s1 + $0x1540] sm:$0xff]
    %v712 = vld [vmem:[%s1 + $0x1548] sm:$0xff]
    %v713 = vld [vmem:[%s1 + $0x1550] sm:$0xff]
    %v714 = vld [vmem:[%s1 + $0x1558] sm:$0xff]
    %v715 = vld [vmem:[%s1 + $0x1560] sm:$0xff]
    %v716 = vld [vmem:[%s1 + $0x1568] sm:$0xff]
    %v717 = vld [vmem:[%s1 + $0x1570] sm:$0xff]
    %v718 = vld [vmem:[%s1 + $0x1578] sm:$0xff]
    %v719 = vld [vmem:[%s1 + $0x1580] sm:$0xff]
    %v720 = vld [vmem:[%s1 + $0x1588] sm:$0xff]
    %v721 = vld [vmem:[%s1 + $0x1590] sm:$0xff]
    %v722 = vld [vmem:[%s1 + $0x1598] sm:$0xff]
    %v723 = vld [vmem:[%s1 + $0x15a0] sm:$0xff]
    %v724 = vld [vmem:[%s1 + $0x15a8] sm:$0xff]
    %v725 = vld [vmem:[%s1 + $0x15b0] sm:$0xff]
    %v726 = vld [vmem:[%s1 + $0x15b8] sm:$0xff]
    %v727 = vld [vmem:[%s1 + $0x15c0] sm:$0xff]
    %v728 = vld [vmem:[%s1 + $0x15c8] sm:$0xff]
    %v729 = vld [vmem:[%s1 + $0x15d0] sm:$0xff]
    %v730 = vld [vmem:[%s1 + $0x15d8] sm:$0xff]
    %v731 = vld [vmem:[%s1 + $0x15e0] sm:$0xff]
    %v732 = vld [vmem:[%s1 + $0x15e8] sm:$0xff]
    %v733 = vld [vmem:[%s1 + $0x15f0] sm:$0xff]
    %v734 = vld [vmem:[%s1 + $0x15f8] sm:$0xff]
    %v735 = vld [vmem:[%s1 + $0x1600] sm:$0xff]
    %v736 = vld [vmem:[%s1 + $0x1608] sm:$0xff]
    %v737 = vld [vmem:[%s1 + $0x1610] sm:$0xff]
    %v738 = vld [vmem:[%s1 + $0x1618] sm:$0xff]
    %v739 = vld [vmem:[%s1 + $0x1620] sm:$0xff]
    %v740 = vld [vmem:[%s1 + $0x1628] sm:$0xff]
    %v741 = vld [vmem:[%s1 + $0x1630] sm:$0xff]
    %v742 = vld [vmem:[%s1 + $0x1638] sm:$0xff]
    %v743 = vld [vmem:[%s1 + $0x1640] sm:$0xff]
    %v744 = vld [vmem:[%s1 + $0x1648] sm:$0xff]
    %v745 = vld [vmem:[%s1 + $0x1650] sm:$0xff]
    %v746 = vld [vmem:[%s1 + $0x1658] sm:$0xff]
    %v747 = vld [vmem:[%s1 + $0x1660] sm:$0xff]
    %v748 = vld [vmem:[%s1 + $0x1668] sm:$0xff]
    %v749 = vld [vmem:[%s1 + $0x1670] sm:$0xff]
    %v750 = vld [vmem:[%s1 + $0x1678] sm:$0xff]
    %v751 = vld [vmem:[%s1 + $0x1680] sm:$0xff]
    %v752 = vld [vmem:[%s1 + $0x1688] sm:$0xff]
    %v753 = vld [vmem:[%s1 + $0x1690] sm:$0xff]
    %v754 = vld [vmem:[%s1 + $0x1698] sm:$0xff]
    %v755 = vld [vmem:[%s1 + $0x16a0] sm:$0xff]
    %v756 = vld [vmem:[%s1 + $0x16a8] sm:$0xff]
    %v757 = vld [vmem:[%s1 + $0x16b0] sm:$0xff]
    %v758 = vld [vmem:[%s1 + $0x16b8] sm:$0xff]
    %v759 = vld [vmem:[%s1 + $0x16c0] sm:$0xff]
    %v760 = vld [vmem:[%s1 + $0x16c8] sm:$0xff]
    %v761 = vld [vmem:[%s1 + $0x16d0] sm:$0xff]
    %v762 = vld [vmem:[%s1 + $0x16d8] sm:$0xff]
    %v763 = vld [vmem:[%s1 + $0x16e0] sm:$0xff]
    %v764 = vld [vmem:[%s1 + $0x16e8] sm:$0xff]
    %v765 = vld [vmem:[%s1 + $0x16f0] sm:$0xff]
    %v766 = vld [vmem:[%s1 + $0x16f8] sm:$0xff]
    %v767 = vld [vmem:[%s1 + $0x1700] sm:$0xff]
    %v768 = vld [vmem:[%s1 + $0x1708] sm:$0xff]
    %v769 = vld [vmem:[%s1 + $0x1710] sm:$0xff]
    %v770 = vld [vmem:[%s1 + $0x1718] sm:$0xff]
    %v771 = vld [vmem:[%s1 + $0x1720] sm:$0xff]
    %v772 = vld [vmem:[%s1 + $0x1728] sm:$0xff]
    %v773 = vld [vmem:[%s1 + $0x1730] sm:$0xff]
    %v774 = vld [vmem:[%s1 + $0x1738] sm:$0xff]
    %v775 = vld [vmem:[%s1 + $0x1740] sm:$0xff]
    %v776 = vld [vmem:[%s1 + $0x1748] sm:$0xff]
    %v777 = vld [vmem:[%s1 + $0x1750] sm:$0xff]
    %v778 = vld [vmem:[%s1 + $0x1758] sm:$0xff]
    %v779 = vld [vmem:[%s1 + $0x1760] sm:$0xff]
    %v780 = vld [vmem:[%s1 + $0x1768] sm:$0xff]
    %v781 = vld [vmem:[%s1 + $0x1770] sm:$0xff]
    %v782 = vld [vmem:[%s1 + $0x1778] sm:$0xff]
    %v783 = vld [vmem:[%s1 + $0x1780] sm:$0xff]
    %v784 = vld [vmem:[%s1 + $0x1788] sm:$0xff]
    %v785 = vld [vmem:[%s1 + $0x1790] sm:$0xff]
    %v786 = vld [vmem:[%s1 + $0x1798] sm:$0xff]
    %v787 = vld [vmem:[%s1 + $0x17a0] sm:$0xff]
    %v788 = vld [vmem:[%s1 + $0x17a8] sm:$0xff]
    %v789 = vld [vmem:[%s1 + $0x17b0] sm:$0xff]
    %v790 = vld [vmem:[%s1 + $0x17b8] sm:$0xff]
    %v791 = vld [vmem:[%s1 + $0x17c0] sm:$0xff]
    %v792 = vld [vmem:[%s1 + $0x17c8] sm:$0xff]
    %v793 = vld [vmem:[%s1 + $0x17d0] sm:$0xff]
    %v794 = vld [vmem:[%s1 + $0x17d8] sm:$0xff]
    %v795 = vld [vmem:[%s1 + $0x17e0] sm:$0xff]
    %v796 = vld [vmem:[%s1 + $0x17e8] sm:$0xff]
    %v797 = vld [vmem:[%s1 + $0x17f0] sm:$0xff]
    %v798 = vld [vmem:[%s1 + $0x17f8] sm:$0xff]
    %v799 = vld [vmem:[%s1 + $0x1800] sm:$0xff]
    %v800 = vld [vmem:[%s1 + $0x1808] sm:$0xff]
    %v801 = vld [vmem:[%s1 + $0x1810] sm:$0xff]
    %v802 = vld [vmem:[%s1 + $0x1818] sm:$0xff]
    %v803 = vld [vmem:[%s1 + $0x1820] sm:$0xff]
    %v804 = vld [vmem:[%s1 + $0x1828] sm:$0xff]
    %v805 = vld [vmem:[%s1 + $0x1830] sm:$0xff]
    %v806 = vld [vmem:[%s1 + $0x1838] sm:$0xff]
    %v807 = vld [vmem:[%s1 + $0x1840] sm:$0xff]
    %v808 = vld [vmem:[%s1 + $0x1848] sm:$0xff]
    %v809 = vld [vmem:[%s1 + $0x1850] sm:$0xff]
    %v810 = vld [vmem:[%s1 + $0x1858] sm:$0xff]
    %v811 = vld [vmem:[%s1 + $0x1860] sm:$0xff]
    %v812 = vld [vmem:[%s1 + $0x1868] sm:$0xff]
    %v813 = vld [vmem:[%s1 + $0x1870] sm:$0xff]
    %v814 = vld [vmem:[%s1 + $0x1878] sm:$0xff]
    %v815 = vld [vmem:[%s1 + $0x1880] sm:$0xff]
    %v816 = vld [vmem:[%s1 + $0x1888] sm:$0xff]
    %v817 = vld [vmem:[%s1 + $0x1890] sm:$0xff]
    %v818 = vld [vmem:[%s1 + $0x1898] sm:$0xff]
    %v819 = vld [vmem:[%s1 + $0x18a0] sm:$0xff]
    %v820 = vld [vmem:[%s1 + $0x18a8] sm:$0xff]
    %v821 = vld [vmem:[%s1 + $0x18b0] sm:$0xff]
    %v822 = vld [vmem:[%s1 + $0x18b8] sm:$0xff]
    %v823 = vld [vmem:[%s1 + $0x18c0] sm:$0xff]
    %v824 = vld [vmem:[%s1 + $0x18c8] sm:$0xff]
    %v825 = vld [vmem:[%s1 + $0x18d0] sm:$0xff]
    %v826 = vld [vmem:[%s1 + $0x18d8] sm:$0xff]
    %v827 = vld [vmem:[%s1 + $0x18e0] sm:$0xff]
    %v828 = vld [vmem:[%s1 + $0x18e8] sm:$0xff]
    %v829 = vld [vmem:[%s1 + $0x18f0] sm:$0xff]
    %v830 = vld [vmem:[%s1 + $0x18f8] sm:$0xff]
    %v831 = vld [vmem:[%s1 + $0x1900] sm:$0xff]
    %v832 = vld [vmem:[%s1 + $0x1908] sm:$0xff]
    %v833 = vld [vmem:[%s1 + $0x1910] sm:$0xff]
    %v834 = vld [vmem:[%s1 + $0x1918] sm:$0xff]
    %v835 = vld [vmem:[%s1 + $0x1920] sm:$0xff]
    %v836 = vld [vmem:[%s1 + $0x1928] sm:$0xff]
    %v837 = vld [vmem:[%s1 + $0x1930] sm:$0xff]
    %v838 = vld [vmem:[%s1 + $0x1938] sm:$0xff]
    %v839 = vld [vmem:[%s1 + $0x1940] sm:$0xff]
    %v840 = vld [vmem:[%s1 + $0x1948] sm:$0xff]
    %v841 = vld [vmem:[%s1 + $0x1950] sm:$0xff]
    %v842 = vld [vmem:[%s1 + $0x1958] sm:$0xff]
    %v843 = vld [vmem:[%s1 + $0x1960] sm:$0xff]
    %v844 = vld [vmem:[%s1 + $0x1968] sm:$0xff]
    %v845 = vld [vmem:[%s1 + $0x1970] sm:$0xff]
    %v846 = vld [vmem:[%s1 + $0x1978] sm:$0xff]
    %v847 = vld [vmem:[%s1 + $0x1980] sm:$0xff]
    %v848 = vld [vmem:[%s1 + $0x1988] sm:$0xff]
    %v849 = vld [vmem:[%s1 + $0x1990] sm:$0xff]
    %v850 = vld [vmem:[%s1 + $0x1998] sm:$0xff]
    %v851 = vld [vmem:[%s1 + $0x19a0] sm:$0xff]
    %v852 = vld [vmem:[%s1 + $0x19a8] sm:$0xff]
    %v853 = vld [vmem:[%s1 + $0x19b0] sm:$0xff]
    %v854 = vld [vmem:[%s1 + $0x19b8] sm:$0xff]
    %v855 = vld [vmem:[%s1 + $0x19c0] sm:$0xff]
    %v856 = vld [vmem:[%s1 + $0x19c8] sm:$0xff]
    %v857 = vld [vmem:[%s1 + $0x19d0] sm:$0xff]
    %v858 = vld [vmem:[%s1 + $0x19d8] sm:$0xff]
    %v859 = vld [vmem:[%s1 + $0x19e0] sm:$0xff]
    %v860 = vld [vmem:[%s1 + $0x19e8] sm:$0xff]
    %v861 = vld [vmem:[%s1 + $0x19f0] sm:$0xff]
    %v862 = vld [vmem:[%s1 + $0x19f8] sm:$0xff]
    %v863 = vld [vmem:[%s1 + $0x1a00] sm:$0xff]
    %v864 = vld [vmem:[%s1 + $0x1a08] sm:$0xff]
    %v865 = vld [vmem:[%s1 + $0x1a10] sm:$0xff]
    %v866 = vld [vmem:[%s1 + $0x1a18] sm:$0xff]
    %v867 = vld [vmem:[%s1 + $0x1a20] sm:$0xff]
    %v868 = vld [vmem:[%s1 + $0x1a28] sm:$0xff]
    %v869 = vld [vmem:[%s1 + $0x1a30] sm:$0xff]
    %v870 = vld [vmem:[%s1 + $0x1a38] sm:$0xff]
    %v871 = vld [vmem:[%s1 + $0x1a40] sm:$0xff]
    %v872 = vld [vmem:[%s1 + $0x1a48] sm:$0xff]
    %v873 = vld [vmem:[%s1 + $0x1a50] sm:$0xff]
    %v874 = vld [vmem:[%s1 + $0x1a58] sm:$0xff]
    %v875 = vld [vmem:[%s1 + $0x1a60] sm:$0xff]
    %v876 = vld [vmem:[%s1 + $0x1a68] sm:$0xff]
    %v877 = vld [vmem:[%s1 + $0x1a70] sm:$0xff]
    %v878 = vld [vmem:[%s1 + $0x1a78] sm:$0xff]
    %v879 = vld [vmem:[%s1 + $0x1a80] sm:$0xff]
    %v880 = vld [vmem:[%s1 + $0x1a88] sm:$0xff]
    %v881 = vld [vmem:[%s1 + $0x1a90] sm:$0xff]
    %v882 = vld [vmem:[%s1 + $0x1a98] sm:$0xff]
    %v883 = vld [vmem:[%s1 + $0x1aa0] sm:$0xff]
    %v884 = vld [vmem:[%s1 + $0x1aa8] sm:$0xff]
    %v885 = vld [vmem:[%s1 + $0x1ab0] sm:$0xff]
    %v886 = vld [vmem:[%s1 + $0x1ab8] sm:$0xff]
    %v887 = vld [vmem:[%s1 + $0x1ac0] sm:$0xff]
    %v888 = vld [vmem:[%s1 + $0x1ac8] sm:$0xff]
    %v889 = vld [vmem:[%s1 + $0x1ad0] sm:$0xff]
    %v890 = vld [vmem:[%s1 + $0x1ad8] sm:$0xff]
    %v891 = vld [vmem:[%s1 + $0x1ae0] sm:$0xff]
    %v892 = vld [vmem:[%s1 + $0x1ae8] sm:$0xff]
    %v893 = vld [vmem:[%s1 + $0x1af0] sm:$0xff]
    %v894 = vld [vmem:[%s1 + $0x1af8] sm:$0xff]
    %v895 = vld [vmem:[%s1 + $0x1b00] sm:$0xff]
    %v896 = vld [vmem:[%s1 + $0x1b08] sm:$0xff]
    %v897 = vld [vmem:[%s1 + $0x1b10] sm:$0xff]
    %v898 = vld [vmem:[%s1 + $0x1b18] sm:$0xff]
    %v899 = vld [vmem:[%s1 + $0x1b20] sm:$0xff]
    %v900 = vld [vmem:[%s1 + $0x1b28] sm:$0xff]
    %v901 = vld [vmem:[%s1 + $0x1b30] sm:$0xff]
    %v902 = vld [vmem:[%s1 + $0x1b38] sm:$0xff]
    %v903 = vld [vmem:[%s1 + $0x1b40] sm:$0xff]
    %v904 = vld [vmem:[%s1 + $0x1b48] sm:$0xff]
    %v905 = vld [vmem:[%s1 + $0x1b50] sm:$0xff]
    %v906 = vld [vmem:[%s1 + $0x1b58] sm:$0xff]
    %v907 = vld [vmem:[%s1 + $0x1b60] sm:$0xff]
    %v908 = vld [vmem:[%s1 + $0x1b68] sm:$0xff]
    %v909 = vld [vmem:[%s1 + $0x1b70] sm:$0xff]
    %v910 = vld [vmem:[%s1 + $0x1b78] sm:$0xff]
    %v911 = vld [vmem:[%s1 + $0x1b80] sm:$0xff]
    %v912 = vld [vmem:[%s1 + $0x1b88] sm:$0xff]
    %v913 = vld [vmem:[%s1 + $0x1b90] sm:$0xff]
    %v914 = vld [vmem:[%s1 + $0x1b98] sm:$0xff]
    %v915 = vld [vmem:[%s1 + $0x1ba0] sm:$0xff]
    %v916 = vld [vmem:[%s1 + $0x1ba8] sm:$0xff]
    %v917 = vld [vmem:[%s1 + $0x1bb0] sm:$0xff]
    %v918 = vld [vmem:[%s1 + $0x1bb8] sm:$0xff]
    %v919 = vld [vmem:[%s1 + $0x1bc0] sm:$0xff]
    %v920 = vld [vmem:[%s1 + $0x1bc8] sm:$0xff]
    %v921 = vld [vmem:[%s1 + $0x1bd0] sm:$0xff]
    %v922 = vld [vmem:[%s1 + $0x1bd8] sm:$0xff]
    %v923 = vld [vmem:[%s1 + $0x1be0] sm:$0xff]
    %v924 = vld [vmem:[%s1 + $0x1be8] sm:$0xff]
    %v925 = vld [vmem:[%s1 + $0x1bf0] sm:$0xff]
    %v926 = vld [vmem:[%s1 + $0x1bf8] sm:$0xff]
    %v927 = vld [vmem:[%s1 + $0x1c00] sm:$0xff]
    %v928 = vld [vmem:[%s1 + $0x1c08] sm:$0xff]
    %v929 = vld [vmem:[%s1 + $0x1c10] sm:$0xff]
    %v930 = vld [vmem:[%s1 + $0x1c18] sm:$0xff]
    %v931 = vld [vmem:[%s1 + $0x1c20] sm:$0xff]
    %v932 = vld [vmem:[%s1 + $0x1c28] sm:$0xff]
    %v933 = vld [vmem:[%s1 + $0x1c30] sm:$0xff]
    %v934 = vld [vmem:[%s1 + $0x1c38] sm:$0xff]
    %v935 = vld [vmem:[%s1 + $0x1c40] sm:$0xff]
    %v936 = vld [vmem:[%s1 + $0x1c48] sm:$0xff]
    %v937 = vld [vmem:[%s1 + $0x1c50] sm:$0xff]
    %v938 = vld [vmem:[%s1 + $0x1c58] sm:$0xff]
    %v939 = vld [vmem:[%s1 + $0x1c60] sm:$0xff]
    %v940 = vld [vmem:[%s1 + $0x1c68] sm:$0xff]
    %v941 = vld [vmem:[%s1 + $0x1c70] sm:$0xff]
    %v942 = vld [vmem:[%s1 + $0x1c78] sm:$0xff]
    %v943 = vld [vmem:[%s1 + $0x1c80] sm:$0xff]
    %v944 = vld [vmem:[%s1 + $0x1c88] sm:$0xff]
    %v945 = vld [vmem:[%s1 + $0x1c90] sm:$0xff]
    %v946 = vld [vmem:[%s1 + $0x1c98] sm:$0xff]
    %v947 = vld [vmem:[%s1 + $0x1ca0] sm:$0xff]
    %v948 = vld [vmem:[%s1 + $0x1ca8] sm:$0xff]
    %v949 = vld [vmem:[%s1 + $0x1cb0] sm:$0xff]
    %v950 = vld [vmem:[%s1 + $0x1cb8] sm:$0xff]
    %v951 = vld [vmem:[%s1 + $0x1cc0] sm:$0xff]
    %v952 = vld [vmem:[%s1 + $0x1cc8] sm:$0xff]
    %v953 = vld [vmem:[%s1 + $0x1cd0] sm:$0xff]
    %v954 = vld [vmem:[%s1 + $0x1cd8] sm:$0xff]
    %v955 = vld [vmem:[%s1 + $0x1ce0] sm:$0xff]
    %v956 = vld [vmem:[%s1 + $0x1ce8] sm:$0xff]
    %v957 = vld [vmem:[%s1 + $0x1cf0] sm:$0xff]
    %v958 = vld [vmem:[%s1 + $0x1cf8] sm:$0xff]
    %v959 = vld [vmem:[%s1 + $0x1d00] sm:$0xff]
    %v960 = vld [vmem:[%s1 + $0x1d08] sm:$0xff]
    %v961 = vld [vmem:[%s1 + $0x1d10] sm:$0xff]
    %v962 = vld [vmem:[%s1 + $0x1d18] sm:$0xff]
    %v963 = vld [vmem:[%s1 + $0x1d20] sm:$0xff]
    %v964 = vld [vmem:[%s1 + $0x1d28] sm:$0xff]
    %v965 = vld [vmem:[%s1 + $0x1d30] sm:$0xff]
    %v966 = vld [vmem:[%s1 + $0x1d38] sm:$0xff]
    %v967 = vld [vmem:[%s1 + $0x1d40] sm:$0xff]
    %v968 = vld [vmem:[%s1 + $0x1d48] sm:$0xff]
    %v969 = vld [vmem:[%s1 + $0x1d50] sm:$0xff]
    %v970 = vld [vmem:[%s1 + $0x1d58] sm:$0xff]
    %v971 = vld [vmem:[%s1 + $0x1d60] sm:$0xff]
    %v972 = vld [vmem:[%s1 + $0x1d68] sm:$0xff]
    %v973 = vld [vmem:[%s1 + $0x1d70] sm:$0xff]
    %v974 = vld [vmem:[%s1 + $0x1d78] sm:$0xff]
    %v975 = vld [vmem:[%s1 + $0x1d80] sm:$0xff]
    %v976 = vld [vmem:[%s1 + $0x1d88] sm:$0xff]
    %v977 = vld [vmem:[%s1 + $0x1d90] sm:$0xff]
    %v978 = vld [vmem:[%s1 + $0x1d98] sm:$0xff]
    %v979 = vld [vmem:[%s1 + $0x1da0] sm:$0xff]
    %v980 = vld [vmem:[%s1 + $0x1da8] sm:$0xff]
    %v981 = vld [vmem:[%s1 + $0x1db0] sm:$0xff]
    %v982 = vld [vmem:[%s1 + $0x1db8] sm:$0xff]
    %v983 = vld [vmem:[%s1 + $0x1dc0] sm:$0xff]
    %v984 = vld [vmem:[%s1 + $0x1dc8] sm:$0xff]
    %v985 = vld [vmem:[%s1 + $0x1dd0] sm:$0xff]
    %v986 = vld [vmem:[%s1 + $0x1dd8] sm:$0xff]
    %v987 = vld [vmem:[%s1 + $0x1de0] sm:$0xff]
    %v988 = vld [vmem:[%s1 + $0x1de8] sm:$0xff]
    %v989 = vld [vmem:[%s1 + $0x1df0] sm:$0xff]
    %v990 = vld [vmem:[%s1 + $0x1df8] sm:$0xff]
    %v991 = vld [vmem:[%s1 + $0x1e00] sm:$0xff]
    %v992 = vld [vmem:[%s1 + $0x1e08] sm:$0xff]
    %v993 = vld [vmem:[%s1 + $0x1e10] sm:$0xff]
    %v994 = vld [vmem:[%s1 + $0x1e18] sm:$0xff]
    %v995 = vld [vmem:[%s1 + $0x1e20] sm:$0xff]
    %v996 = vld [vmem:[%s1 + $0x1e28] sm:$0xff]
    %v997 = vld [vmem:[%s1 + $0x1e30] sm:$0xff]
    %v998 = vld [vmem:[%s1 + $0x1e38] sm:$0xff]
    %v999 = vld [vmem:[%s1 + $0x1e40] sm:$0xff]
    %v1000 = vld [vmem:[%s1 + $0x1e48] sm:$0xff]
    %v1001 = vld [vmem:[%s1 + $0x1e50] sm:$0xff]
    %v1002 = vld [vmem:[%s1 + $0x1e58] sm:$0xff]
    %v1003 = vld [vmem:[%s1 + $0x1e60] sm:$0xff]
    %v1004 = vld [vmem:[%s1 + $0x1e68] sm:$0xff]
    %v1005 = vld [vmem:[%s1 + $0x1e70] sm:$0xff]
    %v1006 = vld [vmem:[%s1 + $0x1e78] sm:$0xff]
    %v1007 = vld [vmem:[%s1 + $0x1e80] sm:$0xff]
    %v1008 = vld [vmem:[%s1 + $0x1e88] sm:$0xff]
    %v1009 = vld [vmem:[%s1 + $0x1e90] sm:$0xff]
    %v1010 = vld [vmem:[%s1 + $0x1e98] sm:$0xff]
    %v1011 = vld [vmem:[%s1 + $0x1ea0] sm:$0xff]
    %v1012 = vld [vmem:[%s1 + $0x1ea8] sm:$0xff]
    %v1013 = vld [vmem:[%s1 + $0x1eb0] sm:$0xff]
    %v1014 = vld [vmem:[%s1 + $0x1eb8] sm:$0xff]
    %v1015 = vld [vmem:[%s1 + $0x1ec0] sm:$0xff]
    %v1016 = vld [vmem:[%s1 + $0x1ec8] sm:$0xff]
    %v1017 = vld [vmem:[%s1 + $0x1ed0] sm:$0xff]
    %v1018 = vld [vmem:[%s1 + $0x1ed8] sm:$0xff]
    %v1019 = vld [vmem:[%s1 + $0x1ee0] sm:$0xff]
    %v1020 = vld [vmem:[%s1 + $0x1ee8] sm:$0xff]
    %v1021 = vld [vmem:[%s1 + $0x1ef0] sm:$0xff]
    %v1022 = vld [vmem:[%s1 + $0x1ef8] sm:$0xff]
    %v1023 = vld [vmem:[%s1 + $0x1f00] sm:$0xff]
    %v1024 = vld [vmem:[%s1 + $0x1f08] sm:$0xff]
    %v1025 = vld [vmem:[%s1 + $0x1f10] sm:$0xff]
    %v1026 = vld [vmem:[%s1 + $0x1f18] sm:$0xff]
    %v1027 = vld [vmem:[%s1 + $0x1f20] sm:$0xff]
    %v1028 = vld [vmem:[%s1 + $0x1f28] sm:$0xff]
    %v1029 = vld [vmem:[%s1 + $0x1f30] sm:$0xff]
    %v1030 = vld [vmem:[%s1 + $0x1f38] sm:$0xff]
    %v1031 = vld [vmem:[%s1 + $0x1f40] sm:$0xff]
    %v1032 = vld [vmem:[%s1 + $0x1f48] sm:$0xff]
    %v1033 = vld [vmem:[%s1 + $0x1f50] sm:$0xff]
    %v1034 = vld [vmem:[%s1 + $0x1f58] sm:$0xff]
    %v1035 = vld [vmem:[%s1 + $0x1f60] sm:$0xff]
    %v1036 = vld [vmem:[%s1 + $0x1f68] sm:$0xff]
    %v1037 = vld [vmem:[%s1 + $0x1f70] sm:$0xff]
    %v1038 = vld [vmem:[%s1 + $0x1f78] sm:$0xff]
    %v1039 = vld [vmem:[%s1 + $0x1f80] sm:$0xff]
    %v1040 = vld [vmem:[%s1 + $0x1f88] sm:$0xff]
    %v1041 = vld [vmem:[%s1 + $0x1f90] sm:$0xff]
    %v1042 = vld [vmem:[%s1 + $0x1f98] sm:$0xff]
    %v1043 = vld [vmem:[%s1 + $0x1fa0] sm:$0xff]
    %v1044 = vld [vmem:[%s1 + $0x1fa8] sm:$0xff]
    %v1045 = vld [vmem:[%s1 + $0x1fb0] sm:$0xff]
    %v1046 = vld [vmem:[%s1 + $0x1fb8] sm:$0xff]
    %v1047 = vld [vmem:[%s1 + $0x1fc0] sm:$0xff]
    %v1048 = vld [vmem:[%s1 + $0x1fc8] sm:$0xff]
    %v1049 = vld [vmem:[%s1 + $0x1fd0] sm:$0xff]
    %v1050 = vld [vmem:[%s1 + $0x1fd8] sm:$0xff]
    %v1051 = vld [vmem:[%s1 + $0x1fe0] sm:$0xff]
    %v1052 = vld [vmem:[%s1 + $0x1fe8] sm:$0xff]
    %v1053 = vld [vmem:[%s1 + $0x1ff0] sm:$0xff]
    %v1054 = vld [vmem:[%s1 + $0x1ff8] sm:$0xff]
    %v1055 = vld [vmem:[%s1 + $0x2000] sm:$0xff]
    %v1056 = vld [vmem:[%s1 + $0x2008] sm:$0xff]
    %v1057 = vld [vmem:[%s1 + $0x2010] sm:$0xff]
    %v1058 = vld [vmem:[%s1 + $0x2018] sm:$0xff]
    %v1059 = vld [vmem:[%s1 + $0x2020] sm:$0xff]
    %v1060 = vld [vmem:[%s1 + $0x2028] sm:$0xff]
    %v1061 = vld [vmem:[%s1 + $0x2030] sm:$0xff]
    %v1062 = vld [vmem:[%s1 + $0x2038] sm:$0xff]
    %v1063 = vld [vmem:[%s1 + $0x2040] sm:$0xff]
    %v1064 = vld [vmem:[%s1 + $0x2048] sm:$0xff]
    %v1065 = vld [vmem:[%s1 + $0x2050] sm:$0xff]
    %v1066 = vld [vmem:[%s1 + $0x2058] sm:$0xff]
    %v1067 = vld [vmem:[%s1 + $0x2060] sm:$0xff]
    %v1068 = vld [vmem:[%s1 + $0x2068] sm:$0xff]
    %v1069 = vld [vmem:[%s1 + $0x2070] sm:$0xff]
    %v1070 = vld [vmem:[%s1 + $0x2078] sm:$0xff]
    %v1071 = vld [vmem:[%s1 + $0x2080] sm:$0xff]
    %v1072 = vld [vmem:[%s1 + $0x2088] sm:$0xff]
    %v1073 = vld [vmem:[%s1 + $0x2090] sm:$0xff]
    %v1074 = vld [vmem:[%s1 + $0x2098] sm:$0xff]
    %v1075 = vld [vmem:[%s1 + $0x20a0] sm:$0xff]
    %v1076 = vld [vmem:[%s1 + $0x20a8] sm:$0xff]
    %v1077 = vld [vmem:[%s1 + $0x20b0] sm:$0xff]
    %v1078 = vld [vmem:[%s1 + $0x20b8] sm:$0xff]
    %v1079 = vld [vmem:[%s1 + $0x20c0] sm:$0xff]
    %v1080 = vld [vmem:[%s1 + $0x20c8] sm:$0xff]
    %v1081 = vld [vmem:[%s1 + $0x20d0] sm:$0xff]
    %v1082 = vld [vmem:[%s1 + $0x20d8] sm:$0xff]
    %v1083 = vld [vmem:[%s1 + $0x20e0] sm:$0xff]
    %v1084 = vld [vmem:[%s1 + $0x20e8] sm:$0xff]
    %v1085 = vld [vmem:[%s1 + $0x20f0] sm:$0xff]
    %v1086 = vld [vmem:[%s1 + $0x20f8] sm:$0xff]
    %v1087 = vld [vmem:[%s1 + $0x2100] sm:$0xff]
    %v1088 = vld [vmem:[%s1 + $0x2108] sm:$0xff]
    %v1089 = vld [vmem:[%s1 + $0x2110] sm:$0xff]
    %v1090 = vld [vmem:[%s1 + $0x2118] sm:$0xff]
    %v1091 = vld [vmem:[%s1 + $0x2120] sm:$0xff]
    %v1092 = vld [vmem:[%s1 + $0x2128] sm:$0xff]
    %v1093 = vld [vmem:[%s1 + $0x2130] sm:$0xff]
    %v1094 = vld [vmem:[%s1 + $0x2138] sm:$0xff]
    %v1095 = vld [vmem:[%s2] sm:$0x3]
    %v1097 = vlaneseq
    %v1098 = vshrl.u32 %v1097, 7
    %v1099 = vsub.s32 0, %v1098
    %v1100 = vrot.slane %v1095, %v1099
    %v1101 = vlaneseq
    %v1102 = vshrl.u32 %v1101, 7
    %v1103 = vsub.s32 1, %v1102
    %v1104 = vrot.slane %v1095, %v1103
    %v1116 = vcombine.high %v22, %v22
    %v1118 = vunpack.c.l.s4 1966171168
    %v1119 = vunpack.c.0.s8 %v1118
    %v1120 = vlaneseq
    %v1121 = vshrl.u32 %v1120, 7
    %v1122 = vsub.s32 %v1119, %v1121
    %v1123 = vrot.slane %v22, %v1122
    %v1125 = vunpack.c.l.s4 1966171168
    %v1126 = vunpack.c.0.s8 %v1125
    %v1127 = vlaneseq
    %v1128 = vshrl.u32 %v1127, 7
    %v1129 = vsub.s32 %v1126, %v1128
    %v1130 = vrot.slane %v1116, %v1129
    %v1131 = vcombine.high %v1123, %v1123
    %v1132 = vcombine.high %v1130, %v1130
    %v1134 = vunpack.c.l.s4 1966171168
    %v1135 = vunpack.c.0.s8 %v1134
    %v1136 = vlaneseq
    %v1137 = vshrl.u32 %v1136, 7
    %v1138 = vsub.s32 %v1135, %v1137
    %v1139 = vrot.slane %v1123, %v1138
    %v1141 = vunpack.c.l.s4 1966171168
    %v1142 = vunpack.c.0.s8 %v1141
    %v1143 = vlaneseq
    %v1144 = vshrl.u32 %v1143, 7
    %v1145 = vsub.s32 %v1142, %v1144
    %v1146 = vrot.slane %v1130, %v1145
    %v1148 = vunpack.c.l.s4 1966171168
    %v1149 = vunpack.c.0.s8 %v1148
    %v1150 = vlaneseq
    %v1151 = vshrl.u32 %v1150, 7
    %v1152 = vsub.s32 %v1149, %v1151
    %v1153 = vrot.slane %v1131, %v1152
    %v1155 = vunpack.c.l.s4 1966171168
    %v1156 = vunpack.c.0.s8 %v1155
    %v1157 = vlaneseq
    %v1158 = vshrl.u32 %v1157, 7
    %v1159 = vsub.s32 %v1156, %v1158
    %v1160 = vrot.slane %v1132, %v1159
    %v1161 = vcombine.high %v1139, %v1139
    %v1162 = vcombine.high %v1146, %v1146
    %v1163 = vcombine.high %v1153, %v1153
    %v1164 = vcombine.high %v1160, %v1160
    %v1165 = vcombine.high %v23, %v23
    %v1167 = vunpack.c.l.s4 1966171168
    %v1168 = vunpack.c.0.s8 %v1167
    %v1169 = vlaneseq
    %v1170 = vshrl.u32 %v1169, 7
    %v1171 = vsub.s32 %v1168, %v1170
    %v1172 = vrot.slane %v23, %v1171
    %v1174 = vunpack.c.l.s4 1966171168
    %v1175 = vunpack.c.0.s8 %v1174
    %v1176 = vlaneseq
    %v1177 = vshrl.u32 %v1176, 7
    %v1178 = vsub.s32 %v1175, %v1177
    %v1179 = vrot.slane %v1165, %v1178
    %v1180 = vcombine.high %v1172, %v1172
    %v1181 = vcombine.high %v1179, %v1179
    %v1183 = vunpack.c.l.s4 1966171168
    %v1184 = vunpack.c.0.s8 %v1183
    %v1185 = vlaneseq
    %v1186 = vshrl.u32 %v1185, 7
    %v1187 = vsub.s32 %v1184, %v1186
    %v1188 = vrot.slane %v1172, %v1187
    %v1190 = vunpack.c.l.s4 1966171168
    %v1191 = vunpack.c.0.s8 %v1190
    %v1192 = vlaneseq
    %v1193 = vshrl.u32 %v1192, 7
    %v1194 = vsub.s32 %v1191, %v1193
    %v1195 = vrot.slane %v1179, %v1194
    %v1197 = vunpack.c.l.s4 1966171168
    %v1198 = vunpack.c.0.s8 %v1197
    %v1199 = vlaneseq
    %v1200 = vshrl.u32 %v1199, 7
    %v1201 = vsub.s32 %v1198, %v1200
    %v1202 = vrot.slane %v1180, %v1201
    %v1204 = vunpack.c.l.s4 1966171168
    %v1205 = vunpack.c.0.s8 %v1204
    %v1206 = vlaneseq
    %v1207 = vshrl.u32 %v1206, 7
    %v1208 = vsub.s32 %v1205, %v1207
    %v1209 = vrot.slane %v1181, %v1208
    %v1210 = vcombine.high %v1188, %v1188
    %v1211 = vcombine.high %v1195, %v1195
    %v1212 = vcombine.high %v1202, %v1202
    %v1213 = vcombine.high %v1209, %v1209
    %v1214 = vcombine.high %v24, %v24
    %v1216 = vunpack.c.l.s4 1966171168
    %v1217 = vunpack.c.0.s8 %v1216
    %v1218 = vlaneseq
    %v1219 = vshrl.u32 %v1218, 7
    %v1220 = vsub.s32 %v1217, %v1219
    %v1221 = vrot.slane %v24, %v1220
    %v1223 = vunpack.c.l.s4 1966171168
    %v1224 = vunpack.c.0.s8 %v1223
    %v1225 = vlaneseq
    %v1226 = vshrl.u32 %v1225, 7
    %v1227 = vsub.s32 %v1224, %v1226
    %v1228 = vrot.slane %v1214, %v1227
    %v1229 = vcombine.high %v1221, %v1221
    %v1230 = vcombine.high %v1228, %v1228
    %v1232 = vunpack.c.l.s4 1966171168
    %v1233 = vunpack.c.0.s8 %v1232
    %v1234 = vlaneseq
    %v1235 = vshrl.u32 %v1234, 7
    %v1236 = vsub.s32 %v1233, %v1235
    %v1237 = vrot.slane %v1221, %v1236
    %v1239 = vunpack.c.l.s4 1966171168
    %v1240 = vunpack.c.0.s8 %v1239
    %v1241 = vlaneseq
    %v1242 = vshrl.u32 %v1241, 7
    %v1243 = vsub.s32 %v1240, %v1242
    %v1244 = vrot.slane %v1228, %v1243
    %v1246 = vunpack.c.l.s4 1966171168
    %v1247 = vunpack.c.0.s8 %v1246
    %v1248 = vlaneseq
    %v1249 = vshrl.u32 %v1248, 7
    %v1250 = vsub.s32 %v1247, %v1249
    %v1251 = vrot.slane %v1229, %v1250
    %v1253 = vunpack.c.l.s4 1966171168
    %v1254 = vunpack.c.0.s8 %v1253
    %v1255 = vlaneseq
    %v1256 = vshrl.u32 %v1255, 7
    %v1257 = vsub.s32 %v1254, %v1256
    %v1258 = vrot.slane %v1230, %v1257
    %v1259 = vcombine.high %v1237, %v1237
    %v1260 = vcombine.high %v1244, %v1244
    %v1261 = vcombine.high %v1251, %v1251
    %v1262 = vcombine.high %v1258, %v1258
    %v1263 = vcombine.high %v25, %v25
    %v1265 = vunpack.c.l.s4 1966171168
    %v1266 = vunpack.c.0.s8 %v1265
    %v1267 = vlaneseq
    %v1268 = vshrl.u32 %v1267, 7
    %v1269 = vsub.s32 %v1266, %v1268
    %v1270 = vrot.slane %v25, %v1269
    %v1272 = vunpack.c.l.s4 1966171168
    %v1273 = vunpack.c.0.s8 %v1272
    %v1274 = vlaneseq
    %v1275 = vshrl.u32 %v1274, 7
    %v1276 = vsub.s32 %v1273, %v1275
    %v1277 = vrot.slane %v1263, %v1276
    %v1278 = vcombine.high %v1270, %v1270
    %v1279 = vcombine.high %v1277, %v1277
    %v1281 = vunpack.c.l.s4 1966171168
    %v1282 = vunpack.c.0.s8 %v1281
    %v1283 = vlaneseq
    %v1284 = vshrl.u32 %v1283, 7
    %v1285 = vsub.s32 %v1282, %v1284
    %v1286 = vrot.slane %v1270, %v1285
    %v1288 = vunpack.c.l.s4 1966171168
    %v1289 = vunpack.c.0.s8 %v1288
    %v1290 = vlaneseq
    %v1291 = vshrl.u32 %v1290, 7
    %v1292 = vsub.s32 %v1289, %v1291
    %v1293 = vrot.slane %v1277, %v1292
    %v1295 = vunpack.c.l.s4 1966171168
    %v1296 = vunpack.c.0.s8 %v1295
    %v1297 = vlaneseq
    %v1298 = vshrl.u32 %v1297, 7
    %v1299 = vsub.s32 %v1296, %v1298
    %v1300 = vrot.slane %v1278, %v1299
    %v1302 = vunpack.c.l.s4 1966171168
    %v1303 = vunpack.c.0.s8 %v1302
    %v1304 = vlaneseq
    %v1305 = vshrl.u32 %v1304, 7
    %v1306 = vsub.s32 %v1303, %v1305
    %v1307 = vrot.slane %v1279, %v1306
    %v1308 = vcombine.high %v1286, %v1286
    %v1309 = vcombine.high %v1293, %v1293
    %v1310 = vcombine.high %v1300, %v1300
    %v1311 = vcombine.high %v1307, %v1307
    %v1312 = vcombine.high %v26, %v26
    %v1314 = vunpack.c.l.s4 1966171168
    %v1315 = vunpack.c.0.s8 %v1314
    %v1316 = vlaneseq
    %v1317 = vshrl.u32 %v1316, 7
    %v1318 = vsub.s32 %v1315, %v1317
    %v1319 = vrot.slane %v26, %v1318
    %v1321 = vunpack.c.l.s4 1966171168
    %v1322 = vunpack.c.0.s8 %v1321
    %v1323 = vlaneseq
    %v1324 = vshrl.u32 %v1323, 7
    %v1325 = vsub.s32 %v1322, %v1324
    %v1326 = vrot.slane %v1312, %v1325
    %v1327 = vcombine.high %v1319, %v1319
    %v1328 = vcombine.high %v1326, %v1326
    %v1330 = vunpack.c.l.s4 1966171168
    %v1331 = vunpack.c.0.s8 %v1330
    %v1332 = vlaneseq
    %v1333 = vshrl.u32 %v1332, 7
    %v1334 = vsub.s32 %v1331, %v1333
    %v1335 = vrot.slane %v1319, %v1334
    %v1337 = vunpack.c.l.s4 1966171168
    %v1338 = vunpack.c.0.s8 %v1337
    %v1339 = vlaneseq
    %v1340 = vshrl.u32 %v1339, 7
    %v1341 = vsub.s32 %v1338, %v1340
    %v1342 = vrot.slane %v1326, %v1341
    %v1344 = vunpack.c.l.s4 1966171168
    %v1345 = vunpack.c.0.s8 %v1344
    %v1346 = vlaneseq
    %v1347 = vshrl.u32 %v1346, 7
    %v1348 = vsub.s32 %v1345, %v1347
    %v1349 = vrot.slane %v1327, %v1348
    %v1351 = vunpack.c.l.s4 1966171168
    %v1352 = vunpack.c.0.s8 %v1351
    %v1353 = vlaneseq
    %v1354 = vshrl.u32 %v1353, 7
    %v1355 = vsub.s32 %v1352, %v1354
    %v1356 = vrot.slane %v1328, %v1355
    %v1357 = vcombine.high %v1335, %v1335
    %v1358 = vcombine.high %v1342, %v1342
    %v1359 = vcombine.high %v1349, %v1349
    %v1360 = vcombine.high %v1356, %v1356
    %v1361 = vcombine.high %v27, %v27
    %v1363 = vunpack.c.l.s4 1966171168
    %v1364 = vunpack.c.0.s8 %v1363
    %v1365 = vlaneseq
    %v1366 = vshrl.u32 %v1365, 7
    %v1367 = vsub.s32 %v1364, %v1366
    %v1368 = vrot.slane %v27, %v1367
    %v1370 = vunpack.c.l.s4 1966171168
    %v1371 = vunpack.c.0.s8 %v1370
    %v1372 = vlaneseq
    %v1373 = vshrl.u32 %v1372, 7
    %v1374 = vsub.s32 %v1371, %v1373
    %v1375 = vrot.slane %v1361, %v1374
    %v1376 = vcombine.high %v1368, %v1368
    %v1377 = vcombine.high %v1375, %v1375
    %v1379 = vunpack.c.l.s4 1966171168
    %v1380 = vunpack.c.0.s8 %v1379
    %v1381 = vlaneseq
    %v1382 = vshrl.u32 %v1381, 7
    %v1383 = vsub.s32 %v1380, %v1382
    %v1384 = vrot.slane %v1368, %v1383
    %v1386 = vunpack.c.l.s4 1966171168
    %v1387 = vunpack.c.0.s8 %v1386
    %v1388 = vlaneseq
    %v1389 = vshrl.u32 %v1388, 7
    %v1390 = vsub.s32 %v1387, %v1389
    %v1391 = vrot.slane %v1375, %v1390
    %v1393 = vunpack.c.l.s4 1966171168
    %v1394 = vunpack.c.0.s8 %v1393
    %v1395 = vlaneseq
    %v1396 = vshrl.u32 %v1395, 7
    %v1397 = vsub.s32 %v1394, %v1396
    %v1398 = vrot.slane %v1376, %v1397
    %v1400 = vunpack.c.l.s4 1966171168
    %v1401 = vunpack.c.0.s8 %v1400
    %v1402 = vlaneseq
    %v1403 = vshrl.u32 %v1402, 7
    %v1404 = vsub.s32 %v1401, %v1403
    %v1405 = vrot.slane %v1377, %v1404
    %v1406 = vcombine.high %v1384, %v1384
    %v1407 = vcombine.high %v1391, %v1391
    %v1408 = vcombine.high %v1398, %v1398
    %v1409 = vcombine.high %v1405, %v1405
    %v1410 = vcombine.high %v28, %v28
    %v1412 = vunpack.c.l.s4 1966171168
    %v1413 = vunpack.c.0.s8 %v1412
    %v1414 = vlaneseq
    %v1415 = vshrl.u32 %v1414, 7
    %v1416 = vsub.s32 %v1413, %v1415
    %v1417 = vrot.slane %v28, %v1416
    %v1419 = vunpack.c.l.s4 1966171168
    %v1420 = vunpack.c.0.s8 %v1419
    %v1421 = vlaneseq
    %v1422 = vshrl.u32 %v1421, 7
    %v1423 = vsub.s32 %v1420, %v1422
    %v1424 = vrot.slane %v1410, %v1423
    %v1425 = vcombine.high %v1417, %v1417
    %v1426 = vcombine.high %v1424, %v1424
    %v1428 = vunpack.c.l.s4 1966171168
    %v1429 = vunpack.c.0.s8 %v1428
    %v1430 = vlaneseq
    %v1431 = vshrl.u32 %v1430, 7
    %v1432 = vsub.s32 %v1429, %v1431
    %v1433 = vrot.slane %v1417, %v1432
    %v1435 = vunpack.c.l.s4 1966171168
    %v1436 = vunpack.c.0.s8 %v1435
    %v1437 = vlaneseq
    %v1438 = vshrl.u32 %v1437, 7
    %v1439 = vsub.s32 %v1436, %v1438
    %v1440 = vrot.slane %v1424, %v1439
    %v1442 = vunpack.c.l.s4 1966171168
    %v1443 = vunpack.c.0.s8 %v1442
    %v1444 = vlaneseq
    %v1445 = vshrl.u32 %v1444, 7
    %v1446 = vsub.s32 %v1443, %v1445
    %v1447 = vrot.slane %v1425, %v1446
    %v1449 = vunpack.c.l.s4 1966171168
    %v1450 = vunpack.c.0.s8 %v1449
    %v1451 = vlaneseq
    %v1452 = vshrl.u32 %v1451, 7
    %v1453 = vsub.s32 %v1450, %v1452
    %v1454 = vrot.slane %v1426, %v1453
    %v1455 = vcombine.high %v1433, %v1433
    %v1456 = vcombine.high %v1440, %v1440
    %v1457 = vcombine.high %v1447, %v1447
    %v1458 = vcombine.high %v1454, %v1454
    %v1459 = vcombine.high %v29, %v29
    %v1461 = vunpack.c.l.s4 1966171168
    %v1462 = vunpack.c.0.s8 %v1461
    %v1463 = vlaneseq
    %v1464 = vshrl.u32 %v1463, 7
    %v1465 = vsub.s32 %v1462, %v1464
    %v1466 = vrot.slane %v29, %v1465
    %v1468 = vunpack.c.l.s4 1966171168
    %v1469 = vunpack.c.0.s8 %v1468
    %v1470 = vlaneseq
    %v1471 = vshrl.u32 %v1470, 7
    %v1472 = vsub.s32 %v1469, %v1471
    %v1473 = vrot.slane %v1459, %v1472
    %v1474 = vcombine.high %v1466, %v1466
    %v1475 = vcombine.high %v1473, %v1473
    %v1477 = vunpack.c.l.s4 1966171168
    %v1478 = vunpack.c.0.s8 %v1477
    %v1479 = vlaneseq
    %v1480 = vshrl.u32 %v1479, 7
    %v1481 = vsub.s32 %v1478, %v1480
    %v1482 = vrot.slane %v1466, %v1481
    %v1484 = vunpack.c.l.s4 1966171168
    %v1485 = vunpack.c.0.s8 %v1484
    %v1486 = vlaneseq
    %v1487 = vshrl.u32 %v1486, 7
    %v1488 = vsub.s32 %v1485, %v1487
    %v1489 = vrot.slane %v1473, %v1488
    %v1491 = vunpack.c.l.s4 1966171168
    %v1492 = vunpack.c.0.s8 %v1491
    %v1493 = vlaneseq
    %v1494 = vshrl.u32 %v1493, 7
    %v1495 = vsub.s32 %v1492, %v1494
    %v1496 = vrot.slane %v1474, %v1495
    %v1498 = vunpack.c.l.s4 1966171168
    %v1499 = vunpack.c.0.s8 %v1498
    %v1500 = vlaneseq
    %v1501 = vshrl.u32 %v1500, 7
    %v1502 = vsub.s32 %v1499, %v1501
    %v1503 = vrot.slane %v1475, %v1502
    %v1504 = vcombine.high %v1482, %v1482
    %v1505 = vcombine.high %v1489, %v1489
    %v1506 = vcombine.high %v1496, %v1496
    %v1507 = vcombine.high %v1503, %v1503
    %v1509 = vunpack.c.l.s4 1966171168
    %v1510 = vunpack.c.0.s8 %v1509
    %v1511 = vlaneseq
    %v1512 = vshrl.u32 %v1511, 7
    %v1513 = vsub.s32 %v1510, %v1512
    %v1514 = vrot.slane %v30, %v1513
    %v1515 = vcombine.high %v1514, %v1514
    %v1517 = vunpack.c.l.s4 1966171168
    %v1518 = vunpack.c.0.s8 %v1517
    %v1519 = vlaneseq
    %v1520 = vshrl.u32 %v1519, 7
    %v1521 = vsub.s32 %v1518, %v1520
    %v1522 = vrot.slane %v1514, %v1521
    %v1524 = vunpack.c.l.s4 1966171168
    %v1525 = vunpack.c.0.s8 %v1524
    %v1526 = vlaneseq
    %v1527 = vshrl.u32 %v1526, 7
    %v1528 = vsub.s32 %v1525, %v1527
    %v1529 = vrot.slane %v1515, %v1528
    %v1530 = vcombine.high %v1522, %v1522
    %v2661 = vunpack.c.l.b16 %v31
    %v2662 = vunpack.c.h.b16 %v31
    %v2663 = vunpack.c.l.b16 %v32
    %v2664 = vunpack.c.h.b16 %v32
    %v2665 = vunpack.c.l.b16 %v33
    %v2666 = vunpack.c.h.b16 %v33
    %v2667 = vunpack.c.l.b16 %v34
    %v2668 = vunpack.c.h.b16 %v34
    %v2669 = vunpack.c.l.b16 %v35
    %v2670 = vunpack.c.h.b16 %v35
    %v2671 = vunpack.c.l.b16 %v36
    %v2672 = vunpack.c.h.b16 %v36
    %v2673 = vunpack.c.l.b16 %v37
    %v2674 = vunpack.c.h.b16 %v37
    %v2675 = vunpack.c.l.b16 %v38
    %v2676 = vunpack.c.h.b16 %v38
    %v2677 = vunpack.c.l.b16 %v39
    %v2678 = vunpack.c.h.b16 %v39
    %v2679 = vunpack.c.l.b16 %v40
    %v2680 = vunpack.c.h.b16 %v40
    %v2681 = vunpack.c.l.b16 %v41
    %v2682 = vunpack.c.h.b16 %v41
    %v2683 = vunpack.c.l.b16 %v42
    %v2684 = vunpack.c.h.b16 %v42
    %v2685 = vunpack.c.l.b16 %v43
    %v2686 = vunpack.c.h.b16 %v43
    %v2687 = vunpack.c.l.b16 %v44
    %v2688 = vunpack.c.h.b16 %v44
    %v2689 = vunpack.c.l.b16 %v45
    %v2690 = vunpack.c.h.b16 %v45
    %v2691 = vunpack.c.l.b16 %v46
    %v2692 = vunpack.c.h.b16 %v46
    %v2693 = vunpack.c.l.b16 %v47
    %v2694 = vunpack.c.h.b16 %v47
    %v2695 = vunpack.c.l.b16 %v48
    %v2696 = vunpack.c.h.b16 %v48
    %v2697 = vunpack.c.l.b16 %v49
    %v2698 = vunpack.c.h.b16 %v49
    %v2699 = vunpack.c.l.b16 %v50
    %v2700 = vunpack.c.h.b16 %v50
    %v2701 = vunpack.c.l.b16 %v51
    %v2702 = vunpack.c.h.b16 %v51
    %v2703 = vunpack.c.l.b16 %v52
    %v2704 = vunpack.c.h.b16 %v52
    %v2705 = vunpack.c.l.b16 %v53
    %v2706 = vunpack.c.h.b16 %v53
    %v2707 = vunpack.c.l.b16 %v54
    %v2708 = vunpack.c.h.b16 %v54
    %v2709 = vunpack.c.l.b16 %v55
    %v2710 = vunpack.c.h.b16 %v55
    %v2711 = vunpack.c.l.b16 %v56
    %v2712 = vunpack.c.h.b16 %v56
    %v2713 = vunpack.c.l.b16 %v57
    %v2714 = vunpack.c.h.b16 %v57
    %v2715 = vunpack.c.l.b16 %v58
    %v2716 = vunpack.c.h.b16 %v58
    %v2717 = vunpack.c.l.b16 %v59
    %v2718 = vunpack.c.h.b16 %v59
    %v2719 = vunpack.c.l.b16 %v60
    %v2720 = vunpack.c.h.b16 %v60
    %v2721 = vunpack.c.l.b16 %v61
    %v2722 = vunpack.c.h.b16 %v61
    %v2723 = vunpack.c.l.b16 %v62
    %v2724 = vunpack.c.h.b16 %v62
    %v2725 = vunpack.c.l.b16 %v63
    %v2726 = vunpack.c.h.b16 %v63
    %v2727 = vunpack.c.l.b16 %v64
    %v2728 = vunpack.c.h.b16 %v64
    %v2729 = vunpack.c.l.b16 %v65
    %v2730 = vunpack.c.h.b16 %v65
    %v2731 = vunpack.c.l.b16 %v66
    %v2732 = vunpack.c.h.b16 %v66
    %v2733 = vunpack.c.l.b16 %v67
    %v2734 = vunpack.c.h.b16 %v67
    %v2735 = vunpack.c.l.b16 %v68
    %v2736 = vunpack.c.h.b16 %v68
    %v2737 = vunpack.c.l.b16 %v69
    %v2738 = vunpack.c.h.b16 %v69
    %v2739 = vunpack.c.l.b16 %v70
    %v2740 = vunpack.c.h.b16 %v70
    %v2741 = vunpack.c.l.b16 %v71
    %v2742 = vunpack.c.h.b16 %v71
    %v2743 = vunpack.c.l.b16 %v72
    %v2744 = vunpack.c.h.b16 %v72
    %v2745 = vunpack.c.l.b16 %v73
    %v2746 = vunpack.c.h.b16 %v73
    %v2747 = vunpack.c.l.b16 %v74
    %v2748 = vunpack.c.h.b16 %v74
    %v2749 = vunpack.c.l.b16 %v75
    %v2750 = vunpack.c.h.b16 %v75
    %v2751 = vunpack.c.l.b16 %v76
    %v2752 = vunpack.c.h.b16 %v76
    %v2753 = vunpack.c.l.b16 %v77
    %v2754 = vunpack.c.h.b16 %v77
    %v2755 = vunpack.c.l.b16 %v78
    %v2756 = vunpack.c.h.b16 %v78
    %v2757 = vunpack.c.l.b16 %v79
    %v2758 = vunpack.c.h.b16 %v79
    %v2759 = vunpack.c.l.b16 %v80
    %v2760 = vunpack.c.h.b16 %v80
    %v2761 = vunpack.c.l.b16 %v81
    %v2762 = vunpack.c.h.b16 %v81
    %v2763 = vunpack.c.l.b16 %v82
    %v2764 = vunpack.c.h.b16 %v82
    %v2765 = vunpack.c.l.b16 %v83
    %v2766 = vunpack.c.h.b16 %v83
    %v2767 = vunpack.c.l.b16 %v84
    %v2768 = vunpack.c.h.b16 %v84
    %v2769 = vunpack.c.l.b16 %v85
    %v2770 = vunpack.c.h.b16 %v85
    %v2771 = vunpack.c.l.b16 %v86
    %v2772 = vunpack.c.h.b16 %v86
    %v2773 = vunpack.c.l.b16 %v87
    %v2774 = vunpack.c.h.b16 %v87
    %v2775 = vunpack.c.l.b16 %v88
    %v2776 = vunpack.c.h.b16 %v88
    %v2777 = vunpack.c.l.b16 %v89
    %v2778 = vunpack.c.h.b16 %v89
    %v2779 = vunpack.c.l.b16 %v90
    %v2780 = vunpack.c.h.b16 %v90
    %v2781 = vunpack.c.l.b16 %v91
    %v2782 = vunpack.c.h.b16 %v91
    %v2783 = vunpack.c.l.b16 %v92
    %v2784 = vunpack.c.h.b16 %v92
    %v2785 = vunpack.c.l.b16 %v93
    %v2786 = vunpack.c.h.b16 %v93
    %v2787 = vunpack.c.l.b16 %v94
    %v2788 = vunpack.c.h.b16 %v94
    %v2789 = vunpack.c.l.b16 %v95
    %v2790 = vunpack.c.h.b16 %v95
    %v2791 = vunpack.c.l.b16 %v96
    %v2792 = vunpack.c.h.b16 %v96
    %v2793 = vunpack.c.l.b16 %v97
    %v2794 = vunpack.c.h.b16 %v97
    %v2795 = vunpack.c.l.b16 %v98
    %v2796 = vunpack.c.h.b16 %v98
    %v2797 = vunpack.c.l.b16 %v99
    %v2798 = vunpack.c.h.b16 %v99
    %v2799 = vunpack.c.l.b16 %v100
    %v2800 = vunpack.c.h.b16 %v100
    %v2801 = vunpack.c.l.b16 %v101
    %v2802 = vunpack.c.h.b16 %v101
    %v2803 = vunpack.c.l.b16 %v102
    %v2804 = vunpack.c.h.b16 %v102
    %v2805 = vunpack.c.l.b16 %v103
    %v2806 = vunpack.c.h.b16 %v103
    %v2807 = vunpack.c.l.b16 %v104
    %v2808 = vunpack.c.h.b16 %v104
    %v2809 = vunpack.c.l.b16 %v105
    %v2810 = vunpack.c.h.b16 %v105
    %v2811 = vunpack.c.l.b16 %v106
    %v2812 = vunpack.c.h.b16 %v106
    %v2813 = vunpack.c.l.b16 %v107
    %v2814 = vunpack.c.h.b16 %v107
    %v2815 = vunpack.c.l.b16 %v108
    %v2816 = vunpack.c.h.b16 %v108
    %v2817 = vunpack.c.l.b16 %v109
    %v2818 = vunpack.c.h.b16 %v109
    %v2819 = vunpack.c.l.b16 %v110
    %v2820 = vunpack.c.h.b16 %v110
    %v2821 = vunpack.c.l.b16 %v111
    %v2822 = vunpack.c.h.b16 %v111
    %v2823 = vunpack.c.l.b16 %v112
    %v2824 = vunpack.c.h.b16 %v112
    %v2825 = vunpack.c.l.b16 %v113
    %v2826 = vunpack.c.h.b16 %v113
    %v2827 = vunpack.c.l.b16 %v114
    %v2828 = vunpack.c.h.b16 %v114
    %v2829 = vunpack.c.l.b16 %v115
    %v2830 = vunpack.c.h.b16 %v115
    %v2831 = vunpack.c.l.b16 %v116
    %v2832 = vunpack.c.h.b16 %v116
    %v2833 = vunpack.c.l.b16 %v117
    %v2834 = vunpack.c.h.b16 %v117
    %v2835 = vunpack.c.l.b16 %v118
    %v2836 = vunpack.c.h.b16 %v118
    %v2837 = vunpack.c.l.b16 %v119
    %v2838 = vunpack.c.h.b16 %v119
    %v2839 = vunpack.c.l.b16 %v120
    %v2840 = vunpack.c.h.b16 %v120
    %v2841 = vunpack.c.l.b16 %v121
    %v2842 = vunpack.c.h.b16 %v121
    %v2843 = vunpack.c.l.b16 %v122
    %v2844 = vunpack.c.h.b16 %v122
    %v2845 = vunpack.c.l.b16 %v123
    %v2846 = vunpack.c.h.b16 %v123
    %v2847 = vunpack.c.l.b16 %v124
    %v2848 = vunpack.c.h.b16 %v124
    %v2849 = vunpack.c.l.b16 %v125
    %v2850 = vunpack.c.h.b16 %v125
    %v2851 = vunpack.c.l.b16 %v126
    %v2852 = vunpack.c.h.b16 %v126
    %v2853 = vunpack.c.l.b16 %v127
    %v2854 = vunpack.c.h.b16 %v127
    %v2855 = vunpack.c.l.b16 %v128
    %v2856 = vunpack.c.h.b16 %v128
    %v2857 = vunpack.c.l.b16 %v129
    %v2858 = vunpack.c.h.b16 %v129
    %v2859 = vunpack.c.l.b16 %v130
    %v2860 = vunpack.c.h.b16 %v130
    %v2861 = vunpack.c.l.b16 %v131
    %v2862 = vunpack.c.h.b16 %v131
    %v2863 = vunpack.c.l.b16 %v132
    %v2864 = vunpack.c.h.b16 %v132
    %v2865 = vunpack.c.l.b16 %v133
    %v2866 = vunpack.c.h.b16 %v133
    %v2867 = vunpack.c.l.b16 %v134
    %v2868 = vunpack.c.h.b16 %v134
    %v2869 = vunpack.c.l.b16 %v135
    %v2870 = vunpack.c.h.b16 %v135
    %v2871 = vunpack.c.l.b16 %v136
    %v2872 = vunpack.c.h.b16 %v136
    %v2873 = vunpack.c.l.b16 %v137
    %v2874 = vunpack.c.h.b16 %v137
    %v2875 = vunpack.c.l.b16 %v138
    %v2876 = vunpack.c.h.b16 %v138
    %v2877 = vunpack.c.l.b16 %v139
    %v2878 = vunpack.c.h.b16 %v139
    %v2879 = vunpack.c.l.b16 %v140
    %v2880 = vunpack.c.h.b16 %v140
    %v2881 = vunpack.c.l.b16 %v141
    %v2882 = vunpack.c.h.b16 %v141
    %v2883 = vunpack.c.l.b16 %v142
    %v2884 = vunpack.c.h.b16 %v142
    %v2885 = vunpack.c.l.b16 %v143
    %v2886 = vunpack.c.h.b16 %v143
    %v2887 = vunpack.c.l.b16 %v144
    %v2888 = vunpack.c.h.b16 %v144
    %v2889 = vunpack.c.l.b16 %v145
    %v2890 = vunpack.c.h.b16 %v145
    %v2891 = vunpack.c.l.b16 %v146
    %v2892 = vunpack.c.h.b16 %v146
    %v2893 = vunpack.c.l.b16 %v147
    %v2894 = vunpack.c.h.b16 %v147
    %v2895 = vunpack.c.l.b16 %v148
    %v2896 = vunpack.c.h.b16 %v148
    %v2897 = vunpack.c.l.b16 %v149
    %v2898 = vunpack.c.h.b16 %v149
    %v2899 = vunpack.c.l.b16 %v150
    %v2900 = vunpack.c.h.b16 %v150
    %v2901 = vunpack.c.l.b16 %v151
    %v2902 = vunpack.c.h.b16 %v151
    %v2903 = vunpack.c.l.b16 %v152
    %v2904 = vunpack.c.h.b16 %v152
    %v2905 = vunpack.c.l.b16 %v153
    %v2906 = vunpack.c.h.b16 %v153
    %v2907 = vunpack.c.l.b16 %v154
    %v2908 = vunpack.c.h.b16 %v154
    %v2909 = vunpack.c.l.b16 %v155
    %v2910 = vunpack.c.h.b16 %v155
    %v2911 = vunpack.c.l.b16 %v156
    %v2912 = vunpack.c.h.b16 %v156
    %v2913 = vunpack.c.l.b16 %v157
    %v2914 = vunpack.c.h.b16 %v157
    %v2915 = vunpack.c.l.b16 %v158
    %v2916 = vunpack.c.h.b16 %v158
    %v2917 = vunpack.c.l.b16 %v159
    %v2918 = vunpack.c.h.b16 %v159
    %v2919 = vunpack.c.l.b16 %v160
    %v2920 = vunpack.c.h.b16 %v160
    %v2921 = vunpack.c.l.b16 %v161
    %v2922 = vunpack.c.h.b16 %v161
    %v2923 = vunpack.c.l.b16 %v162
    %v2924 = vunpack.c.h.b16 %v162
    %v2925 = vunpack.c.l.b16 %v163
    %v2926 = vunpack.c.h.b16 %v163
    %v2927 = vunpack.c.l.b16 %v164
    %v2928 = vunpack.c.h.b16 %v164
    %v2929 = vunpack.c.l.b16 %v165
    %v2930 = vunpack.c.h.b16 %v165
    %v2931 = vunpack.c.l.b16 %v166
    %v2932 = vunpack.c.h.b16 %v166
    %v2933 = vunpack.c.l.b16 %v167
    %v2934 = vunpack.c.h.b16 %v167
    %v2935 = vunpack.c.l.b16 %v168
    %v2936 = vunpack.c.h.b16 %v168
    %v2937 = vunpack.c.l.b16 %v169
    %v2938 = vunpack.c.h.b16 %v169
    %v2939 = vunpack.c.l.b16 %v170
    %v2940 = vunpack.c.h.b16 %v170
    %v2941 = vunpack.c.l.b16 %v171
    %v2942 = vunpack.c.h.b16 %v171
    %v2943 = vunpack.c.l.b16 %v172
    %v2944 = vunpack.c.h.b16 %v172
    %v2945 = vunpack.c.l.b16 %v173
    %v2946 = vunpack.c.h.b16 %v173
    %v2947 = vunpack.c.l.b16 %v174
    %v2948 = vunpack.c.h.b16 %v174
    %v2949 = vunpack.c.l.b16 %v175
    %v2950 = vunpack.c.h.b16 %v175
    %v2951 = vunpack.c.l.b16 %v176
    %v2952 = vunpack.c.h.b16 %v176
    %v2953 = vunpack.c.l.b16 %v177
    %v2954 = vunpack.c.h.b16 %v177
    %v2955 = vunpack.c.l.b16 %v178
    %v2956 = vunpack.c.h.b16 %v178
    %v2957 = vunpack.c.l.b16 %v179
    %v2958 = vunpack.c.h.b16 %v179
    %v2959 = vunpack.c.l.b16 %v180
    %v2960 = vunpack.c.h.b16 %v180
    %v2961 = vunpack.c.l.b16 %v181
    %v2962 = vunpack.c.h.b16 %v181
    %v2963 = vunpack.c.l.b16 %v182
    %v2964 = vunpack.c.h.b16 %v182
    %v2965 = vunpack.c.l.b16 %v183
    %v2966 = vunpack.c.h.b16 %v183
    %v2967 = vunpack.c.l.b16 %v184
    %v2968 = vunpack.c.h.b16 %v184
    %v2969 = vunpack.c.l.b16 %v185
    %v2970 = vunpack.c.h.b16 %v185
    %v2971 = vunpack.c.l.b16 %v186
    %v2972 = vunpack.c.h.b16 %v186
    %v2973 = vunpack.c.l.b16 %v187
    %v2974 = vunpack.c.h.b16 %v187
    %v2975 = vunpack.c.l.b16 %v188
    %v2976 = vunpack.c.h.b16 %v188
    %v2977 = vunpack.c.l.b16 %v189
    %v2978 = vunpack.c.h.b16 %v189
    %v2979 = vunpack.c.l.b16 %v190
    %v2980 = vunpack.c.h.b16 %v190
    %v2981 = vunpack.c.l.b16 %v191
    %v2982 = vunpack.c.h.b16 %v191
    %v2983 = vunpack.c.l.b16 %v192
    %v2984 = vunpack.c.h.b16 %v192
    %v2985 = vunpack.c.l.b16 %v193
    %v2986 = vunpack.c.h.b16 %v193
    %v2987 = vunpack.c.l.b16 %v194
    %v2988 = vunpack.c.h.b16 %v194
    %v2989 = vunpack.c.l.b16 %v195
    %v2990 = vunpack.c.h.b16 %v195
    %v2991 = vunpack.c.l.b16 %v196
    %v2992 = vunpack.c.h.b16 %v196
    %v2993 = vunpack.c.l.b16 %v197
    %v2994 = vunpack.c.h.b16 %v197
    %v2995 = vunpack.c.l.b16 %v198
    %v2996 = vunpack.c.h.b16 %v198
    %v2997 = vunpack.c.l.b16 %v199
    %v2998 = vunpack.c.h.b16 %v199
    %v2999 = vunpack.c.l.b16 %v200
    %v3000 = vunpack.c.h.b16 %v200
    %v3001 = vunpack.c.l.b16 %v201
    %v3002 = vunpack.c.h.b16 %v201
    %v3003 = vunpack.c.l.b16 %v202
    %v3004 = vunpack.c.h.b16 %v202
    %v3005 = vunpack.c.l.b16 %v203
    %v3006 = vunpack.c.h.b16 %v203
    %v3007 = vunpack.c.l.b16 %v204
    %v3008 = vunpack.c.h.b16 %v204
    %v3009 = vunpack.c.l.b16 %v205
    %v3010 = vunpack.c.h.b16 %v205
    %v3011 = vunpack.c.l.b16 %v206
    %v3012 = vunpack.c.h.b16 %v206
    %v3013 = vunpack.c.l.b16 %v207
    %v3014 = vunpack.c.h.b16 %v207
    %v3015 = vunpack.c.l.b16 %v208
    %v3016 = vunpack.c.h.b16 %v208
    %v3017 = vunpack.c.l.b16 %v209
    %v3018 = vunpack.c.h.b16 %v209
    %v3019 = vunpack.c.l.b16 %v210
    %v3020 = vunpack.c.h.b16 %v210
    %v3021 = vunpack.c.l.b16 %v211
    %v3022 = vunpack.c.h.b16 %v211
    %v3023 = vunpack.c.l.b16 %v212
    %v3024 = vunpack.c.h.b16 %v212
    %v3025 = vunpack.c.l.b16 %v213
    %v3026 = vunpack.c.h.b16 %v213
    %v3027 = vunpack.c.l.b16 %v214
    %v3028 = vunpack.c.h.b16 %v214
    %v3029 = vunpack.c.l.b16 %v215
    %v3030 = vunpack.c.h.b16 %v215
    %v3031 = vunpack.c.l.b16 %v216
    %v3032 = vunpack.c.h.b16 %v216
    %v3033 = vunpack.c.l.b16 %v217
    %v3034 = vunpack.c.h.b16 %v217
    %v3035 = vunpack.c.l.b16 %v218
    %v3036 = vunpack.c.h.b16 %v218
    %v3037 = vunpack.c.l.b16 %v219
    %v3038 = vunpack.c.h.b16 %v219
    %v3039 = vunpack.c.l.b16 %v220
    %v3040 = vunpack.c.h.b16 %v220
    %v3041 = vunpack.c.l.b16 %v221
    %v3042 = vunpack.c.h.b16 %v221
    %v3043 = vunpack.c.l.b16 %v222
    %v3044 = vunpack.c.h.b16 %v222
    %v3045 = vunpack.c.l.b16 %v223
    %v3046 = vunpack.c.h.b16 %v223
    %v3047 = vunpack.c.l.b16 %v224
    %v3048 = vunpack.c.h.b16 %v224
    %v3049 = vunpack.c.l.b16 %v225
    %v3050 = vunpack.c.h.b16 %v225
    %v3051 = vunpack.c.l.b16 %v226
    %v3052 = vunpack.c.h.b16 %v226
    %v3053 = vunpack.c.l.b16 %v227
    %v3054 = vunpack.c.h.b16 %v227
    %v3055 = vunpack.c.l.b16 %v228
    %v3056 = vunpack.c.h.b16 %v228
    %v3057 = vunpack.c.l.b16 %v229
    %v3058 = vunpack.c.h.b16 %v229
    %v3059 = vunpack.c.l.b16 %v230
    %v3060 = vunpack.c.h.b16 %v230
    %v3061 = vunpack.c.l.b16 %v231
    %v3062 = vunpack.c.h.b16 %v231
    %v3063 = vunpack.c.l.b16 %v232
    %v3064 = vunpack.c.h.b16 %v232
    %v3065 = vunpack.c.l.b16 %v233
    %v3066 = vunpack.c.h.b16 %v233
    %v3067 = vunpack.c.l.b16 %v234
    %v3068 = vunpack.c.h.b16 %v234
    %v3069 = vunpack.c.l.b16 %v235
    %v3070 = vunpack.c.h.b16 %v235
    %v3071 = vunpack.c.l.b16 %v236
    %v3072 = vunpack.c.h.b16 %v236
    %v3073 = vunpack.c.l.b16 %v237
    %v3074 = vunpack.c.h.b16 %v237
    %v3075 = vunpack.c.l.b16 %v238
    %v3076 = vunpack.c.h.b16 %v238
    %v3077 = vunpack.c.l.b16 %v239
    %v3078 = vunpack.c.h.b16 %v239
    %v3079 = vunpack.c.l.b16 %v240
    %v3080 = vunpack.c.h.b16 %v240
    %v3081 = vunpack.c.l.b16 %v241
    %v3082 = vunpack.c.h.b16 %v241
    %v3083 = vunpack.c.l.b16 %v242
    %v3084 = vunpack.c.h.b16 %v242
    %v3085 = vunpack.c.l.b16 %v243
    %v3086 = vunpack.c.h.b16 %v243
    %v3087 = vunpack.c.l.b16 %v244
    %v3088 = vunpack.c.h.b16 %v244
    %v3089 = vunpack.c.l.b16 %v245
    %v3090 = vunpack.c.h.b16 %v245
    %v3091 = vunpack.c.l.b16 %v246
    %v3092 = vunpack.c.h.b16 %v246
    %v3093 = vunpack.c.l.b16 %v247
    %v3094 = vunpack.c.h.b16 %v247
    %v3095 = vunpack.c.l.b16 %v248
    %v3096 = vunpack.c.h.b16 %v248
    %v3097 = vunpack.c.l.b16 %v249
    %v3098 = vunpack.c.h.b16 %v249
    %v3099 = vunpack.c.l.b16 %v250
    %v3100 = vunpack.c.h.b16 %v250
    %v3101 = vunpack.c.l.b16 %v251
    %v3102 = vunpack.c.h.b16 %v251
    %v3103 = vunpack.c.l.b16 %v252
    %v3104 = vunpack.c.h.b16 %v252
    %v3105 = vunpack.c.l.b16 %v253
    %v3106 = vunpack.c.h.b16 %v253
    %v3107 = vunpack.c.l.b16 %v254
    %v3108 = vunpack.c.h.b16 %v254
    %v3109 = vunpack.c.l.b16 %v255
    %v3110 = vunpack.c.h.b16 %v255
    %v3111 = vunpack.c.l.b16 %v256
    %v3112 = vunpack.c.h.b16 %v256
    %v3113 = vunpack.c.l.b16 %v257
    %v3114 = vunpack.c.h.b16 %v257
    %v3115 = vunpack.c.l.b16 %v258
    %v3116 = vunpack.c.h.b16 %v258
    %v3117 = vunpack.c.l.b16 %v259
    %v3118 = vunpack.c.h.b16 %v259
    %v3119 = vunpack.c.l.b16 %v260
    %v3120 = vunpack.c.h.b16 %v260
    %v3121 = vunpack.c.l.b16 %v261
    %v3122 = vunpack.c.h.b16 %v261
    %v3123 = vunpack.c.l.b16 %v262
    %v3124 = vunpack.c.h.b16 %v262
    %v3125 = vunpack.c.l.b16 %v263
    %v3126 = vunpack.c.h.b16 %v263
    %v3127 = vunpack.c.l.b16 %v264
    %v3128 = vunpack.c.h.b16 %v264
    %v3129 = vunpack.c.l.b16 %v265
    %v3130 = vunpack.c.h.b16 %v265
    %v3131 = vunpack.c.l.b16 %v266
    %v3132 = vunpack.c.h.b16 %v266
    %v3133 = vunpack.c.l.b16 %v267
    %v3134 = vunpack.c.h.b16 %v267
    %v3135 = vunpack.c.l.b16 %v268
    %v3136 = vunpack.c.h.b16 %v268
    %v3137 = vunpack.c.l.b16 %v269
    %v3138 = vunpack.c.h.b16 %v269
    %v3139 = vunpack.c.l.b16 %v270
    %v3140 = vunpack.c.h.b16 %v270
    %v3141 = vunpack.c.l.b16 %v271
    %v3142 = vunpack.c.h.b16 %v271
    %v3143 = vunpack.c.l.b16 %v272
    %v3144 = vunpack.c.h.b16 %v272
    %v3145 = vunpack.c.l.b16 %v273
    %v3146 = vunpack.c.h.b16 %v273
    %v3147 = vunpack.c.l.b16 %v274
    %v3148 = vunpack.c.h.b16 %v274
    %v3149 = vunpack.c.l.b16 %v275
    %v3150 = vunpack.c.h.b16 %v275
    %v3151 = vunpack.c.l.b16 %v276
    %v3152 = vunpack.c.h.b16 %v276
    %v3153 = vunpack.c.l.b16 %v277
    %v3154 = vunpack.c.h.b16 %v277
    %v3155 = vunpack.c.l.b16 %v278
    %v3156 = vunpack.c.h.b16 %v278
    %v3157 = vunpack.c.l.b16 %v279
    %v3158 = vunpack.c.h.b16 %v279
    %v3159 = vunpack.c.l.b16 %v280
    %v3160 = vunpack.c.h.b16 %v280
    %v3161 = vunpack.c.l.b16 %v281
    %v3162 = vunpack.c.h.b16 %v281
    %v3163 = vunpack.c.l.b16 %v282
    %v3164 = vunpack.c.h.b16 %v282
    %v3165 = vunpack.c.l.b16 %v283
    %v3166 = vunpack.c.h.b16 %v283
    %v3167 = vunpack.c.l.b16 %v284
    %v3168 = vunpack.c.h.b16 %v284
    %v3169 = vunpack.c.l.b16 %v285
    %v3170 = vunpack.c.h.b16 %v285
    %v3171 = vunpack.c.l.b16 %v286
    %v3172 = vunpack.c.h.b16 %v286
    %v3173 = vunpack.c.l.b16 %v287
    %v3174 = vunpack.c.h.b16 %v287
    %v3175 = vunpack.c.l.b16 %v288
    %v3176 = vunpack.c.h.b16 %v288
    %v3177 = vunpack.c.l.b16 %v289
    %v3178 = vunpack.c.h.b16 %v289
    %v3179 = vunpack.c.l.b16 %v290
    %v3180 = vunpack.c.h.b16 %v290
    %v3181 = vunpack.c.l.b16 %v291
    %v3182 = vunpack.c.h.b16 %v291
    %v3183 = vunpack.c.l.b16 %v292
    %v3184 = vunpack.c.h.b16 %v292
    %v3185 = vunpack.c.l.b16 %v293
    %v3186 = vunpack.c.h.b16 %v293
    %v3187 = vunpack.c.l.b16 %v294
    %v3188 = vunpack.c.h.b16 %v294
    %v3189 = vunpack.c.l.b16 %v295
    %v3190 = vunpack.c.h.b16 %v295
    %v3191 = vunpack.c.l.b16 %v296
    %v3192 = vunpack.c.h.b16 %v296
    %v3193 = vunpack.c.l.b16 %v297
    %v3194 = vunpack.c.h.b16 %v297
    %v3195 = vunpack.c.l.b16 %v298
    %v3196 = vunpack.c.h.b16 %v298
    %v3197 = vunpack.c.l.b16 %v299
    %v3198 = vunpack.c.h.b16 %v299
    %v3199 = vunpack.c.l.b16 %v300
    %v3200 = vunpack.c.h.b16 %v300
    %v3201 = vunpack.c.l.b16 %v301
    %v3202 = vunpack.c.h.b16 %v301
    %v3203 = vunpack.c.l.b16 %v302
    %v3204 = vunpack.c.h.b16 %v302
    %v3205 = vunpack.c.l.b16 %v303
    %v3206 = vunpack.c.h.b16 %v303
    %v3207 = vunpack.c.l.b16 %v304
    %v3208 = vunpack.c.h.b16 %v304
    %v3209 = vunpack.c.l.b16 %v305
    %v3210 = vunpack.c.h.b16 %v305
    %v3211 = vunpack.c.l.b16 %v306
    %v3212 = vunpack.c.h.b16 %v306
    %v3213 = vunpack.c.l.b16 %v307
    %v3214 = vunpack.c.h.b16 %v307
    %v3215 = vunpack.c.l.b16 %v308
    %v3216 = vunpack.c.h.b16 %v308
    %v3217 = vunpack.c.l.b16 %v309
    %v3218 = vunpack.c.h.b16 %v309
    %v3219 = vunpack.c.l.b16 %v310
    %v3220 = vunpack.c.h.b16 %v310
    %v3221 = vunpack.c.l.b16 %v311
    %v3222 = vunpack.c.h.b16 %v311
    %v3223 = vunpack.c.l.b16 %v312
    %v3224 = vunpack.c.h.b16 %v312
    %v3225 = vunpack.c.l.b16 %v313
    %v3226 = vunpack.c.h.b16 %v313
    %v3227 = vunpack.c.l.b16 %v314
    %v3228 = vunpack.c.h.b16 %v314
    %v3229 = vunpack.c.l.b16 %v315
    %v3230 = vunpack.c.h.b16 %v315
    %v3231 = vunpack.c.l.b16 %v316
    %v3232 = vunpack.c.h.b16 %v316
    %v3233 = vunpack.c.l.b16 %v317
    %v3234 = vunpack.c.h.b16 %v317
    %v3235 = vunpack.c.l.b16 %v318
    %v3236 = vunpack.c.h.b16 %v318
    %v3237 = vunpack.c.l.b16 %v319
    %v3238 = vunpack.c.h.b16 %v319
    %v3239 = vunpack.c.l.b16 %v320
    %v3240 = vunpack.c.h.b16 %v320
    %v3241 = vunpack.c.l.b16 %v321
    %v3242 = vunpack.c.h.b16 %v321
    %v3243 = vunpack.c.l.b16 %v322
    %v3244 = vunpack.c.h.b16 %v322
    %v3245 = vunpack.c.l.b16 %v323
    %v3246 = vunpack.c.h.b16 %v323
    %v3247 = vunpack.c.l.b16 %v324
    %v3248 = vunpack.c.h.b16 %v324
    %v3249 = vunpack.c.l.b16 %v325
    %v3250 = vunpack.c.h.b16 %v325
    %v3251 = vunpack.c.l.b16 %v326
    %v3252 = vunpack.c.h.b16 %v326
    %v3253 = vunpack.c.l.b16 %v327
    %v3254 = vunpack.c.h.b16 %v327
    %v3255 = vunpack.c.l.b16 %v328
    %v3256 = vunpack.c.h.b16 %v328
    %v3257 = vunpack.c.l.b16 %v329
    %v3258 = vunpack.c.h.b16 %v329
    %v3259 = vunpack.c.l.b16 %v330
    %v3260 = vunpack.c.h.b16 %v330
    %v3261 = vunpack.c.l.b16 %v331
    %v3262 = vunpack.c.h.b16 %v331
    %v3263 = vunpack.c.l.b16 %v332
    %v3264 = vunpack.c.h.b16 %v332
    %v3265 = vunpack.c.l.b16 %v333
    %v3266 = vunpack.c.h.b16 %v333
    %v3267 = vunpack.c.l.b16 %v334
    %v3268 = vunpack.c.h.b16 %v334
    %v3269 = vunpack.c.l.b16 %v335
    %v3270 = vunpack.c.h.b16 %v335
    %v3271 = vunpack.c.l.b16 %v336
    %v3272 = vunpack.c.h.b16 %v336
    %v3273 = vunpack.c.l.b16 %v337
    %v3274 = vunpack.c.h.b16 %v337
    %v3275 = vunpack.c.l.b16 %v338
    %v3276 = vunpack.c.h.b16 %v338
    %v3277 = vunpack.c.l.b16 %v339
    %v3278 = vunpack.c.h.b16 %v339
    %v3279 = vunpack.c.l.b16 %v340
    %v3280 = vunpack.c.h.b16 %v340
    %v3281 = vunpack.c.l.b16 %v341
    %v3282 = vunpack.c.h.b16 %v341
    %v3283 = vunpack.c.l.b16 %v342
    %v3284 = vunpack.c.h.b16 %v342
    %v3285 = vunpack.c.l.b16 %v343
    %v3286 = vunpack.c.h.b16 %v343
    %v3287 = vunpack.c.l.b16 %v344
    %v3288 = vunpack.c.h.b16 %v344
    %v3289 = vunpack.c.l.b16 %v345
    %v3290 = vunpack.c.h.b16 %v345
    %v3291 = vunpack.c.l.b16 %v346
    %v3292 = vunpack.c.h.b16 %v346
    %v3293 = vunpack.c.l.b16 %v347
    %v3294 = vunpack.c.h.b16 %v347
    %v3295 = vunpack.c.l.b16 %v348
    %v3296 = vunpack.c.h.b16 %v348
    %v3297 = vunpack.c.l.b16 %v349
    %v3298 = vunpack.c.h.b16 %v349
    %v3299 = vunpack.c.l.b16 %v350
    %v3300 = vunpack.c.h.b16 %v350
    %v3301 = vunpack.c.l.b16 %v351
    %v3302 = vunpack.c.h.b16 %v351
    %v3303 = vunpack.c.l.b16 %v352
    %v3304 = vunpack.c.h.b16 %v352
    %v3305 = vunpack.c.l.b16 %v353
    %v3306 = vunpack.c.h.b16 %v353
    %v3307 = vunpack.c.l.b16 %v354
    %v3308 = vunpack.c.h.b16 %v354
    %v3309 = vunpack.c.l.b16 %v355
    %v3310 = vunpack.c.h.b16 %v355
    %v3311 = vunpack.c.l.b16 %v356
    %v3312 = vunpack.c.h.b16 %v356
    %v3313 = vunpack.c.l.b16 %v357
    %v3314 = vunpack.c.h.b16 %v357
    %v3315 = vunpack.c.l.b16 %v358
    %v3316 = vunpack.c.h.b16 %v358
    %v3317 = vunpack.c.l.b16 %v359
    %v3318 = vunpack.c.h.b16 %v359
    %v3319 = vunpack.c.l.b16 %v360
    %v3320 = vunpack.c.h.b16 %v360
    %v3321 = vunpack.c.l.b16 %v361
    %v3322 = vunpack.c.h.b16 %v361
    %v3323 = vunpack.c.l.b16 %v362
    %v3324 = vunpack.c.h.b16 %v362
    %v3325 = vunpack.c.l.b16 %v363
    %v3326 = vunpack.c.h.b16 %v363
    %v3327 = vunpack.c.l.b16 %v364
    %v3328 = vunpack.c.h.b16 %v364
    %v3329 = vunpack.c.l.b16 %v365
    %v3330 = vunpack.c.h.b16 %v365
    %v3331 = vunpack.c.l.b16 %v366
    %v3332 = vunpack.c.h.b16 %v366
    %v3333 = vunpack.c.l.b16 %v367
    %v3334 = vunpack.c.h.b16 %v367
    %v3335 = vunpack.c.l.b16 %v368
    %v3336 = vunpack.c.h.b16 %v368
    %v3337 = vunpack.c.l.b16 %v369
    %v3338 = vunpack.c.h.b16 %v369
    %v3339 = vunpack.c.l.b16 %v370
    %v3340 = vunpack.c.h.b16 %v370
    %v3341 = vunpack.c.l.b16 %v371
    %v3342 = vunpack.c.h.b16 %v371
    %v3343 = vunpack.c.l.b16 %v372
    %v3344 = vunpack.c.h.b16 %v372
    %v3345 = vunpack.c.l.b16 %v373
    %v3346 = vunpack.c.h.b16 %v373
    %v3347 = vunpack.c.l.b16 %v374
    %v3348 = vunpack.c.h.b16 %v374
    %v3349 = vunpack.c.l.b16 %v375
    %v3350 = vunpack.c.h.b16 %v375
    %v3351 = vunpack.c.l.b16 %v376
    %v3352 = vunpack.c.h.b16 %v376
    %v3353 = vunpack.c.l.b16 %v377
    %v3354 = vunpack.c.h.b16 %v377
    %v3355 = vunpack.c.l.b16 %v378
    %v3356 = vunpack.c.h.b16 %v378
    %v3357 = vunpack.c.l.b16 %v379
    %v3358 = vunpack.c.h.b16 %v379
    %v3359 = vunpack.c.l.b16 %v380
    %v3360 = vunpack.c.h.b16 %v380
    %v3361 = vunpack.c.l.b16 %v381
    %v3362 = vunpack.c.h.b16 %v381
    %v3363 = vunpack.c.l.b16 %v382
    %v3364 = vunpack.c.h.b16 %v382
    %v3365 = vunpack.c.l.b16 %v383
    %v3366 = vunpack.c.h.b16 %v383
    %v3367 = vunpack.c.l.b16 %v384
    %v3368 = vunpack.c.h.b16 %v384
    %v3369 = vunpack.c.l.b16 %v385
    %v3370 = vunpack.c.h.b16 %v385
    %v3371 = vunpack.c.l.b16 %v386
    %v3372 = vunpack.c.h.b16 %v386
    %v3373 = vunpack.c.l.b16 %v387
    %v3374 = vunpack.c.h.b16 %v387
    %v3375 = vunpack.c.l.b16 %v388
    %v3376 = vunpack.c.h.b16 %v388
    %v3377 = vunpack.c.l.b16 %v389
    %v3378 = vunpack.c.h.b16 %v389
    %v3379 = vunpack.c.l.b16 %v390
    %v3380 = vunpack.c.h.b16 %v390
    %v3381 = vunpack.c.l.b16 %v391
    %v3382 = vunpack.c.h.b16 %v391
    %v3383 = vunpack.c.l.b16 %v392
    %v3384 = vunpack.c.h.b16 %v392
    %v3385 = vunpack.c.l.b16 %v393
    %v3386 = vunpack.c.h.b16 %v393
    %v3387 = vunpack.c.l.b16 %v394
    %v3388 = vunpack.c.h.b16 %v394
    %v3389 = vunpack.c.l.b16 %v395
    %v3390 = vunpack.c.h.b16 %v395
    %v3391 = vunpack.c.l.b16 %v396
    %v3392 = vunpack.c.h.b16 %v396
    %v3393 = vunpack.c.l.b16 %v397
    %v3394 = vunpack.c.h.b16 %v397
    %v3395 = vunpack.c.l.b16 %v398
    %v3396 = vunpack.c.h.b16 %v398
    %v3397 = vunpack.c.l.b16 %v399
    %v3398 = vunpack.c.h.b16 %v399
    %v3399 = vunpack.c.l.b16 %v400
    %v3400 = vunpack.c.h.b16 %v400
    %v3401 = vunpack.c.l.b16 %v401
    %v3402 = vunpack.c.h.b16 %v401
    %v3403 = vunpack.c.l.b16 %v402
    %v3404 = vunpack.c.h.b16 %v402
    %v3405 = vunpack.c.l.b16 %v403
    %v3406 = vunpack.c.h.b16 %v403
    %v3407 = vunpack.c.l.b16 %v404
    %v3408 = vunpack.c.h.b16 %v404
    %v3409 = vunpack.c.l.b16 %v405
    %v3410 = vunpack.c.h.b16 %v405
    %v3411 = vunpack.c.l.b16 %v406
    %v3412 = vunpack.c.h.b16 %v406
    %v3413 = vunpack.c.l.b16 %v407
    %v3414 = vunpack.c.h.b16 %v407
    %v3415 = vunpack.c.l.b16 %v408
    %v3416 = vunpack.c.h.b16 %v408
    %v3417 = vunpack.c.l.b16 %v409
    %v3418 = vunpack.c.h.b16 %v409
    %v3419 = vunpack.c.l.b16 %v410
    %v3420 = vunpack.c.h.b16 %v410
    %v3421 = vunpack.c.l.b16 %v411
    %v3422 = vunpack.c.h.b16 %v411
    %v3423 = vunpack.c.l.b16 %v412
    %v3424 = vunpack.c.h.b16 %v412
    %v3425 = vunpack.c.l.b16 %v413
    %v3426 = vunpack.c.h.b16 %v413
    %v3427 = vunpack.c.l.b16 %v414
    %v3428 = vunpack.c.h.b16 %v414
    %v3429 = vunpack.c.l.b16 %v415
    %v3430 = vunpack.c.h.b16 %v415
    %v3431 = vunpack.c.l.b16 %v416
    %v3432 = vunpack.c.h.b16 %v416
    %v3433 = vunpack.c.l.b16 %v417
    %v3434 = vunpack.c.h.b16 %v417
    %v3435 = vunpack.c.l.b16 %v418
    %v3436 = vunpack.c.h.b16 %v418
    %v3437 = vunpack.c.l.b16 %v419
    %v3438 = vunpack.c.h.b16 %v419
    %v3439 = vunpack.c.l.b16 %v420
    %v3440 = vunpack.c.h.b16 %v420
    %v3441 = vunpack.c.l.b16 %v421
    %v3442 = vunpack.c.h.b16 %v421
    %v3443 = vunpack.c.l.b16 %v422
    %v3444 = vunpack.c.h.b16 %v422
    %v3445 = vunpack.c.l.b16 %v423
    %v3446 = vunpack.c.h.b16 %v423
    %v3447 = vunpack.c.l.b16 %v424
    %v3448 = vunpack.c.h.b16 %v424
    %v3449 = vunpack.c.l.b16 %v425
    %v3450 = vunpack.c.h.b16 %v425
    %v3451 = vunpack.c.l.b16 %v426
    %v3452 = vunpack.c.h.b16 %v426
    %v3453 = vunpack.c.l.b16 %v427
    %v3454 = vunpack.c.h.b16 %v427
    %v3455 = vunpack.c.l.b16 %v428
    %v3456 = vunpack.c.h.b16 %v428
    %v3457 = vunpack.c.l.b16 %v429
    %v3458 = vunpack.c.h.b16 %v429
    %v3459 = vunpack.c.l.b16 %v430
    %v3460 = vunpack.c.h.b16 %v430
    %v3461 = vunpack.c.l.b16 %v431
    %v3462 = vunpack.c.h.b16 %v431
    %v3463 = vunpack.c.l.b16 %v432
    %v3464 = vunpack.c.h.b16 %v432
    %v3465 = vunpack.c.l.b16 %v433
    %v3466 = vunpack.c.h.b16 %v433
    %v3467 = vunpack.c.l.b16 %v434
    %v3468 = vunpack.c.h.b16 %v434
    %v3469 = vunpack.c.l.b16 %v435
    %v3470 = vunpack.c.h.b16 %v435
    %v3471 = vunpack.c.l.b16 %v436
    %v3472 = vunpack.c.h.b16 %v436
    %v3473 = vunpack.c.l.b16 %v437
    %v3474 = vunpack.c.h.b16 %v437
    %v3475 = vunpack.c.l.b16 %v438
    %v3476 = vunpack.c.h.b16 %v438
    %v3477 = vunpack.c.l.b16 %v439
    %v3478 = vunpack.c.h.b16 %v439
    %v3479 = vunpack.c.l.b16 %v440
    %v3480 = vunpack.c.h.b16 %v440
    %v3481 = vunpack.c.l.b16 %v441
    %v3482 = vunpack.c.h.b16 %v441
    %v3483 = vunpack.c.l.b16 %v442
    %v3484 = vunpack.c.h.b16 %v442
    %v3485 = vunpack.c.l.b16 %v443
    %v3486 = vunpack.c.h.b16 %v443
    %v3487 = vunpack.c.l.b16 %v444
    %v3488 = vunpack.c.h.b16 %v444
    %v3489 = vunpack.c.l.b16 %v445
    %v3490 = vunpack.c.h.b16 %v445
    %v3491 = vunpack.c.l.b16 %v446
    %v3492 = vunpack.c.h.b16 %v446
    %v3493 = vunpack.c.l.b16 %v447
    %v3494 = vunpack.c.h.b16 %v447
    %v3495 = vunpack.c.l.b16 %v448
    %v3496 = vunpack.c.h.b16 %v448
    %v3497 = vunpack.c.l.b16 %v449
    %v3498 = vunpack.c.h.b16 %v449
    %v3499 = vunpack.c.l.b16 %v450
    %v3500 = vunpack.c.h.b16 %v450
    %v3501 = vunpack.c.l.b16 %v451
    %v3502 = vunpack.c.h.b16 %v451
    %v3503 = vunpack.c.l.b16 %v452
    %v3504 = vunpack.c.h.b16 %v452
    %v3505 = vunpack.c.l.b16 %v453
    %v3506 = vunpack.c.h.b16 %v453
    %v3507 = vunpack.c.l.b16 %v454
    %v3508 = vunpack.c.h.b16 %v454
    %v3509 = vunpack.c.l.b16 %v455
    %v3510 = vunpack.c.h.b16 %v455
    %v3511 = vunpack.c.l.b16 %v456
    %v3512 = vunpack.c.h.b16 %v456
    %v3513 = vunpack.c.l.b16 %v457
    %v3514 = vunpack.c.h.b16 %v457
    %v3515 = vunpack.c.l.b16 %v458
    %v3516 = vunpack.c.h.b16 %v458
    %v3517 = vunpack.c.l.b16 %v459
    %v3518 = vunpack.c.h.b16 %v459
    %v3519 = vunpack.c.l.b16 %v460
    %v3520 = vunpack.c.h.b16 %v460
    %v3521 = vunpack.c.l.b16 %v461
    %v3522 = vunpack.c.h.b16 %v461
    %v3523 = vunpack.c.l.b16 %v462
    %v3524 = vunpack.c.h.b16 %v462
    %v3525 = vunpack.c.l.b16 %v463
    %v3526 = vunpack.c.h.b16 %v463
    %v3527 = vunpack.c.l.b16 %v464
    %v3528 = vunpack.c.h.b16 %v464
    %v3529 = vunpack.c.l.b16 %v465
    %v3530 = vunpack.c.h.b16 %v465
    %v3531 = vunpack.c.l.b16 %v466
    %v3532 = vunpack.c.h.b16 %v466
    %v3533 = vunpack.c.l.b16 %v467
    %v3534 = vunpack.c.h.b16 %v467
    %v3535 = vunpack.c.l.b16 %v468
    %v3536 = vunpack.c.h.b16 %v468
    %v3537 = vunpack.c.l.b16 %v469
    %v3538 = vunpack.c.h.b16 %v469
    %v3539 = vunpack.c.l.b16 %v470
    %v3540 = vunpack.c.h.b16 %v470
    %v3541 = vunpack.c.l.b16 %v471
    %v3542 = vunpack.c.h.b16 %v471
    %v3543 = vunpack.c.l.b16 %v472
    %v3544 = vunpack.c.h.b16 %v472
    %v3545 = vunpack.c.l.b16 %v473
    %v3546 = vunpack.c.h.b16 %v473
    %v3547 = vunpack.c.l.b16 %v474
    %v3548 = vunpack.c.h.b16 %v474
    %v3549 = vunpack.c.l.b16 %v475
    %v3550 = vunpack.c.h.b16 %v475
    %v3551 = vunpack.c.l.b16 %v476
    %v3552 = vunpack.c.h.b16 %v476
    %v3553 = vunpack.c.l.b16 %v477
    %v3554 = vunpack.c.h.b16 %v477
    %v3555 = vunpack.c.l.b16 %v478
    %v3556 = vunpack.c.h.b16 %v478
    %v3557 = vunpack.c.l.b16 %v479
    %v3558 = vunpack.c.h.b16 %v479
    %v3559 = vunpack.c.l.b16 %v480
    %v3560 = vunpack.c.h.b16 %v480
    %v3561 = vunpack.c.l.b16 %v481
    %v3562 = vunpack.c.h.b16 %v481
    %v3563 = vunpack.c.l.b16 %v482
    %v3564 = vunpack.c.h.b16 %v482
    %v3565 = vunpack.c.l.b16 %v483
    %v3566 = vunpack.c.h.b16 %v483
    %v3567 = vunpack.c.l.b16 %v484
    %v3568 = vunpack.c.h.b16 %v484
    %v3569 = vunpack.c.l.b16 %v485
    %v3570 = vunpack.c.h.b16 %v485
    %v3571 = vunpack.c.l.b16 %v486
    %v3572 = vunpack.c.h.b16 %v486
    %v3573 = vunpack.c.l.b16 %v487
    %v3574 = vunpack.c.h.b16 %v487
    %v3575 = vunpack.c.l.b16 %v488
    %v3576 = vunpack.c.h.b16 %v488
    %v3577 = vunpack.c.l.b16 %v489
    %v3578 = vunpack.c.h.b16 %v489
    %v3579 = vunpack.c.l.b16 %v490
    %v3580 = vunpack.c.h.b16 %v490
    %v3581 = vunpack.c.l.b16 %v491
    %v3582 = vunpack.c.h.b16 %v491
    %v3583 = vunpack.c.l.b16 %v492
    %v3584 = vunpack.c.h.b16 %v492
    %v3585 = vunpack.c.l.b16 %v493
    %v3586 = vunpack.c.h.b16 %v493
    %v3587 = vunpack.c.l.b16 %v494
    %v3588 = vunpack.c.h.b16 %v494
    %v3589 = vunpack.c.l.b16 %v495
    %v3590 = vunpack.c.h.b16 %v495
    %v3591 = vunpack.c.l.b16 %v496
    %v3592 = vunpack.c.h.b16 %v496
    %v3593 = vunpack.c.l.b16 %v497
    %v3594 = vunpack.c.h.b16 %v497
    %v3595 = vunpack.c.l.b16 %v498
    %v3596 = vunpack.c.h.b16 %v498
    %v3597 = vunpack.c.l.b16 %v499
    %v3598 = vunpack.c.h.b16 %v499
    %v3599 = vunpack.c.l.b16 %v500
    %v3600 = vunpack.c.h.b16 %v500
    %v3601 = vunpack.c.l.b16 %v501
    %v3602 = vunpack.c.h.b16 %v501
    %v3603 = vunpack.c.l.b16 %v502
    %v3604 = vunpack.c.h.b16 %v502
    %v3605 = vunpack.c.l.b16 %v503
    %v3606 = vunpack.c.h.b16 %v503
    %v3607 = vunpack.c.l.b16 %v504
    %v3608 = vunpack.c.h.b16 %v504
    %v3609 = vunpack.c.l.b16 %v505
    %v3610 = vunpack.c.h.b16 %v505
    %v3611 = vunpack.c.l.b16 %v506
    %v3612 = vunpack.c.h.b16 %v506
    %v3613 = vunpack.c.l.b16 %v507
    %v3614 = vunpack.c.h.b16 %v507
    %v3615 = vunpack.c.l.b16 %v508
    %v3616 = vunpack.c.h.b16 %v508
    %v3617 = vunpack.c.l.b16 %v509
    %v3618 = vunpack.c.h.b16 %v509
    %v3619 = vunpack.c.l.b16 %v510
    %v3620 = vunpack.c.h.b16 %v510
    %v3621 = vunpack.c.l.b16 %v511
    %v3622 = vunpack.c.h.b16 %v511
    %v3623 = vunpack.c.l.b16 %v512
    %v3624 = vunpack.c.h.b16 %v512
    %v3625 = vunpack.c.l.b16 %v513
    %v3626 = vunpack.c.h.b16 %v513
    %v3627 = vunpack.c.l.b16 %v514
    %v3628 = vunpack.c.h.b16 %v514
    %v3629 = vunpack.c.l.b16 %v515
    %v3630 = vunpack.c.h.b16 %v515
    %v3631 = vunpack.c.l.b16 %v516
    %v3632 = vunpack.c.h.b16 %v516
    %v3633 = vunpack.c.l.b16 %v517
    %v3634 = vunpack.c.h.b16 %v517
    %v3635 = vunpack.c.l.b16 %v518
    %v3636 = vunpack.c.h.b16 %v518
    %v3637 = vunpack.c.l.b16 %v519
    %v3638 = vunpack.c.h.b16 %v519
    %v3639 = vunpack.c.l.b16 %v520
    %v3640 = vunpack.c.h.b16 %v520
    %v3641 = vunpack.c.l.b16 %v521
    %v3642 = vunpack.c.h.b16 %v521
    %v3643 = vunpack.c.l.b16 %v522
    %v3644 = vunpack.c.h.b16 %v522
    %v3645 = vunpack.c.l.b16 %v523
    %v3646 = vunpack.c.h.b16 %v523
    %v3647 = vunpack.c.l.b16 %v524
    %v3648 = vunpack.c.h.b16 %v524
    %v3649 = vunpack.c.l.b16 %v525
    %v3650 = vunpack.c.h.b16 %v525
    %v3651 = vunpack.c.l.b16 %v526
    %v3652 = vunpack.c.h.b16 %v526
    %v3653 = vunpack.c.l.b16 %v527
    %v3654 = vunpack.c.h.b16 %v527
    %v3655 = vunpack.c.l.b16 %v528
    %v3656 = vunpack.c.h.b16 %v528
    %v3657 = vunpack.c.l.b16 %v529
    %v3658 = vunpack.c.h.b16 %v529
    %v3659 = vunpack.c.l.b16 %v530
    %v3660 = vunpack.c.h.b16 %v530
    %v3661 = vunpack.c.l.b16 %v531
    %v3662 = vunpack.c.h.b16 %v531
    %v3663 = vunpack.c.l.b16 %v532
    %v3664 = vunpack.c.h.b16 %v532
    %v3665 = vunpack.c.l.b16 %v533
    %v3666 = vunpack.c.h.b16 %v533
    %v3667 = vunpack.c.l.b16 %v534
    %v3668 = vunpack.c.h.b16 %v534
    %v3669 = vunpack.c.l.b16 %v535
    %v3670 = vunpack.c.h.b16 %v535
    %v3671 = vunpack.c.l.b16 %v536
    %v3672 = vunpack.c.h.b16 %v536
    %v3673 = vunpack.c.l.b16 %v537
    %v3674 = vunpack.c.h.b16 %v537
    %v3675 = vunpack.c.l.b16 %v538
    %v3676 = vunpack.c.h.b16 %v538
    %v3677 = vunpack.c.l.b16 %v539
    %v3678 = vunpack.c.h.b16 %v539
    %v3679 = vunpack.c.l.b16 %v540
    %v3680 = vunpack.c.h.b16 %v540
    %v3681 = vunpack.c.l.b16 %v541
    %v3682 = vunpack.c.h.b16 %v541
    %v3683 = vunpack.c.l.b16 %v542
    %v3684 = vunpack.c.h.b16 %v542
    %v3685 = vunpack.c.l.b16 %v543
    %v3686 = vunpack.c.h.b16 %v543
    %v3687 = vunpack.c.l.b16 %v544
    %v3688 = vunpack.c.h.b16 %v544
    %v3689 = vunpack.c.l.b16 %v545
    %v3690 = vunpack.c.h.b16 %v545
    %v3691 = vunpack.c.l.b16 %v546
    %v3692 = vunpack.c.h.b16 %v546
    %v3693 = vunpack.c.l.b16 %v547
    %v3694 = vunpack.c.h.b16 %v547
    %v3695 = vunpack.c.l.b16 %v548
    %v3696 = vunpack.c.h.b16 %v548
    %v3697 = vunpack.c.l.b16 %v549
    %v3698 = vunpack.c.h.b16 %v549
    %v3699 = vunpack.c.l.b16 %v550
    %v3700 = vunpack.c.h.b16 %v550
    %v3701 = vunpack.c.l.b16 %v551
    %v3702 = vunpack.c.h.b16 %v551
    %v3703 = vunpack.c.l.b16 %v552
    %v3704 = vunpack.c.h.b16 %v552
    %v3705 = vunpack.c.l.b16 %v553
    %v3706 = vunpack.c.h.b16 %v553
    %v3707 = vunpack.c.l.b16 %v554
    %v3708 = vunpack.c.h.b16 %v554
    %v3709 = vunpack.c.l.b16 %v555
    %v3710 = vunpack.c.h.b16 %v555
    %v3711 = vunpack.c.l.b16 %v556
    %v3712 = vunpack.c.h.b16 %v556
    %v3713 = vunpack.c.l.b16 %v557
    %v3714 = vunpack.c.h.b16 %v557
    %v3715 = vunpack.c.l.b16 %v558
    %v3716 = vunpack.c.h.b16 %v558
    %v3717 = vunpack.c.l.b16 %v559
    %v3718 = vunpack.c.h.b16 %v559
    %v3719 = vunpack.c.l.b16 %v560
    %v3720 = vunpack.c.h.b16 %v560
    %v3721 = vunpack.c.l.b16 %v561
    %v3722 = vunpack.c.h.b16 %v561
    %v3723 = vunpack.c.l.b16 %v562
    %v3724 = vunpack.c.h.b16 %v562
    %v3725 = vunpack.c.l.b16 %v563
    %v3726 = vunpack.c.h.b16 %v563
    %v3727 = vunpack.c.l.b16 %v564
    %v3728 = vunpack.c.h.b16 %v564
    %v3729 = vunpack.c.l.b16 %v565
    %v3730 = vunpack.c.h.b16 %v565
    %v3731 = vunpack.c.l.b16 %v566
    %v3732 = vunpack.c.h.b16 %v566
    %v3733 = vunpack.c.l.b16 %v567
    %v3734 = vunpack.c.h.b16 %v567
    %v3735 = vunpack.c.l.b16 %v568
    %v3736 = vunpack.c.h.b16 %v568
    %v3737 = vunpack.c.l.b16 %v569
    %v3738 = vunpack.c.h.b16 %v569
    %v3739 = vunpack.c.l.b16 %v570
    %v3740 = vunpack.c.h.b16 %v570
    %v3741 = vunpack.c.l.b16 %v571
    %v3742 = vunpack.c.h.b16 %v571
    %v3743 = vunpack.c.l.b16 %v572
    %v3744 = vunpack.c.h.b16 %v572
    %v3745 = vunpack.c.l.b16 %v573
    %v3746 = vunpack.c.h.b16 %v573
    %v3747 = vunpack.c.l.b16 %v574
    %v3748 = vunpack.c.h.b16 %v574
    %v3749 = vunpack.c.l.b16 %v575
    %v3750 = vunpack.c.h.b16 %v575
    %v3751 = vunpack.c.l.b16 %v576
    %v3752 = vunpack.c.h.b16 %v576
    %v3753 = vunpack.c.l.b16 %v577
    %v3754 = vunpack.c.h.b16 %v577
    %v3755 = vunpack.c.l.b16 %v578
    %v3756 = vunpack.c.h.b16 %v578
    %v3757 = vunpack.c.l.b16 %v579
    %v3758 = vunpack.c.h.b16 %v579
    %v3759 = vunpack.c.l.b16 %v580
    %v3760 = vunpack.c.h.b16 %v580
    %v3761 = vunpack.c.l.b16 %v581
    %v3762 = vunpack.c.h.b16 %v581
    %v3763 = vunpack.c.l.b16 %v582
    %v3764 = vunpack.c.h.b16 %v582
    %v3765 = vunpack.c.l.b16 %v583
    %v3766 = vunpack.c.h.b16 %v583
    %v3767 = vunpack.c.l.b16 %v584
    %v3768 = vunpack.c.h.b16 %v584
    %v3769 = vunpack.c.l.b16 %v585
    %v3770 = vunpack.c.h.b16 %v585
    %v3771 = vunpack.c.l.b16 %v586
    %v3772 = vunpack.c.h.b16 %v586
    %v3773 = vunpack.c.l.b16 %v587
    %v3774 = vunpack.c.h.b16 %v587
    %v3775 = vunpack.c.l.b16 %v588
    %v3776 = vunpack.c.h.b16 %v588
    %v3777 = vunpack.c.l.b16 %v589
    %v3778 = vunpack.c.h.b16 %v589
    %v3779 = vunpack.c.l.b16 %v590
    %v3780 = vunpack.c.h.b16 %v590
    %v3781 = vunpack.c.l.b16 %v591
    %v3782 = vunpack.c.h.b16 %v591
    %v3783 = vunpack.c.l.b16 %v592
    %v3784 = vunpack.c.h.b16 %v592
    %v3785 = vunpack.c.l.b16 %v593
    %v3786 = vunpack.c.h.b16 %v593
    %v3787 = vunpack.c.l.b16 %v594
    %v3788 = vunpack.c.h.b16 %v594
    %v3789 = vunpack.c.l.b16 %v595
    %v3790 = vunpack.c.h.b16 %v595
    %v3791 = vunpack.c.l.b16 %v596
    %v3792 = vunpack.c.h.b16 %v596
    %v3793 = vunpack.c.l.b16 %v597
    %v3794 = vunpack.c.h.b16 %v597
    %v3795 = vunpack.c.l.b16 %v598
    %v3796 = vunpack.c.h.b16 %v598
    %v3797 = vunpack.c.l.b16 %v599
    %v3798 = vunpack.c.h.b16 %v599
    %v3799 = vunpack.c.l.b16 %v600
    %v3800 = vunpack.c.h.b16 %v600
    %v3801 = vunpack.c.l.b16 %v601
    %v3802 = vunpack.c.h.b16 %v601
    %v3803 = vunpack.c.l.b16 %v602
    %v3804 = vunpack.c.h.b16 %v602
    %v3805 = vunpack.c.l.b16 %v603
    %v3806 = vunpack.c.h.b16 %v603
    %v3807 = vunpack.c.l.b16 %v604
    %v3808 = vunpack.c.h.b16 %v604
    %v3809 = vunpack.c.l.b16 %v605
    %v3810 = vunpack.c.h.b16 %v605
    %v3811 = vunpack.c.l.b16 %v606
    %v3812 = vunpack.c.h.b16 %v606
    %v3813 = vunpack.c.l.b16 %v607
    %v3814 = vunpack.c.h.b16 %v607
    %v3815 = vunpack.c.l.b16 %v608
    %v3816 = vunpack.c.h.b16 %v608
    %v3817 = vunpack.c.l.b16 %v609
    %v3818 = vunpack.c.h.b16 %v609
    %v3819 = vunpack.c.l.b16 %v610
    %v3820 = vunpack.c.h.b16 %v610
    %v3821 = vunpack.c.l.b16 %v611
    %v3822 = vunpack.c.h.b16 %v611
    %v3823 = vunpack.c.l.b16 %v612
    %v3824 = vunpack.c.h.b16 %v612
    %v3825 = vunpack.c.l.b16 %v613
    %v3826 = vunpack.c.h.b16 %v613
    %v3827 = vunpack.c.l.b16 %v614
    %v3828 = vunpack.c.h.b16 %v614
    %v3829 = vunpack.c.l.b16 %v615
    %v3830 = vunpack.c.h.b16 %v615
    %v3831 = vunpack.c.l.b16 %v616
    %v3832 = vunpack.c.h.b16 %v616
    %v3833 = vunpack.c.l.b16 %v617
    %v3834 = vunpack.c.h.b16 %v617
    %v3835 = vunpack.c.l.b16 %v618
    %v3836 = vunpack.c.h.b16 %v618
    %v3837 = vunpack.c.l.b16 %v619
    %v3838 = vunpack.c.h.b16 %v619
    %v3839 = vunpack.c.l.b16 %v620
    %v3840 = vunpack.c.h.b16 %v620
    %v3841 = vunpack.c.l.b16 %v621
    %v3842 = vunpack.c.h.b16 %v621
    %v3843 = vunpack.c.l.b16 %v622
    %v3844 = vunpack.c.h.b16 %v622
    %v3845 = vunpack.c.l.b16 %v623
    %v3846 = vunpack.c.h.b16 %v623
    %v3847 = vunpack.c.l.b16 %v624
    %v3848 = vunpack.c.h.b16 %v624
    %v3849 = vunpack.c.l.b16 %v625
    %v3850 = vunpack.c.h.b16 %v625
    %v3851 = vunpack.c.l.b16 %v626
    %v3852 = vunpack.c.h.b16 %v626
    %v3853 = vunpack.c.l.b16 %v627
    %v3854 = vunpack.c.h.b16 %v627
    %v3855 = vunpack.c.l.b16 %v628
    %v3856 = vunpack.c.h.b16 %v628
    %v3857 = vunpack.c.l.b16 %v629
    %v3858 = vunpack.c.h.b16 %v629
    %v3859 = vunpack.c.l.b16 %v630
    %v3860 = vunpack.c.h.b16 %v630
    %v3861 = vunpack.c.l.b16 %v631
    %v3862 = vunpack.c.h.b16 %v631
    %v3863 = vunpack.c.l.b16 %v632
    %v3864 = vunpack.c.h.b16 %v632
    %v3865 = vunpack.c.l.b16 %v633
    %v3866 = vunpack.c.h.b16 %v633
    %v3867 = vunpack.c.l.b16 %v634
    %v3868 = vunpack.c.h.b16 %v634
    %v3869 = vunpack.c.l.b16 %v635
    %v3870 = vunpack.c.h.b16 %v635
    %v3871 = vunpack.c.l.b16 %v636
    %v3872 = vunpack.c.h.b16 %v636
    %v3873 = vunpack.c.l.b16 %v637
    %v3874 = vunpack.c.h.b16 %v637
    %v3875 = vunpack.c.l.b16 %v638
    %v3876 = vunpack.c.h.b16 %v638
    %v3877 = vunpack.c.l.b16 %v639
    %v3878 = vunpack.c.h.b16 %v639
    %v3879 = vunpack.c.l.b16 %v640
    %v3880 = vunpack.c.h.b16 %v640
    %v3881 = vunpack.c.l.b16 %v641
    %v3882 = vunpack.c.h.b16 %v641
    %v3883 = vunpack.c.l.b16 %v642
    %v3884 = vunpack.c.h.b16 %v642
    %v3885 = vunpack.c.l.b16 %v643
    %v3886 = vunpack.c.h.b16 %v643
    %v3887 = vunpack.c.l.b16 %v644
    %v3888 = vunpack.c.h.b16 %v644
    %v3889 = vunpack.c.l.b16 %v645
    %v3890 = vunpack.c.h.b16 %v645
    %v3891 = vunpack.c.l.b16 %v646
    %v3892 = vunpack.c.h.b16 %v646
    %v3893 = vunpack.c.l.b16 %v647
    %v3894 = vunpack.c.h.b16 %v647
    %v3895 = vunpack.c.l.b16 %v648
    %v3896 = vunpack.c.h.b16 %v648
    %v3897 = vunpack.c.l.b16 %v649
    %v3898 = vunpack.c.h.b16 %v649
    %v3899 = vunpack.c.l.b16 %v650
    %v3900 = vunpack.c.h.b16 %v650
    %v3901 = vunpack.c.l.b16 %v651
    %v3902 = vunpack.c.h.b16 %v651
    %v3903 = vunpack.c.l.b16 %v652
    %v3904 = vunpack.c.h.b16 %v652
    %v3905 = vunpack.c.l.b16 %v653
    %v3906 = vunpack.c.h.b16 %v653
    %v3907 = vunpack.c.l.b16 %v654
    %v3908 = vunpack.c.h.b16 %v654
    %v3909 = vunpack.c.l.b16 %v655
    %v3910 = vunpack.c.h.b16 %v655
    %v3911 = vunpack.c.l.b16 %v656
    %v3912 = vunpack.c.h.b16 %v656
    %v3913 = vunpack.c.l.b16 %v657
    %v3914 = vunpack.c.h.b16 %v657
    %v3915 = vunpack.c.l.b16 %v658
    %v3916 = vunpack.c.h.b16 %v658
    %v3917 = vunpack.c.l.b16 %v659
    %v3918 = vunpack.c.h.b16 %v659
    %v3919 = vunpack.c.l.b16 %v660
    %v3920 = vunpack.c.h.b16 %v660
    %v3921 = vunpack.c.l.b16 %v661
    %v3922 = vunpack.c.h.b16 %v661
    %v3923 = vunpack.c.l.b16 %v662
    %v3924 = vunpack.c.h.b16 %v662
    %v3925 = vunpack.c.l.b16 %v663
    %v3926 = vunpack.c.h.b16 %v663
    %v3927 = vunpack.c.l.b16 %v664
    %v3928 = vunpack.c.h.b16 %v664
    %v3929 = vunpack.c.l.b16 %v665
    %v3930 = vunpack.c.h.b16 %v665
    %v3931 = vunpack.c.l.b16 %v666
    %v3932 = vunpack.c.h.b16 %v666
    %v3933 = vunpack.c.l.b16 %v667
    %v3934 = vunpack.c.h.b16 %v667
    %v3935 = vunpack.c.l.b16 %v668
    %v3936 = vunpack.c.h.b16 %v668
    %v3937 = vunpack.c.l.b16 %v669
    %v3938 = vunpack.c.h.b16 %v669
    %v3939 = vunpack.c.l.b16 %v670
    %v3940 = vunpack.c.h.b16 %v670
    %v3941 = vunpack.c.l.b16 %v671
    %v3942 = vunpack.c.h.b16 %v671
    %v3943 = vunpack.c.l.b16 %v672
    %v3944 = vunpack.c.h.b16 %v672
    %v3945 = vunpack.c.l.b16 %v673
    %v3946 = vunpack.c.h.b16 %v673
    %v3947 = vunpack.c.l.b16 %v674
    %v3948 = vunpack.c.h.b16 %v674
    %v3949 = vunpack.c.l.b16 %v675
    %v3950 = vunpack.c.h.b16 %v675
    %v3951 = vunpack.c.l.b16 %v676
    %v3952 = vunpack.c.h.b16 %v676
    %v3953 = vunpack.c.l.b16 %v677
    %v3954 = vunpack.c.h.b16 %v677
    %v3955 = vunpack.c.l.b16 %v678
    %v3956 = vunpack.c.h.b16 %v678
    %v3957 = vunpack.c.l.b16 %v679
    %v3958 = vunpack.c.h.b16 %v679
    %v3959 = vunpack.c.l.b16 %v680
    %v3960 = vunpack.c.h.b16 %v680
    %v3961 = vunpack.c.l.b16 %v681
    %v3962 = vunpack.c.h.b16 %v681
    %v3963 = vunpack.c.l.b16 %v682
    %v3964 = vunpack.c.h.b16 %v682
    %v3965 = vunpack.c.l.b16 %v683
    %v3966 = vunpack.c.h.b16 %v683
    %v3967 = vunpack.c.l.b16 %v684
    %v3968 = vunpack.c.h.b16 %v684
    %v3969 = vunpack.c.l.b16 %v685
    %v3970 = vunpack.c.h.b16 %v685
    %v3971 = vunpack.c.l.b16 %v686
    %v3972 = vunpack.c.h.b16 %v686
    %v3973 = vunpack.c.l.b16 %v687
    %v3974 = vunpack.c.h.b16 %v687
    %v3975 = vunpack.c.l.b16 %v688
    %v3976 = vunpack.c.h.b16 %v688
    %v3977 = vunpack.c.l.b16 %v689
    %v3978 = vunpack.c.h.b16 %v689
    %v3979 = vunpack.c.l.b16 %v690
    %v3980 = vunpack.c.h.b16 %v690
    %v3981 = vunpack.c.l.b16 %v691
    %v3982 = vunpack.c.h.b16 %v691
    %v3983 = vunpack.c.l.b16 %v692
    %v3984 = vunpack.c.h.b16 %v692
    %v3985 = vunpack.c.l.b16 %v693
    %v3986 = vunpack.c.h.b16 %v693
    %v3987 = vunpack.c.l.b16 %v694
    %v3988 = vunpack.c.h.b16 %v694
    %v3989 = vunpack.c.l.b16 %v695
    %v3990 = vunpack.c.h.b16 %v695
    %v3991 = vunpack.c.l.b16 %v696
    %v3992 = vunpack.c.h.b16 %v696
    %v3993 = vunpack.c.l.b16 %v697
    %v3994 = vunpack.c.h.b16 %v697
    %v3995 = vunpack.c.l.b16 %v698
    %v3996 = vunpack.c.h.b16 %v698
    %v3997 = vunpack.c.l.b16 %v699
    %v3998 = vunpack.c.h.b16 %v699
    %v3999 = vunpack.c.l.b16 %v700
    %v4000 = vunpack.c.h.b16 %v700
    %v4001 = vunpack.c.l.b16 %v701
    %v4002 = vunpack.c.h.b16 %v701
    %v4003 = vunpack.c.l.b16 %v702
    %v4004 = vunpack.c.h.b16 %v702
    %v4005 = vunpack.c.l.b16 %v703
    %v4006 = vunpack.c.h.b16 %v703
    %v4007 = vunpack.c.l.b16 %v704
    %v4008 = vunpack.c.h.b16 %v704
    %v4009 = vunpack.c.l.b16 %v705
    %v4010 = vunpack.c.h.b16 %v705
    %v4011 = vunpack.c.l.b16 %v706
    %v4012 = vunpack.c.h.b16 %v706
    %v4013 = vunpack.c.l.b16 %v707
    %v4014 = vunpack.c.h.b16 %v707
    %v4015 = vunpack.c.l.b16 %v708
    %v4016 = vunpack.c.h.b16 %v708
    %v4017 = vunpack.c.l.b16 %v709
    %v4018 = vunpack.c.h.b16 %v709
    %v4019 = vunpack.c.l.b16 %v710
    %v4020 = vunpack.c.h.b16 %v710
    %v4021 = vunpack.c.l.b16 %v711
    %v4022 = vunpack.c.h.b16 %v711
    %v4023 = vunpack.c.l.b16 %v712
    %v4024 = vunpack.c.h.b16 %v712
    %v4025 = vunpack.c.l.b16 %v713
    %v4026 = vunpack.c.h.b16 %v713
    %v4027 = vunpack.c.l.b16 %v714
    %v4028 = vunpack.c.h.b16 %v714
    %v4029 = vunpack.c.l.b16 %v715
    %v4030 = vunpack.c.h.b16 %v715
    %v4031 = vunpack.c.l.b16 %v716
    %v4032 = vunpack.c.h.b16 %v716
    %v4033 = vunpack.c.l.b16 %v717
    %v4034 = vunpack.c.h.b16 %v717
    %v4035 = vunpack.c.l.b16 %v718
    %v4036 = vunpack.c.h.b16 %v718
    %v4037 = vunpack.c.l.b16 %v719
    %v4038 = vunpack.c.h.b16 %v719
    %v4039 = vunpack.c.l.b16 %v720
    %v4040 = vunpack.c.h.b16 %v720
    %v4041 = vunpack.c.l.b16 %v721
    %v4042 = vunpack.c.h.b16 %v721
    %v4043 = vunpack.c.l.b16 %v722
    %v4044 = vunpack.c.h.b16 %v722
    %v4045 = vunpack.c.l.b16 %v723
    %v4046 = vunpack.c.h.b16 %v723
    %v4047 = vunpack.c.l.b16 %v724
    %v4048 = vunpack.c.h.b16 %v724
    %v4049 = vunpack.c.l.b16 %v725
    %v4050 = vunpack.c.h.b16 %v725
    %v4051 = vunpack.c.l.b16 %v726
    %v4052 = vunpack.c.h.b16 %v726
    %v4053 = vunpack.c.l.b16 %v727
    %v4054 = vunpack.c.h.b16 %v727
    %v4055 = vunpack.c.l.b16 %v728
    %v4056 = vunpack.c.h.b16 %v728
    %v4057 = vunpack.c.l.b16 %v729
    %v4058 = vunpack.c.h.b16 %v729
    %v4059 = vunpack.c.l.b16 %v730
    %v4060 = vunpack.c.h.b16 %v730
    %v4061 = vunpack.c.l.b16 %v731
    %v4062 = vunpack.c.h.b16 %v731
    %v4063 = vunpack.c.l.b16 %v732
    %v4064 = vunpack.c.h.b16 %v732
    %v4065 = vunpack.c.l.b16 %v733
    %v4066 = vunpack.c.h.b16 %v733
    %v4067 = vunpack.c.l.b16 %v734
    %v4068 = vunpack.c.h.b16 %v734
    %v4069 = vunpack.c.l.b16 %v735
    %v4070 = vunpack.c.h.b16 %v735
    %v4071 = vunpack.c.l.b16 %v736
    %v4072 = vunpack.c.h.b16 %v736
    %v4073 = vunpack.c.l.b16 %v737
    %v4074 = vunpack.c.h.b16 %v737
    %v4075 = vunpack.c.l.b16 %v738
    %v4076 = vunpack.c.h.b16 %v738
    %v4077 = vunpack.c.l.b16 %v739
    %v4078 = vunpack.c.h.b16 %v739
    %v4079 = vunpack.c.l.b16 %v740
    %v4080 = vunpack.c.h.b16 %v740
    %v4081 = vunpack.c.l.b16 %v741
    %v4082 = vunpack.c.h.b16 %v741
    %v4083 = vunpack.c.l.b16 %v742
    %v4084 = vunpack.c.h.b16 %v742
    %v4085 = vunpack.c.l.b16 %v743
    %v4086 = vunpack.c.h.b16 %v743
    %v4087 = vunpack.c.l.b16 %v744
    %v4088 = vunpack.c.h.b16 %v744
    %v4089 = vunpack.c.l.b16 %v745
    %v4090 = vunpack.c.h.b16 %v745
    %v4091 = vunpack.c.l.b16 %v746
    %v4092 = vunpack.c.h.b16 %v746
    %v4093 = vunpack.c.l.b16 %v747
    %v4094 = vunpack.c.h.b16 %v747
    %v4095 = vunpack.c.l.b16 %v748
    %v4096 = vunpack.c.h.b16 %v748
    %v4097 = vunpack.c.l.b16 %v749
    %v4098 = vunpack.c.h.b16 %v749
    %v4099 = vunpack.c.l.b16 %v750
    %v4100 = vunpack.c.h.b16 %v750
    %v4101 = vunpack.c.l.b16 %v751
    %v4102 = vunpack.c.h.b16 %v751
    %v4103 = vunpack.c.l.b16 %v752
    %v4104 = vunpack.c.h.b16 %v752
    %v4105 = vunpack.c.l.b16 %v753
    %v4106 = vunpack.c.h.b16 %v753
    %v4107 = vunpack.c.l.b16 %v754
    %v4108 = vunpack.c.h.b16 %v754
    %v4109 = vunpack.c.l.b16 %v755
    %v4110 = vunpack.c.h.b16 %v755
    %v4111 = vunpack.c.l.b16 %v756
    %v4112 = vunpack.c.h.b16 %v756
    %v4113 = vunpack.c.l.b16 %v757
    %v4114 = vunpack.c.h.b16 %v757
    %v4115 = vunpack.c.l.b16 %v758
    %v4116 = vunpack.c.h.b16 %v758
    %v4117 = vunpack.c.l.b16 %v759
    %v4118 = vunpack.c.h.b16 %v759
    %v4119 = vunpack.c.l.b16 %v760
    %v4120 = vunpack.c.h.b16 %v760
    %v4121 = vunpack.c.l.b16 %v761
    %v4122 = vunpack.c.h.b16 %v761
    %v4123 = vunpack.c.l.b16 %v762
    %v4124 = vunpack.c.h.b16 %v762
    %v4125 = vunpack.c.l.b16 %v763
    %v4126 = vunpack.c.h.b16 %v763
    %v4127 = vunpack.c.l.b16 %v764
    %v4128 = vunpack.c.h.b16 %v764
    %v4129 = vunpack.c.l.b16 %v765
    %v4130 = vunpack.c.h.b16 %v765
    %v4131 = vunpack.c.l.b16 %v766
    %v4132 = vunpack.c.h.b16 %v766
    %v4133 = vunpack.c.l.b16 %v767
    %v4134 = vunpack.c.h.b16 %v767
    %v4135 = vunpack.c.l.b16 %v768
    %v4136 = vunpack.c.h.b16 %v768
    %v4137 = vunpack.c.l.b16 %v769
    %v4138 = vunpack.c.h.b16 %v769
    %v4139 = vunpack.c.l.b16 %v770
    %v4140 = vunpack.c.h.b16 %v770
    %v4141 = vunpack.c.l.b16 %v771
    %v4142 = vunpack.c.h.b16 %v771
    %v4143 = vunpack.c.l.b16 %v772
    %v4144 = vunpack.c.h.b16 %v772
    %v4145 = vunpack.c.l.b16 %v773
    %v4146 = vunpack.c.h.b16 %v773
    %v4147 = vunpack.c.l.b16 %v774
    %v4148 = vunpack.c.h.b16 %v774
    %v4149 = vunpack.c.l.b16 %v775
    %v4150 = vunpack.c.h.b16 %v775
    %v4151 = vunpack.c.l.b16 %v776
    %v4152 = vunpack.c.h.b16 %v776
    %v4153 = vunpack.c.l.b16 %v777
    %v4154 = vunpack.c.h.b16 %v777
    %v4155 = vunpack.c.l.b16 %v778
    %v4156 = vunpack.c.h.b16 %v778
    %v4157 = vunpack.c.l.b16 %v779
    %v4158 = vunpack.c.h.b16 %v779
    %v4159 = vunpack.c.l.b16 %v780
    %v4160 = vunpack.c.h.b16 %v780
    %v4161 = vunpack.c.l.b16 %v781
    %v4162 = vunpack.c.h.b16 %v781
    %v4163 = vunpack.c.l.b16 %v782
    %v4164 = vunpack.c.h.b16 %v782
    %v4165 = vunpack.c.l.b16 %v783
    %v4166 = vunpack.c.h.b16 %v783
    %v4167 = vunpack.c.l.b16 %v784
    %v4168 = vunpack.c.h.b16 %v784
    %v4169 = vunpack.c.l.b16 %v785
    %v4170 = vunpack.c.h.b16 %v785
    %v4171 = vunpack.c.l.b16 %v786
    %v4172 = vunpack.c.h.b16 %v786
    %v4173 = vunpack.c.l.b16 %v787
    %v4174 = vunpack.c.h.b16 %v787
    %v4175 = vunpack.c.l.b16 %v788
    %v4176 = vunpack.c.h.b16 %v788
    %v4177 = vunpack.c.l.b16 %v789
    %v4178 = vunpack.c.h.b16 %v789
    %v4179 = vunpack.c.l.b16 %v790
    %v4180 = vunpack.c.h.b16 %v790
    %v4181 = vunpack.c.l.b16 %v791
    %v4182 = vunpack.c.h.b16 %v791
    %v4183 = vunpack.c.l.b16 %v792
    %v4184 = vunpack.c.h.b16 %v792
    %v4185 = vunpack.c.l.b16 %v793
    %v4186 = vunpack.c.h.b16 %v793
    %v4187 = vunpack.c.l.b16 %v794
    %v4188 = vunpack.c.h.b16 %v794
    %v4189 = vunpack.c.l.b16 %v795
    %v4190 = vunpack.c.h.b16 %v795
    %v4191 = vunpack.c.l.b16 %v796
    %v4192 = vunpack.c.h.b16 %v796
    %v4193 = vunpack.c.l.b16 %v797
    %v4194 = vunpack.c.h.b16 %v797
    %v4195 = vunpack.c.l.b16 %v798
    %v4196 = vunpack.c.h.b16 %v798
    %v4197 = vunpack.c.l.b16 %v799
    %v4198 = vunpack.c.h.b16 %v799
    %v4199 = vunpack.c.l.b16 %v800
    %v4200 = vunpack.c.h.b16 %v800
    %v4201 = vunpack.c.l.b16 %v801
    %v4202 = vunpack.c.h.b16 %v801
    %v4203 = vunpack.c.l.b16 %v802
    %v4204 = vunpack.c.h.b16 %v802
    %v4205 = vunpack.c.l.b16 %v803
    %v4206 = vunpack.c.h.b16 %v803
    %v4207 = vunpack.c.l.b16 %v804
    %v4208 = vunpack.c.h.b16 %v804
    %v4209 = vunpack.c.l.b16 %v805
    %v4210 = vunpack.c.h.b16 %v805
    %v4211 = vunpack.c.l.b16 %v806
    %v4212 = vunpack.c.h.b16 %v806
    %v4213 = vunpack.c.l.b16 %v807
    %v4214 = vunpack.c.h.b16 %v807
    %v4215 = vunpack.c.l.b16 %v808
    %v4216 = vunpack.c.h.b16 %v808
    %v4217 = vunpack.c.l.b16 %v809
    %v4218 = vunpack.c.h.b16 %v809
    %v4219 = vunpack.c.l.b16 %v810
    %v4220 = vunpack.c.h.b16 %v810
    %v4221 = vunpack.c.l.b16 %v811
    %v4222 = vunpack.c.h.b16 %v811
    %v4223 = vunpack.c.l.b16 %v812
    %v4224 = vunpack.c.h.b16 %v812
    %v4225 = vunpack.c.l.b16 %v813
    %v4226 = vunpack.c.h.b16 %v813
    %v4227 = vunpack.c.l.b16 %v814
    %v4228 = vunpack.c.h.b16 %v814
    %v4229 = vunpack.c.l.b16 %v815
    %v4230 = vunpack.c.h.b16 %v815
    %v4231 = vunpack.c.l.b16 %v816
    %v4232 = vunpack.c.h.b16 %v816
    %v4233 = vunpack.c.l.b16 %v817
    %v4234 = vunpack.c.h.b16 %v817
    %v4235 = vunpack.c.l.b16 %v818
    %v4236 = vunpack.c.h.b16 %v818
    %v4237 = vunpack.c.l.b16 %v819
    %v4238 = vunpack.c.h.b16 %v819
    %v4239 = vunpack.c.l.b16 %v820
    %v4240 = vunpack.c.h.b16 %v820
    %v4241 = vunpack.c.l.b16 %v821
    %v4242 = vunpack.c.h.b16 %v821
    %v4243 = vunpack.c.l.b16 %v822
    %v4244 = vunpack.c.h.b16 %v822
    %v4245 = vunpack.c.l.b16 %v823
    %v4246 = vunpack.c.h.b16 %v823
    %v4247 = vunpack.c.l.b16 %v824
    %v4248 = vunpack.c.h.b16 %v824
    %v4249 = vunpack.c.l.b16 %v825
    %v4250 = vunpack.c.h.b16 %v825
    %v4251 = vunpack.c.l.b16 %v826
    %v4252 = vunpack.c.h.b16 %v826
    %v4253 = vunpack.c.l.b16 %v827
    %v4254 = vunpack.c.h.b16 %v827
    %v4255 = vunpack.c.l.b16 %v828
    %v4256 = vunpack.c.h.b16 %v828
    %v4257 = vunpack.c.l.b16 %v829
    %v4258 = vunpack.c.h.b16 %v829
    %v4259 = vunpack.c.l.b16 %v830
    %v4260 = vunpack.c.h.b16 %v830
    %v4261 = vunpack.c.l.b16 %v831
    %v4262 = vunpack.c.h.b16 %v831
    %v4263 = vunpack.c.l.b16 %v832
    %v4264 = vunpack.c.h.b16 %v832
    %v4265 = vunpack.c.l.b16 %v833
    %v4266 = vunpack.c.h.b16 %v833
    %v4267 = vunpack.c.l.b16 %v834
    %v4268 = vunpack.c.h.b16 %v834
    %v4269 = vunpack.c.l.b16 %v835
    %v4270 = vunpack.c.h.b16 %v835
    %v4271 = vunpack.c.l.b16 %v836
    %v4272 = vunpack.c.h.b16 %v836
    %v4273 = vunpack.c.l.b16 %v837
    %v4274 = vunpack.c.h.b16 %v837
    %v4275 = vunpack.c.l.b16 %v838
    %v4276 = vunpack.c.h.b16 %v838
    %v4277 = vunpack.c.l.b16 %v839
    %v4278 = vunpack.c.h.b16 %v839
    %v4279 = vunpack.c.l.b16 %v840
    %v4280 = vunpack.c.h.b16 %v840
    %v4281 = vunpack.c.l.b16 %v841
    %v4282 = vunpack.c.h.b16 %v841
    %v4283 = vunpack.c.l.b16 %v842
    %v4284 = vunpack.c.h.b16 %v842
    %v4285 = vunpack.c.l.b16 %v843
    %v4286 = vunpack.c.h.b16 %v843
    %v4287 = vunpack.c.l.b16 %v844
    %v4288 = vunpack.c.h.b16 %v844
    %v4289 = vunpack.c.l.b16 %v845
    %v4290 = vunpack.c.h.b16 %v845
    %v4291 = vunpack.c.l.b16 %v846
    %v4292 = vunpack.c.h.b16 %v846
    %v4293 = vunpack.c.l.b16 %v847
    %v4294 = vunpack.c.h.b16 %v847
    %v4295 = vunpack.c.l.b16 %v848
    %v4296 = vunpack.c.h.b16 %v848
    %v4297 = vunpack.c.l.b16 %v849
    %v4298 = vunpack.c.h.b16 %v849
    %v4299 = vunpack.c.l.b16 %v850
    %v4300 = vunpack.c.h.b16 %v850
    %v4301 = vunpack.c.l.b16 %v851
    %v4302 = vunpack.c.h.b16 %v851
    %v4303 = vunpack.c.l.b16 %v852
    %v4304 = vunpack.c.h.b16 %v852
    %v4305 = vunpack.c.l.b16 %v853
    %v4306 = vunpack.c.h.b16 %v853
    %v4307 = vunpack.c.l.b16 %v854
    %v4308 = vunpack.c.h.b16 %v854
    %v4309 = vunpack.c.l.b16 %v855
    %v4310 = vunpack.c.h.b16 %v855
    %v4311 = vunpack.c.l.b16 %v856
    %v4312 = vunpack.c.h.b16 %v856
    %v4313 = vunpack.c.l.b16 %v857
    %v4314 = vunpack.c.h.b16 %v857
    %v4315 = vunpack.c.l.b16 %v858
    %v4316 = vunpack.c.h.b16 %v858
    %v4317 = vunpack.c.l.b16 %v859
    %v4318 = vunpack.c.h.b16 %v859
    %v4319 = vunpack.c.l.b16 %v860
    %v4320 = vunpack.c.h.b16 %v860
    %v4321 = vunpack.c.l.b16 %v861
    %v4322 = vunpack.c.h.b16 %v861
    %v4323 = vunpack.c.l.b16 %v862
    %v4324 = vunpack.c.h.b16 %v862
    %v4325 = vunpack.c.l.b16 %v863
    %v4326 = vunpack.c.h.b16 %v863
    %v4327 = vunpack.c.l.b16 %v864
    %v4328 = vunpack.c.h.b16 %v864
    %v4329 = vunpack.c.l.b16 %v865
    %v4330 = vunpack.c.h.b16 %v865
    %v4331 = vunpack.c.l.b16 %v866
    %v4332 = vunpack.c.h.b16 %v866
    %v4333 = vunpack.c.l.b16 %v867
    %v4334 = vunpack.c.h.b16 %v867
    %v4335 = vunpack.c.l.b16 %v868
    %v4336 = vunpack.c.h.b16 %v868
    %v4337 = vunpack.c.l.b16 %v869
    %v4338 = vunpack.c.h.b16 %v869
    %v4339 = vunpack.c.l.b16 %v870
    %v4340 = vunpack.c.h.b16 %v870
    %v4341 = vunpack.c.l.b16 %v871
    %v4342 = vunpack.c.h.b16 %v871
    %v4343 = vunpack.c.l.b16 %v872
    %v4344 = vunpack.c.h.b16 %v872
    %v4345 = vunpack.c.l.b16 %v873
    %v4346 = vunpack.c.h.b16 %v873
    %v4347 = vunpack.c.l.b16 %v874
    %v4348 = vunpack.c.h.b16 %v874
    %v4349 = vunpack.c.l.b16 %v875
    %v4350 = vunpack.c.h.b16 %v875
    %v4351 = vunpack.c.l.b16 %v876
    %v4352 = vunpack.c.h.b16 %v876
    %v4353 = vunpack.c.l.b16 %v877
    %v4354 = vunpack.c.h.b16 %v877
    %v4355 = vunpack.c.l.b16 %v878
    %v4356 = vunpack.c.h.b16 %v878
    %v4357 = vunpack.c.l.b16 %v879
    %v4358 = vunpack.c.h.b16 %v879
    %v4359 = vunpack.c.l.b16 %v880
    %v4360 = vunpack.c.h.b16 %v880
    %v4361 = vunpack.c.l.b16 %v881
    %v4362 = vunpack.c.h.b16 %v881
    %v4363 = vunpack.c.l.b16 %v882
    %v4364 = vunpack.c.h.b16 %v882
    %v4365 = vunpack.c.l.b16 %v883
    %v4366 = vunpack.c.h.b16 %v883
    %v4367 = vunpack.c.l.b16 %v884
    %v4368 = vunpack.c.h.b16 %v884
    %v4369 = vunpack.c.l.b16 %v885
    %v4370 = vunpack.c.h.b16 %v885
    %v4371 = vunpack.c.l.b16 %v886
    %v4372 = vunpack.c.h.b16 %v886
    %v4373 = vunpack.c.l.b16 %v887
    %v4374 = vunpack.c.h.b16 %v887
    %v4375 = vunpack.c.l.b16 %v888
    %v4376 = vunpack.c.h.b16 %v888
    %v4377 = vunpack.c.l.b16 %v889
    %v4378 = vunpack.c.h.b16 %v889
    %v4379 = vunpack.c.l.b16 %v890
    %v4380 = vunpack.c.h.b16 %v890
    %v4381 = vunpack.c.l.b16 %v891
    %v4382 = vunpack.c.h.b16 %v891
    %v4383 = vunpack.c.l.b16 %v892
    %v4384 = vunpack.c.h.b16 %v892
    %v4385 = vunpack.c.l.b16 %v893
    %v4386 = vunpack.c.h.b16 %v893
    %v4387 = vunpack.c.l.b16 %v894
    %v4388 = vunpack.c.h.b16 %v894
    %v4389 = vunpack.c.l.b16 %v895
    %v4390 = vunpack.c.h.b16 %v895
    %v4391 = vunpack.c.l.b16 %v896
    %v4392 = vunpack.c.h.b16 %v896
    %v4393 = vunpack.c.l.b16 %v897
    %v4394 = vunpack.c.h.b16 %v897
    %v4395 = vunpack.c.l.b16 %v898
    %v4396 = vunpack.c.h.b16 %v898
    %v4397 = vunpack.c.l.b16 %v899
    %v4398 = vunpack.c.h.b16 %v899
    %v4399 = vunpack.c.l.b16 %v900
    %v4400 = vunpack.c.h.b16 %v900
    %v4401 = vunpack.c.l.b16 %v901
    %v4402 = vunpack.c.h.b16 %v901
    %v4403 = vunpack.c.l.b16 %v902
    %v4404 = vunpack.c.h.b16 %v902
    %v4405 = vunpack.c.l.b16 %v903
    %v4406 = vunpack.c.h.b16 %v903
    %v4407 = vunpack.c.l.b16 %v904
    %v4408 = vunpack.c.h.b16 %v904
    %v4409 = vunpack.c.l.b16 %v905
    %v4410 = vunpack.c.h.b16 %v905
    %v4411 = vunpack.c.l.b16 %v906
    %v4412 = vunpack.c.h.b16 %v906
    %v4413 = vunpack.c.l.b16 %v907
    %v4414 = vunpack.c.h.b16 %v907
    %v4415 = vunpack.c.l.b16 %v908
    %v4416 = vunpack.c.h.b16 %v908
    %v4417 = vunpack.c.l.b16 %v909
    %v4418 = vunpack.c.h.b16 %v909
    %v4419 = vunpack.c.l.b16 %v910
    %v4420 = vunpack.c.h.b16 %v910
    %v4421 = vunpack.c.l.b16 %v911
    %v4422 = vunpack.c.h.b16 %v911
    %v4423 = vunpack.c.l.b16 %v912
    %v4424 = vunpack.c.h.b16 %v912
    %v4425 = vunpack.c.l.b16 %v913
    %v4426 = vunpack.c.h.b16 %v913
    %v4427 = vunpack.c.l.b16 %v914
    %v4428 = vunpack.c.h.b16 %v914
    %v4429 = vunpack.c.l.b16 %v915
    %v4430 = vunpack.c.h.b16 %v915
    %v4431 = vunpack.c.l.b16 %v916
    %v4432 = vunpack.c.h.b16 %v916
    %v4433 = vunpack.c.l.b16 %v917
    %v4434 = vunpack.c.h.b16 %v917
    %v4435 = vunpack.c.l.b16 %v918
    %v4436 = vunpack.c.h.b16 %v918
    %v4437 = vunpack.c.l.b16 %v919
    %v4438 = vunpack.c.h.b16 %v919
    %v4439 = vunpack.c.l.b16 %v920
    %v4440 = vunpack.c.h.b16 %v920
    %v4441 = vunpack.c.l.b16 %v921
    %v4442 = vunpack.c.h.b16 %v921
    %v4443 = vunpack.c.l.b16 %v922
    %v4444 = vunpack.c.h.b16 %v922
    %v4445 = vunpack.c.l.b16 %v923
    %v4446 = vunpack.c.h.b16 %v923
    %v4447 = vunpack.c.l.b16 %v924
    %v4448 = vunpack.c.h.b16 %v924
    %v4449 = vunpack.c.l.b16 %v925
    %v4450 = vunpack.c.h.b16 %v925
    %v4451 = vunpack.c.l.b16 %v926
    %v4452 = vunpack.c.h.b16 %v926
    %v4453 = vunpack.c.l.b16 %v927
    %v4454 = vunpack.c.h.b16 %v927
    %v4455 = vunpack.c.l.b16 %v928
    %v4456 = vunpack.c.h.b16 %v928
    %v4457 = vunpack.c.l.b16 %v929
    %v4458 = vunpack.c.h.b16 %v929
    %v4459 = vunpack.c.l.b16 %v930
    %v4460 = vunpack.c.h.b16 %v930
    %v4461 = vunpack.c.l.b16 %v931
    %v4462 = vunpack.c.h.b16 %v931
    %v4463 = vunpack.c.l.b16 %v932
    %v4464 = vunpack.c.h.b16 %v932
    %v4465 = vunpack.c.l.b16 %v933
    %v4466 = vunpack.c.h.b16 %v933
    %v4467 = vunpack.c.l.b16 %v934
    %v4468 = vunpack.c.h.b16 %v934
    %v4469 = vunpack.c.l.b16 %v935
    %v4470 = vunpack.c.h.b16 %v935
    %v4471 = vunpack.c.l.b16 %v936
    %v4472 = vunpack.c.h.b16 %v936
    %v4473 = vunpack.c.l.b16 %v937
    %v4474 = vunpack.c.h.b16 %v937
    %v4475 = vunpack.c.l.b16 %v938
    %v4476 = vunpack.c.h.b16 %v938
    %v4477 = vunpack.c.l.b16 %v939
    %v4478 = vunpack.c.h.b16 %v939
    %v4479 = vunpack.c.l.b16 %v940
    %v4480 = vunpack.c.h.b16 %v940
    %v4481 = vunpack.c.l.b16 %v941
    %v4482 = vunpack.c.h.b16 %v941
    %v4483 = vunpack.c.l.b16 %v942
    %v4484 = vunpack.c.h.b16 %v942
    %v4485 = vunpack.c.l.b16 %v943
    %v4486 = vunpack.c.h.b16 %v943
    %v4487 = vunpack.c.l.b16 %v944
    %v4488 = vunpack.c.h.b16 %v944
    %v4489 = vunpack.c.l.b16 %v945
    %v4490 = vunpack.c.h.b16 %v945
    %v4491 = vunpack.c.l.b16 %v946
    %v4492 = vunpack.c.h.b16 %v946
    %v4493 = vunpack.c.l.b16 %v947
    %v4494 = vunpack.c.h.b16 %v947
    %v4495 = vunpack.c.l.b16 %v948
    %v4496 = vunpack.c.h.b16 %v948
    %v4497 = vunpack.c.l.b16 %v949
    %v4498 = vunpack.c.h.b16 %v949
    %v4499 = vunpack.c.l.b16 %v950
    %v4500 = vunpack.c.h.b16 %v950
    %v4501 = vunpack.c.l.b16 %v951
    %v4502 = vunpack.c.h.b16 %v951
    %v4503 = vunpack.c.l.b16 %v952
    %v4504 = vunpack.c.h.b16 %v952
    %v4505 = vunpack.c.l.b16 %v953
    %v4506 = vunpack.c.h.b16 %v953
    %v4507 = vunpack.c.l.b16 %v954
    %v4508 = vunpack.c.h.b16 %v954
    %v4509 = vunpack.c.l.b16 %v955
    %v4510 = vunpack.c.h.b16 %v955
    %v4511 = vunpack.c.l.b16 %v956
    %v4512 = vunpack.c.h.b16 %v956
    %v4513 = vunpack.c.l.b16 %v957
    %v4514 = vunpack.c.h.b16 %v957
    %v4515 = vunpack.c.l.b16 %v958
    %v4516 = vunpack.c.h.b16 %v958
    %v4517 = vunpack.c.l.b16 %v959
    %v4518 = vunpack.c.h.b16 %v959
    %v4519 = vunpack.c.l.b16 %v960
    %v4520 = vunpack.c.h.b16 %v960
    %v4521 = vunpack.c.l.b16 %v961
    %v4522 = vunpack.c.h.b16 %v961
    %v4523 = vunpack.c.l.b16 %v962
    %v4524 = vunpack.c.h.b16 %v962
    %v4525 = vunpack.c.l.b16 %v963
    %v4526 = vunpack.c.h.b16 %v963
    %v4527 = vunpack.c.l.b16 %v964
    %v4528 = vunpack.c.h.b16 %v964
    %v4529 = vunpack.c.l.b16 %v965
    %v4530 = vunpack.c.h.b16 %v965
    %v4531 = vunpack.c.l.b16 %v966
    %v4532 = vunpack.c.h.b16 %v966
    %v4533 = vunpack.c.l.b16 %v967
    %v4534 = vunpack.c.h.b16 %v967
    %v4535 = vunpack.c.l.b16 %v968
    %v4536 = vunpack.c.h.b16 %v968
    %v4537 = vunpack.c.l.b16 %v969
    %v4538 = vunpack.c.h.b16 %v969
    %v4539 = vunpack.c.l.b16 %v970
    %v4540 = vunpack.c.h.b16 %v970
    %v4541 = vunpack.c.l.b16 %v971
    %v4542 = vunpack.c.h.b16 %v971
    %v4543 = vunpack.c.l.b16 %v972
    %v4544 = vunpack.c.h.b16 %v972
    %v4545 = vunpack.c.l.b16 %v973
    %v4546 = vunpack.c.h.b16 %v973
    %v4547 = vunpack.c.l.b16 %v974
    %v4548 = vunpack.c.h.b16 %v974
    %v4549 = vunpack.c.l.b16 %v975
    %v4550 = vunpack.c.h.b16 %v975
    %v4551 = vunpack.c.l.b16 %v976
    %v4552 = vunpack.c.h.b16 %v976
    %v4553 = vunpack.c.l.b16 %v977
    %v4554 = vunpack.c.h.b16 %v977
    %v4555 = vunpack.c.l.b16 %v978
    %v4556 = vunpack.c.h.b16 %v978
    %v4557 = vunpack.c.l.b16 %v979
    %v4558 = vunpack.c.h.b16 %v979
    %v4559 = vunpack.c.l.b16 %v980
    %v4560 = vunpack.c.h.b16 %v980
    %v4561 = vunpack.c.l.b16 %v981
    %v4562 = vunpack.c.h.b16 %v981
    %v4563 = vunpack.c.l.b16 %v982
    %v4564 = vunpack.c.h.b16 %v982
    %v4565 = vunpack.c.l.b16 %v983
    %v4566 = vunpack.c.h.b16 %v983
    %v4567 = vunpack.c.l.b16 %v984
    %v4568 = vunpack.c.h.b16 %v984
    %v4569 = vunpack.c.l.b16 %v985
    %v4570 = vunpack.c.h.b16 %v985
    %v4571 = vunpack.c.l.b16 %v986
    %v4572 = vunpack.c.h.b16 %v986
    %v4573 = vunpack.c.l.b16 %v987
    %v4574 = vunpack.c.h.b16 %v987
    %v4575 = vunpack.c.l.b16 %v988
    %v4576 = vunpack.c.h.b16 %v988
    %v4577 = vunpack.c.l.b16 %v989
    %v4578 = vunpack.c.h.b16 %v989
    %v4579 = vunpack.c.l.b16 %v990
    %v4580 = vunpack.c.h.b16 %v990
    %v4581 = vunpack.c.l.b16 %v991
    %v4582 = vunpack.c.h.b16 %v991
    %v4583 = vunpack.c.l.b16 %v992
    %v4584 = vunpack.c.h.b16 %v992
    %v4585 = vunpack.c.l.b16 %v993
    %v4586 = vunpack.c.h.b16 %v993
    %v4587 = vunpack.c.l.b16 %v994
    %v4588 = vunpack.c.h.b16 %v994
    %v4589 = vunpack.c.l.b16 %v995
    %v4590 = vunpack.c.h.b16 %v995
    %v4591 = vunpack.c.l.b16 %v996
    %v4592 = vunpack.c.h.b16 %v996
    %v4593 = vunpack.c.l.b16 %v997
    %v4594 = vunpack.c.h.b16 %v997
    %v4595 = vunpack.c.l.b16 %v998
    %v4596 = vunpack.c.h.b16 %v998
    %v4597 = vunpack.c.l.b16 %v999
    %v4598 = vunpack.c.h.b16 %v999
    %v4599 = vunpack.c.l.b16 %v1000
    %v4600 = vunpack.c.h.b16 %v1000
    %v4601 = vunpack.c.l.b16 %v1001
    %v4602 = vunpack.c.h.b16 %v1001
    %v4603 = vunpack.c.l.b16 %v1002
    %v4604 = vunpack.c.h.b16 %v1002
    %v4605 = vunpack.c.l.b16 %v1003
    %v4606 = vunpack.c.h.b16 %v1003
    %v4607 = vunpack.c.l.b16 %v1004
    %v4608 = vunpack.c.h.b16 %v1004
    %v4609 = vunpack.c.l.b16 %v1005
    %v4610 = vunpack.c.h.b16 %v1005
    %v4611 = vunpack.c.l.b16 %v1006
    %v4612 = vunpack.c.h.b16 %v1006
    %v4613 = vunpack.c.l.b16 %v1007
    %v4614 = vunpack.c.h.b16 %v1007
    %v4615 = vunpack.c.l.b16 %v1008
    %v4616 = vunpack.c.h.b16 %v1008
    %v4617 = vunpack.c.l.b16 %v1009
    %v4618 = vunpack.c.h.b16 %v1009
    %v4619 = vunpack.c.l.b16 %v1010
    %v4620 = vunpack.c.h.b16 %v1010
    %v4621 = vunpack.c.l.b16 %v1011
    %v4622 = vunpack.c.h.b16 %v1011
    %v4623 = vunpack.c.l.b16 %v1012
    %v4624 = vunpack.c.h.b16 %v1012
    %v4625 = vunpack.c.l.b16 %v1013
    %v4626 = vunpack.c.h.b16 %v1013
    %v4627 = vunpack.c.l.b16 %v1014
    %v4628 = vunpack.c.h.b16 %v1014
    %v4629 = vunpack.c.l.b16 %v1015
    %v4630 = vunpack.c.h.b16 %v1015
    %v4631 = vunpack.c.l.b16 %v1016
    %v4632 = vunpack.c.h.b16 %v1016
    %v4633 = vunpack.c.l.b16 %v1017
    %v4634 = vunpack.c.h.b16 %v1017
    %v4635 = vunpack.c.l.b16 %v1018
    %v4636 = vunpack.c.h.b16 %v1018
    %v4637 = vunpack.c.l.b16 %v1019
    %v4638 = vunpack.c.h.b16 %v1019
    %v4639 = vunpack.c.l.b16 %v1020
    %v4640 = vunpack.c.h.b16 %v1020
    %v4641 = vunpack.c.l.b16 %v1021
    %v4642 = vunpack.c.h.b16 %v1021
    %v4643 = vunpack.c.l.b16 %v1022
    %v4644 = vunpack.c.h.b16 %v1022
    %v4645 = vunpack.c.l.b16 %v1023
    %v4646 = vunpack.c.h.b16 %v1023
    %v4647 = vunpack.c.l.b16 %v1024
    %v4648 = vunpack.c.h.b16 %v1024
    %v4649 = vunpack.c.l.b16 %v1025
    %v4650 = vunpack.c.h.b16 %v1025
    %v4651 = vunpack.c.l.b16 %v1026
    %v4652 = vunpack.c.h.b16 %v1026
    %v4653 = vunpack.c.l.b16 %v1027
    %v4654 = vunpack.c.h.b16 %v1027
    %v4655 = vunpack.c.l.b16 %v1028
    %v4656 = vunpack.c.h.b16 %v1028
    %v4657 = vunpack.c.l.b16 %v1029
    %v4658 = vunpack.c.h.b16 %v1029
    %v4659 = vunpack.c.l.b16 %v1030
    %v4660 = vunpack.c.h.b16 %v1030
    %v4661 = vunpack.c.l.b16 %v1031
    %v4662 = vunpack.c.h.b16 %v1031
    %v4663 = vunpack.c.l.b16 %v1032
    %v4664 = vunpack.c.h.b16 %v1032
    %v4665 = vunpack.c.l.b16 %v1033
    %v4666 = vunpack.c.h.b16 %v1033
    %v4667 = vunpack.c.l.b16 %v1034
    %v4668 = vunpack.c.h.b16 %v1034
    %v4669 = vunpack.c.l.b16 %v1035
    %v4670 = vunpack.c.h.b16 %v1035
    %v4671 = vunpack.c.l.b16 %v1036
    %v4672 = vunpack.c.h.b16 %v1036
    %v4673 = vunpack.c.l.b16 %v1037
    %v4674 = vunpack.c.h.b16 %v1037
    %v4675 = vunpack.c.l.b16 %v1038
    %v4676 = vunpack.c.h.b16 %v1038
    %v4677 = vunpack.c.l.b16 %v1039
    %v4678 = vunpack.c.h.b16 %v1039
    %v4679 = vunpack.c.l.b16 %v1040
    %v4680 = vunpack.c.h.b16 %v1040
    %v4681 = vunpack.c.l.b16 %v1041
    %v4682 = vunpack.c.h.b16 %v1041
    %v4683 = vunpack.c.l.b16 %v1042
    %v4684 = vunpack.c.h.b16 %v1042
    %v4685 = vunpack.c.l.b16 %v1043
    %v4686 = vunpack.c.h.b16 %v1043
    %v4687 = vunpack.c.l.b16 %v1044
    %v4688 = vunpack.c.h.b16 %v1044
    %v4689 = vunpack.c.l.b16 %v1045
    %v4690 = vunpack.c.h.b16 %v1045
    %v4691 = vunpack.c.l.b16 %v1046
    %v4692 = vunpack.c.h.b16 %v1046
    %v4693 = vunpack.c.l.b16 %v1047
    %v4694 = vunpack.c.h.b16 %v1047
    %v4695 = vunpack.c.l.b16 %v1048
    %v4696 = vunpack.c.h.b16 %v1048
    %v4697 = vunpack.c.l.b16 %v1049
    %v4698 = vunpack.c.h.b16 %v1049
    %v4699 = vunpack.c.l.b16 %v1050
    %v4700 = vunpack.c.h.b16 %v1050
    %v4701 = vunpack.c.l.b16 %v1051
    %v4702 = vunpack.c.h.b16 %v1051
    %v4703 = vunpack.c.l.b16 %v1052
    %v4704 = vunpack.c.h.b16 %v1052
    %v4705 = vunpack.c.l.b16 %v1053
    %v4706 = vunpack.c.h.b16 %v1053
    %v4707 = vunpack.c.l.b16 %v1054
    %v4708 = vunpack.c.h.b16 %v1054
    %v4709 = vunpack.c.l.b16 %v1055
    %v4710 = vunpack.c.h.b16 %v1055
    %v4711 = vunpack.c.l.b16 %v1056
    %v4712 = vunpack.c.h.b16 %v1056
    %v4713 = vunpack.c.l.b16 %v1057
    %v4714 = vunpack.c.h.b16 %v1057
    %v4715 = vunpack.c.l.b16 %v1058
    %v4716 = vunpack.c.h.b16 %v1058
    %v4717 = vunpack.c.l.b16 %v1059
    %v4718 = vunpack.c.h.b16 %v1059
    %v4719 = vunpack.c.l.b16 %v1060
    %v4720 = vunpack.c.h.b16 %v1060
    %v4721 = vunpack.c.l.b16 %v1061
    %v4722 = vunpack.c.h.b16 %v1061
    %v4723 = vunpack.c.l.b16 %v1062
    %v4724 = vunpack.c.h.b16 %v1062
    %v4725 = vunpack.c.l.b16 %v1063
    %v4726 = vunpack.c.h.b16 %v1063
    %v4727 = vunpack.c.l.b16 %v1064
    %v4728 = vunpack.c.h.b16 %v1064
    %v4729 = vunpack.c.l.b16 %v1065
    %v4730 = vunpack.c.h.b16 %v1065
    %v4731 = vunpack.c.l.b16 %v1066
    %v4732 = vunpack.c.h.b16 %v1066
    %v4733 = vunpack.c.l.b16 %v1067
    %v4734 = vunpack.c.h.b16 %v1067
    %v4735 = vunpack.c.l.b16 %v1068
    %v4736 = vunpack.c.h.b16 %v1068
    %v4737 = vunpack.c.l.b16 %v1069
    %v4738 = vunpack.c.h.b16 %v1069
    %v4739 = vunpack.c.l.b16 %v1070
    %v4740 = vunpack.c.h.b16 %v1070
    %v4741 = vunpack.c.l.b16 %v1071
    %v4742 = vunpack.c.h.b16 %v1071
    %v4743 = vunpack.c.l.b16 %v1072
    %v4744 = vunpack.c.h.b16 %v1072
    %v4745 = vunpack.c.l.b16 %v1073
    %v4746 = vunpack.c.h.b16 %v1073
    %v4747 = vunpack.c.l.b16 %v1074
    %v4748 = vunpack.c.h.b16 %v1074
    %v4749 = vunpack.c.l.b16 %v1075
    %v4750 = vunpack.c.h.b16 %v1075
    %v4751 = vunpack.c.l.b16 %v1076
    %v4752 = vunpack.c.h.b16 %v1076
    %v4753 = vunpack.c.l.b16 %v1077
    %v4754 = vunpack.c.h.b16 %v1077
    %v4755 = vunpack.c.l.b16 %v1078
    %v4756 = vunpack.c.h.b16 %v1078
    %v4757 = vunpack.c.l.b16 %v1079
    %v4758 = vunpack.c.h.b16 %v1079
    %v4759 = vunpack.c.l.b16 %v1080
    %v4760 = vunpack.c.h.b16 %v1080
    %v4761 = vunpack.c.l.b16 %v1081
    %v4762 = vunpack.c.h.b16 %v1081
    %v4763 = vunpack.c.l.b16 %v1082
    %v4764 = vunpack.c.h.b16 %v1082
    %v4765 = vunpack.c.l.b16 %v1083
    %v4766 = vunpack.c.h.b16 %v1083
    %v4767 = vunpack.c.l.b16 %v1084
    %v4768 = vunpack.c.h.b16 %v1084
    %v4769 = vunpack.c.l.b16 %v1085
    %v4770 = vunpack.c.h.b16 %v1085
    %v4771 = vunpack.c.l.b16 %v1086
    %v4772 = vunpack.c.h.b16 %v1086
    %v4773 = vunpack.c.l.b16 %v1087
    %v4774 = vunpack.c.h.b16 %v1087
    %v4775 = vunpack.c.l.b16 %v1088
    %v4776 = vunpack.c.h.b16 %v1088
    %v4777 = vunpack.c.l.b16 %v1089
    %v4778 = vunpack.c.h.b16 %v1089
    %v4779 = vunpack.c.l.b16 %v1090
    %v4780 = vunpack.c.h.b16 %v1090
    %v4781 = vunpack.c.l.b16 %v1091
    %v4782 = vunpack.c.h.b16 %v1091
    %v4783 = vunpack.c.l.b16 %v1092
    %v4784 = vunpack.c.h.b16 %v1092
    %v4785 = vunpack.c.l.b16 %v1093
    %v4786 = vunpack.c.h.b16 %v1093
    %v4787 = vunpack.c.l.b16 %v1094
    %v4788 = vunpack.c.h.b16 %v1094
    %v4789 = vpack.c.b16 %v2663, %v2661
    %v4790 = vpack.c.b16 %v2664, %v2662
    %v4791 = vpack.c.b16 %v2667, %v2665
    %v4792 = vpack.c.b16 %v2668, %v2666
    %v4793 = vpack.c.b16 %v2671, %v2669
    %v4794 = vpack.c.b16 %v2672, %v2670
    %v4795 = vpack.c.b16 %v2675, %v2673
    %v4796 = vpack.c.b16 %v2676, %v2674
    %v4797 = vpack.c.b16 %v2679, %v2677
    %v4798 = vpack.c.b16 %v2680, %v2678
    %v4799 = vpack.c.b16 %v2683, %v2681
    %v4800 = vpack.c.b16 %v2684, %v2682
    %v4801 = vpack.c.b16 %v2687, %v2685
    %v4802 = vpack.c.b16 %v2688, %v2686
    %v4803 = vpack.c.b16 %v2691, %v2689
    %v4804 = vpack.c.b16 %v2692, %v2690
    %v4805 = vpack.c.b16 %v2695, %v2693
    %v4806 = vpack.c.b16 %v2696, %v2694
    %v4807 = vpack.c.b16 %v2699, %v2697
    %v4808 = vpack.c.b16 %v2700, %v2698
    %v4809 = vpack.c.b16 %v2703, %v2701
    %v4810 = vpack.c.b16 %v2704, %v2702
    %v4811 = vpack.c.b16 %v2707, %v2705
    %v4812 = vpack.c.b16 %v2708, %v2706
    %v4813 = vpack.c.b16 %v2711, %v2709
    %v4814 = vpack.c.b16 %v2712, %v2710
    %v4815 = vpack.c.b16 %v2715, %v2713
    %v4816 = vpack.c.b16 %v2716, %v2714
    %v4817 = vpack.c.b16 %v2719, %v2717
    %v4818 = vpack.c.b16 %v2720, %v2718
    %v4819 = vpack.c.b16 %v2723, %v2721
    %v4820 = vpack.c.b16 %v2724, %v2722
    %v4821 = vpack.c.b16 %v2727, %v2725
    %v4822 = vpack.c.b16 %v2728, %v2726
    %v4823 = vpack.c.b16 %v2731, %v2729
    %v4824 = vpack.c.b16 %v2732, %v2730
    %v4825 = vpack.c.b16 %v2735, %v2733
    %v4826 = vpack.c.b16 %v2736, %v2734
    %v4827 = vpack.c.b16 %v2739, %v2737
    %v4828 = vpack.c.b16 %v2740, %v2738
    %v4829 = vpack.c.b16 %v2743, %v2741
    %v4830 = vpack.c.b16 %v2744, %v2742
    %v4831 = vpack.c.b16 %v2747, %v2745
    %v4832 = vpack.c.b16 %v2748, %v2746
    %v4833 = vpack.c.b16 %v2751, %v2749
    %v4834 = vpack.c.b16 %v2752, %v2750
    %v4835 = vpack.c.b16 %v2755, %v2753
    %v4836 = vpack.c.b16 %v2756, %v2754
    %v4837 = vpack.c.b16 %v2759, %v2757
    %v4838 = vpack.c.b16 %v2760, %v2758
    %v4839 = vpack.c.b16 %v2763, %v2761
    %v4840 = vpack.c.b16 %v2764, %v2762
    %v4841 = vpack.c.b16 %v2767, %v2765
    %v4842 = vpack.c.b16 %v2768, %v2766
    %v4843 = vpack.c.b16 %v2771, %v2769
    %v4844 = vpack.c.b16 %v2772, %v2770
    %v4845 = vpack.c.b16 %v2775, %v2773
    %v4846 = vpack.c.b16 %v2776, %v2774
    %v4847 = vpack.c.b16 %v2779, %v2777
    %v4848 = vpack.c.b16 %v2780, %v2778
    %v4849 = vpack.c.b16 %v2783, %v2781
    %v4850 = vpack.c.b16 %v2784, %v2782
    %v4851 = vpack.c.b16 %v2787, %v2785
    %v4852 = vpack.c.b16 %v2788, %v2786
    %v4853 = vpack.c.b16 %v2791, %v2789
    %v4854 = vpack.c.b16 %v2792, %v2790
    %v4855 = vpack.c.b16 %v2795, %v2793
    %v4856 = vpack.c.b16 %v2796, %v2794
    %v4857 = vpack.c.b16 %v2799, %v2797
    %v4858 = vpack.c.b16 %v2800, %v2798
    %v4859 = vpack.c.b16 %v2803, %v2801
    %v4860 = vpack.c.b16 %v2804, %v2802
    %v4861 = vpack.c.b16 %v2807, %v2805
    %v4862 = vpack.c.b16 %v2808, %v2806
    %v4863 = vpack.c.b16 %v2811, %v2809
    %v4864 = vpack.c.b16 %v2812, %v2810
    %v4865 = vpack.c.b16 %v2815, %v2813
    %v4866 = vpack.c.b16 %v2816, %v2814
    %v4867 = vpack.c.b16 %v2819, %v2817
    %v4868 = vpack.c.b16 %v2820, %v2818
    %v4869 = vpack.c.b16 %v2823, %v2821
    %v4870 = vpack.c.b16 %v2824, %v2822
    %v4871 = vpack.c.b16 %v2827, %v2825
    %v4872 = vpack.c.b16 %v2828, %v2826
    %v4873 = vpack.c.b16 %v2831, %v2829
    %v4874 = vpack.c.b16 %v2832, %v2830
    %v4875 = vpack.c.b16 %v2835, %v2833
    %v4876 = vpack.c.b16 %v2836, %v2834
    %v4877 = vpack.c.b16 %v2839, %v2837
    %v4878 = vpack.c.b16 %v2840, %v2838
    %v4879 = vpack.c.b16 %v2843, %v2841
    %v4880 = vpack.c.b16 %v2844, %v2842
    %v4881 = vpack.c.b16 %v2847, %v2845
    %v4882 = vpack.c.b16 %v2848, %v2846
    %v4883 = vpack.c.b16 %v2851, %v2849
    %v4884 = vpack.c.b16 %v2852, %v2850
    %v4885 = vpack.c.b16 %v2855, %v2853
    %v4886 = vpack.c.b16 %v2856, %v2854
    %v4887 = vpack.c.b16 %v2859, %v2857
    %v4888 = vpack.c.b16 %v2860, %v2858
    %v4889 = vpack.c.b16 %v2863, %v2861
    %v4890 = vpack.c.b16 %v2864, %v2862
    %v4891 = vpack.c.b16 %v2867, %v2865
    %v4892 = vpack.c.b16 %v2868, %v2866
    %v4893 = vpack.c.b16 %v2871, %v2869
    %v4894 = vpack.c.b16 %v2872, %v2870
    %v4895 = vpack.c.b16 %v2875, %v2873
    %v4896 = vpack.c.b16 %v2876, %v2874
    %v4897 = vpack.c.b16 %v2879, %v2877
    %v4898 = vpack.c.b16 %v2880, %v2878
    %v4899 = vpack.c.b16 %v2883, %v2881
    %v4900 = vpack.c.b16 %v2884, %v2882
    %v4901 = vpack.c.b16 %v2887, %v2885
    %v4902 = vpack.c.b16 %v2888, %v2886
    %v4903 = vpack.c.b16 %v2891, %v2889
    %v4904 = vpack.c.b16 %v2892, %v2890
    %v4905 = vpack.c.b16 %v2895, %v2893
    %v4906 = vpack.c.b16 %v2896, %v2894
    %v4907 = vpack.c.b16 %v2899, %v2897
    %v4908 = vpack.c.b16 %v2900, %v2898
    %v4909 = vpack.c.b16 %v2903, %v2901
    %v4910 = vpack.c.b16 %v2904, %v2902
    %v4911 = vpack.c.b16 %v2907, %v2905
    %v4912 = vpack.c.b16 %v2908, %v2906
    %v4913 = vpack.c.b16 %v2911, %v2909
    %v4914 = vpack.c.b16 %v2912, %v2910
    %v4915 = vpack.c.b16 %v2915, %v2913
    %v4916 = vpack.c.b16 %v2916, %v2914
    %v4917 = vpack.c.b16 %v2919, %v2917
    %v4918 = vpack.c.b16 %v2920, %v2918
    %v4919 = vpack.c.b16 %v2923, %v2921
    %v4920 = vpack.c.b16 %v2924, %v2922
    %v4921 = vpack.c.b16 %v2927, %v2925
    %v4922 = vpack.c.b16 %v2928, %v2926
    %v4923 = vpack.c.b16 %v2931, %v2929
    %v4924 = vpack.c.b16 %v2932, %v2930
    %v4925 = vpack.c.b16 %v2935, %v2933
    %v4926 = vpack.c.b16 %v2936, %v2934
    %v4927 = vpack.c.b16 %v2939, %v2937
    %v4928 = vpack.c.b16 %v2940, %v2938
    %v4929 = vpack.c.b16 %v2943, %v2941
    %v4930 = vpack.c.b16 %v2944, %v2942
    %v4931 = vpack.c.b16 %v2947, %v2945
    %v4932 = vpack.c.b16 %v2948, %v2946
    %v4933 = vpack.c.b16 %v2951, %v2949
    %v4934 = vpack.c.b16 %v2952, %v2950
    %v4935 = vpack.c.b16 %v2955, %v2953
    %v4936 = vpack.c.b16 %v2956, %v2954
    %v4937 = vpack.c.b16 %v2959, %v2957
    %v4938 = vpack.c.b16 %v2960, %v2958
    %v4939 = vpack.c.b16 %v2963, %v2961
    %v4940 = vpack.c.b16 %v2964, %v2962
    %v4941 = vpack.c.b16 %v2967, %v2965
    %v4942 = vpack.c.b16 %v2968, %v2966
    %v4943 = vpack.c.b16 %v2971, %v2969
    %v4944 = vpack.c.b16 %v2972, %v2970
    %v4945 = vpack.c.b16 %v2975, %v2973
    %v4946 = vpack.c.b16 %v2976, %v2974
    %v4947 = vpack.c.b16 %v2979, %v2977
    %v4948 = vpack.c.b16 %v2980, %v2978
    %v4949 = vpack.c.b16 %v2983, %v2981
    %v4950 = vpack.c.b16 %v2984, %v2982
    %v4951 = vpack.c.b16 %v2987, %v2985
    %v4952 = vpack.c.b16 %v2988, %v2986
    %v4953 = vpack.c.b16 %v2991, %v2989
    %v4954 = vpack.c.b16 %v2992, %v2990
    %v4955 = vpack.c.b16 %v2995, %v2993
    %v4956 = vpack.c.b16 %v2996, %v2994
    %v4957 = vpack.c.b16 %v2999, %v2997
    %v4958 = vpack.c.b16 %v3000, %v2998
    %v4959 = vpack.c.b16 %v3003, %v3001
    %v4960 = vpack.c.b16 %v3004, %v3002
    %v4961 = vpack.c.b16 %v3007, %v3005
    %v4962 = vpack.c.b16 %v3008, %v3006
    %v4963 = vpack.c.b16 %v3011, %v3009
    %v4964 = vpack.c.b16 %v3012, %v3010
    %v4965 = vpack.c.b16 %v3015, %v3013
    %v4966 = vpack.c.b16 %v3016, %v3014
    %v4967 = vpack.c.b16 %v3019, %v3017
    %v4968 = vpack.c.b16 %v3020, %v3018
    %v4969 = vpack.c.b16 %v3023, %v3021
    %v4970 = vpack.c.b16 %v3024, %v3022
    %v4971 = vpack.c.b16 %v3027, %v3025
    %v4972 = vpack.c.b16 %v3028, %v3026
    %v4973 = vpack.c.b16 %v3031, %v3029
    %v4974 = vpack.c.b16 %v3032, %v3030
    %v4975 = vpack.c.b16 %v3035, %v3033
    %v4976 = vpack.c.b16 %v3036, %v3034
    %v4977 = vpack.c.b16 %v3039, %v3037
    %v4978 = vpack.c.b16 %v3040, %v3038
    %v4979 = vpack.c.b16 %v3043, %v3041
    %v4980 = vpack.c.b16 %v3044, %v3042
    %v4981 = vpack.c.b16 %v3047, %v3045
    %v4982 = vpack.c.b16 %v3048, %v3046
    %v4983 = vpack.c.b16 %v3051, %v3049
    %v4984 = vpack.c.b16 %v3052, %v3050
    %v4985 = vpack.c.b16 %v3055, %v3053
    %v4986 = vpack.c.b16 %v3056, %v3054
    %v4987 = vpack.c.b16 %v3059, %v3057
    %v4988 = vpack.c.b16 %v3060, %v3058
    %v4989 = vpack.c.b16 %v3063, %v3061
    %v4990 = vpack.c.b16 %v3064, %v3062
    %v4991 = vpack.c.b16 %v3067, %v3065
    %v4992 = vpack.c.b16 %v3068, %v3066
    %v4993 = vpack.c.b16 %v3071, %v3069
    %v4994 = vpack.c.b16 %v3072, %v3070
    %v4995 = vpack.c.b16 %v3075, %v3073
    %v4996 = vpack.c.b16 %v3076, %v3074
    %v4997 = vpack.c.b16 %v3079, %v3077
    %v4998 = vpack.c.b16 %v3080, %v3078
    %v4999 = vpack.c.b16 %v3083, %v3081
    %v5000 = vpack.c.b16 %v3084, %v3082
    %v5001 = vpack.c.b16 %v3087, %v3085
    %v5002 = vpack.c.b16 %v3088, %v3086
    %v5003 = vpack.c.b16 %v3091, %v3089
    %v5004 = vpack.c.b16 %v3092, %v3090
    %v5005 = vpack.c.b16 %v3095, %v3093
    %v5006 = vpack.c.b16 %v3096, %v3094
    %v5007 = vpack.c.b16 %v3099, %v3097
    %v5008 = vpack.c.b16 %v3100, %v3098
    %v5009 = vpack.c.b16 %v3103, %v3101
    %v5010 = vpack.c.b16 %v3104, %v3102
    %v5011 = vpack.c.b16 %v3107, %v3105
    %v5012 = vpack.c.b16 %v3108, %v3106
    %v5013 = vpack.c.b16 %v3111, %v3109
    %v5014 = vpack.c.b16 %v3112, %v3110
    %v5015 = vpack.c.b16 %v3115, %v3113
    %v5016 = vpack.c.b16 %v3116, %v3114
    %v5017 = vpack.c.b16 %v3119, %v3117
    %v5018 = vpack.c.b16 %v3120, %v3118
    %v5019 = vpack.c.b16 %v3123, %v3121
    %v5020 = vpack.c.b16 %v3124, %v3122
    %v5021 = vpack.c.b16 %v3127, %v3125
    %v5022 = vpack.c.b16 %v3128, %v3126
    %v5023 = vpack.c.b16 %v3131, %v3129
    %v5024 = vpack.c.b16 %v3132, %v3130
    %v5025 = vpack.c.b16 %v3135, %v3133
    %v5026 = vpack.c.b16 %v3136, %v3134
    %v5027 = vpack.c.b16 %v3139, %v3137
    %v5028 = vpack.c.b16 %v3140, %v3138
    %v5029 = vpack.c.b16 %v3143, %v3141
    %v5030 = vpack.c.b16 %v3144, %v3142
    %v5031 = vpack.c.b16 %v3147, %v3145
    %v5032 = vpack.c.b16 %v3148, %v3146
    %v5033 = vpack.c.b16 %v3151, %v3149
    %v5034 = vpack.c.b16 %v3152, %v3150
    %v5035 = vpack.c.b16 %v3155, %v3153
    %v5036 = vpack.c.b16 %v3156, %v3154
    %v5037 = vpack.c.b16 %v3159, %v3157
    %v5038 = vpack.c.b16 %v3160, %v3158
    %v5039 = vpack.c.b16 %v3163, %v3161
    %v5040 = vpack.c.b16 %v3164, %v3162
    %v5041 = vpack.c.b16 %v3167, %v3165
    %v5042 = vpack.c.b16 %v3168, %v3166
    %v5043 = vpack.c.b16 %v3171, %v3169
    %v5044 = vpack.c.b16 %v3172, %v3170
    %v5045 = vpack.c.b16 %v3175, %v3173
    %v5046 = vpack.c.b16 %v3176, %v3174
    %v5047 = vpack.c.b16 %v3179, %v3177
    %v5048 = vpack.c.b16 %v3180, %v3178
    %v5049 = vpack.c.b16 %v3183, %v3181
    %v5050 = vpack.c.b16 %v3184, %v3182
    %v5051 = vpack.c.b16 %v3187, %v3185
    %v5052 = vpack.c.b16 %v3188, %v3186
    %v5053 = vpack.c.b16 %v3191, %v3189
    %v5054 = vpack.c.b16 %v3192, %v3190
    %v5055 = vpack.c.b16 %v3195, %v3193
    %v5056 = vpack.c.b16 %v3196, %v3194
    %v5057 = vpack.c.b16 %v3199, %v3197
    %v5058 = vpack.c.b16 %v3200, %v3198
    %v5059 = vpack.c.b16 %v3203, %v3201
    %v5060 = vpack.c.b16 %v3204, %v3202
    %v5061 = vpack.c.b16 %v3207, %v3205
    %v5062 = vpack.c.b16 %v3208, %v3206
    %v5063 = vpack.c.b16 %v3211, %v3209
    %v5064 = vpack.c.b16 %v3212, %v3210
    %v5065 = vpack.c.b16 %v3215, %v3213
    %v5066 = vpack.c.b16 %v3216, %v3214
    %v5067 = vpack.c.b16 %v3219, %v3217
    %v5068 = vpack.c.b16 %v3220, %v3218
    %v5069 = vpack.c.b16 %v3223, %v3221
    %v5070 = vpack.c.b16 %v3224, %v3222
    %v5071 = vpack.c.b16 %v3227, %v3225
    %v5072 = vpack.c.b16 %v3228, %v3226
    %v5073 = vpack.c.b16 %v3231, %v3229
    %v5074 = vpack.c.b16 %v3232, %v3230
    %v5075 = vpack.c.b16 %v3235, %v3233
    %v5076 = vpack.c.b16 %v3236, %v3234
    %v5077 = vpack.c.b16 %v3239, %v3237
    %v5078 = vpack.c.b16 %v3240, %v3238
    %v5079 = vpack.c.b16 %v3243, %v3241
    %v5080 = vpack.c.b16 %v3244, %v3242
    %v5081 = vpack.c.b16 %v3247, %v3245
    %v5082 = vpack.c.b16 %v3248, %v3246
    %v5083 = vpack.c.b16 %v3251, %v3249
    %v5084 = vpack.c.b16 %v3252, %v3250
    %v5085 = vpack.c.b16 %v3255, %v3253
    %v5086 = vpack.c.b16 %v3256, %v3254
    %v5087 = vpack.c.b16 %v3259, %v3257
    %v5088 = vpack.c.b16 %v3260, %v3258
    %v5089 = vpack.c.b16 %v3263, %v3261
    %v5090 = vpack.c.b16 %v3264, %v3262
    %v5091 = vpack.c.b16 %v3267, %v3265
    %v5092 = vpack.c.b16 %v3268, %v3266
    %v5093 = vpack.c.b16 %v3271, %v3269
    %v5094 = vpack.c.b16 %v3272, %v3270
    %v5095 = vpack.c.b16 %v3275, %v3273
    %v5096 = vpack.c.b16 %v3276, %v3274
    %v5097 = vpack.c.b16 %v3279, %v3277
    %v5098 = vpack.c.b16 %v3280, %v3278
    %v5099 = vpack.c.b16 %v3283, %v3281
    %v5100 = vpack.c.b16 %v3284, %v3282
    %v5101 = vpack.c.b16 %v3287, %v3285
    %v5102 = vpack.c.b16 %v3288, %v3286
    %v5103 = vpack.c.b16 %v3291, %v3289
    %v5104 = vpack.c.b16 %v3292, %v3290
    %v5105 = vpack.c.b16 %v3295, %v3293
    %v5106 = vpack.c.b16 %v3296, %v3294
    %v5107 = vpack.c.b16 %v3299, %v3297
    %v5108 = vpack.c.b16 %v3300, %v3298
    %v5109 = vpack.c.b16 %v3303, %v3301
    %v5110 = vpack.c.b16 %v3304, %v3302
    %v5111 = vpack.c.b16 %v3307, %v3305
    %v5112 = vpack.c.b16 %v3308, %v3306
    %v5113 = vpack.c.b16 %v3311, %v3309
    %v5114 = vpack.c.b16 %v3312, %v3310
    %v5115 = vpack.c.b16 %v3315, %v3313
    %v5116 = vpack.c.b16 %v3316, %v3314
    %v5117 = vpack.c.b16 %v3319, %v3317
    %v5118 = vpack.c.b16 %v3320, %v3318
    %v5119 = vpack.c.b16 %v3323, %v3321
    %v5120 = vpack.c.b16 %v3324, %v3322
    %v5121 = vpack.c.b16 %v3327, %v3325
    %v5122 = vpack.c.b16 %v3328, %v3326
    %v5123 = vpack.c.b16 %v3331, %v3329
    %v5124 = vpack.c.b16 %v3332, %v3330
    %v5125 = vpack.c.b16 %v3335, %v3333
    %v5126 = vpack.c.b16 %v3336, %v3334
    %v5127 = vpack.c.b16 %v3339, %v3337
    %v5128 = vpack.c.b16 %v3340, %v3338
    %v5129 = vpack.c.b16 %v3343, %v3341
    %v5130 = vpack.c.b16 %v3344, %v3342
    %v5131 = vpack.c.b16 %v3347, %v3345
    %v5132 = vpack.c.b16 %v3348, %v3346
    %v5133 = vpack.c.b16 %v3351, %v3349
    %v5134 = vpack.c.b16 %v3352, %v3350
    %v5135 = vpack.c.b16 %v3355, %v3353
    %v5136 = vpack.c.b16 %v3356, %v3354
    %v5137 = vpack.c.b16 %v3359, %v3357
    %v5138 = vpack.c.b16 %v3360, %v3358
    %v5139 = vpack.c.b16 %v3363, %v3361
    %v5140 = vpack.c.b16 %v3364, %v3362
    %v5141 = vpack.c.b16 %v3367, %v3365
    %v5142 = vpack.c.b16 %v3368, %v3366
    %v5143 = vpack.c.b16 %v3371, %v3369
    %v5144 = vpack.c.b16 %v3372, %v3370
    %v5145 = vpack.c.b16 %v3375, %v3373
    %v5146 = vpack.c.b16 %v3376, %v3374
    %v5147 = vpack.c.b16 %v3379, %v3377
    %v5148 = vpack.c.b16 %v3380, %v3378
    %v5149 = vpack.c.b16 %v3383, %v3381
    %v5150 = vpack.c.b16 %v3384, %v3382
    %v5151 = vpack.c.b16 %v3387, %v3385
    %v5152 = vpack.c.b16 %v3388, %v3386
    %v5153 = vpack.c.b16 %v3391, %v3389
    %v5154 = vpack.c.b16 %v3392, %v3390
    %v5155 = vpack.c.b16 %v3395, %v3393
    %v5156 = vpack.c.b16 %v3396, %v3394
    %v5157 = vpack.c.b16 %v3399, %v3397
    %v5158 = vpack.c.b16 %v3400, %v3398
    %v5159 = vpack.c.b16 %v3403, %v3401
    %v5160 = vpack.c.b16 %v3404, %v3402
    %v5161 = vpack.c.b16 %v3407, %v3405
    %v5162 = vpack.c.b16 %v3408, %v3406
    %v5163 = vpack.c.b16 %v3411, %v3409
    %v5164 = vpack.c.b16 %v3412, %v3410
    %v5165 = vpack.c.b16 %v3415, %v3413
    %v5166 = vpack.c.b16 %v3416, %v3414
    %v5167 = vpack.c.b16 %v3419, %v3417
    %v5168 = vpack.c.b16 %v3420, %v3418
    %v5169 = vpack.c.b16 %v3423, %v3421
    %v5170 = vpack.c.b16 %v3424, %v3422
    %v5171 = vpack.c.b16 %v3427, %v3425
    %v5172 = vpack.c.b16 %v3428, %v3426
    %v5173 = vpack.c.b16 %v3431, %v3429
    %v5174 = vpack.c.b16 %v3432, %v3430
    %v5175 = vpack.c.b16 %v3435, %v3433
    %v5176 = vpack.c.b16 %v3436, %v3434
    %v5177 = vpack.c.b16 %v3439, %v3437
    %v5178 = vpack.c.b16 %v3440, %v3438
    %v5179 = vpack.c.b16 %v3443, %v3441
    %v5180 = vpack.c.b16 %v3444, %v3442
    %v5181 = vpack.c.b16 %v3447, %v3445
    %v5182 = vpack.c.b16 %v3448, %v3446
    %v5183 = vpack.c.b16 %v3451, %v3449
    %v5184 = vpack.c.b16 %v3452, %v3450
    %v5185 = vpack.c.b16 %v3455, %v3453
    %v5186 = vpack.c.b16 %v3456, %v3454
    %v5187 = vpack.c.b16 %v3459, %v3457
    %v5188 = vpack.c.b16 %v3460, %v3458
    %v5189 = vpack.c.b16 %v3463, %v3461
    %v5190 = vpack.c.b16 %v3464, %v3462
    %v5191 = vpack.c.b16 %v3467, %v3465
    %v5192 = vpack.c.b16 %v3468, %v3466
    %v5193 = vpack.c.b16 %v3471, %v3469
    %v5194 = vpack.c.b16 %v3472, %v3470
    %v5195 = vpack.c.b16 %v3475, %v3473
    %v5196 = vpack.c.b16 %v3476, %v3474
    %v5197 = vpack.c.b16 %v3479, %v3477
    %v5198 = vpack.c.b16 %v3480, %v3478
    %v5199 = vpack.c.b16 %v3483, %v3481
    %v5200 = vpack.c.b16 %v3484, %v3482
    %v5201 = vpack.c.b16 %v3487, %v3485
    %v5202 = vpack.c.b16 %v3488, %v3486
    %v5203 = vpack.c.b16 %v3491, %v3489
    %v5204 = vpack.c.b16 %v3492, %v3490
    %v5205 = vpack.c.b16 %v3495, %v3493
    %v5206 = vpack.c.b16 %v3496, %v3494
    %v5207 = vpack.c.b16 %v3499, %v3497
    %v5208 = vpack.c.b16 %v3500, %v3498
    %v5209 = vpack.c.b16 %v3503, %v3501
    %v5210 = vpack.c.b16 %v3504, %v3502
    %v5211 = vpack.c.b16 %v3507, %v3505
    %v5212 = vpack.c.b16 %v3508, %v3506
    %v5213 = vpack.c.b16 %v3511, %v3509
    %v5214 = vpack.c.b16 %v3512, %v3510
    %v5215 = vpack.c.b16 %v3515, %v3513
    %v5216 = vpack.c.b16 %v3516, %v3514
    %v5217 = vpack.c.b16 %v3519, %v3517
    %v5218 = vpack.c.b16 %v3520, %v3518
    %v5219 = vpack.c.b16 %v3523, %v3521
    %v5220 = vpack.c.b16 %v3524, %v3522
    %v5221 = vpack.c.b16 %v3527, %v3525
    %v5222 = vpack.c.b16 %v3528, %v3526
    %v5223 = vpack.c.b16 %v3531, %v3529
    %v5224 = vpack.c.b16 %v3532, %v3530
    %v5225 = vpack.c.b16 %v3535, %v3533
    %v5226 = vpack.c.b16 %v3536, %v3534
    %v5227 = vpack.c.b16 %v3539, %v3537
    %v5228 = vpack.c.b16 %v3540, %v3538
    %v5229 = vpack.c.b16 %v3543, %v3541
    %v5230 = vpack.c.b16 %v3544, %v3542
    %v5231 = vpack.c.b16 %v3547, %v3545
    %v5232 = vpack.c.b16 %v3548, %v3546
    %v5233 = vpack.c.b16 %v3551, %v3549
    %v5234 = vpack.c.b16 %v3552, %v3550
    %v5235 = vpack.c.b16 %v3555, %v3553
    %v5236 = vpack.c.b16 %v3556, %v3554
    %v5237 = vpack.c.b16 %v3559, %v3557
    %v5238 = vpack.c.b16 %v3560, %v3558
    %v5239 = vpack.c.b16 %v3563, %v3561
    %v5240 = vpack.c.b16 %v3564, %v3562
    %v5241 = vpack.c.b16 %v3567, %v3565
    %v5242 = vpack.c.b16 %v3568, %v3566
    %v5243 = vpack.c.b16 %v3571, %v3569
    %v5244 = vpack.c.b16 %v3572, %v3570
    %v5245 = vpack.c.b16 %v3575, %v3573
    %v5246 = vpack.c.b16 %v3576, %v3574
    %v5247 = vpack.c.b16 %v3579, %v3577
    %v5248 = vpack.c.b16 %v3580, %v3578
    %v5249 = vpack.c.b16 %v3583, %v3581
    %v5250 = vpack.c.b16 %v3584, %v3582
    %v5251 = vpack.c.b16 %v3587, %v3585
    %v5252 = vpack.c.b16 %v3588, %v3586
    %v5253 = vpack.c.b16 %v3591, %v3589
    %v5254 = vpack.c.b16 %v3592, %v3590
    %v5255 = vpack.c.b16 %v3595, %v3593
    %v5256 = vpack.c.b16 %v3596, %v3594
    %v5257 = vpack.c.b16 %v3599, %v3597
    %v5258 = vpack.c.b16 %v3600, %v3598
    %v5259 = vpack.c.b16 %v3603, %v3601
    %v5260 = vpack.c.b16 %v3604, %v3602
    %v5261 = vpack.c.b16 %v3607, %v3605
    %v5262 = vpack.c.b16 %v3608, %v3606
    %v5263 = vpack.c.b16 %v3611, %v3609
    %v5264 = vpack.c.b16 %v3612, %v3610
    %v5265 = vpack.c.b16 %v3615, %v3613
    %v5266 = vpack.c.b16 %v3616, %v3614
    %v5267 = vpack.c.b16 %v3619, %v3617
    %v5268 = vpack.c.b16 %v3620, %v3618
    %v5269 = vpack.c.b16 %v3623, %v3621
    %v5270 = vpack.c.b16 %v3624, %v3622
    %v5271 = vpack.c.b16 %v3627, %v3625
    %v5272 = vpack.c.b16 %v3628, %v3626
    %v5273 = vpack.c.b16 %v3631, %v3629
    %v5274 = vpack.c.b16 %v3632, %v3630
    %v5275 = vpack.c.b16 %v3635, %v3633
    %v5276 = vpack.c.b16 %v3636, %v3634
    %v5277 = vpack.c.b16 %v3639, %v3637
    %v5278 = vpack.c.b16 %v3640, %v3638
    %v5279 = vpack.c.b16 %v3643, %v3641
    %v5280 = vpack.c.b16 %v3644, %v3642
    %v5281 = vpack.c.b16 %v3647, %v3645
    %v5282 = vpack.c.b16 %v3648, %v3646
    %v5283 = vpack.c.b16 %v3651, %v3649
    %v5284 = vpack.c.b16 %v3652, %v3650
    %v5285 = vpack.c.b16 %v3655, %v3653
    %v5286 = vpack.c.b16 %v3656, %v3654
    %v5287 = vpack.c.b16 %v3659, %v3657
    %v5288 = vpack.c.b16 %v3660, %v3658
    %v5289 = vpack.c.b16 %v3663, %v3661
    %v5290 = vpack.c.b16 %v3664, %v3662
    %v5291 = vpack.c.b16 %v3667, %v3665
    %v5292 = vpack.c.b16 %v3668, %v3666
    %v5293 = vpack.c.b16 %v3671, %v3669
    %v5294 = vpack.c.b16 %v3672, %v3670
    %v5295 = vpack.c.b16 %v3675, %v3673
    %v5296 = vpack.c.b16 %v3676, %v3674
    %v5297 = vpack.c.b16 %v3679, %v3677
    %v5298 = vpack.c.b16 %v3680, %v3678
    %v5299 = vpack.c.b16 %v3683, %v3681
    %v5300 = vpack.c.b16 %v3684, %v3682
    %v5301 = vpack.c.b16 %v3687, %v3685
    %v5302 = vpack.c.b16 %v3688, %v3686
    %v5303 = vpack.c.b16 %v3691, %v3689
    %v5304 = vpack.c.b16 %v3692, %v3690
    %v5305 = vpack.c.b16 %v3695, %v3693
    %v5306 = vpack.c.b16 %v3696, %v3694
    %v5307 = vpack.c.b16 %v3699, %v3697
    %v5308 = vpack.c.b16 %v3700, %v3698
    %v5309 = vpack.c.b16 %v3703, %v3701
    %v5310 = vpack.c.b16 %v3704, %v3702
    %v5311 = vpack.c.b16 %v3707, %v3705
    %v5312 = vpack.c.b16 %v3708, %v3706
    %v5313 = vpack.c.b16 %v3711, %v3709
    %v5314 = vpack.c.b16 %v3712, %v3710
    %v5315 = vpack.c.b16 %v3715, %v3713
    %v5316 = vpack.c.b16 %v3716, %v3714
    %v5317 = vpack.c.b16 %v3719, %v3717
    %v5318 = vpack.c.b16 %v3720, %v3718
    %v5319 = vpack.c.b16 %v3723, %v3721
    %v5320 = vpack.c.b16 %v3724, %v3722
    %v5321 = vpack.c.b16 %v3727, %v3725
    %v5322 = vpack.c.b16 %v3728, %v3726
    %v5323 = vpack.c.b16 %v3731, %v3729
    %v5324 = vpack.c.b16 %v3732, %v3730
    %v5325 = vpack.c.b16 %v3735, %v3733
    %v5326 = vpack.c.b16 %v3736, %v3734
    %v5327 = vpack.c.b16 %v3739, %v3737
    %v5328 = vpack.c.b16 %v3740, %v3738
    %v5329 = vpack.c.b16 %v3743, %v3741
    %v5330 = vpack.c.b16 %v3744, %v3742
    %v5331 = vpack.c.b16 %v3747, %v3745
    %v5332 = vpack.c.b16 %v3748, %v3746
    %v5333 = vpack.c.b16 %v3751, %v3749
    %v5334 = vpack.c.b16 %v3752, %v3750
    %v5335 = vpack.c.b16 %v3755, %v3753
    %v5336 = vpack.c.b16 %v3756, %v3754
    %v5337 = vpack.c.b16 %v3759, %v3757
    %v5338 = vpack.c.b16 %v3760, %v3758
    %v5339 = vpack.c.b16 %v3763, %v3761
    %v5340 = vpack.c.b16 %v3764, %v3762
    %v5341 = vpack.c.b16 %v3767, %v3765
    %v5342 = vpack.c.b16 %v3768, %v3766
    %v5343 = vpack.c.b16 %v3771, %v3769
    %v5344 = vpack.c.b16 %v3772, %v3770
    %v5345 = vpack.c.b16 %v3775, %v3773
    %v5346 = vpack.c.b16 %v3776, %v3774
    %v5347 = vpack.c.b16 %v3779, %v3777
    %v5348 = vpack.c.b16 %v3780, %v3778
    %v5349 = vpack.c.b16 %v3783, %v3781
    %v5350 = vpack.c.b16 %v3784, %v3782
    %v5351 = vpack.c.b16 %v3787, %v3785
    %v5352 = vpack.c.b16 %v3788, %v3786
    %v5353 = vpack.c.b16 %v3791, %v3789
    %v5354 = vpack.c.b16 %v3792, %v3790
    %v5355 = vpack.c.b16 %v3795, %v3793
    %v5356 = vpack.c.b16 %v3796, %v3794
    %v5357 = vpack.c.b16 %v3799, %v3797
    %v5358 = vpack.c.b16 %v3800, %v3798
    %v5359 = vpack.c.b16 %v3803, %v3801
    %v5360 = vpack.c.b16 %v3804, %v3802
    %v5361 = vpack.c.b16 %v3807, %v3805
    %v5362 = vpack.c.b16 %v3808, %v3806
    %v5363 = vpack.c.b16 %v3811, %v3809
    %v5364 = vpack.c.b16 %v3812, %v3810
    %v5365 = vpack.c.b16 %v3815, %v3813
    %v5366 = vpack.c.b16 %v3816, %v3814
    %v5367 = vpack.c.b16 %v3819, %v3817
    %v5368 = vpack.c.b16 %v3820, %v3818
    %v5369 = vpack.c.b16 %v3823, %v3821
    %v5370 = vpack.c.b16 %v3824, %v3822
    %v5371 = vpack.c.b16 %v3827, %v3825
    %v5372 = vpack.c.b16 %v3828, %v3826
    %v5373 = vpack.c.b16 %v3831, %v3829
    %v5374 = vpack.c.b16 %v3832, %v3830
    %v5375 = vpack.c.b16 %v3835, %v3833
    %v5376 = vpack.c.b16 %v3836, %v3834
    %v5377 = vpack.c.b16 %v3839, %v3837
    %v5378 = vpack.c.b16 %v3840, %v3838
    %v5379 = vpack.c.b16 %v3843, %v3841
    %v5380 = vpack.c.b16 %v3844, %v3842
    %v5381 = vpack.c.b16 %v3847, %v3845
    %v5382 = vpack.c.b16 %v3848, %v3846
    %v5383 = vpack.c.b16 %v3851, %v3849
    %v5384 = vpack.c.b16 %v3852, %v3850
    %v5385 = vpack.c.b16 %v3855, %v3853
    %v5386 = vpack.c.b16 %v3856, %v3854
    %v5387 = vpack.c.b16 %v3859, %v3857
    %v5388 = vpack.c.b16 %v3860, %v3858
    %v5389 = vpack.c.b16 %v3863, %v3861
    %v5390 = vpack.c.b16 %v3864, %v3862
    %v5391 = vpack.c.b16 %v3867, %v3865
    %v5392 = vpack.c.b16 %v3868, %v3866
    %v5393 = vpack.c.b16 %v3871, %v3869
    %v5394 = vpack.c.b16 %v3872, %v3870
    %v5395 = vpack.c.b16 %v3875, %v3873
    %v5396 = vpack.c.b16 %v3876, %v3874
    %v5397 = vpack.c.b16 %v3879, %v3877
    %v5398 = vpack.c.b16 %v3880, %v3878
    %v5399 = vpack.c.b16 %v3883, %v3881
    %v5400 = vpack.c.b16 %v3884, %v3882
    %v5401 = vpack.c.b16 %v3887, %v3885
    %v5402 = vpack.c.b16 %v3888, %v3886
    %v5403 = vpack.c.b16 %v3891, %v3889
    %v5404 = vpack.c.b16 %v3892, %v3890
    %v5405 = vpack.c.b16 %v3895, %v3893
    %v5406 = vpack.c.b16 %v3896, %v3894
    %v5407 = vpack.c.b16 %v3899, %v3897
    %v5408 = vpack.c.b16 %v3900, %v3898
    %v5409 = vpack.c.b16 %v3903, %v3901
    %v5410 = vpack.c.b16 %v3904, %v3902
    %v5411 = vpack.c.b16 %v3907, %v3905
    %v5412 = vpack.c.b16 %v3908, %v3906
    %v5413 = vpack.c.b16 %v3911, %v3909
    %v5414 = vpack.c.b16 %v3912, %v3910
    %v5415 = vpack.c.b16 %v3915, %v3913
    %v5416 = vpack.c.b16 %v3916, %v3914
    %v5417 = vpack.c.b16 %v3919, %v3917
    %v5418 = vpack.c.b16 %v3920, %v3918
    %v5419 = vpack.c.b16 %v3923, %v3921
    %v5420 = vpack.c.b16 %v3924, %v3922
    %v5421 = vpack.c.b16 %v3927, %v3925
    %v5422 = vpack.c.b16 %v3928, %v3926
    %v5423 = vpack.c.b16 %v3931, %v3929
    %v5424 = vpack.c.b16 %v3932, %v3930
    %v5425 = vpack.c.b16 %v3935, %v3933
    %v5426 = vpack.c.b16 %v3936, %v3934
    %v5427 = vpack.c.b16 %v3939, %v3937
    %v5428 = vpack.c.b16 %v3940, %v3938
    %v5429 = vpack.c.b16 %v3943, %v3941
    %v5430 = vpack.c.b16 %v3944, %v3942
    %v5431 = vpack.c.b16 %v3947, %v3945
    %v5432 = vpack.c.b16 %v3948, %v3946
    %v5433 = vpack.c.b16 %v3951, %v3949
    %v5434 = vpack.c.b16 %v3952, %v3950
    %v5435 = vpack.c.b16 %v3955, %v3953
    %v5436 = vpack.c.b16 %v3956, %v3954
    %v5437 = vpack.c.b16 %v3959, %v3957
    %v5438 = vpack.c.b16 %v3960, %v3958
    %v5439 = vpack.c.b16 %v3963, %v3961
    %v5440 = vpack.c.b16 %v3964, %v3962
    %v5441 = vpack.c.b16 %v3967, %v3965
    %v5442 = vpack.c.b16 %v3968, %v3966
    %v5443 = vpack.c.b16 %v3971, %v3969
    %v5444 = vpack.c.b16 %v3972, %v3970
    %v5445 = vpack.c.b16 %v3975, %v3973
    %v5446 = vpack.c.b16 %v3976, %v3974
    %v5447 = vpack.c.b16 %v3979, %v3977
    %v5448 = vpack.c.b16 %v3980, %v3978
    %v5449 = vpack.c.b16 %v3983, %v3981
    %v5450 = vpack.c.b16 %v3984, %v3982
    %v5451 = vpack.c.b16 %v3987, %v3985
    %v5452 = vpack.c.b16 %v3988, %v3986
    %v5453 = vpack.c.b16 %v3991, %v3989
    %v5454 = vpack.c.b16 %v3992, %v3990
    %v5455 = vpack.c.b16 %v3995, %v3993
    %v5456 = vpack.c.b16 %v3996, %v3994
    %v5457 = vpack.c.b16 %v3999, %v3997
    %v5458 = vpack.c.b16 %v4000, %v3998
    %v5459 = vpack.c.b16 %v4003, %v4001
    %v5460 = vpack.c.b16 %v4004, %v4002
    %v5461 = vpack.c.b16 %v4007, %v4005
    %v5462 = vpack.c.b16 %v4008, %v4006
    %v5463 = vpack.c.b16 %v4011, %v4009
    %v5464 = vpack.c.b16 %v4012, %v4010
    %v5465 = vpack.c.b16 %v4015, %v4013
    %v5466 = vpack.c.b16 %v4016, %v4014
    %v5467 = vpack.c.b16 %v4019, %v4017
    %v5468 = vpack.c.b16 %v4020, %v4018
    %v5469 = vpack.c.b16 %v4023, %v4021
    %v5470 = vpack.c.b16 %v4024, %v4022
    %v5471 = vpack.c.b16 %v4027, %v4025
    %v5472 = vpack.c.b16 %v4028, %v4026
    %v5473 = vpack.c.b16 %v4031, %v4029
    %v5474 = vpack.c.b16 %v4032, %v4030
    %v5475 = vpack.c.b16 %v4035, %v4033
    %v5476 = vpack.c.b16 %v4036, %v4034
    %v5477 = vpack.c.b16 %v4039, %v4037
    %v5478 = vpack.c.b16 %v4040, %v4038
    %v5479 = vpack.c.b16 %v4043, %v4041
    %v5480 = vpack.c.b16 %v4044, %v4042
    %v5481 = vpack.c.b16 %v4047, %v4045
    %v5482 = vpack.c.b16 %v4048, %v4046
    %v5483 = vpack.c.b16 %v4051, %v4049
    %v5484 = vpack.c.b16 %v4052, %v4050
    %v5485 = vpack.c.b16 %v4055, %v4053
    %v5486 = vpack.c.b16 %v4056, %v4054
    %v5487 = vpack.c.b16 %v4059, %v4057
    %v5488 = vpack.c.b16 %v4060, %v4058
    %v5489 = vpack.c.b16 %v4063, %v4061
    %v5490 = vpack.c.b16 %v4064, %v4062
    %v5491 = vpack.c.b16 %v4067, %v4065
    %v5492 = vpack.c.b16 %v4068, %v4066
    %v5493 = vpack.c.b16 %v4071, %v4069
    %v5494 = vpack.c.b16 %v4072, %v4070
    %v5495 = vpack.c.b16 %v4075, %v4073
    %v5496 = vpack.c.b16 %v4076, %v4074
    %v5497 = vpack.c.b16 %v4079, %v4077
    %v5498 = vpack.c.b16 %v4080, %v4078
    %v5499 = vpack.c.b16 %v4083, %v4081
    %v5500 = vpack.c.b16 %v4084, %v4082
    %v5501 = vpack.c.b16 %v4087, %v4085
    %v5502 = vpack.c.b16 %v4088, %v4086
    %v5503 = vpack.c.b16 %v4091, %v4089
    %v5504 = vpack.c.b16 %v4092, %v4090
    %v5505 = vpack.c.b16 %v4095, %v4093
    %v5506 = vpack.c.b16 %v4096, %v4094
    %v5507 = vpack.c.b16 %v4099, %v4097
    %v5508 = vpack.c.b16 %v4100, %v4098
    %v5509 = vpack.c.b16 %v4103, %v4101
    %v5510 = vpack.c.b16 %v4104, %v4102
    %v5511 = vpack.c.b16 %v4107, %v4105
    %v5512 = vpack.c.b16 %v4108, %v4106
    %v5513 = vpack.c.b16 %v4111, %v4109
    %v5514 = vpack.c.b16 %v4112, %v4110
    %v5515 = vpack.c.b16 %v4115, %v4113
    %v5516 = vpack.c.b16 %v4116, %v4114
    %v5517 = vpack.c.b16 %v4119, %v4117
    %v5518 = vpack.c.b16 %v4120, %v4118
    %v5519 = vpack.c.b16 %v4123, %v4121
    %v5520 = vpack.c.b16 %v4124, %v4122
    %v5521 = vpack.c.b16 %v4127, %v4125
    %v5522 = vpack.c.b16 %v4128, %v4126
    %v5523 = vpack.c.b16 %v4131, %v4129
    %v5524 = vpack.c.b16 %v4132, %v4130
    %v5525 = vpack.c.b16 %v4135, %v4133
    %v5526 = vpack.c.b16 %v4136, %v4134
    %v5527 = vpack.c.b16 %v4139, %v4137
    %v5528 = vpack.c.b16 %v4140, %v4138
    %v5529 = vpack.c.b16 %v4143, %v4141
    %v5530 = vpack.c.b16 %v4144, %v4142
    %v5531 = vpack.c.b16 %v4147, %v4145
    %v5532 = vpack.c.b16 %v4148, %v4146
    %v5533 = vpack.c.b16 %v4151, %v4149
    %v5534 = vpack.c.b16 %v4152, %v4150
    %v5535 = vpack.c.b16 %v4155, %v4153
    %v5536 = vpack.c.b16 %v4156, %v4154
    %v5537 = vpack.c.b16 %v4159, %v4157
    %v5538 = vpack.c.b16 %v4160, %v4158
    %v5539 = vpack.c.b16 %v4163, %v4161
    %v5540 = vpack.c.b16 %v4164, %v4162
    %v5541 = vpack.c.b16 %v4167, %v4165
    %v5542 = vpack.c.b16 %v4168, %v4166
    %v5543 = vpack.c.b16 %v4171, %v4169
    %v5544 = vpack.c.b16 %v4172, %v4170
    %v5545 = vpack.c.b16 %v4175, %v4173
    %v5546 = vpack.c.b16 %v4176, %v4174
    %v5547 = vpack.c.b16 %v4179, %v4177
    %v5548 = vpack.c.b16 %v4180, %v4178
    %v5549 = vpack.c.b16 %v4183, %v4181
    %v5550 = vpack.c.b16 %v4184, %v4182
    %v5551 = vpack.c.b16 %v4187, %v4185
    %v5552 = vpack.c.b16 %v4188, %v4186
    %v5553 = vpack.c.b16 %v4191, %v4189
    %v5554 = vpack.c.b16 %v4192, %v4190
    %v5555 = vpack.c.b16 %v4195, %v4193
    %v5556 = vpack.c.b16 %v4196, %v4194
    %v5557 = vpack.c.b16 %v4199, %v4197
    %v5558 = vpack.c.b16 %v4200, %v4198
    %v5559 = vpack.c.b16 %v4203, %v4201
    %v5560 = vpack.c.b16 %v4204, %v4202
    %v5561 = vpack.c.b16 %v4207, %v4205
    %v5562 = vpack.c.b16 %v4208, %v4206
    %v5563 = vpack.c.b16 %v4211, %v4209
    %v5564 = vpack.c.b16 %v4212, %v4210
    %v5565 = vpack.c.b16 %v4215, %v4213
    %v5566 = vpack.c.b16 %v4216, %v4214
    %v5567 = vpack.c.b16 %v4219, %v4217
    %v5568 = vpack.c.b16 %v4220, %v4218
    %v5569 = vpack.c.b16 %v4223, %v4221
    %v5570 = vpack.c.b16 %v4224, %v4222
    %v5571 = vpack.c.b16 %v4227, %v4225
    %v5572 = vpack.c.b16 %v4228, %v4226
    %v5573 = vpack.c.b16 %v4231, %v4229
    %v5574 = vpack.c.b16 %v4232, %v4230
    %v5575 = vpack.c.b16 %v4235, %v4233
    %v5576 = vpack.c.b16 %v4236, %v4234
    %v5577 = vpack.c.b16 %v4239, %v4237
    %v5578 = vpack.c.b16 %v4240, %v4238
    %v5579 = vpack.c.b16 %v4243, %v4241
    %v5580 = vpack.c.b16 %v4244, %v4242
    %v5581 = vpack.c.b16 %v4247, %v4245
    %v5582 = vpack.c.b16 %v4248, %v4246
    %v5583 = vpack.c.b16 %v4251, %v4249
    %v5584 = vpack.c.b16 %v4252, %v4250
    %v5585 = vpack.c.b16 %v4255, %v4253
    %v5586 = vpack.c.b16 %v4256, %v4254
    %v5587 = vpack.c.b16 %v4259, %v4257
    %v5588 = vpack.c.b16 %v4260, %v4258
    %v5589 = vpack.c.b16 %v4263, %v4261
    %v5590 = vpack.c.b16 %v4264, %v4262
    %v5591 = vpack.c.b16 %v4267, %v4265
    %v5592 = vpack.c.b16 %v4268, %v4266
    %v5593 = vpack.c.b16 %v4271, %v4269
    %v5594 = vpack.c.b16 %v4272, %v4270
    %v5595 = vpack.c.b16 %v4275, %v4273
    %v5596 = vpack.c.b16 %v4276, %v4274
    %v5597 = vpack.c.b16 %v4279, %v4277
    %v5598 = vpack.c.b16 %v4280, %v4278
    %v5599 = vpack.c.b16 %v4283, %v4281
    %v5600 = vpack.c.b16 %v4284, %v4282
    %v5601 = vpack.c.b16 %v4287, %v4285
    %v5602 = vpack.c.b16 %v4288, %v4286
    %v5603 = vpack.c.b16 %v4291, %v4289
    %v5604 = vpack.c.b16 %v4292, %v4290
    %v5605 = vpack.c.b16 %v4295, %v4293
    %v5606 = vpack.c.b16 %v4296, %v4294
    %v5607 = vpack.c.b16 %v4299, %v4297
    %v5608 = vpack.c.b16 %v4300, %v4298
    %v5609 = vpack.c.b16 %v4303, %v4301
    %v5610 = vpack.c.b16 %v4304, %v4302
    %v5611 = vpack.c.b16 %v4307, %v4305
    %v5612 = vpack.c.b16 %v4308, %v4306
    %v5613 = vpack.c.b16 %v4311, %v4309
    %v5614 = vpack.c.b16 %v4312, %v4310
    %v5615 = vpack.c.b16 %v4315, %v4313
    %v5616 = vpack.c.b16 %v4316, %v4314
    %v5617 = vpack.c.b16 %v4319, %v4317
    %v5618 = vpack.c.b16 %v4320, %v4318
    %v5619 = vpack.c.b16 %v4323, %v4321
    %v5620 = vpack.c.b16 %v4324, %v4322
    %v5621 = vpack.c.b16 %v4327, %v4325
    %v5622 = vpack.c.b16 %v4328, %v4326
    %v5623 = vpack.c.b16 %v4331, %v4329
    %v5624 = vpack.c.b16 %v4332, %v4330
    %v5625 = vpack.c.b16 %v4335, %v4333
    %v5626 = vpack.c.b16 %v4336, %v4334
    %v5627 = vpack.c.b16 %v4339, %v4337
    %v5628 = vpack.c.b16 %v4340, %v4338
    %v5629 = vpack.c.b16 %v4343, %v4341
    %v5630 = vpack.c.b16 %v4344, %v4342
    %v5631 = vpack.c.b16 %v4347, %v4345
    %v5632 = vpack.c.b16 %v4348, %v4346
    %v5633 = vpack.c.b16 %v4351, %v4349
    %v5634 = vpack.c.b16 %v4352, %v4350
    %v5635 = vpack.c.b16 %v4355, %v4353
    %v5636 = vpack.c.b16 %v4356, %v4354
    %v5637 = vpack.c.b16 %v4359, %v4357
    %v5638 = vpack.c.b16 %v4360, %v4358
    %v5639 = vpack.c.b16 %v4363, %v4361
    %v5640 = vpack.c.b16 %v4364, %v4362
    %v5641 = vpack.c.b16 %v4367, %v4365
    %v5642 = vpack.c.b16 %v4368, %v4366
    %v5643 = vpack.c.b16 %v4371, %v4369
    %v5644 = vpack.c.b16 %v4372, %v4370
    %v5645 = vpack.c.b16 %v4375, %v4373
    %v5646 = vpack.c.b16 %v4376, %v4374
    %v5647 = vpack.c.b16 %v4379, %v4377
    %v5648 = vpack.c.b16 %v4380, %v4378
    %v5649 = vpack.c.b16 %v4383, %v4381
    %v5650 = vpack.c.b16 %v4384, %v4382
    %v5651 = vpack.c.b16 %v4387, %v4385
    %v5652 = vpack.c.b16 %v4388, %v4386
    %v5653 = vpack.c.b16 %v4391, %v4389
    %v5654 = vpack.c.b16 %v4392, %v4390
    %v5655 = vpack.c.b16 %v4395, %v4393
    %v5656 = vpack.c.b16 %v4396, %v4394
    %v5657 = vpack.c.b16 %v4399, %v4397
    %v5658 = vpack.c.b16 %v4400, %v4398
    %v5659 = vpack.c.b16 %v4403, %v4401
    %v5660 = vpack.c.b16 %v4404, %v4402
    %v5661 = vpack.c.b16 %v4407, %v4405
    %v5662 = vpack.c.b16 %v4408, %v4406
    %v5663 = vpack.c.b16 %v4411, %v4409
    %v5664 = vpack.c.b16 %v4412, %v4410
    %v5665 = vpack.c.b16 %v4415, %v4413
    %v5666 = vpack.c.b16 %v4416, %v4414
    %v5667 = vpack.c.b16 %v4419, %v4417
    %v5668 = vpack.c.b16 %v4420, %v4418
    %v5669 = vpack.c.b16 %v4423, %v4421
    %v5670 = vpack.c.b16 %v4424, %v4422
    %v5671 = vpack.c.b16 %v4427, %v4425
    %v5672 = vpack.c.b16 %v4428, %v4426
    %v5673 = vpack.c.b16 %v4431, %v4429
    %v5674 = vpack.c.b16 %v4432, %v4430
    %v5675 = vpack.c.b16 %v4435, %v4433
    %v5676 = vpack.c.b16 %v4436, %v4434
    %v5677 = vpack.c.b16 %v4439, %v4437
    %v5678 = vpack.c.b16 %v4440, %v4438
    %v5679 = vpack.c.b16 %v4443, %v4441
    %v5680 = vpack.c.b16 %v4444, %v4442
    %v5681 = vpack.c.b16 %v4447, %v4445
    %v5682 = vpack.c.b16 %v4448, %v4446
    %v5683 = vpack.c.b16 %v4451, %v4449
    %v5684 = vpack.c.b16 %v4452, %v4450
    %v5685 = vpack.c.b16 %v4455, %v4453
    %v5686 = vpack.c.b16 %v4456, %v4454
    %v5687 = vpack.c.b16 %v4459, %v4457
    %v5688 = vpack.c.b16 %v4460, %v4458
    %v5689 = vpack.c.b16 %v4463, %v4461
    %v5690 = vpack.c.b16 %v4464, %v4462
    %v5691 = vpack.c.b16 %v4467, %v4465
    %v5692 = vpack.c.b16 %v4468, %v4466
    %v5693 = vpack.c.b16 %v4471, %v4469
    %v5694 = vpack.c.b16 %v4472, %v4470
    %v5695 = vpack.c.b16 %v4475, %v4473
    %v5696 = vpack.c.b16 %v4476, %v4474
    %v5697 = vpack.c.b16 %v4479, %v4477
    %v5698 = vpack.c.b16 %v4480, %v4478
    %v5699 = vpack.c.b16 %v4483, %v4481
    %v5700 = vpack.c.b16 %v4484, %v4482
    %v5701 = vpack.c.b16 %v4487, %v4485
    %v5702 = vpack.c.b16 %v4488, %v4486
    %v5703 = vpack.c.b16 %v4491, %v4489
    %v5704 = vpack.c.b16 %v4492, %v4490
    %v5705 = vpack.c.b16 %v4495, %v4493
    %v5706 = vpack.c.b16 %v4496, %v4494
    %v5707 = vpack.c.b16 %v4499, %v4497
    %v5708 = vpack.c.b16 %v4500, %v4498
    %v5709 = vpack.c.b16 %v4503, %v4501
    %v5710 = vpack.c.b16 %v4504, %v4502
    %v5711 = vpack.c.b16 %v4507, %v4505
    %v5712 = vpack.c.b16 %v4508, %v4506
    %v5713 = vpack.c.b16 %v4511, %v4509
    %v5714 = vpack.c.b16 %v4512, %v4510
    %v5715 = vpack.c.b16 %v4515, %v4513
    %v5716 = vpack.c.b16 %v4516, %v4514
    %v5717 = vpack.c.b16 %v4519, %v4517
    %v5718 = vpack.c.b16 %v4520, %v4518
    %v5719 = vpack.c.b16 %v4523, %v4521
    %v5720 = vpack.c.b16 %v4524, %v4522
    %v5721 = vpack.c.b16 %v4527, %v4525
    %v5722 = vpack.c.b16 %v4528, %v4526
    %v5723 = vpack.c.b16 %v4531, %v4529
    %v5724 = vpack.c.b16 %v4532, %v4530
    %v5725 = vpack.c.b16 %v4535, %v4533
    %v5726 = vpack.c.b16 %v4536, %v4534
    %v5727 = vpack.c.b16 %v4539, %v4537
    %v5728 = vpack.c.b16 %v4540, %v4538
    %v5729 = vpack.c.b16 %v4543, %v4541
    %v5730 = vpack.c.b16 %v4544, %v4542
    %v5731 = vpack.c.b16 %v4547, %v4545
    %v5732 = vpack.c.b16 %v4548, %v4546
    %v5733 = vpack.c.b16 %v4551, %v4549
    %v5734 = vpack.c.b16 %v4552, %v4550
    %v5735 = vpack.c.b16 %v4555, %v4553
    %v5736 = vpack.c.b16 %v4556, %v4554
    %v5737 = vpack.c.b16 %v4559, %v4557
    %v5738 = vpack.c.b16 %v4560, %v4558
    %v5739 = vpack.c.b16 %v4563, %v4561
    %v5740 = vpack.c.b16 %v4564, %v4562
    %v5741 = vpack.c.b16 %v4567, %v4565
    %v5742 = vpack.c.b16 %v4568, %v4566
    %v5743 = vpack.c.b16 %v4571, %v4569
    %v5744 = vpack.c.b16 %v4572, %v4570
    %v5745 = vpack.c.b16 %v4575, %v4573
    %v5746 = vpack.c.b16 %v4576, %v4574
    %v5747 = vpack.c.b16 %v4579, %v4577
    %v5748 = vpack.c.b16 %v4580, %v4578
    %v5749 = vpack.c.b16 %v4583, %v4581
    %v5750 = vpack.c.b16 %v4584, %v4582
    %v5751 = vpack.c.b16 %v4587, %v4585
    %v5752 = vpack.c.b16 %v4588, %v4586
    %v5753 = vpack.c.b16 %v4591, %v4589
    %v5754 = vpack.c.b16 %v4592, %v4590
    %v5755 = vpack.c.b16 %v4595, %v4593
    %v5756 = vpack.c.b16 %v4596, %v4594
    %v5757 = vpack.c.b16 %v4599, %v4597
    %v5758 = vpack.c.b16 %v4600, %v4598
    %v5759 = vpack.c.b16 %v4603, %v4601
    %v5760 = vpack.c.b16 %v4604, %v4602
    %v5761 = vpack.c.b16 %v4607, %v4605
    %v5762 = vpack.c.b16 %v4608, %v4606
    %v5763 = vpack.c.b16 %v4611, %v4609
    %v5764 = vpack.c.b16 %v4612, %v4610
    %v5765 = vpack.c.b16 %v4615, %v4613
    %v5766 = vpack.c.b16 %v4616, %v4614
    %v5767 = vpack.c.b16 %v4619, %v4617
    %v5768 = vpack.c.b16 %v4620, %v4618
    %v5769 = vpack.c.b16 %v4623, %v4621
    %v5770 = vpack.c.b16 %v4624, %v4622
    %v5771 = vpack.c.b16 %v4627, %v4625
    %v5772 = vpack.c.b16 %v4628, %v4626
    %v5773 = vpack.c.b16 %v4631, %v4629
    %v5774 = vpack.c.b16 %v4632, %v4630
    %v5775 = vpack.c.b16 %v4635, %v4633
    %v5776 = vpack.c.b16 %v4636, %v4634
    %v5777 = vpack.c.b16 %v4639, %v4637
    %v5778 = vpack.c.b16 %v4640, %v4638
    %v5779 = vpack.c.b16 %v4643, %v4641
    %v5780 = vpack.c.b16 %v4644, %v4642
    %v5781 = vpack.c.b16 %v4647, %v4645
    %v5782 = vpack.c.b16 %v4648, %v4646
    %v5783 = vpack.c.b16 %v4651, %v4649
    %v5784 = vpack.c.b16 %v4652, %v4650
    %v5785 = vpack.c.b16 %v4655, %v4653
    %v5786 = vpack.c.b16 %v4656, %v4654
    %v5787 = vpack.c.b16 %v4659, %v4657
    %v5788 = vpack.c.b16 %v4660, %v4658
    %v5789 = vpack.c.b16 %v4663, %v4661
    %v5790 = vpack.c.b16 %v4664, %v4662
    %v5791 = vpack.c.b16 %v4667, %v4665
    %v5792 = vpack.c.b16 %v4668, %v4666
    %v5793 = vpack.c.b16 %v4671, %v4669
    %v5794 = vpack.c.b16 %v4672, %v4670
    %v5795 = vpack.c.b16 %v4675, %v4673
    %v5796 = vpack.c.b16 %v4676, %v4674
    %v5797 = vpack.c.b16 %v4679, %v4677
    %v5798 = vpack.c.b16 %v4680, %v4678
    %v5799 = vpack.c.b16 %v4683, %v4681
    %v5800 = vpack.c.b16 %v4684, %v4682
    %v5801 = vpack.c.b16 %v4687, %v4685
    %v5802 = vpack.c.b16 %v4688, %v4686
    %v5803 = vpack.c.b16 %v4691, %v4689
    %v5804 = vpack.c.b16 %v4692, %v4690
    %v5805 = vpack.c.b16 %v4695, %v4693
    %v5806 = vpack.c.b16 %v4696, %v4694
    %v5807 = vpack.c.b16 %v4699, %v4697
    %v5808 = vpack.c.b16 %v4700, %v4698
    %v5809 = vpack.c.b16 %v4703, %v4701
    %v5810 = vpack.c.b16 %v4704, %v4702
    %v5811 = vpack.c.b16 %v4707, %v4705
    %v5812 = vpack.c.b16 %v4708, %v4706
    %v5813 = vpack.c.b16 %v4711, %v4709
    %v5814 = vpack.c.b16 %v4712, %v4710
    %v5815 = vpack.c.b16 %v4715, %v4713
    %v5816 = vpack.c.b16 %v4716, %v4714
    %v5817 = vpack.c.b16 %v4719, %v4717
    %v5818 = vpack.c.b16 %v4720, %v4718
    %v5819 = vpack.c.b16 %v4723, %v4721
    %v5820 = vpack.c.b16 %v4724, %v4722
    %v5821 = vpack.c.b16 %v4727, %v4725
    %v5822 = vpack.c.b16 %v4728, %v4726
    %v5823 = vpack.c.b16 %v4731, %v4729
    %v5824 = vpack.c.b16 %v4732, %v4730
    %v5825 = vpack.c.b16 %v4735, %v4733
    %v5826 = vpack.c.b16 %v4736, %v4734
    %v5827 = vpack.c.b16 %v4739, %v4737
    %v5828 = vpack.c.b16 %v4740, %v4738
    %v5829 = vpack.c.b16 %v4743, %v4741
    %v5830 = vpack.c.b16 %v4744, %v4742
    %v5831 = vpack.c.b16 %v4747, %v4745
    %v5832 = vpack.c.b16 %v4748, %v4746
    %v5833 = vpack.c.b16 %v4751, %v4749
    %v5834 = vpack.c.b16 %v4752, %v4750
    %v5835 = vpack.c.b16 %v4755, %v4753
    %v5836 = vpack.c.b16 %v4756, %v4754
    %v5837 = vpack.c.b16 %v4759, %v4757
    %v5838 = vpack.c.b16 %v4760, %v4758
    %v5839 = vpack.c.b16 %v4763, %v4761
    %v5840 = vpack.c.b16 %v4764, %v4762
    %v5841 = vpack.c.b16 %v4767, %v4765
    %v5842 = vpack.c.b16 %v4768, %v4766
    %v5843 = vpack.c.b16 %v4771, %v4769
    %v5844 = vpack.c.b16 %v4772, %v4770
    %v5845 = vpack.c.b16 %v4775, %v4773
    %v5846 = vpack.c.b16 %v4776, %v4774
    %v5847 = vpack.c.b16 %v4779, %v4777
    %v5848 = vpack.c.b16 %v4780, %v4778
    %v5849 = vpack.c.b16 %v4783, %v4781
    %v5850 = vpack.c.b16 %v4784, %v4782
    %v5851 = vpack.c.b16 %v4787, %v4785
    %v5852 = vpack.c.b16 %v4788, %v4786
    %vm6917 = vcmask 523264
    %v6919 = vsel %vm6917, %v1530, 0
    %6921 = vmatprep.subr.bf16.mxu0 %v4790
    %6922 = vmatpush1.bf16.msra.mxu0 %v4789
    %6923 = vmatprep.subr.bf16.mxu0 %v4792
    %6924 = vmatpush1.bf16.msra.mxu0 %v4791
    %6925 = vmatprep.subr.bf16.mxu0 %v4794
    %6926 = vmatpush1.bf16.msra.mxu0 %v4793
    %6927 = vmatprep.subr.bf16.mxu0 %v4796
    %6928 = vmatpush1.bf16.msra.mxu0 %v4795
    %6929 = vmatprep.subr.bf16.mxu0 %v4798
    %6930 = vmatpush1.bf16.msra.mxu0 %v4797
    %6931 = vmatprep.subr.bf16.mxu0 %v4800
    %6932 = vmatpush1.bf16.msra.mxu0 %v4799
    %6933 = vmatprep.subr.bf16.mxu0 %v4802
    %6934 = vmatpush1.bf16.msra.mxu0 %v4801
    %6935 = vmatprep.subr.bf16.mxu0 %v4804
    %6936 = vmatpush1.bf16.msra.mxu0 %v4803
    %6937 = vmatprep.subr.bf16.mxu0 %v4806
    %6938 = vmatpush1.bf16.msra.mxu0 %v4805
    %6939 = vmatprep.subr.bf16.mxu0 %v4808
    %6940 = vmatpush1.bf16.msra.mxu0 %v4807
    %6941 = vmatprep.subr.bf16.mxu0 %v4810
    %6942 = vmatpush1.bf16.msra.mxu0 %v4809
    %6943 = vmatprep.subr.bf16.mxu0 %v4812
    %6944 = vmatpush1.bf16.msra.mxu0 %v4811
    %6945 = vmatprep.subr.bf16.mxu0 %v4814
    %6946 = vmatpush1.bf16.msra.mxu0 %v4813
    %6947 = vmatprep.subr.bf16.mxu0 %v4816
    %6948 = vmatpush1.bf16.msra.mxu0 %v4815
    %6949 = vmatprep.subr.bf16.mxu0 %v4818
    %6950 = vmatpush1.bf16.msra.mxu0 %v4817
    %6951 = vmatprep.subr.bf16.mxu0 %v4820
    %6952 = vmatpush1.bf16.msra.mxu0 %v4819
    %6953 = vmatprep.mubr.bf16.mxu0 %v1153
    %6954 = vmatmul.mubr.bf16.gmra.mrb[0].mxu0 %v1139
    %v6955 = vpop.f32.mrb[0].mxu0
    %v6956 = vadd.f32 %v1100, %v6955
    %v6957 = vpop.f32.mrb[0].mxu0
    %v6958 = vadd.f32 %v1104, %v6957
    %v6959 = vpop.f32.mrb[0].mxu0
    %v6960 = vpop.f32.mrb[0].mxu0
    %6961 = vdwg.mxu0
    %6962 = vmatprep.subr.bf16.mxu0 %v4822
    %6963 = vmatpush1.bf16.msra.mxu0 %v4821
    %6964 = vmatprep.subr.bf16.mxu0 %v4824
    %6965 = vmatpush1.bf16.msra.mxu0 %v4823
    %6966 = vmatprep.subr.bf16.mxu0 %v4826
    %6967 = vmatpush1.bf16.msra.mxu0 %v4825
    %6968 = vmatprep.subr.bf16.mxu0 %v4828
    %6969 = vmatpush1.bf16.msra.mxu0 %v4827
    %6970 = vmatprep.subr.bf16.mxu0 %v4830
    %6971 = vmatpush1.bf16.msra.mxu0 %v4829
    %6972 = vmatprep.subr.bf16.mxu0 %v4832
    %6973 = vmatpush1.bf16.msra.mxu0 %v4831
    %6974 = vmatprep.subr.bf16.mxu0 %v4834
    %6975 = vmatpush1.bf16.msra.mxu0 %v4833
    %6976 = vmatprep.subr.bf16.mxu0 %v4836
    %6977 = vmatpush1.bf16.msra.mxu0 %v4835
    %6978 = vmatprep.subr.bf16.mxu0 %v4838
    %6979 = vmatpush1.bf16.msra.mxu0 %v4837
    %6980 = vmatprep.subr.bf16.mxu0 %v4840
    %6981 = vmatpush1.bf16.msra.mxu0 %v4839
    %6982 = vmatprep.subr.bf16.mxu0 %v4842
    %6983 = vmatpush1.bf16.msra.mxu0 %v4841
    %6984 = vmatprep.subr.bf16.mxu0 %v4844
    %6985 = vmatpush1.bf16.msra.mxu0 %v4843
    %6986 = vmatprep.subr.bf16.mxu0 %v4846
    %6987 = vmatpush1.bf16.msra.mxu0 %v4845
    %6988 = vmatprep.subr.bf16.mxu0 %v4848
    %6989 = vmatpush1.bf16.msra.mxu0 %v4847
    %6990 = vmatprep.subr.bf16.mxu0 %v4850
    %6991 = vmatpush1.bf16.msra.mxu0 %v4849
    %6992 = vmatprep.subr.bf16.mxu0 %v4852
    %6993 = vmatpush1.bf16.msra.mxu0 %v4851
    %6994 = vmatprep.mubr.bf16.mxu0 %v1163
    %6995 = vmatmul.mubr.bf16.gmra.mrb[0].mxu0 %v1161
    %v6996 = vpop.f32.mrb[0].mxu0
    %v6997 = vadd.f32 %v6956, %v6996
    %v6998 = vpop.f32.mrb[0].mxu0
    %v6999 = vadd.f32 %v6958, %v6998
    %v7000 = vpop.f32.mrb[0].mxu0
    %v7001 = vpop.f32.mrb[0].mxu0
    %7002 = vdwg.mxu0
    %7003 = vmatprep.subr.bf16.mxu0 %v4854
    %7004 = vmatpush1.bf16.msra.mxu0 %v4853
    %7005 = vmatprep.subr.bf16.mxu0 %v4856
    %7006 = vmatpush1.bf16.msra.mxu0 %v4855
    %7007 = vmatprep.subr.bf16.mxu0 %v4858
    %7008 = vmatpush1.bf16.msra.mxu0 %v4857
    %7009 = vmatprep.subr.bf16.mxu0 %v4860
    %7010 = vmatpush1.bf16.msra.mxu0 %v4859
    %7011 = vmatprep.subr.bf16.mxu0 %v4862
    %7012 = vmatpush1.bf16.msra.mxu0 %v4861
    %7013 = vmatprep.subr.bf16.mxu0 %v4864
    %7014 = vmatpush1.bf16.msra.mxu0 %v4863
    %7015 = vmatprep.subr.bf16.mxu0 %v4866
    %7016 = vmatpush1.bf16.msra.mxu0 %v4865
    %7017 = vmatprep.subr.bf16.mxu0 %v4868
    %7018 = vmatpush1.bf16.msra.mxu0 %v4867
    %7019 = vmatprep.subr.bf16.mxu0 %v4870
    %7020 = vmatpush1.bf16.msra.mxu0 %v4869
    %7021 = vmatprep.subr.bf16.mxu0 %v4872
    %7022 = vmatpush1.bf16.msra.mxu0 %v4871
    %7023 = vmatprep.subr.bf16.mxu0 %v4874
    %7024 = vmatpush1.bf16.msra.mxu0 %v4873
    %7025 = vmatprep.subr.bf16.mxu0 %v4876
    %7026 = vmatpush1.bf16.msra.mxu0 %v4875
    %7027 = vmatprep.subr.bf16.mxu0 %v4878
    %7028 = vmatpush1.bf16.msra.mxu0 %v4877
    %7029 = vmatprep.subr.bf16.mxu0 %v4880
    %7030 = vmatpush1.bf16.msra.mxu0 %v4879
    %7031 = vmatprep.subr.bf16.mxu0 %v4882
    %7032 = vmatpush1.bf16.msra.mxu0 %v4881
    %7033 = vmatprep.subr.bf16.mxu0 %v4884
    %7034 = vmatpush1.bf16.msra.mxu0 %v4883
    %7035 = vmatprep.mubr.bf16.mxu0 %v1160
    %7036 = vmatmul.mubr.bf16.gmra.mrb[0].mxu0 %v1146
    %v7037 = vpop.f32.mrb[0].mxu0
    %v7038 = vadd.f32 %v6997, %v7037
    %v7039 = vpop.f32.mrb[0].mxu0
    %v7040 = vadd.f32 %v6999, %v7039
    %v7041 = vpop.f32.mrb[0].mxu0
    %v7042 = vpop.f32.mrb[0].mxu0
    %7043 = vdwg.mxu0
    %7044 = vmatprep.subr.bf16.mxu0 %v4886
    %7045 = vmatpush1.bf16.msra.mxu0 %v4885
    %7046 = vmatprep.subr.bf16.mxu0 %v4888
    %7047 = vmatpush1.bf16.msra.mxu0 %v4887
    %7048 = vmatprep.subr.bf16.mxu0 %v4890
    %7049 = vmatpush1.bf16.msra.mxu0 %v4889
    %7050 = vmatprep.subr.bf16.mxu0 %v4892
    %7051 = vmatpush1.bf16.msra.mxu0 %v4891
    %7052 = vmatprep.subr.bf16.mxu0 %v4894
    %7053 = vmatpush1.bf16.msra.mxu0 %v4893
    %7054 = vmatprep.subr.bf16.mxu0 %v4896
    %7055 = vmatpush1.bf16.msra.mxu0 %v4895
    %7056 = vmatprep.subr.bf16.mxu0 %v4898
    %7057 = vmatpush1.bf16.msra.mxu0 %v4897
    %7058 = vmatprep.subr.bf16.mxu0 %v4900
    %7059 = vmatpush1.bf16.msra.mxu0 %v4899
    %7060 = vmatprep.subr.bf16.mxu0 %v4902
    %7061 = vmatpush1.bf16.msra.mxu0 %v4901
    %7062 = vmatprep.subr.bf16.mxu0 %v4904
    %7063 = vmatpush1.bf16.msra.mxu0 %v4903
    %7064 = vmatprep.subr.bf16.mxu0 %v4906
    %7065 = vmatpush1.bf16.msra.mxu0 %v4905
    %7066 = vmatprep.subr.bf16.mxu0 %v4908
    %7067 = vmatpush1.bf16.msra.mxu0 %v4907
    %7068 = vmatprep.subr.bf16.mxu0 %v4910
    %7069 = vmatpush1.bf16.msra.mxu0 %v4909
    %7070 = vmatprep.subr.bf16.mxu0 %v4912
    %7071 = vmatpush1.bf16.msra.mxu0 %v4911
    %7072 = vmatprep.subr.bf16.mxu0 %v4914
    %7073 = vmatpush1.bf16.msra.mxu0 %v4913
    %7074 = vmatprep.subr.bf16.mxu0 %v4916
    %7075 = vmatpush1.bf16.msra.mxu0 %v4915
    %7076 = vmatprep.mubr.bf16.mxu0 %v1164
    %7077 = vmatmul.mubr.bf16.gmra.mrb[0].mxu0 %v1162
    %v7078 = vpop.f32.mrb[0].mxu0
    %v7079 = vadd.f32 %v7038, %v7078
    %v7080 = vpop.f32.mrb[0].mxu0
    %v7081 = vadd.f32 %v7040, %v7080
    %v7082 = vpop.f32.mrb[0].mxu0
    %v7083 = vpop.f32.mrb[0].mxu0
    %7084 = vdwg.mxu0
    %7085 = vmatprep.subr.bf16.mxu0 %v4918
    %7086 = vmatpush1.bf16.msra.mxu0 %v4917
    %7087 = vmatprep.subr.bf16.mxu0 %v4920
    %7088 = vmatpush1.bf16.msra.mxu0 %v4919
    %7089 = vmatprep.subr.bf16.mxu0 %v4922
    %7090 = vmatpush1.bf16.msra.mxu0 %v4921
    %7091 = vmatprep.subr.bf16.mxu0 %v4924
    %7092 = vmatpush1.bf16.msra.mxu0 %v4923
    %7093 = vmatprep.subr.bf16.mxu0 %v4926
    %7094 = vmatpush1.bf16.msra.mxu0 %v4925
    %7095 = vmatprep.subr.bf16.mxu0 %v4928
    %7096 = vmatpush1.bf16.msra.mxu0 %v4927
    %7097 = vmatprep.subr.bf16.mxu0 %v4930
    %7098 = vmatpush1.bf16.msra.mxu0 %v4929
    %7099 = vmatprep.subr.bf16.mxu0 %v4932
    %7100 = vmatpush1.bf16.msra.mxu0 %v4931
    %7101 = vmatprep.subr.bf16.mxu0 %v4934
    %7102 = vmatpush1.bf16.msra.mxu0 %v4933
    %7103 = vmatprep.subr.bf16.mxu0 %v4936
    %7104 = vmatpush1.bf16.msra.mxu0 %v4935
    %7105 = vmatprep.subr.bf16.mxu0 %v4938
    %7106 = vmatpush1.bf16.msra.mxu0 %v4937
    %7107 = vmatprep.subr.bf16.mxu0 %v4940
    %7108 = vmatpush1.bf16.msra.mxu0 %v4939
    %7109 = vmatprep.subr.bf16.mxu0 %v4942
    %7110 = vmatpush1.bf16.msra.mxu0 %v4941
    %7111 = vmatprep.subr.bf16.mxu0 %v4944
    %7112 = vmatpush1.bf16.msra.mxu0 %v4943
    %7113 = vmatprep.subr.bf16.mxu0 %v4946
    %7114 = vmatpush1.bf16.msra.mxu0 %v4945
    %7115 = vmatprep.subr.bf16.mxu0 %v4948
    %7116 = vmatpush1.bf16.msra.mxu0 %v4947
    %7117 = vmatprep.mubr.bf16.mxu0 %v1202
    %7118 = vmatmul.mubr.bf16.gmra.mrb[0].mxu0 %v1188
    %v7119 = vpop.f32.mrb[0].mxu0
    %v7120 = vadd.f32 %v7079, %v7119
    %v7121 = vpop.f32.mrb[0].mxu0
    %v7122 = vadd.f32 %v7081, %v7121
    %v7123 = vpop.f32.mrb[0].mxu0
    %v7124 = vpop.f32.mrb[0].mxu0
    %7125 = vdwg.mxu0
    %7126 = vmatprep.subr.bf16.mxu0 %v4950
    %7127 = vmatpush1.bf16.msra.mxu0 %v4949
    %7128 = vmatprep.subr.bf16.mxu0 %v4952
    %7129 = vmatpush1.bf16.msra.mxu0 %v4951
    %7130 = vmatprep.subr.bf16.mxu0 %v4954
    %7131 = vmatpush1.bf16.msra.mxu0 %v4953
    %7132 = vmatprep.subr.bf16.mxu0 %v4956
    %7133 = vmatpush1.bf16.msra.mxu0 %v4955
    %7134 = vmatprep.subr.bf16.mxu0 %v4958
    %7135 = vmatpush1.bf16.msra.mxu0 %v4957
    %7136 = vmatprep.subr.bf16.mxu0 %v4960
    %7137 = vmatpush1.bf16.msra.mxu0 %v4959
    %7138 = vmatprep.subr.bf16.mxu0 %v4962
    %7139 = vmatpush1.bf16.msra.mxu0 %v4961
    %7140 = vmatprep.subr.bf16.mxu0 %v4964
    %7141 = vmatpush1.bf16.msra.mxu0 %v4963
    %7142 = vmatprep.subr.bf16.mxu0 %v4966
    %7143 = vmatpush1.bf16.msra.mxu0 %v4965
    %7144 = vmatprep.subr.bf16.mxu0 %v4968
    %7145 = vmatpush1.bf16.msra.mxu0 %v4967
    %7146 = vmatprep.subr.bf16.mxu0 %v4970
    %7147 = vmatpush1.bf16.msra.mxu0 %v4969
    %7148 = vmatprep.subr.bf16.mxu0 %v4972
    %7149 = vmatpush1.bf16.msra.mxu0 %v4971
    %7150 = vmatprep.subr.bf16.mxu0 %v4974
    %7151 = vmatpush1.bf16.msra.mxu0 %v4973
    %7152 = vmatprep.subr.bf16.mxu0 %v4976
    %7153 = vmatpush1.bf16.msra.mxu0 %v4975
    %7154 = vmatprep.subr.bf16.mxu0 %v4978
    %7155 = vmatpush1.bf16.msra.mxu0 %v4977
    %7156 = vmatprep.subr.bf16.mxu0 %v4980
    %7157 = vmatpush1.bf16.msra.mxu0 %v4979
    %7158 = vmatprep.mubr.bf16.mxu0 %v1212
    %7159 = vmatmul.mubr.bf16.gmra.mrb[0].mxu0 %v1210
    %v7160 = vpop.f32.mrb[0].mxu0
    %v7161 = vadd.f32 %v7120, %v7160
    %v7162 = vpop.f32.mrb[0].mxu0
    %v7163 = vadd.f32 %v7122, %v7162
    %v7164 = vpop.f32.mrb[0].mxu0
    %v7165 = vpop.f32.mrb[0].mxu0
    %7166 = vdwg.mxu0
    %7167 = vmatprep.subr.bf16.mxu0 %v4982
    %7168 = vmatpush1.bf16.msra.mxu0 %v4981
    %7169 = vmatprep.subr.bf16.mxu0 %v4984
    %7170 = vmatpush1.bf16.msra.mxu0 %v4983
    %7171 = vmatprep.subr.bf16.mxu0 %v4986
    %7172 = vmatpush1.bf16.msra.mxu0 %v4985
    %7173 = vmatprep.subr.bf16.mxu0 %v4988
    %7174 = vmatpush1.bf16.msra.mxu0 %v4987
    %7175 = vmatprep.subr.bf16.mxu0 %v4990
    %7176 = vmatpush1.bf16.msra.mxu0 %v4989
    %7177 = vmatprep.subr.bf16.mxu0 %v4992
    %7178 = vmatpush1.bf16.msra.mxu0 %v4991
    %7179 = vmatprep.subr.bf16.mxu0 %v4994
    %7180 = vmatpush1.bf16.msra.mxu0 %v4993
    %7181 = vmatprep.subr.bf16.mxu0 %v4996
    %7182 = vmatpush1.bf16.msra.mxu0 %v4995
    %7183 = vmatprep.subr.bf16.mxu0 %v4998
    %7184 = vmatpush1.bf16.msra.mxu0 %v4997
    %7185 = vmatprep.subr.bf16.mxu0 %v5000
    %7186 = vmatpush1.bf16.msra.mxu0 %v4999
    %7187 = vmatprep.subr.bf16.mxu0 %v5002
    %7188 = vmatpush1.bf16.msra.mxu0 %v5001
    %7189 = vmatprep.subr.bf16.mxu0 %v5004
    %7190 = vmatpush1.bf16.msra.mxu0 %v5003
    %7191 = vmatprep.subr.bf16.mxu0 %v5006
    %7192 = vmatpush1.bf16.msra.mxu0 %v5005
    %7193 = vmatprep.subr.bf16.mxu0 %v5008
    %7194 = vmatpush1.bf16.msra.mxu0 %v5007
    %7195 = vmatprep.subr.bf16.mxu0 %v5010
    %7196 = vmatpush1.bf16.msra.mxu0 %v5009
    %7197 = vmatprep.subr.bf16.mxu0 %v5012
    %7198 = vmatpush1.bf16.msra.mxu0 %v5011
    %7199 = vmatprep.mubr.bf16.mxu0 %v1209
    %7200 = vmatmul.mubr.bf16.gmra.mrb[0].mxu0 %v1195
    %v7201 = vpop.f32.mrb[0].mxu0
    %v7202 = vadd.f32 %v7161, %v7201
    %v7203 = vpop.f32.mrb[0].mxu0
    %v7204 = vadd.f32 %v7163, %v7203
    %v7205 = vpop.f32.mrb[0].mxu0
    %v7206 = vpop.f32.mrb[0].mxu0
    %7207 = vdwg.mxu0
    %7208 = vmatprep.subr.bf16.mxu0 %v5014
    %7209 = vmatpush1.bf16.msra.mxu0 %v5013
    %7210 = vmatprep.subr.bf16.mxu0 %v5016
    %7211 = vmatpush1.bf16.msra.mxu0 %v5015
    %7212 = vmatprep.subr.bf16.mxu0 %v5018
    %7213 = vmatpush1.bf16.msra.mxu0 %v5017
    %7214 = vmatprep.subr.bf16.mxu0 %v5020
    %7215 = vmatpush1.bf16.msra.mxu0 %v5019
    %7216 = vmatprep.subr.bf16.mxu0 %v5022
    %7217 = vmatpush1.bf16.msra.mxu0 %v5021
    %7218 = vmatprep.subr.bf16.mxu0 %v5024
    %7219 = vmatpush1.bf16.msra.mxu0 %v5023
    %7220 = vmatprep.subr.bf16.mxu0 %v5026
    %7221 = vmatpush1.bf16.msra.mxu0 %v5025
    %7222 = vmatprep.subr.bf16.mxu0 %v5028
    %7223 = vmatpush1.bf16.msra.mxu0 %v5027
    %7224 = vmatprep.subr.bf16.mxu0 %v5030
    %7225 = vmatpush1.bf16.msra.mxu0 %v5029
    %7226 = vmatprep.subr.bf16.mxu0 %v5032
    %7227 = vmatpush1.bf16.msra.mxu0 %v5031
    %7228 = vmatprep.subr.bf16.mxu0 %v5034
    %7229 = vmatpush1.bf16.msra.mxu0 %v5033
    %7230 = vmatprep.subr.bf16.mxu0 %v5036
    %7231 = vmatpush1.bf16.msra.mxu0 %v5035
    %7232 = vmatprep.subr.bf16.mxu0 %v5038
    %7233 = vmatpush1.bf16.msra.mxu0 %v5037
    %7234 = vmatprep.subr.bf16.mxu0 %v5040
    %7235 = vmatpush1.bf16.msra.mxu0 %v5039
    %7236 = vmatprep.subr.bf16.mxu0 %v5042
    %7237 = vmatpush1.bf16.msra.mxu0 %v5041
    %7238 = vmatprep.subr.bf16.mxu0 %v5044
    %7239 = vmatpush1.bf16.msra.mxu0 %v5043
    %7240 = vmatprep.mubr.bf16.mxu0 %v1213
    %7241 = vmatmul.mubr.bf16.gmra.mrb[0].mxu0 %v1211
    %v7242 = vpop.f32.mrb[0].mxu0
    %v7243 = vadd.f32 %v7202, %v7242
    %v7244 = vpop.f32.mrb[0].mxu0
    %v7245 = vadd.f32 %v7204, %v7244
    %v7246 = vpop.f32.mrb[0].mxu0
    %v7247 = vpop.f32.mrb[0].mxu0
    %7248 = vdwg.mxu0
    %7249 = vmatprep.subr.bf16.mxu0 %v5046
    %7250 = vmatpush1.bf16.msra.mxu0 %v5045
    %7251 = vmatprep.subr.bf16.mxu0 %v5048
    %7252 = vmatpush1.bf16.msra.mxu0 %v5047
    %7253 = vmatprep.subr.bf16.mxu0 %v5050
    %7254 = vmatpush1.bf16.msra.mxu0 %v5049
    %7255 = vmatprep.subr.bf16.mxu0 %v5052
    %7256 = vmatpush1.bf16.msra.mxu0 %v5051
    %7257 = vmatprep.subr.bf16.mxu0 %v5054
    %7258 = vmatpush1.bf16.msra.mxu0 %v5053
    %7259 = vmatprep.subr.bf16.mxu0 %v5056
    %7260 = vmatpush1.bf16.msra.mxu0 %v5055
    %7261 = vmatprep.subr.bf16.mxu0 %v5058
    %7262 = vmatpush1.bf16.msra.mxu0 %v5057
    %7263 = vmatprep.subr.bf16.mxu0 %v5060
    %7264 = vmatpush1.bf16.msra.mxu0 %v5059
    %7265 = vmatprep.subr.bf16.mxu0 %v5062
    %7266 = vmatpush1.bf16.msra.mxu0 %v5061
    %7267 = vmatprep.subr.bf16.mxu0 %v5064
    %7268 = vmatpush1.bf16.msra.mxu0 %v5063
    %7269 = vmatprep.subr.bf16.mxu0 %v5066
    %7270 = vmatpush1.bf16.msra.mxu0 %v5065
    %7271 = vmatprep.subr.bf16.mxu0 %v5068
    %7272 = vmatpush1.bf16.msra.mxu0 %v5067
    %7273 = vmatprep.subr.bf16.mxu0 %v5070
    %7274 = vmatpush1.bf16.msra.mxu0 %v5069
    %7275 = vmatprep.subr.bf16.mxu0 %v5072
    %7276 = vmatpush1.bf16.msra.mxu0 %v5071
    %7277 = vmatprep.subr.bf16.mxu0 %v5074
    %7278 = vmatpush1.bf16.msra.mxu0 %v5073
    %7279 = vmatprep.subr.bf16.mxu0 %v5076
    %7280 = vmatpush1.bf16.msra.mxu0 %v5075
    %7281 = vmatprep.mubr.bf16.mxu0 %v1251
    %7282 = vmatmul.mubr.bf16.gmra.mrb[0].mxu0 %v1237
    %v7283 = vpop.f32.mrb[0].mxu0
    %v7284 = vadd.f32 %v7243, %v7283
    %v7285 = vpop.f32.mrb[0].mxu0
    %v7286 = vadd.f32 %v7245, %v7285
    %v7287 = vpop.f32.mrb[0].mxu0
    %v7288 = vpop.f32.mrb[0].mxu0
    %7289 = vdwg.mxu0
    %7290 = vmatprep.subr.bf16.mxu0 %v5078
    %7291 = vmatpush1.bf16.msra.mxu0 %v5077
    %7292 = vmatprep.subr.bf16.mxu0 %v5080
    %7293 = vmatpush1.bf16.msra.mxu0 %v5079
    %7294 = vmatprep.subr.bf16.mxu0 %v5082
    %7295 = vmatpush1.bf16.msra.mxu0 %v5081
    %7296 = vmatprep.subr.bf16.mxu0 %v5084
    %7297 = vmatpush1.bf16.msra.mxu0 %v5083
    %7298 = vmatprep.subr.bf16.mxu0 %v5086
    %7299 = vmatpush1.bf16.msra.mxu0 %v5085
    %7300 = vmatprep.subr.bf16.mxu0 %v5088
    %7301 = vmatpush1.bf16.msra.mxu0 %v5087
    %7302 = vmatprep.subr.bf16.mxu0 %v5090
    %7303 = vmatpush1.bf16.msra.mxu0 %v5089
    %7304 = vmatprep.subr.bf16.mxu0 %v5092
    %7305 = vmatpush1.bf16.msra.mxu0 %v5091
    %7306 = vmatprep.subr.bf16.mxu0 %v5094
    %7307 = vmatpush1.bf16.msra.mxu0 %v5093
    %7308 = vmatprep.subr.bf16.mxu0 %v5096
    %7309 = vmatpush1.bf16.msra.mxu0 %v5095
    %7310 = vmatprep.subr.bf16.mxu0 %v5098
    %7311 = vmatpush1.bf16.msra.mxu0 %v5097
    %7312 = vmatprep.subr.bf16.mxu0 %v5100
    %7313 = vmatpush1.bf16.msra.mxu0 %v5099
    %7314 = vmatprep.subr.bf16.mxu0 %v5102
    %7315 = vmatpush1.bf16.msra.mxu0 %v5101
    %7316 = vmatprep.subr.bf16.mxu0 %v5104
    %7317 = vmatpush1.bf16.msra.mxu0 %v5103
    %7318 = vmatprep.subr.bf16.mxu0 %v5106
    %7319 = vmatpush1.bf16.msra.mxu0 %v5105
    %7320 = vmatprep.subr.bf16.mxu0 %v5108
    %7321 = vmatpush1.bf16.msra.mxu0 %v5107
    %7322 = vmatprep.mubr.bf16.mxu0 %v1261
    %7323 = vmatmul.mubr.bf16.gmra.mrb[0].mxu0 %v1259
    %v7324 = vpop.f32.mrb[0].mxu0
    %v7325 = vadd.f32 %v7284, %v7324
    %v7326 = vpop.f32.mrb[0].mxu0
    %v7327 = vadd.f32 %v7286, %v7326
    %v7328 = vpop.f32.mrb[0].mxu0
    %v7329 = vpop.f32.mrb[0].mxu0
    %7330 = vdwg.mxu0
    %7331 = vmatprep.subr.bf16.mxu0 %v5110
    %7332 = vmatpush1.bf16.msra.mxu0 %v5109
    %7333 = vmatprep.subr.bf16.mxu0 %v5112
    %7334 = vmatpush1.bf16.msra.mxu0 %v5111
    %7335 = vmatprep.subr.bf16.mxu0 %v5114
    %7336 = vmatpush1.bf16.msra.mxu0 %v5113
    %7337 = vmatprep.subr.bf16.mxu0 %v5116
    %7338 = vmatpush1.bf16.msra.mxu0 %v5115
    %7339 = vmatprep.subr.bf16.mxu0 %v5118
    %7340 = vmatpush1.bf16.msra.mxu0 %v5117
    %7341 = vmatprep.subr.bf16.mxu0 %v5120
    %7342 = vmatpush1.bf16.msra.mxu0 %v5119
    %7343 = vmatprep.subr.bf16.mxu0 %v5122
    %7344 = vmatpush1.bf16.msra.mxu0 %v5121
    %7345 = vmatprep.subr.bf16.mxu0 %v5124
    %7346 = vmatpush1.bf16.msra.mxu0 %v5123
    %7347 = vmatprep.subr.bf16.mxu0 %v5126
    %7348 = vmatpush1.bf16.msra.mxu0 %v5125
    %7349 = vmatprep.subr.bf16.mxu0 %v5128
    %7350 = vmatpush1.bf16.msra.mxu0 %v5127
    %7351 = vmatprep.subr.bf16.mxu0 %v5130
    %7352 = vmatpush1.bf16.msra.mxu0 %v5129
    %7353 = vmatprep.subr.bf16.mxu0 %v5132
    %7354 = vmatpush1.bf16.msra.mxu0 %v5131
    %7355 = vmatprep.subr.bf16.mxu0 %v5134
    %7356 = vmatpush1.bf16.msra.mxu0 %v5133
    %7357 = vmatprep.subr.bf16.mxu0 %v5136
    %7358 = vmatpush1.bf16.msra.mxu0 %v5135
    %7359 = vmatprep.subr.bf16.mxu0 %v5138
    %7360 = vmatpush1.bf16.msra.mxu0 %v5137
    %7361 = vmatprep.subr.bf16.mxu0 %v5140
    %7362 = vmatpush1.bf16.msra.mxu0 %v5139
    %7363 = vmatprep.mubr.bf16.mxu0 %v1258
    %7364 = vmatmul.mubr.bf16.gmra.mrb[0].mxu0 %v1244
    %v7365 = vpop.f32.mrb[0].mxu0
    %v7366 = vadd.f32 %v7325, %v7365
    %v7367 = vpop.f32.mrb[0].mxu0
    %v7368 = vadd.f32 %v7327, %v7367
    %v7369 = vpop.f32.mrb[0].mxu0
    %v7370 = vpop.f32.mrb[0].mxu0
    %7371 = vdwg.mxu0
    %7372 = vmatprep.subr.bf16.mxu0 %v5142
    %7373 = vmatpush1.bf16.msra.mxu0 %v5141
    %7374 = vmatprep.subr.bf16.mxu0 %v5144
    %7375 = vmatpush1.bf16.msra.mxu0 %v5143
    %7376 = vmatprep.subr.bf16.mxu0 %v5146
    %7377 = vmatpush1.bf16.msra.mxu0 %v5145
    %7378 = vmatprep.subr.bf16.mxu0 %v5148
    %7379 = vmatpush1.bf16.msra.mxu0 %v5147
    %7380 = vmatprep.subr.bf16.mxu0 %v5150
    %7381 = vmatpush1.bf16.msra.mxu0 %v5149
    %7382 = vmatprep.subr.bf16.mxu0 %v5152
    %7383 = vmatpush1.bf16.msra.mxu0 %v5151
    %7384 = vmatprep.subr.bf16.mxu0 %v5154
    %7385 = vmatpush1.bf16.msra.mxu0 %v5153
    %7386 = vmatprep.subr.bf16.mxu0 %v5156
    %7387 = vmatpush1.bf16.msra.mxu0 %v5155
    %7388 = vmatprep.subr.bf16.mxu0 %v5158
    %7389 = vmatpush1.bf16.msra.mxu0 %v5157
    %7390 = vmatprep.subr.bf16.mxu0 %v5160
    %7391 = vmatpush1.bf16.msra.mxu0 %v5159
    %7392 = vmatprep.subr.bf16.mxu0 %v5162
    %7393 = vmatpush1.bf16.msra.mxu0 %v5161
    %7394 = vmatprep.subr.bf16.mxu0 %v5164
    %7395 = vmatpush1.bf16.msra.mxu0 %v5163
    %7396 = vmatprep.subr.bf16.mxu0 %v5166
    %7397 = vmatpush1.bf16.msra.mxu0 %v5165
    %7398 = vmatprep.subr.bf16.mxu0 %v5168
    %7399 = vmatpush1.bf16.msra.mxu0 %v5167
    %7400 = vmatprep.subr.bf16.mxu0 %v5170
    %7401 = vmatpush1.bf16.msra.mxu0 %v5169
    %7402 = vmatprep.subr.bf16.mxu0 %v5172
    %7403 = vmatpush1.bf16.msra.mxu0 %v5171
    %7404 = vmatprep.mubr.bf16.mxu0 %v1262
    %7405 = vmatmul.mubr.bf16.gmra.mrb[0].mxu0 %v1260
    %v7406 = vpop.f32.mrb[0].mxu0
    %v7407 = vadd.f32 %v7366, %v7406
    %v7408 = vpop.f32.mrb[0].mxu0
    %v7409 = vadd.f32 %v7368, %v7408
    %v7410 = vpop.f32.mrb[0].mxu0
    %v7411 = vpop.f32.mrb[0].mxu0
    %7412 = vdwg.mxu0
    %7413 = vmatprep.subr.bf16.mxu0 %v5174
    %7414 = vmatpush1.bf16.msra.mxu0 %v5173
    %7415 = vmatprep.subr.bf16.mxu0 %v5176
    %7416 = vmatpush1.bf16.msra.mxu0 %v5175
    %7417 = vmatprep.subr.bf16.mxu0 %v5178
    %7418 = vmatpush1.bf16.msra.mxu0 %v5177
    %7419 = vmatprep.subr.bf16.mxu0 %v5180
    %7420 = vmatpush1.bf16.msra.mxu0 %v5179
    %7421 = vmatprep.subr.bf16.mxu0 %v5182
    %7422 = vmatpush1.bf16.msra.mxu0 %v5181
    %7423 = vmatprep.subr.bf16.mxu0 %v5184
    %7424 = vmatpush1.bf16.msra.mxu0 %v5183
    %7425 = vmatprep.subr.bf16.mxu0 %v5186
    %7426 = vmatpush1.bf16.msra.mxu0 %v5185
    %7427 = vmatprep.subr.bf16.mxu0 %v5188
    %7428 = vmatpush1.bf16.msra.mxu0 %v5187
    %7429 = vmatprep.subr.bf16.mxu0 %v5190
    %7430 = vmatpush1.bf16.msra.mxu0 %v5189
    %7431 = vmatprep.subr.bf16.mxu0 %v5192
    %7432 = vmatpush1.bf16.msra.mxu0 %v5191
    %7433 = vmatprep.subr.bf16.mxu0 %v5194
    %7434 = vmatpush1.bf16.msra.mxu0 %v5193
    %7435 = vmatprep.subr.bf16.mxu0 %v5196
    %7436 = vmatpush1.bf16.msra.mxu0 %v5195
    %7437 = vmatprep.subr.bf16.mxu0 %v5198
    %7438 = vmatpush1.bf16.msra.mxu0 %v5197
    %7439 = vmatprep.subr.bf16.mxu0 %v5200
    %7440 = vmatpush1.bf16.msra.mxu0 %v5199
    %7441 = vmatprep.subr.bf16.mxu0 %v5202
    %7442 = vmatpush1.bf16.msra.mxu0 %v5201
    %7443 = vmatprep.subr.bf16.mxu0 %v5204
    %7444 = vmatpush1.bf16.msra.mxu0 %v5203
    %7445 = vmatprep.mubr.bf16.mxu0 %v1300
    %7446 = vmatmul.mubr.bf16.gmra.mrb[0].mxu0 %v1286
    %v7447 = vpop.f32.mrb[0].mxu0
    %v7448 = vadd.f32 %v7407, %v7447
    %v7449 = vpop.f32.mrb[0].mxu0
    %v7450 = vadd.f32 %v7409, %v7449
    %v7451 = vpop.f32.mrb[0].mxu0
    %v7452 = vpop.f32.mrb[0].mxu0
    %7453 = vdwg.mxu0
    %7454 = vmatprep.subr.bf16.mxu0 %v5206
    %7455 = vmatpush1.bf16.msra.mxu0 %v5205
    %7456 = vmatprep.subr.bf16.mxu0 %v5208
    %7457 = vmatpush1.bf16.msra.mxu0 %v5207
    %7458 = vmatprep.subr.bf16.mxu0 %v5210
    %7459 = vmatpush1.bf16.msra.mxu0 %v5209
    %7460 = vmatprep.subr.bf16.mxu0 %v5212
    %7461 = vmatpush1.bf16.msra.mxu0 %v5211
    %7462 = vmatprep.subr.bf16.mxu0 %v5214
    %7463 = vmatpush1.bf16.msra.mxu0 %v5213
    %7464 = vmatprep.subr.bf16.mxu0 %v5216
    %7465 = vmatpush1.bf16.msra.mxu0 %v5215
    %7466 = vmatprep.subr.bf16.mxu0 %v5218
    %7467 = vmatpush1.bf16.msra.mxu0 %v5217
    %7468 = vmatprep.subr.bf16.mxu0 %v5220
    %7469 = vmatpush1.bf16.msra.mxu0 %v5219
    %7470 = vmatprep.subr.bf16.mxu0 %v5222
    %7471 = vmatpush1.bf16.msra.mxu0 %v5221
    %7472 = vmatprep.subr.bf16.mxu0 %v5224
    %7473 = vmatpush1.bf16.msra.mxu0 %v5223
    %7474 = vmatprep.subr.bf16.mxu0 %v5226
    %7475 = vmatpush1.bf16.msra.mxu0 %v5225
    %7476 = vmatprep.subr.bf16.mxu0 %v5228
    %7477 = vmatpush1.bf16.msra.mxu0 %v5227
    %7478 = vmatprep.subr.bf16.mxu0 %v5230
    %7479 = vmatpush1.bf16.msra.mxu0 %v5229
    %7480 = vmatprep.subr.bf16.mxu0 %v5232
    %7481 = vmatpush1.bf16.msra.mxu0 %v5231
    %7482 = vmatprep.subr.bf16.mxu0 %v5234
    %7483 = vmatpush1.bf16.msra.mxu0 %v5233
    %7484 = vmatprep.subr.bf16.mxu0 %v5236
    %7485 = vmatpush1.bf16.msra.mxu0 %v5235
    %7486 = vmatprep.mubr.bf16.mxu0 %v1310
    %7487 = vmatmul.mubr.bf16.gmra.mrb[0].mxu0 %v1308
    %v7488 = vpop.f32.mrb[0].mxu0
    %v7489 = vadd.f32 %v7448, %v7488
    %v7490 = vpop.f32.mrb[0].mxu0
    %v7491 = vadd.f32 %v7450, %v7490
    %v7492 = vpop.f32.mrb[0].mxu0
    %v7493 = vpop.f32.mrb[0].mxu0
    %7494 = vdwg.mxu0
    %7495 = vmatprep.subr.bf16.mxu0 %v5238
    %7496 = vmatpush1.bf16.msra.mxu0 %v5237
    %7497 = vmatprep.subr.bf16.mxu0 %v5240
    %7498 = vmatpush1.bf16.msra.mxu0 %v5239
    %7499 = vmatprep.subr.bf16.mxu0 %v5242
    %7500 = vmatpush1.bf16.msra.mxu0 %v5241
    %7501 = vmatprep.subr.bf16.mxu0 %v5244
    %7502 = vmatpush1.bf16.msra.mxu0 %v5243
    %7503 = vmatprep.subr.bf16.mxu0 %v5246
    %7504 = vmatpush1.bf16.msra.mxu0 %v5245
    %7505 = vmatprep.subr.bf16.mxu0 %v5248
    %7506 = vmatpush1.bf16.msra.mxu0 %v5247
    %7507 = vmatprep.subr.bf16.mxu0 %v5250
    %7508 = vmatpush1.bf16.msra.mxu0 %v5249
    %7509 = vmatprep.subr.bf16.mxu0 %v5252
    %7510 = vmatpush1.bf16.msra.mxu0 %v5251
    %7511 = vmatprep.subr.bf16.mxu0 %v5254
    %7512 = vmatpush1.bf16.msra.mxu0 %v5253
    %7513 = vmatprep.subr.bf16.mxu0 %v5256
    %7514 = vmatpush1.bf16.msra.mxu0 %v5255
    %7515 = vmatprep.subr.bf16.mxu0 %v5258
    %7516 = vmatpush1.bf16.msra.mxu0 %v5257
    %7517 = vmatprep.subr.bf16.mxu0 %v5260
    %7518 = vmatpush1.bf16.msra.mxu0 %v5259
    %7519 = vmatprep.subr.bf16.mxu0 %v5262
    %7520 = vmatpush1.bf16.msra.mxu0 %v5261
    %7521 = vmatprep.subr.bf16.mxu0 %v5264
    %7522 = vmatpush1.bf16.msra.mxu0 %v5263
    %7523 = vmatprep.subr.bf16.mxu0 %v5266
    %7524 = vmatpush1.bf16.msra.mxu0 %v5265
    %7525 = vmatprep.subr.bf16.mxu0 %v5268
    %7526 = vmatpush1.bf16.msra.mxu0 %v5267
    %7527 = vmatprep.mubr.bf16.mxu0 %v1307
    %7528 = vmatmul.mubr.bf16.gmra.mrb[0].mxu0 %v1293
    %v7529 = vpop.f32.mrb[0].mxu0
    %v7530 = vadd.f32 %v7489, %v7529
    %v7531 = vpop.f32.mrb[0].mxu0
    %v7532 = vadd.f32 %v7491, %v7531
    %v7533 = vpop.f32.mrb[0].mxu0
    %v7534 = vpop.f32.mrb[0].mxu0
    %7535 = vdwg.mxu0
    %7536 = vmatprep.subr.bf16.mxu0 %v5270
    %7537 = vmatpush1.bf16.msra.mxu0 %v5269
    %7538 = vmatprep.subr.bf16.mxu0 %v5272
    %7539 = vmatpush1.bf16.msra.mxu0 %v5271
    %7540 = vmatprep.subr.bf16.mxu0 %v5274
    %7541 = vmatpush1.bf16.msra.mxu0 %v5273
    %7542 = vmatprep.subr.bf16.mxu0 %v5276
    %7543 = vmatpush1.bf16.msra.mxu0 %v5275
    %7544 = vmatprep.subr.bf16.mxu0 %v5278
    %7545 = vmatpush1.bf16.msra.mxu0 %v5277
    %7546 = vmatprep.subr.bf16.mxu0 %v5280
    %7547 = vmatpush1.bf16.msra.mxu0 %v5279
    %7548 = vmatprep.subr.bf16.mxu0 %v5282
    %7549 = vmatpush1.bf16.msra.mxu0 %v5281
    %7550 = vmatprep.subr.bf16.mxu0 %v5284
    %7551 = vmatpush1.bf16.msra.mxu0 %v5283
    %7552 = vmatprep.subr.bf16.mxu0 %v5286
    %7553 = vmatpush1.bf16.msra.mxu0 %v5285
    %7554 = vmatprep.subr.bf16.mxu0 %v5288
    %7555 = vmatpush1.bf16.msra.mxu0 %v5287
    %7556 = vmatprep.subr.bf16.mxu0 %v5290
    %7557 = vmatpush1.bf16.msra.mxu0 %v5289
    %7558 = vmatprep.subr.bf16.mxu0 %v5292
    %7559 = vmatpush1.bf16.msra.mxu0 %v5291
    %7560 = vmatprep.subr.bf16.mxu0 %v5294
    %7561 = vmatpush1.bf16.msra.mxu0 %v5293
    %7562 = vmatprep.subr.bf16.mxu0 %v5296
    %7563 = vmatpush1.bf16.msra.mxu0 %v5295
    %7564 = vmatprep.subr.bf16.mxu0 %v5298
    %7565 = vmatpush1.bf16.msra.mxu0 %v5297
    %7566 = vmatprep.subr.bf16.mxu0 %v5300
    %7567 = vmatpush1.bf16.msra.mxu0 %v5299
    %7568 = vmatprep.mubr.bf16.mxu0 %v1311
    %7569 = vmatmul.mubr.bf16.gmra.mrb[0].mxu0 %v1309
    %v7570 = vpop.f32.mrb[0].mxu0
    %v7571 = vadd.f32 %v7530, %v7570
    %v7572 = vpop.f32.mrb[0].mxu0
    %v7573 = vadd.f32 %v7532, %v7572
    %v7574 = vpop.f32.mrb[0].mxu0
    %v7575 = vpop.f32.mrb[0].mxu0
    %7576 = vdwg.mxu0
    %7577 = vmatprep.subr.bf16.mxu0 %v5302
    %7578 = vmatpush1.bf16.msra.mxu0 %v5301
    %7579 = vmatprep.subr.bf16.mxu0 %v5304
    %7580 = vmatpush1.bf16.msra.mxu0 %v5303
    %7581 = vmatprep.subr.bf16.mxu0 %v5306
    %7582 = vmatpush1.bf16.msra.mxu0 %v5305
    %7583 = vmatprep.subr.bf16.mxu0 %v5308
    %7584 = vmatpush1.bf16.msra.mxu0 %v5307
    %7585 = vmatprep.subr.bf16.mxu0 %v5310
    %7586 = vmatpush1.bf16.msra.mxu0 %v5309
    %7587 = vmatprep.subr.bf16.mxu0 %v5312
    %7588 = vmatpush1.bf16.msra.mxu0 %v5311
    %7589 = vmatprep.subr.bf16.mxu0 %v5314
    %7590 = vmatpush1.bf16.msra.mxu0 %v5313
    %7591 = vmatprep.subr.bf16.mxu0 %v5316
    %7592 = vmatpush1.bf16.msra.mxu0 %v5315
    %7593 = vmatprep.subr.bf16.mxu0 %v5318
    %7594 = vmatpush1.bf16.msra.mxu0 %v5317
    %7595 = vmatprep.subr.bf16.mxu0 %v5320
    %7596 = vmatpush1.bf16.msra.mxu0 %v5319
    %7597 = vmatprep.subr.bf16.mxu0 %v5322
    %7598 = vmatpush1.bf16.msra.mxu0 %v5321
    %7599 = vmatprep.subr.bf16.mxu0 %v5324
    %7600 = vmatpush1.bf16.msra.mxu0 %v5323
    %7601 = vmatprep.subr.bf16.mxu0 %v5326
    %7602 = vmatpush1.bf16.msra.mxu0 %v5325
    %7603 = vmatprep.subr.bf16.mxu0 %v5328
    %7604 = vmatpush1.bf16.msra.mxu0 %v5327
    %7605 = vmatprep.subr.bf16.mxu0 %v5330
    %7606 = vmatpush1.bf16.msra.mxu0 %v5329
    %7607 = vmatprep.subr.bf16.mxu0 %v5332
    %7608 = vmatpush1.bf16.msra.mxu0 %v5331
    %7609 = vmatprep.mubr.bf16.mxu0 %v1349
    %7610 = vmatmul.mubr.bf16.gmra.mrb[0].mxu0 %v1335
    %v7611 = vpop.f32.mrb[0].mxu0
    %v7612 = vadd.f32 %v7571, %v7611
    %v7613 = vpop.f32.mrb[0].mxu0
    %v7614 = vadd.f32 %v7573, %v7613
    %v7615 = vpop.f32.mrb[0].mxu0
    %v7616 = vpop.f32.mrb[0].mxu0
    %7617 = vdwg.mxu0
    %7618 = vmatprep.subr.bf16.mxu0 %v5334
    %7619 = vmatpush1.bf16.msra.mxu0 %v5333
    %7620 = vmatprep.subr.bf16.mxu0 %v5336
    %7621 = vmatpush1.bf16.msra.mxu0 %v5335
    %7622 = vmatprep.subr.bf16.mxu0 %v5338
    %7623 = vmatpush1.bf16.msra.mxu0 %v5337
    %7624 = vmatprep.subr.bf16.mxu0 %v5340
    %7625 = vmatpush1.bf16.msra.mxu0 %v5339
    %7626 = vmatprep.subr.bf16.mxu0 %v5342
    %7627 = vmatpush1.bf16.msra.mxu0 %v5341
    %7628 = vmatprep.subr.bf16.mxu0 %v5344
    %7629 = vmatpush1.bf16.msra.mxu0 %v5343
    %7630 = vmatprep.subr.bf16.mxu0 %v5346
    %7631 = vmatpush1.bf16.msra.mxu0 %v5345
    %7632 = vmatprep.subr.bf16.mxu0 %v5348
    %7633 = vmatpush1.bf16.msra.mxu0 %v5347
    %7634 = vmatprep.subr.bf16.mxu0 %v5350
    %7635 = vmatpush1.bf16.msra.mxu0 %v5349
    %7636 = vmatprep.subr.bf16.mxu0 %v5352
    %7637 = vmatpush1.bf16.msra.mxu0 %v5351
    %7638 = vmatprep.subr.bf16.mxu0 %v5354
    %7639 = vmatpush1.bf16.msra.mxu0 %v5353
    %7640 = vmatprep.subr.bf16.mxu0 %v5356
    %7641 = vmatpush1.bf16.msra.mxu0 %v5355
    %7642 = vmatprep.subr.bf16.mxu0 %v5358
    %7643 = vmatpush1.bf16.msra.mxu0 %v5357
    %7644 = vmatprep.subr.bf16.mxu0 %v5360
    %7645 = vmatpush1.bf16.msra.mxu0 %v5359
    %7646 = vmatprep.subr.bf16.mxu0 %v5362
    %7647 = vmatpush1.bf16.msra.mxu0 %v5361
    %7648 = vmatprep.subr.bf16.mxu0 %v5364
    %7649 = vmatpush1.bf16.msra.mxu0 %v5363
    %7650 = vmatprep.mubr.bf16.mxu0 %v1359
    %7651 = vmatmul.mubr.bf16.gmra.mrb[0].mxu0 %v1357
    %v7652 = vpop.f32.mrb[0].mxu0
    %v7653 = vadd.f32 %v7612, %v7652
    %v7654 = vpop.f32.mrb[0].mxu0
    %v7655 = vadd.f32 %v7614, %v7654
    %v7656 = vpop.f32.mrb[0].mxu0
    %v7657 = vpop.f32.mrb[0].mxu0
    %7658 = vdwg.mxu0
    %7659 = vmatprep.subr.bf16.mxu0 %v5366
    %7660 = vmatpush1.bf16.msra.mxu0 %v5365
    %7661 = vmatprep.subr.bf16.mxu0 %v5368
    %7662 = vmatpush1.bf16.msra.mxu0 %v5367
    %7663 = vmatprep.subr.bf16.mxu0 %v5370
    %7664 = vmatpush1.bf16.msra.mxu0 %v5369
    %7665 = vmatprep.subr.bf16.mxu0 %v5372
    %7666 = vmatpush1.bf16.msra.mxu0 %v5371
    %7667 = vmatprep.subr.bf16.mxu0 %v5374
    %7668 = vmatpush1.bf16.msra.mxu0 %v5373
    %7669 = vmatprep.subr.bf16.mxu0 %v5376
    %7670 = vmatpush1.bf16.msra.mxu0 %v5375
    %7671 = vmatprep.subr.bf16.mxu0 %v5378
    %7672 = vmatpush1.bf16.msra.mxu0 %v5377
    %7673 = vmatprep.subr.bf16.mxu0 %v5380
    %7674 = vmatpush1.bf16.msra.mxu0 %v5379
    %7675 = vmatprep.subr.bf16.mxu0 %v5382
    %7676 = vmatpush1.bf16.msra.mxu0 %v5381
    %7677 = vmatprep.subr.bf16.mxu0 %v5384
    %7678 = vmatpush1.bf16.msra.mxu0 %v5383
    %7679 = vmatprep.subr.bf16.mxu0 %v5386
    %7680 = vmatpush1.bf16.msra.mxu0 %v5385
    %7681 = vmatprep.subr.bf16.mxu0 %v5388
    %7682 = vmatpush1.bf16.msra.mxu0 %v5387
    %7683 = vmatprep.subr.bf16.mxu0 %v5390
    %7684 = vmatpush1.bf16.msra.mxu0 %v5389
    %7685 = vmatprep.subr.bf16.mxu0 %v5392
    %7686 = vmatpush1.bf16.msra.mxu0 %v5391
    %7687 = vmatprep.subr.bf16.mxu0 %v5394
    %7688 = vmatpush1.bf16.msra.mxu0 %v5393
    %7689 = vmatprep.subr.bf16.mxu0 %v5396
    %7690 = vmatpush1.bf16.msra.mxu0 %v5395
    %7691 = vmatprep.mubr.bf16.mxu0 %v1356
    %7692 = vmatmul.mubr.bf16.gmra.mrb[0].mxu0 %v1342
    %v7693 = vpop.f32.mrb[0].mxu0
    %v7694 = vadd.f32 %v7653, %v7693
    %v7695 = vpop.f32.mrb[0].mxu0
    %v7696 = vadd.f32 %v7655, %v7695
    %v7697 = vpop.f32.mrb[0].mxu0
    %v7698 = vpop.f32.mrb[0].mxu0
    %7699 = vdwg.mxu0
    %7700 = vmatprep.subr.bf16.mxu0 %v5398
    %7701 = vmatpush1.bf16.msra.mxu0 %v5397
    %7702 = vmatprep.subr.bf16.mxu0 %v5400
    %7703 = vmatpush1.bf16.msra.mxu0 %v5399
    %7704 = vmatprep.subr.bf16.mxu0 %v5402
    %7705 = vmatpush1.bf16.msra.mxu0 %v5401
    %7706 = vmatprep.subr.bf16.mxu0 %v5404
    %7707 = vmatpush1.bf16.msra.mxu0 %v5403
    %7708 = vmatprep.subr.bf16.mxu0 %v5406
    %7709 = vmatpush1.bf16.msra.mxu0 %v5405
    %7710 = vmatprep.subr.bf16.mxu0 %v5408
    %7711 = vmatpush1.bf16.msra.mxu0 %v5407
    %7712 = vmatprep.subr.bf16.mxu0 %v5410
    %7713 = vmatpush1.bf16.msra.mxu0 %v5409
    %7714 = vmatprep.subr.bf16.mxu0 %v5412
    %7715 = vmatpush1.bf16.msra.mxu0 %v5411
    %7716 = vmatprep.subr.bf16.mxu0 %v5414
    %7717 = vmatpush1.bf16.msra.mxu0 %v5413
    %7718 = vmatprep.subr.bf16.mxu0 %v5416
    %7719 = vmatpush1.bf16.msra.mxu0 %v5415
    %7720 = vmatprep.subr.bf16.mxu0 %v5418
    %7721 = vmatpush1.bf16.msra.mxu0 %v5417
    %7722 = vmatprep.subr.bf16.mxu0 %v5420
    %7723 = vmatpush1.bf16.msra.mxu0 %v5419
    %7724 = vmatprep.subr.bf16.mxu0 %v5422
    %7725 = vmatpush1.bf16.msra.mxu0 %v5421
    %7726 = vmatprep.subr.bf16.mxu0 %v5424
    %7727 = vmatpush1.bf16.msra.mxu0 %v5423
    %7728 = vmatprep.subr.bf16.mxu0 %v5426
    %7729 = vmatpush1.bf16.msra.mxu0 %v5425
    %7730 = vmatprep.subr.bf16.mxu0 %v5428
    %7731 = vmatpush1.bf16.msra.mxu0 %v5427
    %7732 = vmatprep.mubr.bf16.mxu0 %v1360
    %7733 = vmatmul.mubr.bf16.gmra.mrb[0].mxu0 %v1358
    %v7734 = vpop.f32.mrb[0].mxu0
    %v7735 = vadd.f32 %v7694, %v7734
    %v7736 = vpop.f32.mrb[0].mxu0
    %v7737 = vadd.f32 %v7696, %v7736
    %v7738 = vpop.f32.mrb[0].mxu0
    %v7739 = vpop.f32.mrb[0].mxu0
    %7740 = vdwg.mxu0
    %7741 = vmatprep.subr.bf16.mxu0 %v5430
    %7742 = vmatpush1.bf16.msra.mxu0 %v5429
    %7743 = vmatprep.subr.bf16.mxu0 %v5432
    %7744 = vmatpush1.bf16.msra.mxu0 %v5431
    %7745 = vmatprep.subr.bf16.mxu0 %v5434
    %7746 = vmatpush1.bf16.msra.mxu0 %v5433
    %7747 = vmatprep.subr.bf16.mxu0 %v5436
    %7748 = vmatpush1.bf16.msra.mxu0 %v5435
    %7749 = vmatprep.subr.bf16.mxu0 %v5438
    %7750 = vmatpush1.bf16.msra.mxu0 %v5437
    %7751 = vmatprep.subr.bf16.mxu0 %v5440
    %7752 = vmatpush1.bf16.msra.mxu0 %v5439
    %7753 = vmatprep.subr.bf16.mxu0 %v5442
    %7754 = vmatpush1.bf16.msra.mxu0 %v5441
    %7755 = vmatprep.subr.bf16.mxu0 %v5444
    %7756 = vmatpush1.bf16.msra.mxu0 %v5443
    %7757 = vmatprep.subr.bf16.mxu0 %v5446
    %7758 = vmatpush1.bf16.msra.mxu0 %v5445
    %7759 = vmatprep.subr.bf16.mxu0 %v5448
    %7760 = vmatpush1.bf16.msra.mxu0 %v5447
    %7761 = vmatprep.subr.bf16.mxu0 %v5450
    %7762 = vmatpush1.bf16.msra.mxu0 %v5449
    %7763 = vmatprep.subr.bf16.mxu0 %v5452
    %7764 = vmatpush1.bf16.msra.mxu0 %v5451
    %7765 = vmatprep.subr.bf16.mxu0 %v5454
    %7766 = vmatpush1.bf16.msra.mxu0 %v5453
    %7767 = vmatprep.subr.bf16.mxu0 %v5456
    %7768 = vmatpush1.bf16.msra.mxu0 %v5455
    %7769 = vmatprep.subr.bf16.mxu0 %v5458
    %7770 = vmatpush1.bf16.msra.mxu0 %v5457
    %7771 = vmatprep.subr.bf16.mxu0 %v5460
    %7772 = vmatpush1.bf16.msra.mxu0 %v5459
    %7773 = vmatprep.mubr.bf16.mxu0 %v1398
    %7774 = vmatmul.mubr.bf16.gmra.mrb[0].mxu0 %v1384
    %v7775 = vpop.f32.mrb[0].mxu0
    %v7776 = vadd.f32 %v7735, %v7775
    %v7777 = vpop.f32.mrb[0].mxu0
    %v7778 = vadd.f32 %v7737, %v7777
    %v7779 = vpop.f32.mrb[0].mxu0
    %v7780 = vpop.f32.mrb[0].mxu0
    %7781 = vdwg.mxu0
    %7782 = vmatprep.subr.bf16.mxu0 %v5462
    %7783 = vmatpush1.bf16.msra.mxu0 %v5461
    %7784 = vmatprep.subr.bf16.mxu0 %v5464
    %7785 = vmatpush1.bf16.msra.mxu0 %v5463
    %7786 = vmatprep.subr.bf16.mxu0 %v5466
    %7787 = vmatpush1.bf16.msra.mxu0 %v5465
    %7788 = vmatprep.subr.bf16.mxu0 %v5468
    %7789 = vmatpush1.bf16.msra.mxu0 %v5467
    %7790 = vmatprep.subr.bf16.mxu0 %v5470
    %7791 = vmatpush1.bf16.msra.mxu0 %v5469
    %7792 = vmatprep.subr.bf16.mxu0 %v5472
    %7793 = vmatpush1.bf16.msra.mxu0 %v5471
    %7794 = vmatprep.subr.bf16.mxu0 %v5474
    %7795 = vmatpush1.bf16.msra.mxu0 %v5473
    %7796 = vmatprep.subr.bf16.mxu0 %v5476
    %7797 = vmatpush1.bf16.msra.mxu0 %v5475
    %7798 = vmatprep.subr.bf16.mxu0 %v5478
    %7799 = vmatpush1.bf16.msra.mxu0 %v5477
    %7800 = vmatprep.subr.bf16.mxu0 %v5480
    %7801 = vmatpush1.bf16.msra.mxu0 %v5479
    %7802 = vmatprep.subr.bf16.mxu0 %v5482
    %7803 = vmatpush1.bf16.msra.mxu0 %v5481
    %7804 = vmatprep.subr.bf16.mxu0 %v5484
    %7805 = vmatpush1.bf16.msra.mxu0 %v5483
    %7806 = vmatprep.subr.bf16.mxu0 %v5486
    %7807 = vmatpush1.bf16.msra.mxu0 %v5485
    %7808 = vmatprep.subr.bf16.mxu0 %v5488
    %7809 = vmatpush1.bf16.msra.mxu0 %v5487
    %7810 = vmatprep.subr.bf16.mxu0 %v5490
    %7811 = vmatpush1.bf16.msra.mxu0 %v5489
    %7812 = vmatprep.subr.bf16.mxu0 %v5492
    %7813 = vmatpush1.bf16.msra.mxu0 %v5491
    %7814 = vmatprep.mubr.bf16.mxu0 %v1408
    %7815 = vmatmul.mubr.bf16.gmra.mrb[0].mxu0 %v1406
    %v7816 = vpop.f32.mrb[0].mxu0
    %v7817 = vadd.f32 %v7776, %v7816
    %v7818 = vpop.f32.mrb[0].mxu0
    %v7819 = vadd.f32 %v7778, %v7818
    %v7820 = vpop.f32.mrb[0].mxu0
    %v7821 = vpop.f32.mrb[0].mxu0
    %7822 = vdwg.mxu0
    %7823 = vmatprep.subr.bf16.mxu0 %v5494
    %7824 = vmatpush1.bf16.msra.mxu0 %v5493
    %7825 = vmatprep.subr.bf16.mxu0 %v5496
    %7826 = vmatpush1.bf16.msra.mxu0 %v5495
    %7827 = vmatprep.subr.bf16.mxu0 %v5498
    %7828 = vmatpush1.bf16.msra.mxu0 %v5497
    %7829 = vmatprep.subr.bf16.mxu0 %v5500
    %7830 = vmatpush1.bf16.msra.mxu0 %v5499
    %7831 = vmatprep.subr.bf16.mxu0 %v5502
    %7832 = vmatpush1.bf16.msra.mxu0 %v5501
    %7833 = vmatprep.subr.bf16.mxu0 %v5504
    %7834 = vmatpush1.bf16.msra.mxu0 %v5503
    %7835 = vmatprep.subr.bf16.mxu0 %v5506
    %7836 = vmatpush1.bf16.msra.mxu0 %v5505
    %7837 = vmatprep.subr.bf16.mxu0 %v5508
    %7838 = vmatpush1.bf16.msra.mxu0 %v5507
    %7839 = vmatprep.subr.bf16.mxu0 %v5510
    %7840 = vmatpush1.bf16.msra.mxu0 %v5509
    %7841 = vmatprep.subr.bf16.mxu0 %v5512
    %7842 = vmatpush1.bf16.msra.mxu0 %v5511
    %7843 = vmatprep.subr.bf16.mxu0 %v5514
    %7844 = vmatpush1.bf16.msra.mxu0 %v5513
    %7845 = vmatprep.subr.bf16.mxu0 %v5516
    %7846 = vmatpush1.bf16.msra.mxu0 %v5515
    %7847 = vmatprep.subr.bf16.mxu0 %v5518
    %7848 = vmatpush1.bf16.msra.mxu0 %v5517
    %7849 = vmatprep.subr.bf16.mxu0 %v5520
    %7850 = vmatpush1.bf16.msra.mxu0 %v5519
    %7851 = vmatprep.subr.bf16.mxu0 %v5522
    %7852 = vmatpush1.bf16.msra.mxu0 %v5521
    %7853 = vmatprep.subr.bf16.mxu0 %v5524
    %7854 = vmatpush1.bf16.msra.mxu0 %v5523
    %7855 = vmatprep.mubr.bf16.mxu0 %v1405
    %7856 = vmatmul.mubr.bf16.gmra.mrb[0].mxu0 %v1391
    %v7857 = vpop.f32.mrb[0].mxu0
    %v7858 = vadd.f32 %v7817, %v7857
    %v7859 = vpop.f32.mrb[0].mxu0
    %v7860 = vadd.f32 %v7819, %v7859
    %v7861 = vpop.f32.mrb[0].mxu0
    %v7862 = vpop.f32.mrb[0].mxu0
    %7863 = vdwg.mxu0
    %7864 = vmatprep.subr.bf16.mxu0 %v5526
    %7865 = vmatpush1.bf16.msra.mxu0 %v5525
    %7866 = vmatprep.subr.bf16.mxu0 %v5528
    %7867 = vmatpush1.bf16.msra.mxu0 %v5527
    %7868 = vmatprep.subr.bf16.mxu0 %v5530
    %7869 = vmatpush1.bf16.msra.mxu0 %v5529
    %7870 = vmatprep.subr.bf16.mxu0 %v5532
    %7871 = vmatpush1.bf16.msra.mxu0 %v5531
    %7872 = vmatprep.subr.bf16.mxu0 %v5534
    %7873 = vmatpush1.bf16.msra.mxu0 %v5533
    %7874 = vmatprep.subr.bf16.mxu0 %v5536
    %7875 = vmatpush1.bf16.msra.mxu0 %v5535
    %7876 = vmatprep.subr.bf16.mxu0 %v5538
    %7877 = vmatpush1.bf16.msra.mxu0 %v5537
    %7878 = vmatprep.subr.bf16.mxu0 %v5540
    %7879 = vmatpush1.bf16.msra.mxu0 %v5539
    %7880 = vmatprep.subr.bf16.mxu0 %v5542
    %7881 = vmatpush1.bf16.msra.mxu0 %v5541
    %7882 = vmatprep.subr.bf16.mxu0 %v5544
    %7883 = vmatpush1.bf16.msra.mxu0 %v5543
    %7884 = vmatprep.subr.bf16.mxu0 %v5546
    %7885 = vmatpush1.bf16.msra.mxu0 %v5545
    %7886 = vmatprep.subr.bf16.mxu0 %v5548
    %7887 = vmatpush1.bf16.msra.mxu0 %v5547
    %7888 = vmatprep.subr.bf16.mxu0 %v5550
    %7889 = vmatpush1.bf16.msra.mxu0 %v5549
    %7890 = vmatprep.subr.bf16.mxu0 %v5552
    %7891 = vmatpush1.bf16.msra.mxu0 %v5551
    %7892 = vmatprep.subr.bf16.mxu0 %v5554
    %7893 = vmatpush1.bf16.msra.mxu0 %v5553
    %7894 = vmatprep.subr.bf16.mxu0 %v5556
    %7895 = vmatpush1.bf16.msra.mxu0 %v5555
    %7896 = vmatprep.mubr.bf16.mxu0 %v1409
    %7897 = vmatmul.mubr.bf16.gmra.mrb[0].mxu0 %v1407
    %v7898 = vpop.f32.mrb[0].mxu0
    %v7899 = vadd.f32 %v7858, %v7898
    %v7900 = vpop.f32.mrb[0].mxu0
    %v7901 = vadd.f32 %v7860, %v7900
    %v7902 = vpop.f32.mrb[0].mxu0
    %v7903 = vpop.f32.mrb[0].mxu0
    %7904 = vdwg.mxu0
    %7905 = vmatprep.subr.bf16.mxu0 %v5558
    %7906 = vmatpush1.bf16.msra.mxu0 %v5557
    %7907 = vmatprep.subr.bf16.mxu0 %v5560
    %7908 = vmatpush1.bf16.msra.mxu0 %v5559
    %7909 = vmatprep.subr.bf16.mxu0 %v5562
    %7910 = vmatpush1.bf16.msra.mxu0 %v5561
    %7911 = vmatprep.subr.bf16.mxu0 %v5564
    %7912 = vmatpush1.bf16.msra.mxu0 %v5563
    %7913 = vmatprep.subr.bf16.mxu0 %v5566
    %7914 = vmatpush1.bf16.msra.mxu0 %v5565
    %7915 = vmatprep.subr.bf16.mxu0 %v5568
    %7916 = vmatpush1.bf16.msra.mxu0 %v5567
    %7917 = vmatprep.subr.bf16.mxu0 %v5570
    %7918 = vmatpush1.bf16.msra.mxu0 %v5569
    %7919 = vmatprep.subr.bf16.mxu0 %v5572
    %7920 = vmatpush1.bf16.msra.mxu0 %v5571
    %7921 = vmatprep.subr.bf16.mxu0 %v5574
    %7922 = vmatpush1.bf16.msra.mxu0 %v5573
    %7923 = vmatprep.subr.bf16.mxu0 %v5576
    %7924 = vmatpush1.bf16.msra.mxu0 %v5575
    %7925 = vmatprep.subr.bf16.mxu0 %v5578
    %7926 = vmatpush1.bf16.msra.mxu0 %v5577
    %7927 = vmatprep.subr.bf16.mxu0 %v5580
    %7928 = vmatpush1.bf16.msra.mxu0 %v5579
    %7929 = vmatprep.subr.bf16.mxu0 %v5582
    %7930 = vmatpush1.bf16.msra.mxu0 %v5581
    %7931 = vmatprep.subr.bf16.mxu0 %v5584
    %7932 = vmatpush1.bf16.msra.mxu0 %v5583
    %7933 = vmatprep.subr.bf16.mxu0 %v5586
    %7934 = vmatpush1.bf16.msra.mxu0 %v5585
    %7935 = vmatprep.subr.bf16.mxu0 %v5588
    %7936 = vmatpush1.bf16.msra.mxu0 %v5587
    %7937 = vmatprep.mubr.bf16.mxu0 %v1447
    %7938 = vmatmul.mubr.bf16.gmra.mrb[0].mxu0 %v1433
    %v7939 = vpop.f32.mrb[0].mxu0
    %v7940 = vadd.f32 %v7899, %v7939
    %v7941 = vpop.f32.mrb[0].mxu0
    %v7942 = vadd.f32 %v7901, %v7941
    %v7943 = vpop.f32.mrb[0].mxu0
    %v7944 = vpop.f32.mrb[0].mxu0
    %7945 = vdwg.mxu0
    %7946 = vmatprep.subr.bf16.mxu0 %v5590
    %7947 = vmatpush1.bf16.msra.mxu0 %v5589
    %7948 = vmatprep.subr.bf16.mxu0 %v5592
    %7949 = vmatpush1.bf16.msra.mxu0 %v5591
    %7950 = vmatprep.subr.bf16.mxu0 %v5594
    %7951 = vmatpush1.bf16.msra.mxu0 %v5593
    %7952 = vmatprep.subr.bf16.mxu0 %v5596
    %7953 = vmatpush1.bf16.msra.mxu0 %v5595
    %7954 = vmatprep.subr.bf16.mxu0 %v5598
    %7955 = vmatpush1.bf16.msra.mxu0 %v5597
    %7956 = vmatprep.subr.bf16.mxu0 %v5600
    %7957 = vmatpush1.bf16.msra.mxu0 %v5599
    %7958 = vmatprep.subr.bf16.mxu0 %v5602
    %7959 = vmatpush1.bf16.msra.mxu0 %v5601
    %7960 = vmatprep.subr.bf16.mxu0 %v5604
    %7961 = vmatpush1.bf16.msra.mxu0 %v5603
    %7962 = vmatprep.subr.bf16.mxu0 %v5606
    %7963 = vmatpush1.bf16.msra.mxu0 %v5605
    %7964 = vmatprep.subr.bf16.mxu0 %v5608
    %7965 = vmatpush1.bf16.msra.mxu0 %v5607
    %7966 = vmatprep.subr.bf16.mxu0 %v5610
    %7967 = vmatpush1.bf16.msra.mxu0 %v5609
    %7968 = vmatprep.subr.bf16.mxu0 %v5612
    %7969 = vmatpush1.bf16.msra.mxu0 %v5611
    %7970 = vmatprep.subr.bf16.mxu0 %v5614
    %7971 = vmatpush1.bf16.msra.mxu0 %v5613
    %7972 = vmatprep.subr.bf16.mxu0 %v5616
    %7973 = vmatpush1.bf16.msra.mxu0 %v5615
    %7974 = vmatprep.subr.bf16.mxu0 %v5618
    %7975 = vmatpush1.bf16.msra.mxu0 %v5617
    %7976 = vmatprep.subr.bf16.mxu0 %v5620
    %7977 = vmatpush1.bf16.msra.mxu0 %v5619
    %7978 = vmatprep.mubr.bf16.mxu0 %v1457
    %7979 = vmatmul.mubr.bf16.gmra.mrb[0].mxu0 %v1455
    %v7980 = vpop.f32.mrb[0].mxu0
    %v7981 = vadd.f32 %v7940, %v7980
    %v7982 = vpop.f32.mrb[0].mxu0
    %v7983 = vadd.f32 %v7942, %v7982
    %v7984 = vpop.f32.mrb[0].mxu0
    %v7985 = vpop.f32.mrb[0].mxu0
    %7986 = vdwg.mxu0
    %7987 = vmatprep.subr.bf16.mxu0 %v5622
    %7988 = vmatpush1.bf16.msra.mxu0 %v5621
    %7989 = vmatprep.subr.bf16.mxu0 %v5624
    %7990 = vmatpush1.bf16.msra.mxu0 %v5623
    %7991 = vmatprep.subr.bf16.mxu0 %v5626
    %7992 = vmatpush1.bf16.msra.mxu0 %v5625
    %7993 = vmatprep.subr.bf16.mxu0 %v5628
    %7994 = vmatpush1.bf16.msra.mxu0 %v5627
    %7995 = vmatprep.subr.bf16.mxu0 %v5630
    %7996 = vmatpush1.bf16.msra.mxu0 %v5629
    %7997 = vmatprep.subr.bf16.mxu0 %v5632
    %7998 = vmatpush1.bf16.msra.mxu0 %v5631
    %7999 = vmatprep.subr.bf16.mxu0 %v5634
    %8000 = vmatpush1.bf16.msra.mxu0 %v5633
    %8001 = vmatprep.subr.bf16.mxu0 %v5636
    %8002 = vmatpush1.bf16.msra.mxu0 %v5635
    %8003 = vmatprep.subr.bf16.mxu0 %v5638
    %8004 = vmatpush1.bf16.msra.mxu0 %v5637
    %8005 = vmatprep.subr.bf16.mxu0 %v5640
    %8006 = vmatpush1.bf16.msra.mxu0 %v5639
    %8007 = vmatprep.subr.bf16.mxu0 %v5642
    %8008 = vmatpush1.bf16.msra.mxu0 %v5641
    %8009 = vmatprep.subr.bf16.mxu0 %v5644
    %8010 = vmatpush1.bf16.msra.mxu0 %v5643
    %8011 = vmatprep.subr.bf16.mxu0 %v5646
    %8012 = vmatpush1.bf16.msra.mxu0 %v5645
    %8013 = vmatprep.subr.bf16.mxu0 %v5648
    %8014 = vmatpush1.bf16.msra.mxu0 %v5647
    %8015 = vmatprep.subr.bf16.mxu0 %v5650
    %8016 = vmatpush1.bf16.msra.mxu0 %v5649
    %8017 = vmatprep.subr.bf16.mxu0 %v5652
    %8018 = vmatpush1.bf16.msra.mxu0 %v5651
    %8019 = vmatprep.mubr.bf16.mxu0 %v1454
    %8020 = vmatmul.mubr.bf16.gmra.mrb[0].mxu0 %v1440
    %v8021 = vpop.f32.mrb[0].mxu0
    %v8022 = vadd.f32 %v7981, %v8021
    %v8023 = vpop.f32.mrb[0].mxu0
    %v8024 = vadd.f32 %v7983, %v8023
    %v8025 = vpop.f32.mrb[0].mxu0
    %v8026 = vpop.f32.mrb[0].mxu0
    %8027 = vdwg.mxu0
    %8028 = vmatprep.subr.bf16.mxu0 %v5654
    %8029 = vmatpush1.bf16.msra.mxu0 %v5653
    %8030 = vmatprep.subr.bf16.mxu0 %v5656
    %8031 = vmatpush1.bf16.msra.mxu0 %v5655
    %8032 = vmatprep.subr.bf16.mxu0 %v5658
    %8033 = vmatpush1.bf16.msra.mxu0 %v5657
    %8034 = vmatprep.subr.bf16.mxu0 %v5660
    %8035 = vmatpush1.bf16.msra.mxu0 %v5659
    %8036 = vmatprep.subr.bf16.mxu0 %v5662
    %8037 = vmatpush1.bf16.msra.mxu0 %v5661
    %8038 = vmatprep.subr.bf16.mxu0 %v5664
    %8039 = vmatpush1.bf16.msra.mxu0 %v5663
    %8040 = vmatprep.subr.bf16.mxu0 %v5666
    %8041 = vmatpush1.bf16.msra.mxu0 %v5665
    %8042 = vmatprep.subr.bf16.mxu0 %v5668
    %8043 = vmatpush1.bf16.msra.mxu0 %v5667
    %8044 = vmatprep.subr.bf16.mxu0 %v5670
    %8045 = vmatpush1.bf16.msra.mxu0 %v5669
    %8046 = vmatprep.subr.bf16.mxu0 %v5672
    %8047 = vmatpush1.bf16.msra.mxu0 %v5671
    %8048 = vmatprep.subr.bf16.mxu0 %v5674
    %8049 = vmatpush1.bf16.msra.mxu0 %v5673
    %8050 = vmatprep.subr.bf16.mxu0 %v5676
    %8051 = vmatpush1.bf16.msra.mxu0 %v5675
    %8052 = vmatprep.subr.bf16.mxu0 %v5678
    %8053 = vmatpush1.bf16.msra.mxu0 %v5677
    %8054 = vmatprep.subr.bf16.mxu0 %v5680
    %8055 = vmatpush1.bf16.msra.mxu0 %v5679
    %8056 = vmatprep.subr.bf16.mxu0 %v5682
    %8057 = vmatpush1.bf16.msra.mxu0 %v5681
    %8058 = vmatprep.subr.bf16.mxu0 %v5684
    %8059 = vmatpush1.bf16.msra.mxu0 %v5683
    %8060 = vmatprep.mubr.bf16.mxu0 %v1458
    %8061 = vmatmul.mubr.bf16.gmra.mrb[0].mxu0 %v1456
    %v8062 = vpop.f32.mrb[0].mxu0
    %v8063 = vadd.f32 %v8022, %v8062
    %v8064 = vpop.f32.mrb[0].mxu0
    %v8065 = vadd.f32 %v8024, %v8064
    %v8066 = vpop.f32.mrb[0].mxu0
    %v8067 = vpop.f32.mrb[0].mxu0
    %8068 = vdwg.mxu0
    %8069 = vmatprep.subr.bf16.mxu0 %v5686
    %8070 = vmatpush1.bf16.msra.mxu0 %v5685
    %8071 = vmatprep.subr.bf16.mxu0 %v5688
    %8072 = vmatpush1.bf16.msra.mxu0 %v5687
    %8073 = vmatprep.subr.bf16.mxu0 %v5690
    %8074 = vmatpush1.bf16.msra.mxu0 %v5689
    %8075 = vmatprep.subr.bf16.mxu0 %v5692
    %8076 = vmatpush1.bf16.msra.mxu0 %v5691
    %8077 = vmatprep.subr.bf16.mxu0 %v5694
    %8078 = vmatpush1.bf16.msra.mxu0 %v5693
    %8079 = vmatprep.subr.bf16.mxu0 %v5696
    %8080 = vmatpush1.bf16.msra.mxu0 %v5695
    %8081 = vmatprep.subr.bf16.mxu0 %v5698
    %8082 = vmatpush1.bf16.msra.mxu0 %v5697
    %8083 = vmatprep.subr.bf16.mxu0 %v5700
    %8084 = vmatpush1.bf16.msra.mxu0 %v5699
    %8085 = vmatprep.subr.bf16.mxu0 %v5702
    %8086 = vmatpush1.bf16.msra.mxu0 %v5701
    %8087 = vmatprep.subr.bf16.mxu0 %v5704
    %8088 = vmatpush1.bf16.msra.mxu0 %v5703
    %8089 = vmatprep.subr.bf16.mxu0 %v5706
    %8090 = vmatpush1.bf16.msra.mxu0 %v5705
    %8091 = vmatprep.subr.bf16.mxu0 %v5708
    %8092 = vmatpush1.bf16.msra.mxu0 %v5707
    %8093 = vmatprep.subr.bf16.mxu0 %v5710
    %8094 = vmatpush1.bf16.msra.mxu0 %v5709
    %8095 = vmatprep.subr.bf16.mxu0 %v5712
    %8096 = vmatpush1.bf16.msra.mxu0 %v5711
    %8097 = vmatprep.subr.bf16.mxu0 %v5714
    %8098 = vmatpush1.bf16.msra.mxu0 %v5713
    %8099 = vmatprep.subr.bf16.mxu0 %v5716
    %8100 = vmatpush1.bf16.msra.mxu0 %v5715
    %8101 = vmatprep.mubr.bf16.mxu0 %v1496
    %8102 = vmatmul.mubr.bf16.gmra.mrb[0].mxu0 %v1482
    %v8103 = vpop.f32.mrb[0].mxu0
    %v8104 = vadd.f32 %v8063, %v8103
    %v8105 = vpop.f32.mrb[0].mxu0
    %v8106 = vadd.f32 %v8065, %v8105
    %v8107 = vpop.f32.mrb[0].mxu0
    %v8108 = vpop.f32.mrb[0].mxu0
    %8109 = vdwg.mxu0
    %8110 = vmatprep.subr.bf16.mxu0 %v5718
    %8111 = vmatpush1.bf16.msra.mxu0 %v5717
    %8112 = vmatprep.subr.bf16.mxu0 %v5720
    %8113 = vmatpush1.bf16.msra.mxu0 %v5719
    %8114 = vmatprep.subr.bf16.mxu0 %v5722
    %8115 = vmatpush1.bf16.msra.mxu0 %v5721
    %8116 = vmatprep.subr.bf16.mxu0 %v5724
    %8117 = vmatpush1.bf16.msra.mxu0 %v5723
    %8118 = vmatprep.subr.bf16.mxu0 %v5726
    %8119 = vmatpush1.bf16.msra.mxu0 %v5725
    %8120 = vmatprep.subr.bf16.mxu0 %v5728
    %8121 = vmatpush1.bf16.msra.mxu0 %v5727
    %8122 = vmatprep.subr.bf16.mxu0 %v5730
    %8123 = vmatpush1.bf16.msra.mxu0 %v5729
    %8124 = vmatprep.subr.bf16.mxu0 %v5732
    %8125 = vmatpush1.bf16.msra.mxu0 %v5731
    %8126 = vmatprep.subr.bf16.mxu0 %v5734
    %8127 = vmatpush1.bf16.msra.mxu0 %v5733
    %8128 = vmatprep.subr.bf16.mxu0 %v5736
    %8129 = vmatpush1.bf16.msra.mxu0 %v5735
    %8130 = vmatprep.subr.bf16.mxu0 %v5738
    %8131 = vmatpush1.bf16.msra.mxu0 %v5737
    %8132 = vmatprep.subr.bf16.mxu0 %v5740
    %8133 = vmatpush1.bf16.msra.mxu0 %v5739
    %8134 = vmatprep.subr.bf16.mxu0 %v5742
    %8135 = vmatpush1.bf16.msra.mxu0 %v5741
    %8136 = vmatprep.subr.bf16.mxu0 %v5744
    %8137 = vmatpush1.bf16.msra.mxu0 %v5743
    %8138 = vmatprep.subr.bf16.mxu0 %v5746
    %8139 = vmatpush1.bf16.msra.mxu0 %v5745
    %8140 = vmatprep.subr.bf16.mxu0 %v5748
    %8141 = vmatpush1.bf16.msra.mxu0 %v5747
    %8142 = vmatprep.mubr.bf16.mxu0 %v1506
    %8143 = vmatmul.mubr.bf16.gmra.mrb[0].mxu0 %v1504
    %v8144 = vpop.f32.mrb[0].mxu0
    %v8145 = vadd.f32 %v8104, %v8144
    %v8146 = vpop.f32.mrb[0].mxu0
    %v8147 = vadd.f32 %v8106, %v8146
    %v8148 = vpop.f32.mrb[0].mxu0
    %v8149 = vpop.f32.mrb[0].mxu0
    %8150 = vdwg.mxu0
    %8151 = vmatprep.subr.bf16.mxu0 %v5750
    %8152 = vmatpush1.bf16.msra.mxu0 %v5749
    %8153 = vmatprep.subr.bf16.mxu0 %v5752
    %8154 = vmatpush1.bf16.msra.mxu0 %v5751
    %8155 = vmatprep.subr.bf16.mxu0 %v5754
    %8156 = vmatpush1.bf16.msra.mxu0 %v5753
    %8157 = vmatprep.subr.bf16.mxu0 %v5756
    %8158 = vmatpush1.bf16.msra.mxu0 %v5755
    %8159 = vmatprep.subr.bf16.mxu0 %v5758
    %8160 = vmatpush1.bf16.msra.mxu0 %v5757
    %8161 = vmatprep.subr.bf16.mxu0 %v5760
    %8162 = vmatpush1.bf16.msra.mxu0 %v5759
    %8163 = vmatprep.subr.bf16.mxu0 %v5762
    %8164 = vmatpush1.bf16.msra.mxu0 %v5761
    %8165 = vmatprep.subr.bf16.mxu0 %v5764
    %8166 = vmatpush1.bf16.msra.mxu0 %v5763
    %8167 = vmatprep.subr.bf16.mxu0 %v5766
    %8168 = vmatpush1.bf16.msra.mxu0 %v5765
    %8169 = vmatprep.subr.bf16.mxu0 %v5768
    %8170 = vmatpush1.bf16.msra.mxu0 %v5767
    %8171 = vmatprep.subr.bf16.mxu0 %v5770
    %8172 = vmatpush1.bf16.msra.mxu0 %v5769
    %8173 = vmatprep.subr.bf16.mxu0 %v5772
    %8174 = vmatpush1.bf16.msra.mxu0 %v5771
    %8175 = vmatprep.subr.bf16.mxu0 %v5774
    %8176 = vmatpush1.bf16.msra.mxu0 %v5773
    %8177 = vmatprep.subr.bf16.mxu0 %v5776
    %8178 = vmatpush1.bf16.msra.mxu0 %v5775
    %8179 = vmatprep.subr.bf16.mxu0 %v5778
    %8180 = vmatpush1.bf16.msra.mxu0 %v5777
    %8181 = vmatprep.subr.bf16.mxu0 %v5780
    %8182 = vmatpush1.bf16.msra.mxu0 %v5779
    %8183 = vmatprep.mubr.bf16.mxu0 %v1503
    %8184 = vmatmul.mubr.bf16.gmra.mrb[0].mxu0 %v1489
    %v8185 = vpop.f32.mrb[0].mxu0
    %v8186 = vadd.f32 %v8145, %v8185
    %v8187 = vpop.f32.mrb[0].mxu0
    %v8188 = vadd.f32 %v8147, %v8187
    %v8189 = vpop.f32.mrb[0].mxu0
    %v8190 = vpop.f32.mrb[0].mxu0
    %8191 = vdwg.mxu0
    %8192 = vmatprep.subr.bf16.mxu0 %v5782
    %8193 = vmatpush1.bf16.msra.mxu0 %v5781
    %8194 = vmatprep.subr.bf16.mxu0 %v5784
    %8195 = vmatpush1.bf16.msra.mxu0 %v5783
    %8196 = vmatprep.subr.bf16.mxu0 %v5786
    %8197 = vmatpush1.bf16.msra.mxu0 %v5785
    %8198 = vmatprep.subr.bf16.mxu0 %v5788
    %8199 = vmatpush1.bf16.msra.mxu0 %v5787
    %8200 = vmatprep.subr.bf16.mxu0 %v5790
    %8201 = vmatpush1.bf16.msra.mxu0 %v5789
    %8202 = vmatprep.subr.bf16.mxu0 %v5792
    %8203 = vmatpush1.bf16.msra.mxu0 %v5791
    %8204 = vmatprep.subr.bf16.mxu0 %v5794
    %8205 = vmatpush1.bf16.msra.mxu0 %v5793
    %8206 = vmatprep.subr.bf16.mxu0 %v5796
    %8207 = vmatpush1.bf16.msra.mxu0 %v5795
    %8208 = vmatprep.subr.bf16.mxu0 %v5798
    %8209 = vmatpush1.bf16.msra.mxu0 %v5797
    %8210 = vmatprep.subr.bf16.mxu0 %v5800
    %8211 = vmatpush1.bf16.msra.mxu0 %v5799
    %8212 = vmatprep.subr.bf16.mxu0 %v5802
    %8213 = vmatpush1.bf16.msra.mxu0 %v5801
    %8214 = vmatprep.subr.bf16.mxu0 %v5804
    %8215 = vmatpush1.bf16.msra.mxu0 %v5803
    %8216 = vmatprep.subr.bf16.mxu0 %v5806
    %8217 = vmatpush1.bf16.msra.mxu0 %v5805
    %8218 = vmatprep.subr.bf16.mxu0 %v5808
    %8219 = vmatpush1.bf16.msra.mxu0 %v5807
    %8220 = vmatprep.subr.bf16.mxu0 %v5810
    %8221 = vmatpush1.bf16.msra.mxu0 %v5809
    %8222 = vmatprep.subr.bf16.mxu0 %v5812
    %8223 = vmatpush1.bf16.msra.mxu0 %v5811
    %8224 = vmatprep.mubr.bf16.mxu0 %v1507
    %8225 = vmatmul.mubr.bf16.gmra.mrb[0].mxu0 %v1505
    %v8226 = vpop.f32.mrb[0].mxu0
    %v8227 = vadd.f32 %v8186, %v8226
    %v8228 = vpop.f32.mrb[0].mxu0
    %v8229 = vadd.f32 %v8188, %v8228
    %v8230 = vpop.f32.mrb[0].mxu0
    %v8231 = vpop.f32.mrb[0].mxu0
    %8232 = vdwg.mxu0
    %8233 = vmatprep.subr.bf16.mxu0 %v5814
    %8234 = vmatpush1.bf16.msra.mxu0 %v5813
    %8235 = vmatprep.subr.bf16.mxu0 %v5816
    %8236 = vmatpush1.bf16.msra.mxu0 %v5815
    %8237 = vmatprep.subr.bf16.mxu0 %v5818
    %8238 = vmatpush1.bf16.msra.mxu0 %v5817
    %8239 = vmatprep.subr.bf16.mxu0 %v5820
    %8240 = vmatpush1.bf16.msra.mxu0 %v5819
    %8241 = vmatprep.subr.bf16.mxu0 %v5822
    %8242 = vmatpush1.bf16.msra.mxu0 %v5821
    %8243 = vmatprep.subr.bf16.mxu0 %v5824
    %8244 = vmatpush1.bf16.msra.mxu0 %v5823
    %8245 = vmatprep.subr.bf16.mxu0 %v5826
    %8246 = vmatpush1.bf16.msra.mxu0 %v5825
    %8247 = vmatprep.subr.bf16.mxu0 %v5828
    %8248 = vmatpush1.bf16.msra.mxu0 %v5827
    %8249 = vmatprep.subr.bf16.mxu0 %v5830
    %8250 = vmatpush1.bf16.msra.mxu0 %v5829
    %8251 = vmatprep.subr.bf16.mxu0 %v5832
    %8252 = vmatpush1.bf16.msra.mxu0 %v5831
    %8253 = vmatprep.subr.bf16.mxu0 %v5834
    %8254 = vmatpush1.bf16.msra.mxu0 %v5833
    %8255 = vmatprep.subr.bf16.mxu0 %v5836
    %8256 = vmatpush1.bf16.msra.mxu0 %v5835
    %8257 = vmatprep.subr.bf16.mxu0 %v5838
    %8258 = vmatpush1.bf16.msra.mxu0 %v5837
    %8259 = vmatprep.subr.bf16.mxu0 %v5840
    %8260 = vmatpush1.bf16.msra.mxu0 %v5839
    %8261 = vmatprep.subr.bf16.mxu0 %v5842
    %8262 = vmatpush1.bf16.msra.mxu0 %v5841
    %8263 = vmatprep.subr.bf16.mxu0 %v5844
    %8264 = vmatpush1.bf16.msra.mxu0 %v5843
    %8265 = vmatprep.mubr.bf16.mxu0 %v1529
    %8266 = vmatmul.mubr.bf16.gmra.mrb[0].mxu0 %v1522
    %v8267 = vpop.f32.mrb[0].mxu0
    %v8268 = vadd.f32 %v8227, %v8267
    %v8269 = vpop.f32.mrb[0].mxu0
    %v8270 = vadd.f32 %v8229, %v8269
    %v8271 = vpop.f32.mrb[0].mxu0
    %v8272 = vpop.f32.mrb[0].mxu0
    %8273 = vdwg.mxu0
    %8274 = vmatprep.subr.bf16.mxu0 %v5846
    %8275 = vmatpush1.bf16.msra.mxu0 %v5845
    %8276 = vmatprep.subr.bf16.mxu0 %v5848
    %8277 = vmatpush1.bf16.msra.mxu0 %v5847
    %8278 = vmatprep.subr.bf16.mxu0 %v5850
    %8279 = vmatpush1.bf16.msra.mxu0 %v5849
    %8280 = vmatprep.subr.bf16.mxu0 %v5852
    %8281 = vmatpush1.bf16.msra.mxu0 %v5851
    %8282 = vmatprep.subr.bf16.mxu0 0
    %8283 = vmatpush1.bf16.msra.mxu0 0
    %8284 = vmatprep.subr.bf16.mxu0 0
    %8285 = vmatpush1.bf16.msra.mxu0 0
    %8286 = vmatprep.subr.bf16.mxu0 0
    %8287 = vmatpush1.bf16.msra.mxu0 0
    %8288 = vmatprep.subr.bf16.mxu0 0
    %8289 = vmatpush1.bf16.msra.mxu0 0
    %8290 = vmatprep.subr.bf16.mxu0 0
    %8291 = vmatpush1.bf16.msra.mxu0 0
    %8292 = vmatprep.subr.bf16.mxu0 0
    %8293 = vmatpush1.bf16.msra.mxu0 0
    %8294 = vmatprep.subr.bf16.mxu0 0
    %8295 = vmatpush1.bf16.msra.mxu0 0
    %8296 = vmatprep.subr.bf16.mxu0 0
    %8297 = vmatpush1.bf16.msra.mxu0 0
    %8298 = vmatprep.subr.bf16.mxu0 0
    %8299 = vmatpush1.bf16.msra.mxu0 0
    %8300 = vmatprep.subr.bf16.mxu0 0
    %8301 = vmatpush1.bf16.msra.mxu0 0
    %8302 = vmatprep.subr.bf16.mxu0 0
    %8303 = vmatpush1.bf16.msra.mxu0 0
    %8304 = vmatprep.subr.bf16.mxu0 0
    %8305 = vmatpush1.bf16.msra.mxu0 0
    %8306 = vmatprep.mubr.bf16.mxu0 0
    %8307 = vmatmul.mubr.bf16.gmra.mrb[0].mxu0 %v6919
    %v8308 = vpop.f32.mrb[0].mxu0
    %v8309 = vadd.f32 %v8268, %v8308
    %v8310 = vpop.f32.mrb[0].mxu0
    %v8311 = vadd.f32 %v8270, %v8310
    %v8312 = vpop.f32.mrb[0].mxu0
    %v8313 = vpop.f32.mrb[0].mxu0
    %8314 = vdwg.mxu0
    %v8315 = vmax.f32 %v8309, 0.0
    %v8316 = vmax.f32 %v8311, 0.0
    %v8317 = vld [vmem:[%s3] sm:$0xff]
    %v8318 = vld [vmem:[%s3 + $0x8] sm:$0xff]
    %v8319 = vld [vmem:[%s3 + $0x10] sm:$0xff]
    %v8320 = vld [vmem:[%s3 + $0x18] sm:$0xff]
    %v8321 = vld [vmem:[%s3 + $0x20] sm:$0xff]
    %v8322 = vld [vmem:[%s3 + $0x28] sm:$0xff]
    %v8323 = vld [vmem:[%s3 + $0x30] sm:$0xff]
    %v8324 = vld [vmem:[%s3 + $0x38] sm:$0xff]
    %v8325 = vld [vmem:[%s3 + $0x40] sm:$0xff]
    %v8326 = vld [vmem:[%s3 + $0x48] sm:$0xff]
    %v8327 = vld [vmem:[%s3 + $0x50] sm:$0xff]
    %v8328 = vld [vmem:[%s3 + $0x58] sm:$0xff]
    %v8329 = vld [vmem:[%s3 + $0x60] sm:$0xff]
    %v8330 = vld [vmem:[%s3 + $0x68] sm:$0xff]
    %v8331 = vld [vmem:[%s3 + $0x70] sm:$0xff]
    %v8332 = vld [vmem:[%s3 + $0x78] sm:$0xff]
    %v8333 = vld [vmem:[%s3 + $0x80] sm:$0xff]
    %v8334 = vld [vmem:[%s3 + $0x88] sm:$0xff]
    %v8335 = vld [vmem:[%s3 + $0x90] sm:$0xff]
    %v8336 = vld [vmem:[%s3 + $0x98] sm:$0xff]
    %v8337 = vld [vmem:[%s3 + $0xa0] sm:$0xff]
    %v8338 = vld [vmem:[%s3 + $0xa8] sm:$0xff]
    %v8339 = vld [vmem:[%s3 + $0xb0] sm:$0xff]
    %v8340 = vld [vmem:[%s3 + $0xb8] sm:$0xff]
    %v8341 = vld [vmem:[%s3 + $0xc0] sm:$0xff]
    %v8342 = vld [vmem:[%s4] sm:$0x1]
    %v8344 = vlaneseq
    %v8345 = vshrl.u32 %v8344, 7
    %v8346 = vsub.s32 0, %v8345
    %v8347 = vrot.slane %v8342, %v8346
    %vm8349 = vcmask 588800
    %v8351 = vsel %vm8349, %v8316, 0
    %8353 = vmatprep.subr.mxu0 0.0
    %8354 = vmatpush1.msra.mxu0 %v8317
    %8355 = vmatprep.subr.mxu0 0.0
    %8356 = vmatpush1.msra.mxu0 %v8318
    %8357 = vmatprep.subr.mxu0 0.0
    %8358 = vmatpush1.msra.mxu0 %v8319
    %8359 = vmatprep.subr.mxu0 0.0
    %8360 = vmatpush1.msra.mxu0 %v8320
    %8361 = vmatprep.subr.mxu0 0.0
    %8362 = vmatpush1.msra.mxu0 %v8321
    %8363 = vmatprep.subr.mxu0 0.0
    %8364 = vmatpush1.msra.mxu0 %v8322
    %8365 = vmatprep.subr.mxu0 0.0
    %8366 = vmatpush1.msra.mxu0 %v8323
    %8367 = vmatprep.subr.mxu0 0.0
    %8368 = vmatpush1.msra.mxu0 %v8324
    %8369 = vmatprep.subr.mxu0 0.0
    %8370 = vmatpush1.msra.mxu0 %v8325
    %8371 = vmatprep.subr.mxu0 0.0
    %8372 = vmatpush1.msra.mxu0 %v8326
    %8373 = vmatprep.subr.mxu0 0.0
    %8374 = vmatpush1.msra.mxu0 %v8327
    %8375 = vmatprep.subr.mxu0 0.0
    %8376 = vmatpush1.msra.mxu0 %v8328
    %8377 = vmatprep.subr.mxu0 0.0
    %8378 = vmatpush1.msra.mxu0 %v8329
    %8379 = vmatprep.subr.mxu0 0.0
    %8380 = vmatpush1.msra.mxu0 %v8330
    %8381 = vmatprep.subr.mxu0 0.0
    %8382 = vmatpush1.msra.mxu0 %v8331
    %8383 = vmatprep.subr.mxu0 0.0
    %8384 = vmatpush1.msra.mxu0 %v8332
    %8385 = vmatprep.subr.mxu0 0.0
    %8386 = vmatpush1.msra.mxu0 %v8333
    %8387 = vmatprep.subr.mxu0 0.0
    %8388 = vmatpush1.msra.mxu0 %v8334
    %8389 = vmatprep.subr.mxu0 0.0
    %8390 = vmatpush1.msra.mxu0 %v8335
    %8391 = vmatprep.subr.mxu0 0.0
    %8392 = vmatpush1.msra.mxu0 %v8336
    %8393 = vmatprep.subr.mxu0 0.0
    %8394 = vmatpush1.msra.mxu0 %v8337
    %8395 = vmatprep.subr.mxu0 0.0
    %8396 = vmatpush1.msra.mxu0 %v8338
    %8397 = vmatprep.subr.mxu0 0.0
    %8398 = vmatpush1.msra.mxu0 %v8339
    %8399 = vmatprep.subr.mxu0 0.0
    %8400 = vmatpush1.msra.mxu0 %v8340
    %8401 = vmatprep.subr.mxu0 0.0
    %8402 = vmatpush1.msra.mxu0 %v8341
    %8403 = vmatprep.subr.mxu0 0.0
    %8404 = vmatpush1.msra.mxu0 0.0
    %8405 = vmatprep.subr.mxu0 0.0
    %8406 = vmatpush1.msra.mxu0 0.0
    %8407 = vmatprep.subr.mxu0 0.0
    %8408 = vmatpush1.msra.mxu0 0.0
    %8409 = vmatprep.subr.mxu0 0.0
    %8410 = vmatpush1.msra.mxu0 0.0
    %8411 = vmatprep.subr.mxu0 0.0
    %8412 = vmatpush1.msra.mxu0 0.0
    %8413 = vmatprep.subr.mxu0 0.0
    %8414 = vmatpush1.msra.mxu0 0.0
    %8415 = vmatprep.subr.mxu0 0.0
    %8416 = vmatpush1.msra.mxu0 0.0
    %8417 = vmatprep.mubr.f32.mxu0 %v8351
    %8418 = vmatmul.mubr.f32.gmra.mrb[0].mxu0 %v8315
    %v8419 = vpop.f32.mrb[0].mxu0
    %v8420 = vadd.f32 %v8347, %v8419
    %v8421 = vpop.f32.mrb[0].mxu0
    %8422 = vdwg.mxu0
    %vm8423 = vcmask 33792
    %8424 = vst.msk [vmem:[#allocation2] sm:$0x3] %vm8423, %v8420
    // Predicated region
    $region22: #{conv_nn_forward.5} parent=1 // pred_check
      _
    $region23: #{conv_nn_forward.5} parent=1 // pred_check_branch
      %8426 = sbr.rel (0) target = $region25
    $region24: #{conv_nn_forward.5} parent=1 // pred_region
      %s8428 = ssub.s32 32, 32
      %8429 = vsyncadd [#allocation3], %s8428
      %s8431 = sshll.u32 [#allocation2], 4
      %s8432 = int_to_ptr.vmem [resolvable:$true] %s8431
      %8434 = dma.vmem_to_hbm [thread:$0]  %s8432, 32, %s5, [#allocation3]
    $region25: #{conv_nn_forward.5} parent=1 // pred_fallthru
      _
    // Predicated region
    $region26: #{conv_nn_forward.5} parent=1 // pred_check
      _
    $region27: #{conv_nn_forward.5} parent=1 // pred_check_branch
      %8436 = sbr.rel (0) target = $region29
    $region28: #{conv_nn_forward.5} parent=1 // pred_region
      %8437 = dma.done [#allocation3], 32
    $region29: #{conv_nn_forward.5} parent=1 // pred_fallthru
      _
    %8438 = vsyncpa [#allocation3], 1

</llo_original>
